<compile_context>
chip_gen: v6e
topology: v6e:2x2x1
jax: 0.10.0
libtpu: 0.0.40
codegen_flags: <defaults>
</compile_context>

<pallas_src>
import functools

import jax
import jax.numpy as jnp
from jax.experimental import pallas as pl
from jax.experimental.pallas import tpu as pltpu


def _pick_chunk_rows(R, K, Cout):
    """Largest row-chunk that divides R, is 16-aligned and keeps live data small."""
    best = None
    for cr in range(16, R + 1, 16):
        if R % cr == 0 and cr * K * 4 <= 128 * 1024 and cr * Cout * 4 <= 64 * 1024:
            best = cr
    return best if best is not None else R


def _stage(xpad, w_ref, gamma_ref, beta_ref, slab, y, z, store_fn, *,
           N, H, W, Cinp, Cout, chunk_rows, eps):
    """One Conv3x3(same) + BN(batch stats) + ReLU + MaxPool2x2 stage, fully in VMEM.

    xpad  : ref, (>= N*Hp*Wp + 2, Cinp) zero-padded input, rows (n, h', w')
    w_ref : ref, (9*Cinp, Cout) bf16 weight slab, tap order t = dy*3 + dx
    slab  : scratch (N*H*Wp, 9*Cinp) f32 im2col slab (extended-w layout)
    y     : scratch (N*H*Wp, Cout) f32 conv output
    z     : scratch (N*H*Wp//2, Cout) f32 W-pooled, BN+ReLU'd output
    store_fn(n, ho, strip): writes the pooled (Wout, Cout) row strip to its destination.
    """
    Hp, Wp = H + 2, W + 2
    Rn = H * Wp                     # extended rows per image
    R = N * Rn
    half = Rn // 2
    Hout, Wout, Wh = H // 2, W // 2, Wp // 2

    # --- im2col slab: 9 contiguous row copies per image (tap offset = dy*Wp + dx) -------
    for n in range(N):
        for t in range(9):
            dy, dx = divmod(t, 3)
            src = n * Hp * Wp + dy * Wp + dx
            slab[pl.ds(n * Rn, Rn), t * Cinp:(t + 1) * Cinp] = xpad[pl.ds(src, Rn), :]

    # --- conv = one K=9*Cin matmul per row chunk; one-pass masked BN statistics ---------
    w = w_ref[...]                                           # (9*Cinp, Cout) bf16
    s1 = jnp.zeros((1, Cout), jnp.float32)
    s2 = jnp.zeros((1, Cout), jnp.float32)
    for c0 in range(0, R, chunk_rows):
        cr = min(chunk_rows, R - c0)
        yb = jnp.dot(slab[pl.ds(c0, cr), :].astype(jnp.bfloat16), w,
                     preferred_element_type=jnp.float32)
        y[pl.ds(c0, cr), :] = yb
        rows = c0 + jax.lax.broadcasted_iota(jnp.int32, (cr, 1), 0)
        valid = (rows % Wp) < W                              # mask the 2 junk columns/row
        ybm = jnp.where(valid, yb, 0.0)
        s1 = s1 + jnp.sum(ybm, axis=0, keepdims=True)
        s2 = s2 + jnp.sum(ybm * yb, axis=0, keepdims=True)

    inv_cnt = 1.0 / float(N * H * W)
    mean = s1 * inv_cnt
    var = s2 * inv_cnt - mean * mean                         # biased (train-mode) variance
    scale = gamma_ref[...] * jax.lax.rsqrt(var + eps)
    shift = beta_ref[...] - mean * scale

    # --- BN + ReLU + W-direction max-pool: one stride-2 load pair per image -------------
    for n in range(N):
        ev = y[pl.ds(n * Rn, half, stride=2), :]
        od = y[pl.ds(n * Rn + 1, half, stride=2), :]
        ze = jnp.maximum(ev * scale + shift, 0.0)
        zo = jnp.maximum(od * scale + shift, 0.0)
        z[pl.ds(n * half, half), :] = jnp.maximum(ze, zo)

    # --- H-direction max-pool; write strips straight to their destination ---------------
    for n in range(N):
        for ho in range(Hout):
            za = z[pl.ds(n * half + (2 * ho) * Wh, Wh), :]
            zb = z[pl.ds(n * half + (2 * ho + 1) * Wh, Wh), :]
            store_fn(n, ho, jnp.maximum(za, zb)[:Wout, :])   # drop the junk wo' column


def _encode_kernel(xpad1, w1, gamma1, beta1, w2, gamma2, beta2,
                   o_ref,
                   slab1, y1, z1, xpad2, slab2, y2, z2,
                   *, cfg1, cfg2, eps):
    N, H1, W1, Cinp1, C1, ch1 = cfg1
    _, H2, W2, Cinp2, C2, ch2 = cfg2
    Hp2, Wp2 = H2 + 2, W2 + 2
    Wout1 = W1 // 2
    Hout2, Wout2 = H2 // 2, W2 // 2

    # Zero the padded stage-2 input once ('same' border + alignment tail must be 0).
    xpad2[...] = jnp.zeros(xpad2.shape, xpad2.dtype)

    def store1(n, ho, strip):                  # (Wout1, C1) -> interior of padded stage-2 input
        dst = n * Hp2 * Wp2 + (ho + 1) * Wp2 + 1
        xpad2[pl.ds(dst, Wout1), :] = strip

    _stage(xpad1, w1, gamma1, beta1, slab1, y1, z1, store1,
           N=N, H=H1, W=W1, Cinp=Cinp1, Cout=C1, chunk_rows=ch1, eps=eps)

    def store2(n, ho, strip):                  # (Wout2, C2) -> final output rows
        o_ref[pl.ds((n * Hout2 + ho) * Wout2, Wout2), :] = strip

    _stage(xpad2, w2, gamma2, beta2, slab2, y2, z2, store2,
           N=N, H=H2, W=W2, Cinp=Cinp2, Cout=C2, chunk_rows=ch2, eps=eps)


def encode_module_forward(x_nchw, params):
    """EncodeModule.forward: x (N,1,H,W) -> (N, channel_num, H//4, W//4)."""
    (w1, _b1, g1, bt1), (w2, _b2, g2, bt2) = params   # conv biases cancel in train-mode BN
    N, Cin, H, W = x_nchw.shape
    assert H % 4 == 0 and W % 4 == 0, "two 2x2 pools need H, W divisible by 4"
    C1 = w1.shape[3]
    C2 = w2.shape[3]
    H2, W2 = H // 2, W // 2
    Ho, Wo = H // 4, W // 4
    Cinp1 = max(8, ((Cin + 7) // 8) * 8)
    Hp1, Wp1 = H + 2, W + 2
    Hp2, Wp2 = H2 + 2, W2 + 2
    eps = 1e-5

    # Stage-1 padded input: channel-last, Cin zero-padded to 8, flattened rows, +8 tail rows.
    x = jnp.transpose(x_nchw, (0, 2, 3, 1)).astype(jnp.float32)        # NCHW -> NHWC
    x = jnp.pad(x, ((0, 0), (1, 1), (1, 1), (0, Cinp1 - Cin)))
    xflat = jnp.pad(x.reshape(N * Hp1 * Wp1, Cinp1), ((0, 8), (0, 0)))

    # Weight slabs (9*Cin, Cout), tap order t = dy*3 + dx; bf16 for the MXU fast path.
    # (PyTorch OIHW weights map to this HWIO layout via w.transpose(2, 3, 1, 0).)
    w1s = jnp.pad(w1, ((0, 0), (0, 0), (0, Cinp1 - Cin), (0, 0)))
    w1s = w1s.reshape(9 * Cinp1, C1).astype(jnp.bfloat16)
    w2s = w2.reshape(9 * C1, C2).astype(jnp.bfloat16)
    g1r = g1.reshape(1, C1).astype(jnp.float32)
    b1r = bt1.reshape(1, C1).astype(jnp.float32)
    g2r = g2.reshape(1, C2).astype(jnp.float32)
    b2r = bt2.reshape(1, C2).astype(jnp.float32)

    R1, K1 = N * H * Wp1, 9 * Cinp1
    R2, K2 = N * H2 * Wp2, 9 * C1
    cfg1 = (N, H, W, Cinp1, C1, _pick_chunk_rows(R1, K1, C1))
    cfg2 = (N, H2, W2, C1, C2, _pick_chunk_rows(R2, K2, C2))

    kernel = functools.partial(_encode_kernel, cfg1=cfg1, cfg2=cfg2, eps=eps)
    out2d = pl.pallas_call(
        kernel,
        out_shape=jax.ShapeDtypeStruct((N * Ho * Wo, C2), jnp.float32),
        in_specs=[pl.BlockSpec(memory_space=pltpu.MemorySpace.VMEM)] * 7,
        out_specs=pl.BlockSpec(memory_space=pltpu.MemorySpace.VMEM),
        scratch_shapes=[
            pltpu.VMEM((R1, K1), jnp.float32),                   # slab1 (im2col, stage 1)
            pltpu.VMEM((R1, C1), jnp.float32),                   # y1    (conv1 out)
            pltpu.VMEM((R1 // 2, C1), jnp.float32),              # z1    (W-pooled stage 1)
            pltpu.VMEM((N * Hp2 * Wp2 + 8, C1), jnp.float32),    # xpad2 (padded stage-2 in)
            pltpu.VMEM((R2, K2), jnp.float32),                   # slab2
            pltpu.VMEM((R2, C2), jnp.float32),                   # y2
            pltpu.VMEM((R2 // 2, C2), jnp.float32),              # z2
        ],
    )(xflat, w1s, g1r, b1r, w2s, g2r, b2r)

    out = out2d.reshape(N, Ho, Wo, C2)
    return jnp.transpose(out, (0, 3, 1, 2))                      # NHWC -> NCHW


# ----------------- pure-JAX reference (for correctness check) -----------------
def _ref_stage(x_nhwc, w_hwio, bias, gamma, beta, eps=1e-5):
    y = jax.lax.conv_general_dilated(
        x_nhwc, w_hwio, window_strides=(1, 1), padding='SAME',
        dimension_numbers=('NHWC', 'HWIO', 'NHWC'),
        precision=jax.lax.Precision.HIGHEST) + bias
    mean = jnp.mean(y, axis=(0, 1, 2), keepdims=True)
    var = jnp.mean(jnp.square(y - mean), axis=(0, 1, 2), keepdims=True)
    y = (y - mean) * jax.lax.rsqrt(var + eps) * gamma + beta
    y = jnp.maximum(y, 0.0)
    y = jax.lax.reduce_window(y, -jnp.inf, jax.lax.max,
                              (1, 2, 2, 1), (1, 2, 2, 1), 'VALID')
    return y


def _ref_forward(x_nchw, params):
    x = jnp.transpose(x_nchw, (0, 2, 3, 1))
    for (w, b, g, bt) in params:
        x = _ref_stage(x, w, b, g, bt)
    return jnp.transpose(x, (0, 3, 1, 2))


if __name__ == "__main__":
    channel_num = 16
    intermediate_feature = 64

    key = jax.random.PRNGKey(0)
    kx, k1, k2, k3, k4 = jax.random.split(key, 5)

    # Synthetic parameters (conv weights stored HWIO; PyTorch OIHW -> transpose(2,3,1,0)).
    w1 = 0.1 * jax.random.normal(k1, (3, 3, 1, intermediate_feature), jnp.float32)
    b1 = 0.1 * jax.random.normal(k2, (intermediate_feature,), jnp.float32)
    g1 = jnp.ones((intermediate_feature,), jnp.float32)    # BN gamma init
    bt1 = jnp.zeros((intermediate_feature,), jnp.float32)  # BN beta init

    w2 = 0.05 * jax.random.normal(k3, (3, 3, intermediate_feature, channel_num), jnp.float32)
    b2 = 0.1 * jax.random.normal(k4, (channel_num,), jnp.float32)
    g2 = jnp.ones((channel_num,), jnp.float32)
    bt2 = jnp.zeros((channel_num,), jnp.float32)

    params = [(w1, b1, g1, bt1), (w2, b2, g2, bt2)]

    # Input: NCHW, 1 channel (encode1 is Conv2d(1, ...)).
    x = jax.random.normal(kx, (2, 1, 16, 16), jnp.float32)

    out = jax.jit(encode_module_forward)(x, params)
    out = jax.block_until_ready(out)

    assert out.shape == (2, channel_num, 4, 4), out.shape
    assert bool(jnp.all(jnp.isfinite(out)))

    ref = _ref_forward(x, params)
    max_err = float(jnp.max(jnp.abs(out - ref)))
    # bf16 MXU inputs (f32 accumulation) vs. an f32-HIGHEST reference -> allow ~1e-2 slack.
    assert bool(jnp.allclose(out, ref, rtol=2e-2, atol=2e-2)), max_err

    print("KERNEL_OK")
</pallas_src>

<mosaic_0001>
module attributes {stable_mosaic.version = 11 : i64} {
  func.func @_encode_kernel(%arg0: memref<656x8xf32, #tpu.memory_space<vmem>>, %arg1: memref<72x64xbf16, #tpu.memory_space<vmem>>, %arg2: memref<1x64xf32, #tpu.memory_space<vmem>>, %arg3: memref<1x64xf32, #tpu.memory_space<vmem>>, %arg4: memref<576x16xbf16, #tpu.memory_space<vmem>>, %arg5: memref<1x16xf32, #tpu.memory_space<vmem>>, %arg6: memref<1x16xf32, #tpu.memory_space<vmem>>, %arg7: memref<32x16xf32, #tpu.memory_space<vmem>>, %arg8: memref<576x72xf32, #tpu.memory_space<vmem>>, %arg9: memref<576x64xf32, #tpu.memory_space<vmem>>, %arg10: memref<288x64xf32, #tpu.memory_space<vmem>>, %arg11: memref<208x64xf32, #tpu.memory_space<vmem>>, %arg12: memref<160x576xf32, #tpu.memory_space<vmem>>, %arg13: memref<160x16xf32, #tpu.memory_space<vmem>>, %arg14: memref<80x16xf32, #tpu.memory_space<vmem>>) attributes {dimension_semantics = [], scalar_prefetch = 0 : i64, scratch_operands = 7 : i64, tpu.core_type = #tpu.core_type<tc>} {
    %cst = arith.constant 0.000000e+00 : f32
    %0 = vector.broadcast %cst : f32 to vector<208x64xf32>
    %c0 = arith.constant 0 : index
    %c0_0 = arith.constant 0 : index
    %1 = vector.load %arg11[%c0, %c0_0] : memref<208x64xf32, #tpu.memory_space<vmem>>, vector<208x64xf32>
    tpu.vector_store %arg11[%c0, %c0_0], %0 {strides = array<i32>} : memref<208x64xf32, #tpu.memory_space<vmem>>, vector<208x64xf32>,
    %c0_1 = arith.constant 0 : index
    %c0_2 = arith.constant 0 : index
    %2 = vector.load %arg0[%c0_1, %c0_2] : memref<656x8xf32, #tpu.memory_space<vmem>>, vector<288x8xf32>
    %c0_3 = arith.constant 0 : index
    %c0_4 = arith.constant 0 : index
    %3 = vector.load %arg8[%c0_3, %c0_4] : memref<576x72xf32, #tpu.memory_space<vmem>>, vector<288x8xf32>
    tpu.vector_store %arg8[%c0_3, %c0_4], %2 {strides = array<i32>} : memref<576x72xf32, #tpu.memory_space<vmem>>, vector<288x8xf32>,
    %c1 = arith.constant 1 : index
    %c0_5 = arith.constant 0 : index
    %4 = vector.load %arg0[%c1, %c0_5] : memref<656x8xf32, #tpu.memory_space<vmem>>, vector<288x8xf32>
    %c0_6 = arith.constant 0 : index
    %c8 = arith.constant 8 : index
    %5 = vector.load %arg8[%c0_6, %c8] : memref<576x72xf32, #tpu.memory_space<vmem>>, vector<288x8xf32>
    tpu.vector_store %arg8[%c0_6, %c8], %4 {strides = array<i32>} : memref<576x72xf32, #tpu.memory_space<vmem>>, vector<288x8xf32>,
    %c2 = arith.constant 2 : index
    %c0_7 = arith.constant 0 : index
    %6 = vector.load %arg0[%c2, %c0_7] : memref<656x8xf32, #tpu.memory_space<vmem>>, vector<288x8xf32>
    %c0_8 = arith.constant 0 : index
    %c16 = arith.constant 16 : index
    %7 = vector.load %arg8[%c0_8, %c16] : memref<576x72xf32, #tpu.memory_space<vmem>>, vector<288x8xf32>
    tpu.vector_store %arg8[%c0_8, %c16], %6 {strides = array<i32>} : memref<576x72xf32, #tpu.memory_space<vmem>>, vector<288x8xf32>,
    %c18 = arith.constant 18 : index
    %c0_9 = arith.constant 0 : index
    %8 = vector.load %arg0[%c18, %c0_9] : memref<656x8xf32, #tpu.memory_space<vmem>>, vector<288x8xf32>
    %c0_10 = arith.constant 0 : index
    %c24 = arith.constant 24 : index
    %9 = vector.load %arg8[%c0_10, %c24] : memref<576x72xf32, #tpu.memory_space<vmem>>, vector<288x8xf32>
    tpu.vector_store %arg8[%c0_10, %c24], %8 {strides = array<i32>} : memref<576x72xf32, #tpu.memory_space<vmem>>, vector<288x8xf32>,
    %c19 = arith.constant 19 : index
    %c0_11 = arith.constant 0 : index
    %10 = vector.load %arg0[%c19, %c0_11] : memref<656x8xf32, #tpu.memory_space<vmem>>, vector<288x8xf32>
    %c0_12 = arith.constant 0 : index
    %c32 = arith.constant 32 : index
    %11 = vector.load %arg8[%c0_12, %c32] : memref<576x72xf32, #tpu.memory_space<vmem>>, vector<288x8xf32>
    tpu.vector_store %arg8[%c0_12, %c32], %10 {strides = array<i32>} : memref<576x72xf32, #tpu.memory_space<vmem>>, vector<288x8xf32>,
    %c20 = arith.constant 20 : index
    %c0_13 = arith.constant 0 : index
    %12 = vector.load %arg0[%c20, %c0_13] : memref<656x8xf32, #tpu.memory_space<vmem>>, vector<288x8xf32>
    %c0_14 = arith.constant 0 : index
    %c40 = arith.constant 40 : index
    %13 = vector.load %arg8[%c0_14, %c40] : memref<576x72xf32, #tpu.memory_space<vmem>>, vector<288x8xf32>
    tpu.vector_store %arg8[%c0_14, %c40], %12 {strides = array<i32>} : memref<576x72xf32, #tpu.memory_space<vmem>>, vector<288x8xf32>,
    %c36 = arith.constant 36 : index
    %c0_15 = arith.constant 0 : index
    %14 = vector.load %arg0[%c36, %c0_15] : memref<656x8xf32, #tpu.memory_space<vmem>>, vector<288x8xf32>
    %c0_16 = arith.constant 0 : index
    %c48 = arith.constant 48 : index
    %15 = vector.load %arg8[%c0_16, %c48] : memref<576x72xf32, #tpu.memory_space<vmem>>, vector<288x8xf32>
    tpu.vector_store %arg8[%c0_16, %c48], %14 {strides = array<i32>} : memref<576x72xf32, #tpu.memory_space<vmem>>, vector<288x8xf32>,
    %c37 = arith.constant 37 : index
    %c0_17 = arith.constant 0 : index
    %16 = vector.load %arg0[%c37, %c0_17] : memref<656x8xf32, #tpu.memory_space<vmem>>, vector<288x8xf32>
    %c0_18 = arith.constant 0 : index
    %c56 = arith.constant 56 : index
    %17 = vector.load %arg8[%c0_18, %c56] : memref<576x72xf32, #tpu.memory_space<vmem>>, vector<288x8xf32>
    tpu.vector_store %arg8[%c0_18, %c56], %16 {strides = array<i32>} : memref<576x72xf32, #tpu.memory_space<vmem>>, vector<288x8xf32>,
    %c38 = arith.constant 38 : index
    %c0_19 = arith.constant 0 : index
    %18 = vector.load %arg0[%c38, %c0_19] : memref<656x8xf32, #tpu.memory_space<vmem>>, vector<288x8xf32>
    %c0_20 = arith.constant 0 : index
    %c64 = arith.constant 64 : index
    %19 = vector.load %arg8[%c0_20, %c64] : memref<576x72xf32, #tpu.memory_space<vmem>>, vector<288x8xf32>
    tpu.vector_store %arg8[%c0_20, %c64], %18 {strides = array<i32>} : memref<576x72xf32, #tpu.memory_space<vmem>>, vector<288x8xf32>,
    %c324 = arith.constant 324 : index
    %c0_21 = arith.constant 0 : index
    %20 = vector.load %arg0[%c324, %c0_21] : memref<656x8xf32, #tpu.memory_space<vmem>>, vector<288x8xf32>
    %c288 = arith.constant 288 : index
    %c0_22 = arith.constant 0 : index
    %21 = vector.load %arg8[%c288, %c0_22] : memref<576x72xf32, #tpu.memory_space<vmem>>, vector<288x8xf32>
    tpu.vector_store %arg8[%c288, %c0_22], %20 {strides = array<i32>} : memref<576x72xf32, #tpu.memory_space<vmem>>, vector<288x8xf32>,
    %c325 = arith.constant 325 : index
    %c0_23 = arith.constant 0 : index
    %22 = vector.load %arg0[%c325, %c0_23] : memref<656x8xf32, #tpu.memory_space<vmem>>, vector<288x8xf32>
    %c288_24 = arith.constant 288 : index
    %c8_25 = arith.constant 8 : index
    %23 = vector.load %arg8[%c288_24, %c8_25] : memref<576x72xf32, #tpu.memory_space<vmem>>, vector<288x8xf32>
    tpu.vector_store %arg8[%c288_24, %c8_25], %22 {strides = array<i32>} : memref<576x72xf32, #tpu.memory_space<vmem>>, vector<288x8xf32>,
    %c326 = arith.constant 326 : index
    %c0_26 = arith.constant 0 : index
    %24 = vector.load %arg0[%c326, %c0_26] : memref<656x8xf32, #tpu.memory_space<vmem>>, vector<288x8xf32>
    %c288_27 = arith.constant 288 : index
    %c16_28 = arith.constant 16 : index
    %25 = vector.load %arg8[%c288_27, %c16_28] : memref<576x72xf32, #tpu.memory_space<vmem>>, vector<288x8xf32>
    tpu.vector_store %arg8[%c288_27, %c16_28], %24 {strides = array<i32>} : memref<576x72xf32, #tpu.memory_space<vmem>>, vector<288x8xf32>,
    %c342 = arith.constant 342 : index
    %c0_29 = arith.constant 0 : index
    %26 = vector.load %arg0[%c342, %c0_29] : memref<656x8xf32, #tpu.memory_space<vmem>>, vector<288x8xf32>
    %c288_30 = arith.constant 288 : index
    %c24_31 = arith.constant 24 : index
    %27 = vector.load %arg8[%c288_30, %c24_31] : memref<576x72xf32, #tpu.memory_space<vmem>>, vector<288x8xf32>
    tpu.vector_store %arg8[%c288_30, %c24_31], %26 {strides = array<i32>} : memref<576x72xf32, #tpu.memory_space<vmem>>, vector<288x8xf32>,
    %c343 = arith.constant 343 : index
    %c0_32 = arith.constant 0 : index
    %28 = vector.load %arg0[%c343, %c0_32] : memref<656x8xf32, #tpu.memory_space<vmem>>, vector<288x8xf32>
    %c288_33 = arith.constant 288 : index
    %c32_34 = arith.constant 32 : index
    %29 = vector.load %arg8[%c288_33, %c32_34] : memref<576x72xf32, #tpu.memory_space<vmem>>, vector<288x8xf32>
    tpu.vector_store %arg8[%c288_33, %c32_34], %28 {strides = array<i32>} : memref<576x72xf32, #tpu.memory_space<vmem>>, vector<288x8xf32>,
    %c344 = arith.constant 344 : index
    %c0_35 = arith.constant 0 : index
    %30 = vector.load %arg0[%c344, %c0_35] : memref<656x8xf32, #tpu.memory_space<vmem>>, vector<288x8xf32>
    %c288_36 = arith.constant 288 : index
    %c40_37 = arith.constant 40 : index
    %31 = vector.load %arg8[%c288_36, %c40_37] : memref<576x72xf32, #tpu.memory_space<vmem>>, vector<288x8xf32>
    tpu.vector_store %arg8[%c288_36, %c40_37], %30 {strides = array<i32>} : memref<576x72xf32, #tpu.memory_space<vmem>>, vector<288x8xf32>,
    %c360 = arith.constant 360 : index
    %c0_38 = arith.constant 0 : index
    %32 = vector.load %arg0[%c360, %c0_38] : memref<656x8xf32, #tpu.memory_space<vmem>>, vector<288x8xf32>
    %c288_39 = arith.constant 288 : index
    %c48_40 = arith.constant 48 : index
    %33 = vector.load %arg8[%c288_39, %c48_40] : memref<576x72xf32, #tpu.memory_space<vmem>>, vector<288x8xf32>
    tpu.vector_store %arg8[%c288_39, %c48_40], %32 {strides = array<i32>} : memref<576x72xf32, #tpu.memory_space<vmem>>, vector<288x8xf32>,
    %c361 = arith.constant 361 : index
    %c0_41 = arith.constant 0 : index
    %34 = vector.load %arg0[%c361, %c0_41] : memref<656x8xf32, #tpu.memory_space<vmem>>, vector<288x8xf32>
    %c288_42 = arith.constant 288 : index
    %c56_43 = arith.constant 56 : index
    %35 = vector.load %arg8[%c288_42, %c56_43] : memref<576x72xf32, #tpu.memory_space<vmem>>, vector<288x8xf32>
    tpu.vector_store %arg8[%c288_42, %c56_43], %34 {strides = array<i32>} : memref<576x72xf32, #tpu.memory_space<vmem>>, vector<288x8xf32>,
    %c362 = arith.constant 362 : index
    %c0_44 = arith.constant 0 : index
    %36 = vector.load %arg0[%c362, %c0_44] : memref<656x8xf32, #tpu.memory_space<vmem>>, vector<288x8xf32>
    %c288_45 = arith.constant 288 : index
    %c64_46 = arith.constant 64 : index
    %37 = vector.load %arg8[%c288_45, %c64_46] : memref<576x72xf32, #tpu.memory_space<vmem>>, vector<288x8xf32>
    tpu.vector_store %arg8[%c288_45, %c64_46], %36 {strides = array<i32>} : memref<576x72xf32, #tpu.memory_space<vmem>>, vector<288x8xf32>,
    %c0_47 = arith.constant 0 : index
    %c0_48 = arith.constant 0 : index
    %38 = vector.load %arg1[%c0_47, %c0_48] : memref<72x64xbf16, #tpu.memory_space<vmem>>, vector<72x64xbf16>
    %cst_49 = arith.constant 0.000000e+00 : f32
    %39 = vector.broadcast %cst_49 : f32 to vector<1x64xf32>
    %cst_50 = arith.constant 0.000000e+00 : f32
    %40 = vector.broadcast %cst_50 : f32 to vector<1x64xf32>
    %c0_51 = arith.constant 0 : index
    %c0_52 = arith.constant 0 : index
    %41 = vector.load %arg8[%c0_51, %c0_52] : memref<576x72xf32, #tpu.memory_space<vmem>>, vector<192x72xf32>
    %42 = arith.truncf %41 : vector<192x72xf32> to vector<192x72xbf16>
    %cst_53 = arith.constant dense<0.000000e+00> : vector<192x64xf32>
    %43 = tpu.matmul %42, %38, %cst_53 {dimension_numbers = #tpu.dot_dimension_numbers<[1], [0], [0], [1], [0, 0, 1, 1], [], []>} : vector<192x72xbf16>, vector<72x64xbf16>, vector<192x64xf32> -> vector<192x64xf32>
    %c0_54 = arith.constant 0 : index
    %c0_55 = arith.constant 0 : index
    %44 = vector.load %arg9[%c0_54, %c0_55] : memref<576x64xf32, #tpu.memory_space<vmem>>, vector<192x64xf32>
    tpu.vector_store %arg9[%c0_54, %c0_55], %43 {strides = array<i32>} : memref<576x64xf32, #tpu.memory_space<vmem>>, vector<192x64xf32>,
    %45 = tpu.iota {dimensions = array<i32: 0>} : vector<192x1xi32>
    %c0_i32 = arith.constant 0 : i32
    %46 = vector.broadcast %c0_i32 : i32 to vector<192x1xi32>
    %47 = arith.addi %46, %45 : vector<192x1xi32>
    %c18_i32 = arith.constant 18 : i32
    %c0_i32_56 = arith.constant 0 : i32
    %48 = arith.cmpi eq, %c18_i32, %c0_i32_56 : i32
    %c1_i32 = arith.constant 1 : i32
    %49 = arith.select %48, %c1_i32, %c18_i32 : i32
    %50 = vector.broadcast %49 : i32 to vector<192x1xi32>
    %51 = arith.remsi %47, %50 : vector<192x1xi32>
    %c0_i32_57 = arith.constant 0 : i32
    %52 = vector.broadcast %c0_i32_57 : i32 to vector<192x1xi32>
    %53 = arith.cmpi ne, %51, %52 : vector<192x1xi32>
    %c0_i32_58 = arith.constant 0 : i32
    %54 = vector.broadcast %c0_i32_58 : i32 to vector<192x1xi32>
    %55 = arith.cmpi slt, %51, %54 : vector<192x1xi32>
    %c0_i32_59 = arith.constant 0 : i32
    %56 = arith.cmpi slt, %49, %c0_i32_59 : i32
    %57 = vector.broadcast %56 : i1 to vector<192x1xi1>
    %58 = vector.broadcast %57 : vector<192x1xi1> to vector<192x1xi1>
    %59 = arith.xori %55, %58 : vector<192x1xi1>
    %60 = arith.andi %59, %53 : vector<192x1xi1>
    %61 = vector.broadcast %49 : i32 to vector<192x1xi32>
    %62 = arith.addi %51, %61 : vector<192x1xi32>
    %63 = arith.select %60, %62, %51 : vector<192x1xi1>, vector<192x1xi32>
    %c16_i32 = arith.constant 16 : i32
    %64 = vector.broadcast %c16_i32 : i32 to vector<192x1xi32>
    %65 = arith.cmpi slt, %63, %64 : vector<192x1xi32>
    %cst_60 = arith.constant 0.000000e+00 : f32
    %66 = vector.shape_cast %65 : vector<192x1xi1> to vector<192x1xi1>
    %67 = vector.broadcast %66 : vector<192x1xi1> to vector<192x64xi1>
    %68 = vector.broadcast %cst_60 : f32 to vector<192x64xf32>
    %69 = arith.select %67, %43, %68 : vector<192x64xi1>, vector<192x64xf32>
    %cst_61 = arith.constant dense<0.000000e+00> : vector<64xf32>
    %70 = vector.multi_reduction <add>, %69, %cst_61 [0] : vector<192x64xf32> to vector<64xf32>
    %71 = vector.shape_cast %70 : vector<64xf32> to vector<1x64xf32>
    %72 = arith.addf %39, %71 : vector<1x64xf32>
    %73 = arith.mulf %69, %43 : vector<192x64xf32>
    %cst_62 = arith.constant dense<0.000000e+00> : vector<64xf32>
    %74 = vector.multi_reduction <add>, %73, %cst_62 [0] : vector<192x64xf32> to vector<64xf32>
    %75 = vector.shape_cast %74 : vector<64xf32> to vector<1x64xf32>
    %76 = arith.addf %40, %75 : vector<1x64xf32>
    %c192 = arith.constant 192 : index
    %c0_63 = arith.constant 0 : index
    %77 = vector.load %arg8[%c192, %c0_63] : memref<576x72xf32, #tpu.memory_space<vmem>>, vector<192x72xf32>
    %78 = arith.truncf %77 : vector<192x72xf32> to vector<192x72xbf16>
    %cst_64 = arith.constant dense<0.000000e+00> : vector<192x64xf32>
    %79 = tpu.matmul %78, %38, %cst_64 {dimension_numbers = #tpu.dot_dimension_numbers<[1], [0], [0], [1], [0, 0, 1, 1], [], []>} : vector<192x72xbf16>, vector<72x64xbf16>, vector<192x64xf32> -> vector<192x64xf32>
    %c192_65 = arith.constant 192 : index
    %c0_66 = arith.constant 0 : index
    %80 = vector.load %arg9[%c192_65, %c0_66] : memref<576x64xf32, #tpu.memory_space<vmem>>, vector<192x64xf32>
    tpu.vector_store %arg9[%c192_65, %c0_66], %79 {strides = array<i32>} : memref<576x64xf32, #tpu.memory_space<vmem>>, vector<192x64xf32>,
    %81 = tpu.iota {dimensions = array<i32: 0>} : vector<192x1xi32>
    %c192_i32 = arith.constant 192 : i32
    %82 = vector.broadcast %c192_i32 : i32 to vector<192x1xi32>
    %83 = arith.addi %82, %81 : vector<192x1xi32>
    %c18_i32_67 = arith.constant 18 : i32
    %c0_i32_68 = arith.constant 0 : i32
    %84 = arith.cmpi eq, %c18_i32_67, %c0_i32_68 : i32
    %c1_i32_69 = arith.constant 1 : i32
    %85 = arith.select %84, %c1_i32_69, %c18_i32_67 : i32
    %86 = vector.broadcast %85 : i32 to vector<192x1xi32>
    %87 = arith.remsi %83, %86 : vector<192x1xi32>
    %c0_i32_70 = arith.constant 0 : i32
    %88 = vector.broadcast %c0_i32_70 : i32 to vector<192x1xi32>
    %89 = arith.cmpi ne, %87, %88 : vector<192x1xi32>
    %c0_i32_71 = arith.constant 0 : i32
    %90 = vector.broadcast %c0_i32_71 : i32 to vector<192x1xi32>
    %91 = arith.cmpi slt, %87, %90 : vector<192x1xi32>
    %c0_i32_72 = arith.constant 0 : i32
    %92 = arith.cmpi slt, %85, %c0_i32_72 : i32
    %93 = vector.broadcast %92 : i1 to vector<192x1xi1>
    %94 = vector.broadcast %93 : vector<192x1xi1> to vector<192x1xi1>
    %95 = arith.xori %91, %94 : vector<192x1xi1>
    %96 = arith.andi %95, %89 : vector<192x1xi1>
    %97 = vector.broadcast %85 : i32 to vector<192x1xi32>
    %98 = arith.addi %87, %97 : vector<192x1xi32>
    %99 = arith.select %96, %98, %87 : vector<192x1xi1>, vector<192x1xi32>
    %c16_i32_73 = arith.constant 16 : i32
    %100 = vector.broadcast %c16_i32_73 : i32 to vector<192x1xi32>
    %101 = arith.cmpi slt, %99, %100 : vector<192x1xi32>
    %cst_74 = arith.constant 0.000000e+00 : f32
    %102 = vector.shape_cast %101 : vector<192x1xi1> to vector<192x1xi1>
    %103 = vector.broadcast %102 : vector<192x1xi1> to vector<192x64xi1>
    %104 = vector.broadcast %cst_74 : f32 to vector<192x64xf32>
    %105 = arith.select %103, %79, %104 : vector<192x64xi1>, vector<192x64xf32>
    %cst_75 = arith.constant dense<0.000000e+00> : vector<64xf32>
    %106 = vector.multi_reduction <add>, %105, %cst_75 [0] : vector<192x64xf32> to vector<64xf32>
    %107 = vector.shape_cast %106 : vector<64xf32> to vector<1x64xf32>
    %108 = arith.addf %72, %107 : vector<1x64xf32>
    %109 = arith.mulf %105, %79 : vector<192x64xf32>
    %cst_76 = arith.constant dense<0.000000e+00> : vector<64xf32>
    %110 = vector.multi_reduction <add>, %109, %cst_76 [0] : vector<192x64xf32> to vector<64xf32>
    %111 = vector.shape_cast %110 : vector<64xf32> to vector<1x64xf32>
    %112 = arith.addf %76, %111 : vector<1x64xf32>
    %c384 = arith.constant 384 : index
    %c0_77 = arith.constant 0 : index
    %113 = vector.load %arg8[%c384, %c0_77] : memref<576x72xf32, #tpu.memory_space<vmem>>, vector<192x72xf32>
    %114 = arith.truncf %113 : vector<192x72xf32> to vector<192x72xbf16>
    %cst_78 = arith.constant dense<0.000000e+00> : vector<192x64xf32>
    %115 = tpu.matmul %114, %38, %cst_78 {dimension_numbers = #tpu.dot_dimension_numbers<[1], [0], [0], [1], [0, 0, 1, 1], [], []>} : vector<192x72xbf16>, vector<72x64xbf16>, vector<192x64xf32> -> vector<192x64xf32>
    %c384_79 = arith.constant 384 : index
    %c0_80 = arith.constant 0 : index
    %116 = vector.load %arg9[%c384_79, %c0_80] : memref<576x64xf32, #tpu.memory_space<vmem>>, vector<192x64xf32>
    tpu.vector_store %arg9[%c384_79, %c0_80], %115 {strides = array<i32>} : memref<576x64xf32, #tpu.memory_space<vmem>>, vector<192x64xf32>,
    %117 = tpu.iota {dimensions = array<i32: 0>} : vector<192x1xi32>
    %c384_i32 = arith.constant 384 : i32
    %118 = vector.broadcast %c384_i32 : i32 to vector<192x1xi32>
    %119 = arith.addi %118, %117 : vector<192x1xi32>
    %c18_i32_81 = arith.constant 18 : i32
    %c0_i32_82 = arith.constant 0 : i32
    %120 = arith.cmpi eq, %c18_i32_81, %c0_i32_82 : i32
    %c1_i32_83 = arith.constant 1 : i32
    %121 = arith.select %120, %c1_i32_83, %c18_i32_81 : i32
    %122 = vector.broadcast %121 : i32 to vector<192x1xi32>
    %123 = arith.remsi %119, %122 : vector<192x1xi32>
    %c0_i32_84 = arith.constant 0 : i32
    %124 = vector.broadcast %c0_i32_84 : i32 to vector<192x1xi32>
    %125 = arith.cmpi ne, %123, %124 : vector<192x1xi32>
    %c0_i32_85 = arith.constant 0 : i32
    %126 = vector.broadcast %c0_i32_85 : i32 to vector<192x1xi32>
    %127 = arith.cmpi slt, %123, %126 : vector<192x1xi32>
    %c0_i32_86 = arith.constant 0 : i32
    %128 = arith.cmpi slt, %121, %c0_i32_86 : i32
    %129 = vector.broadcast %128 : i1 to vector<192x1xi1>
    %130 = vector.broadcast %129 : vector<192x1xi1> to vector<192x1xi1>
    %131 = arith.xori %127, %130 : vector<192x1xi1>
    %132 = arith.andi %131, %125 : vector<192x1xi1>
    %133 = vector.broadcast %121 : i32 to vector<192x1xi32>
    %134 = arith.addi %123, %133 : vector<192x1xi32>
    %135 = arith.select %132, %134, %123 : vector<192x1xi1>, vector<192x1xi32>
    %c16_i32_87 = arith.constant 16 : i32
    %136 = vector.broadcast %c16_i32_87 : i32 to vector<192x1xi32>
    %137 = arith.cmpi slt, %135, %136 : vector<192x1xi32>
    %cst_88 = arith.constant 0.000000e+00 : f32
    %138 = vector.shape_cast %137 : vector<192x1xi1> to vector<192x1xi1>
    %139 = vector.broadcast %138 : vector<192x1xi1> to vector<192x64xi1>
    %140 = vector.broadcast %cst_88 : f32 to vector<192x64xf32>
    %141 = arith.select %139, %115, %140 : vector<192x64xi1>, vector<192x64xf32>
    %cst_89 = arith.constant dense<0.000000e+00> : vector<64xf32>
    %142 = vector.multi_reduction <add>, %141, %cst_89 [0] : vector<192x64xf32> to vector<64xf32>
    %143 = vector.shape_cast %142 : vector<64xf32> to vector<1x64xf32>
    %144 = arith.addf %108, %143 : vector<1x64xf32>
    %145 = arith.mulf %141, %115 : vector<192x64xf32>
    %cst_90 = arith.constant dense<0.000000e+00> : vector<64xf32>
    %146 = vector.multi_reduction <add>, %145, %cst_90 [0] : vector<192x64xf32> to vector<64xf32>
    %147 = vector.shape_cast %146 : vector<64xf32> to vector<1x64xf32>
    %148 = arith.addf %112, %147 : vector<1x64xf32>
    %cst_91 = arith.constant 0.001953125 : f32
    %149 = vector.broadcast %cst_91 : f32 to vector<1x64xf32>
    %150 = arith.mulf %144, %149 : vector<1x64xf32>
    %cst_92 = arith.constant 0.001953125 : f32
    %151 = vector.broadcast %cst_92 : f32 to vector<1x64xf32>
    %152 = arith.mulf %148, %151 : vector<1x64xf32>
    %153 = arith.mulf %150, %150 : vector<1x64xf32>
    %154 = arith.subf %152, %153 : vector<1x64xf32>
    %c0_93 = arith.constant 0 : index
    %c0_94 = arith.constant 0 : index
    %155 = vector.load %arg2[%c0_93, %c0_94] : memref<1x64xf32, #tpu.memory_space<vmem>>, vector<1x64xf32>
    %cst_95 = arith.constant 9.99999974E-6 : f32
    %156 = vector.broadcast %cst_95 : f32 to vector<1x64xf32>
    %157 = arith.addf %154, %156 : vector<1x64xf32>
    %158 = math.rsqrt %157 : vector<1x64xf32>
    %159 = arith.mulf %155, %158 : vector<1x64xf32>
    %c0_96 = arith.constant 0 : index
    %c0_97 = arith.constant 0 : index
    %160 = vector.load %arg3[%c0_96, %c0_97] : memref<1x64xf32, #tpu.memory_space<vmem>>, vector<1x64xf32>
    %161 = arith.mulf %150, %159 : vector<1x64xf32>
    %162 = arith.subf %160, %161 : vector<1x64xf32>
    %c0_98 = arith.constant 0 : index
    %c0_99 = arith.constant 0 : index
    %163 = tpu.strided_load %arg9[%c0_98, %c0_99] {strides = array<i32: 2, 1>} : memref<576x64xf32, #tpu.memory_space<vmem>>, vector<144x64xf32>
    %c1_100 = arith.constant 1 : index
    %c0_101 = arith.constant 0 : index
    %164 = tpu.strided_load %arg9[%c1_100, %c0_101] {strides = array<i32: 2, 1>} : memref<576x64xf32, #tpu.memory_space<vmem>>, vector<144x64xf32>
    %165 = vector.broadcast %159 : vector<1x64xf32> to vector<144x64xf32>
    %166 = arith.mulf %163, %165 : vector<144x64xf32>
    %167 = vector.broadcast %162 : vector<1x64xf32> to vector<144x64xf32>
    %168 = arith.addf %166, %167 : vector<144x64xf32>
    %cst_102 = arith.constant 0.000000e+00 : f32
    %169 = vector.broadcast %cst_102 : f32 to vector<144x64xf32>
    %170 = arith.maximumf %168, %169 : vector<144x64xf32>
    %171 = vector.broadcast %159 : vector<1x64xf32> to vector<144x64xf32>
    %172 = arith.mulf %164, %171 : vector<144x64xf32>
    %173 = vector.broadcast %162 : vector<1x64xf32> to vector<144x64xf32>
    %174 = arith.addf %172, %173 : vector<144x64xf32>
    %cst_103 = arith.constant 0.000000e+00 : f32
    %175 = vector.broadcast %cst_103 : f32 to vector<144x64xf32>
    %176 = arith.maximumf %174, %175 : vector<144x64xf32>
    %177 = arith.maximumf %170, %176 : vector<144x64xf32>
    %c0_104 = arith.constant 0 : index
    %c0_105 = arith.constant 0 : index
    %178 = vector.load %arg10[%c0_104, %c0_105] : memref<288x64xf32, #tpu.memory_space<vmem>>, vector<144x64xf32>
    tpu.vector_store %arg10[%c0_104, %c0_105], %177 {strides = array<i32>} : memref<288x64xf32, #tpu.memory_space<vmem>>, vector<144x64xf32>,
    %c288_106 = arith.constant 288 : index
    %c0_107 = arith.constant 0 : index
    %179 = tpu.strided_load %arg9[%c288_106, %c0_107] {strides = array<i32: 2, 1>} : memref<576x64xf32, #tpu.memory_space<vmem>>, vector<144x64xf32>
    %c289 = arith.constant 289 : index
    %c0_108 = arith.constant 0 : index
    %180 = tpu.strided_load %arg9[%c289, %c0_108] {strides = array<i32: 2, 1>} : memref<576x64xf32, #tpu.memory_space<vmem>>, vector<144x64xf32>
    %181 = vector.broadcast %159 : vector<1x64xf32> to vector<144x64xf32>
    %182 = arith.mulf %179, %181 : vector<144x64xf32>
    %183 = vector.broadcast %162 : vector<1x64xf32> to vector<144x64xf32>
    %184 = arith.addf %182, %183 : vector<144x64xf32>
    %cst_109 = arith.constant 0.000000e+00 : f32
    %185 = vector.broadcast %cst_109 : f32 to vector<144x64xf32>
    %186 = arith.maximumf %184, %185 : vector<144x64xf32>
    %187 = vector.broadcast %159 : vector<1x64xf32> to vector<144x64xf32>
    %188 = arith.mulf %180, %187 : vector<144x64xf32>
    %189 = vector.broadcast %162 : vector<1x64xf32> to vector<144x64xf32>
    %190 = arith.addf %188, %189 : vector<144x64xf32>
    %cst_110 = arith.constant 0.000000e+00 : f32
    %191 = vector.broadcast %cst_110 : f32 to vector<144x64xf32>
    %192 = arith.maximumf %190, %191 : vector<144x64xf32>
    %193 = arith.maximumf %186, %192 : vector<144x64xf32>
    %c144 = arith.constant 144 : index
    %c0_111 = arith.constant 0 : index
    %194 = vector.load %arg10[%c144, %c0_111] : memref<288x64xf32, #tpu.memory_space<vmem>>, vector<144x64xf32>
    tpu.vector_store %arg10[%c144, %c0_111], %193 {strides = array<i32>} : memref<288x64xf32, #tpu.memory_space<vmem>>, vector<144x64xf32>,
    %c0_112 = arith.constant 0 : index
    %c0_113 = arith.constant 0 : index
    %195 = vector.load %arg10[%c0_112, %c0_113] : memref<288x64xf32, #tpu.memory_space<vmem>>, vector<9x64xf32>
    %c9 = arith.constant 9 : index
    %c0_114 = arith.constant 0 : index
    %196 = vector.load %arg10[%c9, %c0_114] : memref<288x64xf32, #tpu.memory_space<vmem>>, vector<9x64xf32>
    %197 = arith.maximumf %195, %196 : vector<9x64xf32>
    %198 = vector.extract_strided_slice %197 {offsets = [0, 0], sizes = [8, 64], strides = [1, 1]} : vector<9x64xf32> to vector<8x64xf32>
    %c11 = arith.constant 11 : index
    %c0_115 = arith.constant 0 : index
    %199 = vector.load %arg11[%c11, %c0_115] : memref<208x64xf32, #tpu.memory_space<vmem>>, vector<8x64xf32>
    tpu.vector_store %arg11[%c11, %c0_115], %198 {strides = array<i32>} : memref<208x64xf32, #tpu.memory_space<vmem>>, vector<8x64xf32>,
    %c18_116 = arith.constant 18 : index
    %c0_117 = arith.constant 0 : index
    %200 = vector.load %arg10[%c18_116, %c0_117] : memref<288x64xf32, #tpu.memory_space<vmem>>, vector<9x64xf32>
    %c27 = arith.constant 27 : index
    %c0_118 = arith.constant 0 : index
    %201 = vector.load %arg10[%c27, %c0_118] : memref<288x64xf32, #tpu.memory_space<vmem>>, vector<9x64xf32>
    %202 = arith.maximumf %200, %201 : vector<9x64xf32>
    %203 = vector.extract_strided_slice %202 {offsets = [0, 0], sizes = [8, 64], strides = [1, 1]} : vector<9x64xf32> to vector<8x64xf32>
    %c21 = arith.constant 21 : index
    %c0_119 = arith.constant 0 : index
    %204 = vector.load %arg11[%c21, %c0_119] : memref<208x64xf32, #tpu.memory_space<vmem>>, vector<8x64xf32>
    tpu.vector_store %arg11[%c21, %c0_119], %203 {strides = array<i32>} : memref<208x64xf32, #tpu.memory_space<vmem>>, vector<8x64xf32>,
    %c36_120 = arith.constant 36 : index
    %c0_121 = arith.constant 0 : index
    %205 = vector.load %arg10[%c36_120, %c0_121] : memref<288x64xf32, #tpu.memory_space<vmem>>, vector<9x64xf32>
    %c45 = arith.constant 45 : index
    %c0_122 = arith.constant 0 : index
    %206 = vector.load %arg10[%c45, %c0_122] : memref<288x64xf32, #tpu.memory_space<vmem>>, vector<9x64xf32>
    %207 = arith.maximumf %205, %206 : vector<9x64xf32>
    %208 = vector.extract_strided_slice %207 {offsets = [0, 0], sizes = [8, 64], strides = [1, 1]} : vector<9x64xf32> to vector<8x64xf32>
    %c31 = arith.constant 31 : index
    %c0_123 = arith.constant 0 : index
    %209 = vector.load %arg11[%c31, %c0_123] : memref<208x64xf32, #tpu.memory_space<vmem>>, vector<8x64xf32>
    tpu.vector_store %arg11[%c31, %c0_123], %208 {strides = array<i32>} : memref<208x64xf32, #tpu.memory_space<vmem>>, vector<8x64xf32>,
    %c54 = arith.constant 54 : index
    %c0_124 = arith.constant 0 : index
    %210 = vector.load %arg10[%c54, %c0_124] : memref<288x64xf32, #tpu.memory_space<vmem>>, vector<9x64xf32>
    %c63 = arith.constant 63 : index
    %c0_125 = arith.constant 0 : index
    %211 = vector.load %arg10[%c63, %c0_125] : memref<288x64xf32, #tpu.memory_space<vmem>>, vector<9x64xf32>
    %212 = arith.maximumf %210, %211 : vector<9x64xf32>
    %213 = vector.extract_strided_slice %212 {offsets = [0, 0], sizes = [8, 64], strides = [1, 1]} : vector<9x64xf32> to vector<8x64xf32>
    %c41 = arith.constant 41 : index
    %c0_126 = arith.constant 0 : index
    %214 = vector.load %arg11[%c41, %c0_126] : memref<208x64xf32, #tpu.memory_space<vmem>>, vector<8x64xf32>
    tpu.vector_store %arg11[%c41, %c0_126], %213 {strides = array<i32>} : memref<208x64xf32, #tpu.memory_space<vmem>>, vector<8x64xf32>,
    %c72 = arith.constant 72 : index
    %c0_127 = arith.constant 0 : index
    %215 = vector.load %arg10[%c72, %c0_127] : memref<288x64xf32, #tpu.memory_space<vmem>>, vector<9x64xf32>
    %c81 = arith.constant 81 : index
    %c0_128 = arith.constant 0 : index
    %216 = vector.load %arg10[%c81, %c0_128] : memref<288x64xf32, #tpu.memory_space<vmem>>, vector<9x64xf32>
    %217 = arith.maximumf %215, %216 : vector<9x64xf32>
    %218 = vector.extract_strided_slice %217 {offsets = [0, 0], sizes = [8, 64], strides = [1, 1]} : vector<9x64xf32> to vector<8x64xf32>
    %c51 = arith.constant 51 : index
    %c0_129 = arith.constant 0 : index
    %219 = vector.load %arg11[%c51, %c0_129] : memref<208x64xf32, #tpu.memory_space<vmem>>, vector<8x64xf32>
    tpu.vector_store %arg11[%c51, %c0_129], %218 {strides = array<i32>} : memref<208x64xf32, #tpu.memory_space<vmem>>, vector<8x64xf32>,
    %c90 = arith.constant 90 : index
    %c0_130 = arith.constant 0 : index
    %220 = vector.load %arg10[%c90, %c0_130] : memref<288x64xf32, #tpu.memory_space<vmem>>, vector<9x64xf32>
    %c99 = arith.constant 99 : index
    %c0_131 = arith.constant 0 : index
    %221 = vector.load %arg10[%c99, %c0_131] : memref<288x64xf32, #tpu.memory_space<vmem>>, vector<9x64xf32>
    %222 = arith.maximumf %220, %221 : vector<9x64xf32>
    %223 = vector.extract_strided_slice %222 {offsets = [0, 0], sizes = [8, 64], strides = [1, 1]} : vector<9x64xf32> to vector<8x64xf32>
    %c61 = arith.constant 61 : index
    %c0_132 = arith.constant 0 : index
    %224 = vector.load %arg11[%c61, %c0_132] : memref<208x64xf32, #tpu.memory_space<vmem>>, vector<8x64xf32>
    tpu.vector_store %arg11[%c61, %c0_132], %223 {strides = array<i32>} : memref<208x64xf32, #tpu.memory_space<vmem>>, vector<8x64xf32>,
    %c108 = arith.constant 108 : index
    %c0_133 = arith.constant 0 : index
    %225 = vector.load %arg10[%c108, %c0_133] : memref<288x64xf32, #tpu.memory_space<vmem>>, vector<9x64xf32>
    %c117 = arith.constant 117 : index
    %c0_134 = arith.constant 0 : index
    %226 = vector.load %arg10[%c117, %c0_134] : memref<288x64xf32, #tpu.memory_space<vmem>>, vector<9x64xf32>
    %227 = arith.maximumf %225, %226 : vector<9x64xf32>
    %228 = vector.extract_strided_slice %227 {offsets = [0, 0], sizes = [8, 64], strides = [1, 1]} : vector<9x64xf32> to vector<8x64xf32>
    %c71 = arith.constant 71 : index
    %c0_135 = arith.constant 0 : index
    %229 = vector.load %arg11[%c71, %c0_135] : memref<208x64xf32, #tpu.memory_space<vmem>>, vector<8x64xf32>
    tpu.vector_store %arg11[%c71, %c0_135], %228 {strides = array<i32>} : memref<208x64xf32, #tpu.memory_space<vmem>>, vector<8x64xf32>,
    %c126 = arith.constant 126 : index
    %c0_136 = arith.constant 0 : index
    %230 = vector.load %arg10[%c126, %c0_136] : memref<288x64xf32, #tpu.memory_space<vmem>>, vector<9x64xf32>
    %c135 = arith.constant 135 : index
    %c0_137 = arith.constant 0 : index
    %231 = vector.load %arg10[%c135, %c0_137] : memref<288x64xf32, #tpu.memory_space<vmem>>, vector<9x64xf32>
    %232 = arith.maximumf %230, %231 : vector<9x64xf32>
    %233 = vector.extract_strided_slice %232 {offsets = [0, 0], sizes = [8, 64], strides = [1, 1]} : vector<9x64xf32> to vector<8x64xf32>
    %c81_138 = arith.constant 81 : index
    %c0_139 = arith.constant 0 : index
    %234 = vector.load %arg11[%c81_138, %c0_139] : memref<208x64xf32, #tpu.memory_space<vmem>>, vector<8x64xf32>
    tpu.vector_store %arg11[%c81_138, %c0_139], %233 {strides = array<i32>} : memref<208x64xf32, #tpu.memory_space<vmem>>, vector<8x64xf32>,
    %c144_140 = arith.constant 144 : index
    %c0_141 = arith.constant 0 : index
    %235 = vector.load %arg10[%c144_140, %c0_141] : memref<288x64xf32, #tpu.memory_space<vmem>>, vector<9x64xf32>
    %c153 = arith.constant 153 : index
    %c0_142 = arith.constant 0 : index
    %236 = vector.load %arg10[%c153, %c0_142] : memref<288x64xf32, #tpu.memory_space<vmem>>, vector<9x64xf32>
    %237 = arith.maximumf %235, %236 : vector<9x64xf32>
    %238 = vector.extract_strided_slice %237 {offsets = [0, 0], sizes = [8, 64], strides = [1, 1]} : vector<9x64xf32> to vector<8x64xf32>
    %c111 = arith.constant 111 : index
    %c0_143 = arith.constant 0 : index
    %239 = vector.load %arg11[%c111, %c0_143] : memref<208x64xf32, #tpu.memory_space<vmem>>, vector<8x64xf32>
    tpu.vector_store %arg11[%c111, %c0_143], %238 {strides = array<i32>} : memref<208x64xf32, #tpu.memory_space<vmem>>, vector<8x64xf32>,
    %c162 = arith.constant 162 : index
    %c0_144 = arith.constant 0 : index
    %240 = vector.load %arg10[%c162, %c0_144] : memref<288x64xf32, #tpu.memory_space<vmem>>, vector<9x64xf32>
    %c171 = arith.constant 171 : index
    %c0_145 = arith.constant 0 : index
    %241 = vector.load %arg10[%c171, %c0_145] : memref<288x64xf32, #tpu.memory_space<vmem>>, vector<9x64xf32>
    %242 = arith.maximumf %240, %241 : vector<9x64xf32>
    %243 = vector.extract_strided_slice %242 {offsets = [0, 0], sizes = [8, 64], strides = [1, 1]} : vector<9x64xf32> to vector<8x64xf32>
    %c121 = arith.constant 121 : index
    %c0_146 = arith.constant 0 : index
    %244 = vector.load %arg11[%c121, %c0_146] : memref<208x64xf32, #tpu.memory_space<vmem>>, vector<8x64xf32>
    tpu.vector_store %arg11[%c121, %c0_146], %243 {strides = array<i32>} : memref<208x64xf32, #tpu.memory_space<vmem>>, vector<8x64xf32>,
    %c180 = arith.constant 180 : index
    %c0_147 = arith.constant 0 : index
    %245 = vector.load %arg10[%c180, %c0_147] : memref<288x64xf32, #tpu.memory_space<vmem>>, vector<9x64xf32>
    %c189 = arith.constant 189 : index
    %c0_148 = arith.constant 0 : index
    %246 = vector.load %arg10[%c189, %c0_148] : memref<288x64xf32, #tpu.memory_space<vmem>>, vector<9x64xf32>
    %247 = arith.maximumf %245, %246 : vector<9x64xf32>
    %248 = vector.extract_strided_slice %247 {offsets = [0, 0], sizes = [8, 64], strides = [1, 1]} : vector<9x64xf32> to vector<8x64xf32>
    %c131 = arith.constant 131 : index
    %c0_149 = arith.constant 0 : index
    %249 = vector.load %arg11[%c131, %c0_149] : memref<208x64xf32, #tpu.memory_space<vmem>>, vector<8x64xf32>
    tpu.vector_store %arg11[%c131, %c0_149], %248 {strides = array<i32>} : memref<208x64xf32, #tpu.memory_space<vmem>>, vector<8x64xf32>,
    %c198 = arith.constant 198 : index
    %c0_150 = arith.constant 0 : index
    %250 = vector.load %arg10[%c198, %c0_150] : memref<288x64xf32, #tpu.memory_space<vmem>>, vector<9x64xf32>
    %c207 = arith.constant 207 : index
    %c0_151 = arith.constant 0 : index
    %251 = vector.load %arg10[%c207, %c0_151] : memref<288x64xf32, #tpu.memory_space<vmem>>, vector<9x64xf32>
    %252 = arith.maximumf %250, %251 : vector<9x64xf32>
    %253 = vector.extract_strided_slice %252 {offsets = [0, 0], sizes = [8, 64], strides = [1, 1]} : vector<9x64xf32> to vector<8x64xf32>
    %c141 = arith.constant 141 : index
    %c0_152 = arith.constant 0 : index
    %254 = vector.load %arg11[%c141, %c0_152] : memref<208x64xf32, #tpu.memory_space<vmem>>, vector<8x64xf32>
    tpu.vector_store %arg11[%c141, %c0_152], %253 {strides = array<i32>} : memref<208x64xf32, #tpu.memory_space<vmem>>, vector<8x64xf32>,
    %c216 = arith.constant 216 : index
    %c0_153 = arith.constant 0 : index
    %255 = vector.load %arg10[%c216, %c0_153] : memref<288x64xf32, #tpu.memory_space<vmem>>, vector<9x64xf32>
    %c225 = arith.constant 225 : index
    %c0_154 = arith.constant 0 : index
    %256 = vector.load %arg10[%c225, %c0_154] : memref<288x64xf32, #tpu.memory_space<vmem>>, vector<9x64xf32>
    %257 = arith.maximumf %255, %256 : vector<9x64xf32>
    %258 = vector.extract_strided_slice %257 {offsets = [0, 0], sizes = [8, 64], strides = [1, 1]} : vector<9x64xf32> to vector<8x64xf32>
    %c151 = arith.constant 151 : index
    %c0_155 = arith.constant 0 : index
    %259 = vector.load %arg11[%c151, %c0_155] : memref<208x64xf32, #tpu.memory_space<vmem>>, vector<8x64xf32>
    tpu.vector_store %arg11[%c151, %c0_155], %258 {strides = array<i32>} : memref<208x64xf32, #tpu.memory_space<vmem>>, vector<8x64xf32>,
    %c234 = arith.constant 234 : index
    %c0_156 = arith.constant 0 : index
    %260 = vector.load %arg10[%c234, %c0_156] : memref<288x64xf32, #tpu.memory_space<vmem>>, vector<9x64xf32>
    %c243 = arith.constant 243 : index
    %c0_157 = arith.constant 0 : index
    %261 = vector.load %arg10[%c243, %c0_157] : memref<288x64xf32, #tpu.memory_space<vmem>>, vector<9x64xf32>
    %262 = arith.maximumf %260, %261 : vector<9x64xf32>
    %263 = vector.extract_strided_slice %262 {offsets = [0, 0], sizes = [8, 64], strides = [1, 1]} : vector<9x64xf32> to vector<8x64xf32>
    %c161 = arith.constant 161 : index
    %c0_158 = arith.constant 0 : index
    %264 = vector.load %arg11[%c161, %c0_158] : memref<208x64xf32, #tpu.memory_space<vmem>>, vector<8x64xf32>
    tpu.vector_store %arg11[%c161, %c0_158], %263 {strides = array<i32>} : memref<208x64xf32, #tpu.memory_space<vmem>>, vector<8x64xf32>,
    %c252 = arith.constant 252 : index
    %c0_159 = arith.constant 0 : index
    %265 = vector.load %arg10[%c252, %c0_159] : memref<288x64xf32, #tpu.memory_space<vmem>>, vector<9x64xf32>
    %c261 = arith.constant 261 : index
    %c0_160 = arith.constant 0 : index
    %266 = vector.load %arg10[%c261, %c0_160] : memref<288x64xf32, #tpu.memory_space<vmem>>, vector<9x64xf32>
    %267 = arith.maximumf %265, %266 : vector<9x64xf32>
    %268 = vector.extract_strided_slice %267 {offsets = [0, 0], sizes = [8, 64], strides = [1, 1]} : vector<9x64xf32> to vector<8x64xf32>
    %c171_161 = arith.constant 171 : index
    %c0_162 = arith.constant 0 : index
    %269 = vector.load %arg11[%c171_161, %c0_162] : memref<208x64xf32, #tpu.memory_space<vmem>>, vector<8x64xf32>
    tpu.vector_store %arg11[%c171_161, %c0_162], %268 {strides = array<i32>} : memref<208x64xf32, #tpu.memory_space<vmem>>, vector<8x64xf32>,
    %c270 = arith.constant 270 : index
    %c0_163 = arith.constant 0 : index
    %270 = vector.load %arg10[%c270, %c0_163] : memref<288x64xf32, #tpu.memory_space<vmem>>, vector<9x64xf32>
    %c279 = arith.constant 279 : index
    %c0_164 = arith.constant 0 : index
    %271 = vector.load %arg10[%c279, %c0_164] : memref<288x64xf32, #tpu.memory_space<vmem>>, vector<9x64xf32>
    %272 = arith.maximumf %270, %271 : vector<9x64xf32>
    %273 = vector.extract_strided_slice %272 {offsets = [0, 0], sizes = [8, 64], strides = [1, 1]} : vector<9x64xf32> to vector<8x64xf32>
    %c181 = arith.constant 181 : index
    %c0_165 = arith.constant 0 : index
    %274 = vector.load %arg11[%c181, %c0_165] : memref<208x64xf32, #tpu.memory_space<vmem>>, vector<8x64xf32>
    tpu.vector_store %arg11[%c181, %c0_165], %273 {strides = array<i32>} : memref<208x64xf32, #tpu.memory_space<vmem>>, vector<8x64xf32>,
    %c0_166 = arith.constant 0 : index
    %c0_167 = arith.constant 0 : index
    %275 = vector.load %arg11[%c0_166, %c0_167] : memref<208x64xf32, #tpu.memory_space<vmem>>, vector<80x64xf32>
    %c0_168 = arith.constant 0 : index
    %c0_169 = arith.constant 0 : index
    %276 = vector.load %arg12[%c0_168, %c0_169] : memref<160x576xf32, #tpu.memory_space<vmem>>, vector<80x64xf32>
    tpu.vector_store %arg12[%c0_168, %c0_169], %275 {strides = array<i32>} : memref<160x576xf32, #tpu.memory_space<vmem>>, vector<80x64xf32>,
    %c1_170 = arith.constant 1 : index
    %c0_171 = arith.constant 0 : index
    %277 = vector.load %arg11[%c1_170, %c0_171] : memref<208x64xf32, #tpu.memory_space<vmem>>, vector<80x64xf32>
    %c0_172 = arith.constant 0 : index
    %c64_173 = arith.constant 64 : index
    %278 = vector.load %arg12[%c0_172, %c64_173] : memref<160x576xf32, #tpu.memory_space<vmem>>, vector<80x64xf32>
    tpu.vector_store %arg12[%c0_172, %c64_173], %277 {strides = array<i32>} : memref<160x576xf32, #tpu.memory_space<vmem>>, vector<80x64xf32>,
    %c2_174 = arith.constant 2 : index
    %c0_175 = arith.constant 0 : index
    %279 = vector.load %arg11[%c2_174, %c0_175] : memref<208x64xf32, #tpu.memory_space<vmem>>, vector<80x64xf32>
    %c0_176 = arith.constant 0 : index
    %c128 = arith.constant 128 : index
    %280 = vector.load %arg12[%c0_176, %c128] : memref<160x576xf32, #tpu.memory_space<vmem>>, vector<80x64xf32>
    tpu.vector_store %arg12[%c0_176, %c128], %279 {strides = array<i32>} : memref<160x576xf32, #tpu.memory_space<vmem>>, vector<80x64xf32>,
    %c10 = arith.constant 10 : index
    %c0_177 = arith.constant 0 : index
    %281 = vector.load %arg11[%c10, %c0_177] : memref<208x64xf32, #tpu.memory_space<vmem>>, vector<80x64xf32>
    %c0_178 = arith.constant 0 : index
    %c192_179 = arith.constant 192 : index
    %282 = vector.load %arg12[%c0_178, %c192_179] : memref<160x576xf32, #tpu.memory_space<vmem>>, vector<80x64xf32>
    tpu.vector_store %arg12[%c0_178, %c192_179], %281 {strides = array<i32>} : memref<160x576xf32, #tpu.memory_space<vmem>>, vector<80x64xf32>,
    %c11_180 = arith.constant 11 : index
    %c0_181 = arith.constant 0 : index
    %283 = vector.load %arg11[%c11_180, %c0_181] : memref<208x64xf32, #tpu.memory_space<vmem>>, vector<80x64xf32>
    %c0_182 = arith.constant 0 : index
    %c256 = arith.constant 256 : index
    %284 = vector.load %arg12[%c0_182, %c256] : memref<160x576xf32, #tpu.memory_space<vmem>>, vector<80x64xf32>
    tpu.vector_store %arg12[%c0_182, %c256], %283 {strides = array<i32>} : memref<160x576xf32, #tpu.memory_space<vmem>>, vector<80x64xf32>,
    %c12 = arith.constant 12 : index
    %c0_183 = arith.constant 0 : index
    %285 = vector.load %arg11[%c12, %c0_183] : memref<208x64xf32, #tpu.memory_space<vmem>>, vector<80x64xf32>
    %c0_184 = arith.constant 0 : index
    %c320 = arith.constant 320 : index
    %286 = vector.load %arg12[%c0_184, %c320] : memref<160x576xf32, #tpu.memory_space<vmem>>, vector<80x64xf32>
    tpu.vector_store %arg12[%c0_184, %c320], %285 {strides = array<i32>} : memref<160x576xf32, #tpu.memory_space<vmem>>, vector<80x64xf32>,
    %c20_185 = arith.constant 20 : index
    %c0_186 = arith.constant 0 : index
    %287 = vector.load %arg11[%c20_185, %c0_186] : memref<208x64xf32, #tpu.memory_space<vmem>>, vector<80x64xf32>
    %c0_187 = arith.constant 0 : index
    %c384_188 = arith.constant 384 : index
    %288 = vector.load %arg12[%c0_187, %c384_188] : memref<160x576xf32, #tpu.memory_space<vmem>>, vector<80x64xf32>
    tpu.vector_store %arg12[%c0_187, %c384_188], %287 {strides = array<i32>} : memref<160x576xf32, #tpu.memory_space<vmem>>, vector<80x64xf32>,
    %c21_189 = arith.constant 21 : index
    %c0_190 = arith.constant 0 : index
    %289 = vector.load %arg11[%c21_189, %c0_190] : memref<208x64xf32, #tpu.memory_space<vmem>>, vector<80x64xf32>
    %c0_191 = arith.constant 0 : index
    %c448 = arith.constant 448 : index
    %290 = vector.load %arg12[%c0_191, %c448] : memref<160x576xf32, #tpu.memory_space<vmem>>, vector<80x64xf32>
    tpu.vector_store %arg12[%c0_191, %c448], %289 {strides = array<i32>} : memref<160x576xf32, #tpu.memory_space<vmem>>, vector<80x64xf32>,
    %c22 = arith.constant 22 : index
    %c0_192 = arith.constant 0 : index
    %291 = vector.load %arg11[%c22, %c0_192] : memref<208x64xf32, #tpu.memory_space<vmem>>, vector<80x64xf32>
    %c0_193 = arith.constant 0 : index
    %c512 = arith.constant 512 : index
    %292 = vector.load %arg12[%c0_193, %c512] : memref<160x576xf32, #tpu.memory_space<vmem>>, vector<80x64xf32>
    tpu.vector_store %arg12[%c0_193, %c512], %291 {strides = array<i32>} : memref<160x576xf32, #tpu.memory_space<vmem>>, vector<80x64xf32>,
    %c100 = arith.constant 100 : index
    %c0_194 = arith.constant 0 : index
    %293 = vector.load %arg11[%c100, %c0_194] : memref<208x64xf32, #tpu.memory_space<vmem>>, vector<80x64xf32>
    %c80 = arith.constant 80 : index
    %c0_195 = arith.constant 0 : index
    %294 = vector.load %arg12[%c80, %c0_195] : memref<160x576xf32, #tpu.memory_space<vmem>>, vector<80x64xf32>
    tpu.vector_store %arg12[%c80, %c0_195], %293 {strides = array<i32>} : memref<160x576xf32, #tpu.memory_space<vmem>>, vector<80x64xf32>,
    %c101 = arith.constant 101 : index
    %c0_196 = arith.constant 0 : index
    %295 = vector.load %arg11[%c101, %c0_196] : memref<208x64xf32, #tpu.memory_space<vmem>>, vector<80x64xf32>
    %c80_197 = arith.constant 80 : index
    %c64_198 = arith.constant 64 : index
    %296 = vector.load %arg12[%c80_197, %c64_198] : memref<160x576xf32, #tpu.memory_space<vmem>>, vector<80x64xf32>
    tpu.vector_store %arg12[%c80_197, %c64_198], %295 {strides = array<i32>} : memref<160x576xf32, #tpu.memory_space<vmem>>, vector<80x64xf32>,
    %c102 = arith.constant 102 : index
    %c0_199 = arith.constant 0 : index
    %297 = vector.load %arg11[%c102, %c0_199] : memref<208x64xf32, #tpu.memory_space<vmem>>, vector<80x64xf32>
    %c80_200 = arith.constant 80 : index
    %c128_201 = arith.constant 128 : index
    %298 = vector.load %arg12[%c80_200, %c128_201] : memref<160x576xf32, #tpu.memory_space<vmem>>, vector<80x64xf32>
    tpu.vector_store %arg12[%c80_200, %c128_201], %297 {strides = array<i32>} : memref<160x576xf32, #tpu.memory_space<vmem>>, vector<80x64xf32>,
    %c110 = arith.constant 110 : index
    %c0_202 = arith.constant 0 : index
    %299 = vector.load %arg11[%c110, %c0_202] : memref<208x64xf32, #tpu.memory_space<vmem>>, vector<80x64xf32>
    %c80_203 = arith.constant 80 : index
    %c192_204 = arith.constant 192 : index
    %300 = vector.load %arg12[%c80_203, %c192_204] : memref<160x576xf32, #tpu.memory_space<vmem>>, vector<80x64xf32>
    tpu.vector_store %arg12[%c80_203, %c192_204], %299 {strides = array<i32>} : memref<160x576xf32, #tpu.memory_space<vmem>>, vector<80x64xf32>,
    %c111_205 = arith.constant 111 : index
    %c0_206 = arith.constant 0 : index
    %301 = vector.load %arg11[%c111_205, %c0_206] : memref<208x64xf32, #tpu.memory_space<vmem>>, vector<80x64xf32>
    %c80_207 = arith.constant 80 : index
    %c256_208 = arith.constant 256 : index
    %302 = vector.load %arg12[%c80_207, %c256_208] : memref<160x576xf32, #tpu.memory_space<vmem>>, vector<80x64xf32>
    tpu.vector_store %arg12[%c80_207, %c256_208], %301 {strides = array<i32>} : memref<160x576xf32, #tpu.memory_space<vmem>>, vector<80x64xf32>,
    %c112 = arith.constant 112 : index
    %c0_209 = arith.constant 0 : index
    %303 = vector.load %arg11[%c112, %c0_209] : memref<208x64xf32, #tpu.memory_space<vmem>>, vector<80x64xf32>
    %c80_210 = arith.constant 80 : index
    %c320_211 = arith.constant 320 : index
    %304 = vector.load %arg12[%c80_210, %c320_211] : memref<160x576xf32, #tpu.memory_space<vmem>>, vector<80x64xf32>
    tpu.vector_store %arg12[%c80_210, %c320_211], %303 {strides = array<i32>} : memref<160x576xf32, #tpu.memory_space<vmem>>, vector<80x64xf32>,
    %c120 = arith.constant 120 : index
    %c0_212 = arith.constant 0 : index
    %305 = vector.load %arg11[%c120, %c0_212] : memref<208x64xf32, #tpu.memory_space<vmem>>, vector<80x64xf32>
    %c80_213 = arith.constant 80 : index
    %c384_214 = arith.constant 384 : index
    %306 = vector.load %arg12[%c80_213, %c384_214] : memref<160x576xf32, #tpu.memory_space<vmem>>, vector<80x64xf32>
    tpu.vector_store %arg12[%c80_213, %c384_214], %305 {strides = array<i32>} : memref<160x576xf32, #tpu.memory_space<vmem>>, vector<80x64xf32>,
    %c121_215 = arith.constant 121 : index
    %c0_216 = arith.constant 0 : index
    %307 = vector.load %arg11[%c121_215, %c0_216] : memref<208x64xf32, #tpu.memory_space<vmem>>, vector<80x64xf32>
    %c80_217 = arith.constant 80 : index
    %c448_218 = arith.constant 448 : index
    %308 = vector.load %arg12[%c80_217, %c448_218] : memref<160x576xf32, #tpu.memory_space<vmem>>, vector<80x64xf32>
    tpu.vector_store %arg12[%c80_217, %c448_218], %307 {strides = array<i32>} : memref<160x576xf32, #tpu.memory_space<vmem>>, vector<80x64xf32>,
    %c122 = arith.constant 122 : index
    %c0_219 = arith.constant 0 : index
    %309 = vector.load %arg11[%c122, %c0_219] : memref<208x64xf32, #tpu.memory_space<vmem>>, vector<80x64xf32>
    %c80_220 = arith.constant 80 : index
    %c512_221 = arith.constant 512 : index
    %310 = vector.load %arg12[%c80_220, %c512_221] : memref<160x576xf32, #tpu.memory_space<vmem>>, vector<80x64xf32>
    tpu.vector_store %arg12[%c80_220, %c512_221], %309 {strides = array<i32>} : memref<160x576xf32, #tpu.memory_space<vmem>>, vector<80x64xf32>,
    %c0_222 = arith.constant 0 : index
    %c0_223 = arith.constant 0 : index
    %311 = vector.load %arg4[%c0_222, %c0_223] : memref<576x16xbf16, #tpu.memory_space<vmem>>, vector<576x16xbf16>
    %cst_224 = arith.constant 0.000000e+00 : f32
    %312 = vector.broadcast %cst_224 : f32 to vector<1x16xf32>
    %cst_225 = arith.constant 0.000000e+00 : f32
    %313 = vector.broadcast %cst_225 : f32 to vector<1x16xf32>
    %c0_226 = arith.constant 0 : index
    %c0_227 = arith.constant 0 : index
    %314 = vector.load %arg12[%c0_226, %c0_227] : memref<160x576xf32, #tpu.memory_space<vmem>>, vector<32x576xf32>
    %315 = arith.truncf %314 : vector<32x576xf32> to vector<32x576xbf16>
    %cst_228 = arith.constant dense<0.000000e+00> : vector<32x16xf32>
    %316 = tpu.matmul %315, %311, %cst_228 {dimension_numbers = #tpu.dot_dimension_numbers<[1], [0], [0], [1], [0, 0, 1, 1], [], []>} : vector<32x576xbf16>, vector<576x16xbf16>, vector<32x16xf32> -> vector<32x16xf32>
    %c0_229 = arith.constant 0 : index
    %c0_230 = arith.constant 0 : index
    %317 = vector.load %arg13[%c0_229, %c0_230] : memref<160x16xf32, #tpu.memory_space<vmem>>, vector<32x16xf32>
    tpu.vector_store %arg13[%c0_229, %c0_230], %316 {strides = array<i32>} : memref<160x16xf32, #tpu.memory_space<vmem>>, vector<32x16xf32>,
    %318 = tpu.iota {dimensions = array<i32: 0>} : vector<32x1xi32>
    %c0_i32_231 = arith.constant 0 : i32
    %319 = vector.broadcast %c0_i32_231 : i32 to vector<32x1xi32>
    %320 = arith.addi %319, %318 : vector<32x1xi32>
    %c10_i32 = arith.constant 10 : i32
    %c0_i32_232 = arith.constant 0 : i32
    %321 = arith.cmpi eq, %c10_i32, %c0_i32_232 : i32
    %c1_i32_233 = arith.constant 1 : i32
    %322 = arith.select %321, %c1_i32_233, %c10_i32 : i32
    %323 = vector.broadcast %322 : i32 to vector<32x1xi32>
    %324 = arith.remsi %320, %323 : vector<32x1xi32>
    %c0_i32_234 = arith.constant 0 : i32
    %325 = vector.broadcast %c0_i32_234 : i32 to vector<32x1xi32>
    %326 = arith.cmpi ne, %324, %325 : vector<32x1xi32>
    %c0_i32_235 = arith.constant 0 : i32
    %327 = vector.broadcast %c0_i32_235 : i32 to vector<32x1xi32>
    %328 = arith.cmpi slt, %324, %327 : vector<32x1xi32>
    %c0_i32_236 = arith.constant 0 : i32
    %329 = arith.cmpi slt, %322, %c0_i32_236 : i32
    %330 = vector.broadcast %329 : i1 to vector<32x1xi1>
    %331 = vector.broadcast %330 : vector<32x1xi1> to vector<32x1xi1>
    %332 = arith.xori %328, %331 : vector<32x1xi1>
    %333 = arith.andi %332, %326 : vector<32x1xi1>
    %334 = vector.broadcast %322 : i32 to vector<32x1xi32>
    %335 = arith.addi %324, %334 : vector<32x1xi32>
    %336 = arith.select %333, %335, %324 : vector<32x1xi1>, vector<32x1xi32>
    %c8_i32 = arith.constant 8 : i32
    %337 = vector.broadcast %c8_i32 : i32 to vector<32x1xi32>
    %338 = arith.cmpi slt, %336, %337 : vector<32x1xi32>
    %cst_237 = arith.constant 0.000000e+00 : f32
    %339 = vector.shape_cast %338 : vector<32x1xi1> to vector<32x1xi1>
    %340 = vector.broadcast %339 : vector<32x1xi1> to vector<32x16xi1>
    %341 = vector.broadcast %cst_237 : f32 to vector<32x16xf32>
    %342 = arith.select %340, %316, %341 : vector<32x16xi1>, vector<32x16xf32>
    %cst_238 = arith.constant dense<0.000000e+00> : vector<16xf32>
    %343 = vector.multi_reduction <add>, %342, %cst_238 [0] : vector<32x16xf32> to vector<16xf32>
    %344 = vector.shape_cast %343 : vector<16xf32> to vector<1x16xf32>
    %345 = arith.addf %312, %344 : vector<1x16xf32>
    %346 = arith.mulf %342, %316 : vector<32x16xf32>
    %cst_239 = arith.constant dense<0.000000e+00> : vector<16xf32>
    %347 = vector.multi_reduction <add>, %346, %cst_239 [0] : vector<32x16xf32> to vector<16xf32>
    %348 = vector.shape_cast %347 : vector<16xf32> to vector<1x16xf32>
    %349 = arith.addf %313, %348 : vector<1x16xf32>
    %c32_240 = arith.constant 32 : index
    %c0_241 = arith.constant 0 : index
    %350 = vector.load %arg12[%c32_240, %c0_241] : memref<160x576xf32, #tpu.memory_space<vmem>>, vector<32x576xf32>
    %351 = arith.truncf %350 : vector<32x576xf32> to vector<32x576xbf16>
    %cst_242 = arith.constant dense<0.000000e+00> : vector<32x16xf32>
    %352 = tpu.matmul %351, %311, %cst_242 {dimension_numbers = #tpu.dot_dimension_numbers<[1], [0], [0], [1], [0, 0, 1, 1], [], []>} : vector<32x576xbf16>, vector<576x16xbf16>, vector<32x16xf32> -> vector<32x16xf32>
    %c32_243 = arith.constant 32 : index
    %c0_244 = arith.constant 0 : index
    %353 = vector.load %arg13[%c32_243, %c0_244] : memref<160x16xf32, #tpu.memory_space<vmem>>, vector<32x16xf32>
    tpu.vector_store %arg13[%c32_243, %c0_244], %352 {strides = array<i32>} : memref<160x16xf32, #tpu.memory_space<vmem>>, vector<32x16xf32>,
    %354 = tpu.iota {dimensions = array<i32: 0>} : vector<32x1xi32>
    %c32_i32 = arith.constant 32 : i32
    %355 = vector.broadcast %c32_i32 : i32 to vector<32x1xi32>
    %356 = arith.addi %355, %354 : vector<32x1xi32>
    %c10_i32_245 = arith.constant 10 : i32
    %c0_i32_246 = arith.constant 0 : i32
    %357 = arith.cmpi eq, %c10_i32_245, %c0_i32_246 : i32
    %c1_i32_247 = arith.constant 1 : i32
    %358 = arith.select %357, %c1_i32_247, %c10_i32_245 : i32
    %359 = vector.broadcast %358 : i32 to vector<32x1xi32>
    %360 = arith.remsi %356, %359 : vector<32x1xi32>
    %c0_i32_248 = arith.constant 0 : i32
    %361 = vector.broadcast %c0_i32_248 : i32 to vector<32x1xi32>
    %362 = arith.cmpi ne, %360, %361 : vector<32x1xi32>
    %c0_i32_249 = arith.constant 0 : i32
    %363 = vector.broadcast %c0_i32_249 : i32 to vector<32x1xi32>
    %364 = arith.cmpi slt, %360, %363 : vector<32x1xi32>
    %c0_i32_250 = arith.constant 0 : i32
    %365 = arith.cmpi slt, %358, %c0_i32_250 : i32
    %366 = vector.broadcast %365 : i1 to vector<32x1xi1>
    %367 = vector.broadcast %366 : vector<32x1xi1> to vector<32x1xi1>
    %368 = arith.xori %364, %367 : vector<32x1xi1>
    %369 = arith.andi %368, %362 : vector<32x1xi1>
    %370 = vector.broadcast %358 : i32 to vector<32x1xi32>
    %371 = arith.addi %360, %370 : vector<32x1xi32>
    %372 = arith.select %369, %371, %360 : vector<32x1xi1>, vector<32x1xi32>
    %c8_i32_251 = arith.constant 8 : i32
    %373 = vector.broadcast %c8_i32_251 : i32 to vector<32x1xi32>
    %374 = arith.cmpi slt, %372, %373 : vector<32x1xi32>
    %cst_252 = arith.constant 0.000000e+00 : f32
    %375 = vector.shape_cast %374 : vector<32x1xi1> to vector<32x1xi1>
    %376 = vector.broadcast %375 : vector<32x1xi1> to vector<32x16xi1>
    %377 = vector.broadcast %cst_252 : f32 to vector<32x16xf32>
    %378 = arith.select %376, %352, %377 : vector<32x16xi1>, vector<32x16xf32>
    %cst_253 = arith.constant dense<0.000000e+00> : vector<16xf32>
    %379 = vector.multi_reduction <add>, %378, %cst_253 [0] : vector<32x16xf32> to vector<16xf32>
    %380 = vector.shape_cast %379 : vector<16xf32> to vector<1x16xf32>
    %381 = arith.addf %345, %380 : vector<1x16xf32>
    %382 = arith.mulf %378, %352 : vector<32x16xf32>
    %cst_254 = arith.constant dense<0.000000e+00> : vector<16xf32>
    %383 = vector.multi_reduction <add>, %382, %cst_254 [0] : vector<32x16xf32> to vector<16xf32>
    %384 = vector.shape_cast %383 : vector<16xf32> to vector<1x16xf32>
    %385 = arith.addf %349, %384 : vector<1x16xf32>
    %c64_255 = arith.constant 64 : index
    %c0_256 = arith.constant 0 : index
    %386 = vector.load %arg12[%c64_255, %c0_256] : memref<160x576xf32, #tpu.memory_space<vmem>>, vector<32x576xf32>
    %387 = arith.truncf %386 : vector<32x576xf32> to vector<32x576xbf16>
    %cst_257 = arith.constant dense<0.000000e+00> : vector<32x16xf32>
    %388 = tpu.matmul %387, %311, %cst_257 {dimension_numbers = #tpu.dot_dimension_numbers<[1], [0], [0], [1], [0, 0, 1, 1], [], []>} : vector<32x576xbf16>, vector<576x16xbf16>, vector<32x16xf32> -> vector<32x16xf32>
    %c64_258 = arith.constant 64 : index
    %c0_259 = arith.constant 0 : index
    %389 = vector.load %arg13[%c64_258, %c0_259] : memref<160x16xf32, #tpu.memory_space<vmem>>, vector<32x16xf32>
    tpu.vector_store %arg13[%c64_258, %c0_259], %388 {strides = array<i32>} : memref<160x16xf32, #tpu.memory_space<vmem>>, vector<32x16xf32>,
    %390 = tpu.iota {dimensions = array<i32: 0>} : vector<32x1xi32>
    %c64_i32 = arith.constant 64 : i32
    %391 = vector.broadcast %c64_i32 : i32 to vector<32x1xi32>
    %392 = arith.addi %391, %390 : vector<32x1xi32>
    %c10_i32_260 = arith.constant 10 : i32
    %c0_i32_261 = arith.constant 0 : i32
    %393 = arith.cmpi eq, %c10_i32_260, %c0_i32_261 : i32
    %c1_i32_262 = arith.constant 1 : i32
    %394 = arith.select %393, %c1_i32_262, %c10_i32_260 : i32
    %395 = vector.broadcast %394 : i32 to vector<32x1xi32>
    %396 = arith.remsi %392, %395 : vector<32x1xi32>
    %c0_i32_263 = arith.constant 0 : i32
    %397 = vector.broadcast %c0_i32_263 : i32 to vector<32x1xi32>
    %398 = arith.cmpi ne, %396, %397 : vector<32x1xi32>
    %c0_i32_264 = arith.constant 0 : i32
    %399 = vector.broadcast %c0_i32_264 : i32 to vector<32x1xi32>
    %400 = arith.cmpi slt, %396, %399 : vector<32x1xi32>
    %c0_i32_265 = arith.constant 0 : i32
    %401 = arith.cmpi slt, %394, %c0_i32_265 : i32
    %402 = vector.broadcast %401 : i1 to vector<32x1xi1>
    %403 = vector.broadcast %402 : vector<32x1xi1> to vector<32x1xi1>
    %404 = arith.xori %400, %403 : vector<32x1xi1>
    %405 = arith.andi %404, %398 : vector<32x1xi1>
    %406 = vector.broadcast %394 : i32 to vector<32x1xi32>
    %407 = arith.addi %396, %406 : vector<32x1xi32>
    %408 = arith.select %405, %407, %396 : vector<32x1xi1>, vector<32x1xi32>
    %c8_i32_266 = arith.constant 8 : i32
    %409 = vector.broadcast %c8_i32_266 : i32 to vector<32x1xi32>
    %410 = arith.cmpi slt, %408, %409 : vector<32x1xi32>
    %cst_267 = arith.constant 0.000000e+00 : f32
    %411 = vector.shape_cast %410 : vector<32x1xi1> to vector<32x1xi1>
    %412 = vector.broadcast %411 : vector<32x1xi1> to vector<32x16xi1>
    %413 = vector.broadcast %cst_267 : f32 to vector<32x16xf32>
    %414 = arith.select %412, %388, %413 : vector<32x16xi1>, vector<32x16xf32>
    %cst_268 = arith.constant dense<0.000000e+00> : vector<16xf32>
    %415 = vector.multi_reduction <add>, %414, %cst_268 [0] : vector<32x16xf32> to vector<16xf32>
    %416 = vector.shape_cast %415 : vector<16xf32> to vector<1x16xf32>
    %417 = arith.addf %381, %416 : vector<1x16xf32>
    %418 = arith.mulf %414, %388 : vector<32x16xf32>
    %cst_269 = arith.constant dense<0.000000e+00> : vector<16xf32>
    %419 = vector.multi_reduction <add>, %418, %cst_269 [0] : vector<32x16xf32> to vector<16xf32>
    %420 = vector.shape_cast %419 : vector<16xf32> to vector<1x16xf32>
    %421 = arith.addf %385, %420 : vector<1x16xf32>
    %c96 = arith.constant 96 : index
    %c0_270 = arith.constant 0 : index
    %422 = vector.load %arg12[%c96, %c0_270] : memref<160x576xf32, #tpu.memory_space<vmem>>, vector<32x576xf32>
    %423 = arith.truncf %422 : vector<32x576xf32> to vector<32x576xbf16>
    %cst_271 = arith.constant dense<0.000000e+00> : vector<32x16xf32>
    %424 = tpu.matmul %423, %311, %cst_271 {dimension_numbers = #tpu.dot_dimension_numbers<[1], [0], [0], [1], [0, 0, 1, 1], [], []>} : vector<32x576xbf16>, vector<576x16xbf16>, vector<32x16xf32> -> vector<32x16xf32>
    %c96_272 = arith.constant 96 : index
    %c0_273 = arith.constant 0 : index
    %425 = vector.load %arg13[%c96_272, %c0_273] : memref<160x16xf32, #tpu.memory_space<vmem>>, vector<32x16xf32>
    tpu.vector_store %arg13[%c96_272, %c0_273], %424 {strides = array<i32>} : memref<160x16xf32, #tpu.memory_space<vmem>>, vector<32x16xf32>,
    %426 = tpu.iota {dimensions = array<i32: 0>} : vector<32x1xi32>
    %c96_i32 = arith.constant 96 : i32
    %427 = vector.broadcast %c96_i32 : i32 to vector<32x1xi32>
    %428 = arith.addi %427, %426 : vector<32x1xi32>
    %c10_i32_274 = arith.constant 10 : i32
    %c0_i32_275 = arith.constant 0 : i32
    %429 = arith.cmpi eq, %c10_i32_274, %c0_i32_275 : i32
    %c1_i32_276 = arith.constant 1 : i32
    %430 = arith.select %429, %c1_i32_276, %c10_i32_274 : i32
    %431 = vector.broadcast %430 : i32 to vector<32x1xi32>
    %432 = arith.remsi %428, %431 : vector<32x1xi32>
    %c0_i32_277 = arith.constant 0 : i32
    %433 = vector.broadcast %c0_i32_277 : i32 to vector<32x1xi32>
    %434 = arith.cmpi ne, %432, %433 : vector<32x1xi32>
    %c0_i32_278 = arith.constant 0 : i32
    %435 = vector.broadcast %c0_i32_278 : i32 to vector<32x1xi32>
    %436 = arith.cmpi slt, %432, %435 : vector<32x1xi32>
    %c0_i32_279 = arith.constant 0 : i32
    %437 = arith.cmpi slt, %430, %c0_i32_279 : i32
    %438 = vector.broadcast %437 : i1 to vector<32x1xi1>
    %439 = vector.broadcast %438 : vector<32x1xi1> to vector<32x1xi1>
    %440 = arith.xori %436, %439 : vector<32x1xi1>
    %441 = arith.andi %440, %434 : vector<32x1xi1>
    %442 = vector.broadcast %430 : i32 to vector<32x1xi32>
    %443 = arith.addi %432, %442 : vector<32x1xi32>
    %444 = arith.select %441, %443, %432 : vector<32x1xi1>, vector<32x1xi32>
    %c8_i32_280 = arith.constant 8 : i32
    %445 = vector.broadcast %c8_i32_280 : i32 to vector<32x1xi32>
    %446 = arith.cmpi slt, %444, %445 : vector<32x1xi32>
    %cst_281 = arith.constant 0.000000e+00 : f32
    %447 = vector.shape_cast %446 : vector<32x1xi1> to vector<32x1xi1>
    %448 = vector.broadcast %447 : vector<32x1xi1> to vector<32x16xi1>
    %449 = vector.broadcast %cst_281 : f32 to vector<32x16xf32>
    %450 = arith.select %448, %424, %449 : vector<32x16xi1>, vector<32x16xf32>
    %cst_282 = arith.constant dense<0.000000e+00> : vector<16xf32>
    %451 = vector.multi_reduction <add>, %450, %cst_282 [0] : vector<32x16xf32> to vector<16xf32>
    %452 = vector.shape_cast %451 : vector<16xf32> to vector<1x16xf32>
    %453 = arith.addf %417, %452 : vector<1x16xf32>
    %454 = arith.mulf %450, %424 : vector<32x16xf32>
    %cst_283 = arith.constant dense<0.000000e+00> : vector<16xf32>
    %455 = vector.multi_reduction <add>, %454, %cst_283 [0] : vector<32x16xf32> to vector<16xf32>
    %456 = vector.shape_cast %455 : vector<16xf32> to vector<1x16xf32>
    %457 = arith.addf %421, %456 : vector<1x16xf32>
    %c128_284 = arith.constant 128 : index
    %c0_285 = arith.constant 0 : index
    %458 = vector.load %arg12[%c128_284, %c0_285] : memref<160x576xf32, #tpu.memory_space<vmem>>, vector<32x576xf32>
    %459 = arith.truncf %458 : vector<32x576xf32> to vector<32x576xbf16>
    %cst_286 = arith.constant dense<0.000000e+00> : vector<32x16xf32>
    %460 = tpu.matmul %459, %311, %cst_286 {dimension_numbers = #tpu.dot_dimension_numbers<[1], [0], [0], [1], [0, 0, 1, 1], [], []>} : vector<32x576xbf16>, vector<576x16xbf16>, vector<32x16xf32> -> vector<32x16xf32>
    %c128_287 = arith.constant 128 : index
    %c0_288 = arith.constant 0 : index
    %461 = vector.load %arg13[%c128_287, %c0_288] : memref<160x16xf32, #tpu.memory_space<vmem>>, vector<32x16xf32>
    tpu.vector_store %arg13[%c128_287, %c0_288], %460 {strides = array<i32>} : memref<160x16xf32, #tpu.memory_space<vmem>>, vector<32x16xf32>,
    %462 = tpu.iota {dimensions = array<i32: 0>} : vector<32x1xi32>
    %c128_i32 = arith.constant 128 : i32
    %463 = vector.broadcast %c128_i32 : i32 to vector<32x1xi32>
    %464 = arith.addi %463, %462 : vector<32x1xi32>
    %c10_i32_289 = arith.constant 10 : i32
    %c0_i32_290 = arith.constant 0 : i32
    %465 = arith.cmpi eq, %c10_i32_289, %c0_i32_290 : i32
    %c1_i32_291 = arith.constant 1 : i32
    %466 = arith.select %465, %c1_i32_291, %c10_i32_289 : i32
    %467 = vector.broadcast %466 : i32 to vector<32x1xi32>
    %468 = arith.remsi %464, %467 : vector<32x1xi32>
    %c0_i32_292 = arith.constant 0 : i32
    %469 = vector.broadcast %c0_i32_292 : i32 to vector<32x1xi32>
    %470 = arith.cmpi ne, %468, %469 : vector<32x1xi32>
    %c0_i32_293 = arith.constant 0 : i32
    %471 = vector.broadcast %c0_i32_293 : i32 to vector<32x1xi32>
    %472 = arith.cmpi slt, %468, %471 : vector<32x1xi32>
    %c0_i32_294 = arith.constant 0 : i32
    %473 = arith.cmpi slt, %466, %c0_i32_294 : i32
    %474 = vector.broadcast %473 : i1 to vector<32x1xi1>
    %475 = vector.broadcast %474 : vector<32x1xi1> to vector<32x1xi1>
    %476 = arith.xori %472, %475 : vector<32x1xi1>
    %477 = arith.andi %476, %470 : vector<32x1xi1>
    %478 = vector.broadcast %466 : i32 to vector<32x1xi32>
    %479 = arith.addi %468, %478 : vector<32x1xi32>
    %480 = arith.select %477, %479, %468 : vector<32x1xi1>, vector<32x1xi32>
    %c8_i32_295 = arith.constant 8 : i32
    %481 = vector.broadcast %c8_i32_295 : i32 to vector<32x1xi32>
    %482 = arith.cmpi slt, %480, %481 : vector<32x1xi32>
    %cst_296 = arith.constant 0.000000e+00 : f32
    %483 = vector.shape_cast %482 : vector<32x1xi1> to vector<32x1xi1>
    %484 = vector.broadcast %483 : vector<32x1xi1> to vector<32x16xi1>
    %485 = vector.broadcast %cst_296 : f32 to vector<32x16xf32>
    %486 = arith.select %484, %460, %485 : vector<32x16xi1>, vector<32x16xf32>
    %cst_297 = arith.constant dense<0.000000e+00> : vector<16xf32>
    %487 = vector.multi_reduction <add>, %486, %cst_297 [0] : vector<32x16xf32> to vector<16xf32>
    %488 = vector.shape_cast %487 : vector<16xf32> to vector<1x16xf32>
    %489 = arith.addf %453, %488 : vector<1x16xf32>
    %490 = arith.mulf %486, %460 : vector<32x16xf32>
    %cst_298 = arith.constant dense<0.000000e+00> : vector<16xf32>
    %491 = vector.multi_reduction <add>, %490, %cst_298 [0] : vector<32x16xf32> to vector<16xf32>
    %492 = vector.shape_cast %491 : vector<16xf32> to vector<1x16xf32>
    %493 = arith.addf %457, %492 : vector<1x16xf32>
    %cst_299 = arith.constant 7.812500e-03 : f32
    %494 = vector.broadcast %cst_299 : f32 to vector<1x16xf32>
    %495 = arith.mulf %489, %494 : vector<1x16xf32>
    %cst_300 = arith.constant 7.812500e-03 : f32
    %496 = vector.broadcast %cst_300 : f32 to vector<1x16xf32>
    %497 = arith.mulf %493, %496 : vector<1x16xf32>
    %498 = arith.mulf %495, %495 : vector<1x16xf32>
    %499 = arith.subf %497, %498 : vector<1x16xf32>
    %c0_301 = arith.constant 0 : index
    %c0_302 = arith.constant 0 : index
    %500 = vector.load %arg5[%c0_301, %c0_302] : memref<1x16xf32, #tpu.memory_space<vmem>>, vector<1x16xf32>
    %cst_303 = arith.constant 9.99999974E-6 : f32
    %501 = vector.broadcast %cst_303 : f32 to vector<1x16xf32>
    %502 = arith.addf %499, %501 : vector<1x16xf32>
    %503 = math.rsqrt %502 : vector<1x16xf32>
    %504 = arith.mulf %500, %503 : vector<1x16xf32>
    %c0_304 = arith.constant 0 : index
    %c0_305 = arith.constant 0 : index
    %505 = vector.load %arg6[%c0_304, %c0_305] : memref<1x16xf32, #tpu.memory_space<vmem>>, vector<1x16xf32>
    %506 = arith.mulf %495, %504 : vector<1x16xf32>
    %507 = arith.subf %505, %506 : vector<1x16xf32>
    %c0_306 = arith.constant 0 : index
    %c0_307 = arith.constant 0 : index
    %508 = tpu.strided_load %arg13[%c0_306, %c0_307] {strides = array<i32: 2, 1>} : memref<160x16xf32, #tpu.memory_space<vmem>>, vector<40x16xf32>
    %c1_308 = arith.constant 1 : index
    %c0_309 = arith.constant 0 : index
    %509 = tpu.strided_load %arg13[%c1_308, %c0_309] {strides = array<i32: 2, 1>} : memref<160x16xf32, #tpu.memory_space<vmem>>, vector<40x16xf32>
    %510 = vector.broadcast %504 : vector<1x16xf32> to vector<40x16xf32>
    %511 = arith.mulf %508, %510 : vector<40x16xf32>
    %512 = vector.broadcast %507 : vector<1x16xf32> to vector<40x16xf32>
    %513 = arith.addf %511, %512 : vector<40x16xf32>
    %cst_310 = arith.constant 0.000000e+00 : f32
    %514 = vector.broadcast %cst_310 : f32 to vector<40x16xf32>
    %515 = arith.maximumf %513, %514 : vector<40x16xf32>
    %516 = vector.broadcast %504 : vector<1x16xf32> to vector<40x16xf32>
    %517 = arith.mulf %509, %516 : vector<40x16xf32>
    %518 = vector.broadcast %507 : vector<1x16xf32> to vector<40x16xf32>
    %519 = arith.addf %517, %518 : vector<40x16xf32>
    %cst_311 = arith.constant 0.000000e+00 : f32
    %520 = vector.broadcast %cst_311 : f32 to vector<40x16xf32>
    %521 = arith.maximumf %519, %520 : vector<40x16xf32>
    %522 = arith.maximumf %515, %521 : vector<40x16xf32>
    %c0_312 = arith.constant 0 : index
    %c0_313 = arith.constant 0 : index
    %523 = vector.load %arg14[%c0_312, %c0_313] : memref<80x16xf32, #tpu.memory_space<vmem>>, vector<40x16xf32>
    tpu.vector_store %arg14[%c0_312, %c0_313], %522 {strides = array<i32>} : memref<80x16xf32, #tpu.memory_space<vmem>>, vector<40x16xf32>,
    %c80_314 = arith.constant 80 : index
    %c0_315 = arith.constant 0 : index
    %524 = tpu.strided_load %arg13[%c80_314, %c0_315] {strides = array<i32: 2, 1>} : memref<160x16xf32, #tpu.memory_space<vmem>>, vector<40x16xf32>
    %c81_316 = arith.constant 81 : index
    %c0_317 = arith.constant 0 : index
    %525 = tpu.strided_load %arg13[%c81_316, %c0_317] {strides = array<i32: 2, 1>} : memref<160x16xf32, #tpu.memory_space<vmem>>, vector<40x16xf32>
    %526 = vector.broadcast %504 : vector<1x16xf32> to vector<40x16xf32>
    %527 = arith.mulf %524, %526 : vector<40x16xf32>
    %528 = vector.broadcast %507 : vector<1x16xf32> to vector<40x16xf32>
    %529 = arith.addf %527, %528 : vector<40x16xf32>
    %cst_318 = arith.constant 0.000000e+00 : f32
    %530 = vector.broadcast %cst_318 : f32 to vector<40x16xf32>
    %531 = arith.maximumf %529, %530 : vector<40x16xf32>
    %532 = vector.broadcast %504 : vector<1x16xf32> to vector<40x16xf32>
    %533 = arith.mulf %525, %532 : vector<40x16xf32>
    %534 = vector.broadcast %507 : vector<1x16xf32> to vector<40x16xf32>
    %535 = arith.addf %533, %534 : vector<40x16xf32>
    %cst_319 = arith.constant 0.000000e+00 : f32
    %536 = vector.broadcast %cst_319 : f32 to vector<40x16xf32>
    %537 = arith.maximumf %535, %536 : vector<40x16xf32>
    %538 = arith.maximumf %531, %537 : vector<40x16xf32>
    %c40_320 = arith.constant 40 : index
    %c0_321 = arith.constant 0 : index
    %539 = vector.load %arg14[%c40_320, %c0_321] : memref<80x16xf32, #tpu.memory_space<vmem>>, vector<40x16xf32>
    tpu.vector_store %arg14[%c40_320, %c0_321], %538 {strides = array<i32>} : memref<80x16xf32, #tpu.memory_space<vmem>>, vector<40x16xf32>,
    %c0_322 = arith.constant 0 : index
    %c0_323 = arith.constant 0 : index
    %540 = vector.load %arg14[%c0_322, %c0_323] : memref<80x16xf32, #tpu.memory_space<vmem>>, vector<5x16xf32>
    %c5 = arith.constant 5 : index
    %c0_324 = arith.constant 0 : index
    %541 = vector.load %arg14[%c5, %c0_324] : memref<80x16xf32, #tpu.memory_space<vmem>>, vector<5x16xf32>
    %542 = arith.maximumf %540, %541 : vector<5x16xf32>
    %543 = vector.extract_strided_slice %542 {offsets = [0, 0], sizes = [4, 16], strides = [1, 1]} : vector<5x16xf32> to vector<4x16xf32>
    %c0_325 = arith.constant 0 : index
    %c0_326 = arith.constant 0 : index
    %544 = vector.load %arg7[%c0_325, %c0_326] : memref<32x16xf32, #tpu.memory_space<vmem>>, vector<4x16xf32>
    tpu.vector_store %arg7[%c0_325, %c0_326], %543 {strides = array<i32>} : memref<32x16xf32, #tpu.memory_space<vmem>>, vector<4x16xf32>,
    %c10_327 = arith.constant 10 : index
    %c0_328 = arith.constant 0 : index
    %545 = vector.load %arg14[%c10_327, %c0_328] : memref<80x16xf32, #tpu.memory_space<vmem>>, vector<5x16xf32>
    %c15 = arith.constant 15 : index
    %c0_329 = arith.constant 0 : index
    %546 = vector.load %arg14[%c15, %c0_329] : memref<80x16xf32, #tpu.memory_space<vmem>>, vector<5x16xf32>
    %547 = arith.maximumf %545, %546 : vector<5x16xf32>
    %548 = vector.extract_strided_slice %547 {offsets = [0, 0], sizes = [4, 16], strides = [1, 1]} : vector<5x16xf32> to vector<4x16xf32>
    %c4 = arith.constant 4 : index
    %c0_330 = arith.constant 0 : index
    %549 = vector.load %arg7[%c4, %c0_330] : memref<32x16xf32, #tpu.memory_space<vmem>>, vector<4x16xf32>
    tpu.vector_store %arg7[%c4, %c0_330], %548 {strides = array<i32>} : memref<32x16xf32, #tpu.memory_space<vmem>>, vector<4x16xf32>,
    %c20_331 = arith.constant 20 : index
    %c0_332 = arith.constant 0 : index
    %550 = vector.load %arg14[%c20_331, %c0_332] : memref<80x16xf32, #tpu.memory_space<vmem>>, vector<5x16xf32>
    %c25 = arith.constant 25 : index
    %c0_333 = arith.constant 0 : index
    %551 = vector.load %arg14[%c25, %c0_333] : memref<80x16xf32, #tpu.memory_space<vmem>>, vector<5x16xf32>
    %552 = arith.maximumf %550, %551 : vector<5x16xf32>
    %553 = vector.extract_strided_slice %552 {offsets = [0, 0], sizes = [4, 16], strides = [1, 1]} : vector<5x16xf32> to vector<4x16xf32>
    %c8_334 = arith.constant 8 : index
    %c0_335 = arith.constant 0 : index
    %554 = vector.load %arg7[%c8_334, %c0_335] : memref<32x16xf32, #tpu.memory_space<vmem>>, vector<4x16xf32>
    tpu.vector_store %arg7[%c8_334, %c0_335], %553 {strides = array<i32>} : memref<32x16xf32, #tpu.memory_space<vmem>>, vector<4x16xf32>,
    %c30 = arith.constant 30 : index
    %c0_336 = arith.constant 0 : index
    %555 = vector.load %arg14[%c30, %c0_336] : memref<80x16xf32, #tpu.memory_space<vmem>>, vector<5x16xf32>
    %c35 = arith.constant 35 : index
    %c0_337 = arith.constant 0 : index
    %556 = vector.load %arg14[%c35, %c0_337] : memref<80x16xf32, #tpu.memory_space<vmem>>, vector<5x16xf32>
    %557 = arith.maximumf %555, %556 : vector<5x16xf32>
    %558 = vector.extract_strided_slice %557 {offsets = [0, 0], sizes = [4, 16], strides = [1, 1]} : vector<5x16xf32> to vector<4x16xf32>
    %c12_338 = arith.constant 12 : index
    %c0_339 = arith.constant 0 : index
    %559 = vector.load %arg7[%c12_338, %c0_339] : memref<32x16xf32, #tpu.memory_space<vmem>>, vector<4x16xf32>
    tpu.vector_store %arg7[%c12_338, %c0_339], %558 {strides = array<i32>} : memref<32x16xf32, #tpu.memory_space<vmem>>, vector<4x16xf32>,
    %c40_340 = arith.constant 40 : index
    %c0_341 = arith.constant 0 : index
    %560 = vector.load %arg14[%c40_340, %c0_341] : memref<80x16xf32, #tpu.memory_space<vmem>>, vector<5x16xf32>
    %c45_342 = arith.constant 45 : index
    %c0_343 = arith.constant 0 : index
    %561 = vector.load %arg14[%c45_342, %c0_343] : memref<80x16xf32, #tpu.memory_space<vmem>>, vector<5x16xf32>
    %562 = arith.maximumf %560, %561 : vector<5x16xf32>
    %563 = vector.extract_strided_slice %562 {offsets = [0, 0], sizes = [4, 16], strides = [1, 1]} : vector<5x16xf32> to vector<4x16xf32>
    %c16_344 = arith.constant 16 : index
    %c0_345 = arith.constant 0 : index
    %564 = vector.load %arg7[%c16_344, %c0_345] : memref<32x16xf32, #tpu.memory_space<vmem>>, vector<4x16xf32>
    tpu.vector_store %arg7[%c16_344, %c0_345], %563 {strides = array<i32>} : memref<32x16xf32, #tpu.memory_space<vmem>>, vector<4x16xf32>,
    %c50 = arith.constant 50 : index
    %c0_346 = arith.constant 0 : index
    %565 = vector.load %arg14[%c50, %c0_346] : memref<80x16xf32, #tpu.memory_space<vmem>>, vector<5x16xf32>
    %c55 = arith.constant 55 : index
    %c0_347 = arith.constant 0 : index
    %566 = vector.load %arg14[%c55, %c0_347] : memref<80x16xf32, #tpu.memory_space<vmem>>, vector<5x16xf32>
    %567 = arith.maximumf %565, %566 : vector<5x16xf32>
    %568 = vector.extract_strided_slice %567 {offsets = [0, 0], sizes = [4, 16], strides = [1, 1]} : vector<5x16xf32> to vector<4x16xf32>
    %c20_348 = arith.constant 20 : index
    %c0_349 = arith.constant 0 : index
    %569 = vector.load %arg7[%c20_348, %c0_349] : memref<32x16xf32, #tpu.memory_space<vmem>>, vector<4x16xf32>
    tpu.vector_store %arg7[%c20_348, %c0_349], %568 {strides = array<i32>} : memref<32x16xf32, #tpu.memory_space<vmem>>, vector<4x16xf32>,
    %c60 = arith.constant 60 : index
    %c0_350 = arith.constant 0 : index
    %570 = vector.load %arg14[%c60, %c0_350] : memref<80x16xf32, #tpu.memory_space<vmem>>, vector<5x16xf32>
    %c65 = arith.constant 65 : index
    %c0_351 = arith.constant 0 : index
    %571 = vector.load %arg14[%c65, %c0_351] : memref<80x16xf32, #tpu.memory_space<vmem>>, vector<5x16xf32>
    %572 = arith.maximumf %570, %571 : vector<5x16xf32>
    %573 = vector.extract_strided_slice %572 {offsets = [0, 0], sizes = [4, 16], strides = [1, 1]} : vector<5x16xf32> to vector<4x16xf32>
    %c24_352 = arith.constant 24 : index
    %c0_353 = arith.constant 0 : index
    %574 = vector.load %arg7[%c24_352, %c0_353] : memref<32x16xf32, #tpu.memory_space<vmem>>, vector<4x16xf32>
    tpu.vector_store %arg7[%c24_352, %c0_353], %573 {strides = array<i32>} : memref<32x16xf32, #tpu.memory_space<vmem>>, vector<4x16xf32>,
    %c70 = arith.constant 70 : index
    %c0_354 = arith.constant 0 : index
    %575 = vector.load %arg14[%c70, %c0_354] : memref<80x16xf32, #tpu.memory_space<vmem>>, vector<5x16xf32>
    %c75 = arith.constant 75 : index
    %c0_355 = arith.constant 0 : index
    %576 = vector.load %arg14[%c75, %c0_355] : memref<80x16xf32, #tpu.memory_space<vmem>>, vector<5x16xf32>
    %577 = arith.maximumf %575, %576 : vector<5x16xf32>
    %578 = vector.extract_strided_slice %577 {offsets = [0, 0], sizes = [4, 16], strides = [1, 1]} : vector<5x16xf32> to vector<4x16xf32>
    %c28 = arith.constant 28 : index
    %c0_356 = arith.constant 0 : index
    %579 = vector.load %arg7[%c28, %c0_356] : memref<32x16xf32, #tpu.memory_space<vmem>>, vector<4x16xf32>
    tpu.vector_store %arg7[%c28, %c0_356], %578 {strides = array<i32>} : memref<32x16xf32, #tpu.memory_space<vmem>>, vector<4x16xf32>,
    return
  }
}

</mosaic_0001>

<llo_original>
// kernel: encode_module_forward.1
$region0: #{encode_module_forward.1}
  #allocation0 [shape = 'u32[]', space=smem, size = 0x4, offset = 0x4, fixed_abs, tag = 'smem constant byte address 0x4 - core index']
  #allocation1 [shape = 'u32[144,128]{1,0:T(1,128)}', space=vmem, size = 0x12000, scoped, tag = 'internal scratch']
  #allocation2 [shape = 'f32[576,72]{1,0:T(8,128)}', space=vmem, size = 0x48000, scoped, tag = 'scratch operand']
  #allocation3 [shape = 'f32[576,64]{1,0:T(8,128)}', space=vmem, size = 0x48000, scoped, tag = 'scratch operand']
  #allocation4 [shape = 'f32[288,64]{1,0:T(8,128)}', space=vmem, size = 0x24000, scoped, tag = 'scratch operand']
  #allocation5 [shape = 'f32[208,64]{1,0:T(8,128)}', space=vmem, size = 0x1a000, scoped, tag = 'scratch operand']
  #allocation6 [shape = 'f32[160,576]{1,0:T(8,128)}', space=vmem, size = 0x64000, scoped, tag = 'scratch operand']
  #allocation7 [shape = 'f32[160,16]{1,0:T(8,128)}', space=vmem, size = 0x14000, scoped, tag = 'scratch operand']
  #allocation8 [shape = 'f32[80,16]{1,0:T(8,128)}', space=vmem, size = 0xa000, scoped, tag = 'scratch operand']
  %s0 = inlined_call_operand.vmem [shape: f32[656,8], index: 0, kind: input, shape index: {}]
  %s1 = inlined_call_operand.vmem [shape: bf16[72,64], index: 1, kind: input, shape index: {}]
  %s2 = inlined_call_operand.vmem [shape: f32[1,64], index: 2, kind: input, shape index: {}]
  %s3 = inlined_call_operand.vmem [shape: f32[1,64], index: 3, kind: input, shape index: {}]
  %s4 = inlined_call_operand.vmem [shape: bf16[576,16], index: 4, kind: input, shape index: {}]
  %s5 = inlined_call_operand.vmem [shape: f32[1,16], index: 5, kind: input, shape index: {}]
  %s6 = inlined_call_operand.vmem [shape: f32[1,16], index: 6, kind: input, shape index: {}]
  %s7 = inlined_call_operand.hbm [shape: f32[32,16], index: 7, kind: output, shape index: {}]
  %s8 = sld [smem:[#allocation0]]
  $region38: #{encode_module_forward.1} parent=0
    _
  %s10 = ssub.s32 1, %s8
  %s11 = scalar_select 0, %s10, %s8
  $region1: #{encode_module_forward.1} parent=0
    #allocation9 [shape = 'u8[16384]{0}', space=vmem, size = 0x4000, scoped, tag = 'output window, operand 0, single buffered']
    #allocation10 [shape = 's32[1]{0}', space=sflag, size = 0x4, scoped, tag = 'scoped memory for encode_module_forward.1']
    %12 = vsyncpa [#allocation10], 0
    // Predicated region
    $region2: #{encode_module_forward.1} parent=1 // pred_check
      _
    $region3: #{encode_module_forward.1} parent=1 // pred_check_branch
      %14 = sbr.rel (0) target = $region5
    $region4: #{encode_module_forward.1} parent=1 // pred_region
      _
    $region5: #{encode_module_forward.1} parent=1 // pred_fallthru
      _
    // Predicated region
    $region6: #{encode_module_forward.1} parent=1 // pred_check
      _
    $region7: #{encode_module_forward.1} parent=1 // pred_check_branch
      %16 = sbr.rel (0) target = $region9
    $region8: #{encode_module_forward.1} parent=1 // pred_region
      _
    $region9: #{encode_module_forward.1} parent=1 // pred_fallthru
      _
    // Predicated region
    $region10: #{encode_module_forward.1} parent=1 // pred_check
      _
    $region11: #{encode_module_forward.1} parent=1 // pred_check_branch
      %18 = sbr.rel (0) target = $region13
    $region12: #{encode_module_forward.1} parent=1 // pred_region
      _
    $region13: #{encode_module_forward.1} parent=1 // pred_fallthru
      _
    // Predicated region
    $region14: #{encode_module_forward.1} parent=1 // pred_check
      _
    $region15: #{encode_module_forward.1} parent=1 // pred_check_branch
      %20 = sbr.rel (0) target = $region17
    $region16: #{encode_module_forward.1} parent=1 // pred_region
      _
    $region17: #{encode_module_forward.1} parent=1 // pred_fallthru
      _
    // Predicated region
    $region18: #{encode_module_forward.1} parent=1 // pred_check
      _
    $region19: #{encode_module_forward.1} parent=1 // pred_check_branch
      %22 = sbr.rel (0) target = $region21
    $region20: #{encode_module_forward.1} parent=1 // pred_region
      _
    $region21: #{encode_module_forward.1} parent=1 // pred_fallthru
      _
    // Predicated region
    $region22: #{encode_module_forward.1} parent=1 // pred_check
      _
    $region23: #{encode_module_forward.1} parent=1 // pred_check_branch
      %24 = sbr.rel (0) target = $region25
    $region24: #{encode_module_forward.1} parent=1 // pred_region
      _
    $region25: #{encode_module_forward.1} parent=1 // pred_fallthru
      _
    // Predicated region
    $region26: #{encode_module_forward.1} parent=1 // pred_check
      _
    $region27: #{encode_module_forward.1} parent=1 // pred_check_branch
      %26 = sbr.rel (0) target = $region29
    $region28: #{encode_module_forward.1} parent=1 // pred_region
      _
    $region29: #{encode_module_forward.1} parent=1 // pred_fallthru
      _
    %vm28 = vcmask 523264
    %29 = vst.msk [vmem:[#allocation5] sm:$0xff] %vm28, 0.0
    %30 = vst.msk [vmem:[#allocation5 + $0x8] sm:$0xff] %vm28, 0.0
    %31 = vst.msk [vmem:[#allocation5 + $0x10] sm:$0xff] %vm28, 0.0
    %32 = vst.msk [vmem:[#allocation5 + $0x18] sm:$0xff] %vm28, 0.0
    %33 = vst.msk [vmem:[#allocation5 + $0x20] sm:$0xff] %vm28, 0.0
    %34 = vst.msk [vmem:[#allocation5 + $0x28] sm:$0xff] %vm28, 0.0
    %35 = vst.msk [vmem:[#allocation5 + $0x30] sm:$0xff] %vm28, 0.0
    %36 = vst.msk [vmem:[#allocation5 + $0x38] sm:$0xff] %vm28, 0.0
    %37 = vst.msk [vmem:[#allocation5 + $0x40] sm:$0xff] %vm28, 0.0
    %38 = vst.msk [vmem:[#allocation5 + $0x48] sm:$0xff] %vm28, 0.0
    %39 = vst.msk [vmem:[#allocation5 + $0x50] sm:$0xff] %vm28, 0.0
    %40 = vst.msk [vmem:[#allocation5 + $0x58] sm:$0xff] %vm28, 0.0
    %41 = vst.msk [vmem:[#allocation5 + $0x60] sm:$0xff] %vm28, 0.0
    %42 = vst.msk [vmem:[#allocation5 + $0x68] sm:$0xff] %vm28, 0.0
    %43 = vst.msk [vmem:[#allocation5 + $0x70] sm:$0xff] %vm28, 0.0
    %44 = vst.msk [vmem:[#allocation5 + $0x78] sm:$0xff] %vm28, 0.0
    %45 = vst.msk [vmem:[#allocation5 + $0x80] sm:$0xff] %vm28, 0.0
    %46 = vst.msk [vmem:[#allocation5 + $0x88] sm:$0xff] %vm28, 0.0
    %47 = vst.msk [vmem:[#allocation5 + $0x90] sm:$0xff] %vm28, 0.0
    %48 = vst.msk [vmem:[#allocation5 + $0x98] sm:$0xff] %vm28, 0.0
    %49 = vst.msk [vmem:[#allocation5 + $0xa0] sm:$0xff] %vm28, 0.0
    %50 = vst.msk [vmem:[#allocation5 + $0xa8] sm:$0xff] %vm28, 0.0
    %51 = vst.msk [vmem:[#allocation5 + $0xb0] sm:$0xff] %vm28, 0.0
    %52 = vst.msk [vmem:[#allocation5 + $0xb8] sm:$0xff] %vm28, 0.0
    %53 = vst.msk [vmem:[#allocation5 + $0xc0] sm:$0xff] %vm28, 0.0
    %54 = vst.msk [vmem:[#allocation5 + $0xc8] sm:$0xff] %vm28, 0.0
    %v55 = vld [vmem:[%s0] sm:$0xff]
    %v56 = vld [vmem:[%s0 + $0x8] sm:$0xff]
    %v57 = vld [vmem:[%s0 + $0x10] sm:$0xff]
    %v58 = vld [vmem:[%s0 + $0x18] sm:$0xff]
    %v59 = vld [vmem:[%s0 + $0x20] sm:$0xff]
    %v60 = vld [vmem:[%s0 + $0x28] sm:$0xff]
    %v61 = vld [vmem:[%s0 + $0x30] sm:$0xff]
    %v62 = vld [vmem:[%s0 + $0x38] sm:$0xff]
    %v63 = vld [vmem:[%s0 + $0x40] sm:$0xff]
    %v64 = vld [vmem:[%s0 + $0x48] sm:$0xff]
    %v65 = vld [vmem:[%s0 + $0x50] sm:$0xff]
    %v66 = vld [vmem:[%s0 + $0x58] sm:$0xff]
    %v67 = vld [vmem:[%s0 + $0x60] sm:$0xff]
    %v68 = vld [vmem:[%s0 + $0x68] sm:$0xff]
    %v69 = vld [vmem:[%s0 + $0x70] sm:$0xff]
    %v70 = vld [vmem:[%s0 + $0x78] sm:$0xff]
    %v71 = vld [vmem:[%s0 + $0x80] sm:$0xff]
    %v72 = vld [vmem:[%s0 + $0x88] sm:$0xff]
    %v73 = vld [vmem:[%s0 + $0x90] sm:$0xff]
    %v74 = vld [vmem:[%s0 + $0x98] sm:$0xff]
    %v75 = vld [vmem:[%s0 + $0xa0] sm:$0xff]
    %v76 = vld [vmem:[%s0 + $0xa8] sm:$0xff]
    %v77 = vld [vmem:[%s0 + $0xb0] sm:$0xff]
    %v78 = vld [vmem:[%s0 + $0xb8] sm:$0xff]
    %v79 = vld [vmem:[%s0 + $0xc0] sm:$0xff]
    %v80 = vld [vmem:[%s0 + $0xc8] sm:$0xff]
    %v81 = vld [vmem:[%s0 + $0xd0] sm:$0xff]
    %v82 = vld [vmem:[%s0 + $0xd8] sm:$0xff]
    %v83 = vld [vmem:[%s0 + $0xe0] sm:$0xff]
    %v84 = vld [vmem:[%s0 + $0xe8] sm:$0xff]
    %v85 = vld [vmem:[%s0 + $0xf0] sm:$0xff]
    %v86 = vld [vmem:[%s0 + $0xf8] sm:$0xff]
    %v87 = vld [vmem:[%s0 + $0x100] sm:$0xff]
    %v88 = vld [vmem:[%s0 + $0x108] sm:$0xff]
    %v89 = vld [vmem:[%s0 + $0x110] sm:$0xff]
    %v90 = vld [vmem:[%s0 + $0x118] sm:$0xff]
    %vm91 = vcmask 64512
    %92 = vst.msk [vmem:[#allocation2] sm:$0xff] %vm91, %v55
    %93 = vst.msk [vmem:[#allocation2 + $0x8] sm:$0xff] %vm91, %v56
    %94 = vst.msk [vmem:[#allocation2 + $0x10] sm:$0xff] %vm91, %v57
    %95 = vst.msk [vmem:[#allocation2 + $0x18] sm:$0xff] %vm91, %v58
    %96 = vst.msk [vmem:[#allocation2 + $0x20] sm:$0xff] %vm91, %v59
    %97 = vst.msk [vmem:[#allocation2 + $0x28] sm:$0xff] %vm91, %v60
    %98 = vst.msk [vmem:[#allocation2 + $0x30] sm:$0xff] %vm91, %v61
    %99 = vst.msk [vmem:[#allocation2 + $0x38] sm:$0xff] %vm91, %v62
    %100 = vst.msk [vmem:[#allocation2 + $0x40] sm:$0xff] %vm91, %v63
    %101 = vst.msk [vmem:[#allocation2 + $0x48] sm:$0xff] %vm91, %v64
    %102 = vst.msk [vmem:[#allocation2 + $0x50] sm:$0xff] %vm91, %v65
    %103 = vst.msk [vmem:[#allocation2 + $0x58] sm:$0xff] %vm91, %v66
    %104 = vst.msk [vmem:[#allocation2 + $0x60] sm:$0xff] %vm91, %v67
    %105 = vst.msk [vmem:[#allocation2 + $0x68] sm:$0xff] %vm91, %v68
    %106 = vst.msk [vmem:[#allocation2 + $0x70] sm:$0xff] %vm91, %v69
    %107 = vst.msk [vmem:[#allocation2 + $0x78] sm:$0xff] %vm91, %v70
    %108 = vst.msk [vmem:[#allocation2 + $0x80] sm:$0xff] %vm91, %v71
    %109 = vst.msk [vmem:[#allocation2 + $0x88] sm:$0xff] %vm91, %v72
    %110 = vst.msk [vmem:[#allocation2 + $0x90] sm:$0xff] %vm91, %v73
    %111 = vst.msk [vmem:[#allocation2 + $0x98] sm:$0xff] %vm91, %v74
    %112 = vst.msk [vmem:[#allocation2 + $0xa0] sm:$0xff] %vm91, %v75
    %113 = vst.msk [vmem:[#allocation2 + $0xa8] sm:$0xff] %vm91, %v76
    %114 = vst.msk [vmem:[#allocation2 + $0xb0] sm:$0xff] %vm91, %v77
    %115 = vst.msk [vmem:[#allocation2 + $0xb8] sm:$0xff] %vm91, %v78
    %116 = vst.msk [vmem:[#allocation2 + $0xc0] sm:$0xff] %vm91, %v79
    %117 = vst.msk [vmem:[#allocation2 + $0xc8] sm:$0xff] %vm91, %v80
    %118 = vst.msk [vmem:[#allocation2 + $0xd0] sm:$0xff] %vm91, %v81
    %119 = vst.msk [vmem:[#allocation2 + $0xd8] sm:$0xff] %vm91, %v82
    %120 = vst.msk [vmem:[#allocation2 + $0xe0] sm:$0xff] %vm91, %v83
    %121 = vst.msk [vmem:[#allocation2 + $0xe8] sm:$0xff] %vm91, %v84
    %122 = vst.msk [vmem:[#allocation2 + $0xf0] sm:$0xff] %vm91, %v85
    %123 = vst.msk [vmem:[#allocation2 + $0xf8] sm:$0xff] %vm91, %v86
    %124 = vst.msk [vmem:[#allocation2 + $0x100] sm:$0xff] %vm91, %v87
    %125 = vst.msk [vmem:[#allocation2 + $0x108] sm:$0xff] %vm91, %v88
    %126 = vst.msk [vmem:[#allocation2 + $0x110] sm:$0xff] %vm91, %v89
    %127 = vst.msk [vmem:[#allocation2 + $0x118] sm:$0xff] %vm91, %v90
    %v128 = vld [vmem:[%s0 + $0x1] sm:$0xff]
    %v129 = vld [vmem:[%s0 + $0x9] sm:$0xff]
    %v130 = vld [vmem:[%s0 + $0x11] sm:$0xff]
    %v131 = vld [vmem:[%s0 + $0x19] sm:$0xff]
    %v132 = vld [vmem:[%s0 + $0x21] sm:$0xff]
    %v133 = vld [vmem:[%s0 + $0x29] sm:$0xff]
    %v134 = vld [vmem:[%s0 + $0x31] sm:$0xff]
    %v135 = vld [vmem:[%s0 + $0x39] sm:$0xff]
    %v136 = vld [vmem:[%s0 + $0x41] sm:$0xff]
    %v137 = vld [vmem:[%s0 + $0x49] sm:$0xff]
    %v138 = vld [vmem:[%s0 + $0x51] sm:$0xff]
    %v139 = vld [vmem:[%s0 + $0x59] sm:$0xff]
    %v140 = vld [vmem:[%s0 + $0x61] sm:$0xff]
    %v141 = vld [vmem:[%s0 + $0x69] sm:$0xff]
    %v142 = vld [vmem:[%s0 + $0x71] sm:$0xff]
    %v143 = vld [vmem:[%s0 + $0x79] sm:$0xff]
    %v144 = vld [vmem:[%s0 + $0x81] sm:$0xff]
    %v145 = vld [vmem:[%s0 + $0x89] sm:$0xff]
    %v146 = vld [vmem:[%s0 + $0x91] sm:$0xff]
    %v147 = vld [vmem:[%s0 + $0x99] sm:$0xff]
    %v148 = vld [vmem:[%s0 + $0xa1] sm:$0xff]
    %v149 = vld [vmem:[%s0 + $0xa9] sm:$0xff]
    %v150 = vld [vmem:[%s0 + $0xb1] sm:$0xff]
    %v151 = vld [vmem:[%s0 + $0xb9] sm:$0xff]
    %v152 = vld [vmem:[%s0 + $0xc1] sm:$0xff]
    %v153 = vld [vmem:[%s0 + $0xc9] sm:$0xff]
    %v154 = vld [vmem:[%s0 + $0xd1] sm:$0xff]
    %v155 = vld [vmem:[%s0 + $0xd9] sm:$0xff]
    %v156 = vld [vmem:[%s0 + $0xe1] sm:$0xff]
    %v157 = vld [vmem:[%s0 + $0xe9] sm:$0xff]
    %v158 = vld [vmem:[%s0 + $0xf1] sm:$0xff]
    %v159 = vld [vmem:[%s0 + $0xf9] sm:$0xff]
    %v160 = vld [vmem:[%s0 + $0x101] sm:$0xff]
    %v161 = vld [vmem:[%s0 + $0x109] sm:$0xff]
    %v162 = vld [vmem:[%s0 + $0x111] sm:$0xff]
    %v163 = vld [vmem:[%s0 + $0x119] sm:$0xff]
    %200 = vrot.lane.b32.xlu0 %v128, 8
    %v201 = vpop.permute.xlu0 %200
    %202 = vrot.lane.b32.xlu0 %v129, 8
    %v203 = vpop.permute.xlu0 %202
    %204 = vrot.lane.b32.xlu0 %v130, 8
    %v205 = vpop.permute.xlu0 %204
    %206 = vrot.lane.b32.xlu0 %v131, 8
    %v207 = vpop.permute.xlu0 %206
    %208 = vrot.lane.b32.xlu0 %v132, 8
    %v209 = vpop.permute.xlu0 %208
    %210 = vrot.lane.b32.xlu0 %v133, 8
    %v211 = vpop.permute.xlu0 %210
    %212 = vrot.lane.b32.xlu0 %v134, 8
    %v213 = vpop.permute.xlu0 %212
    %214 = vrot.lane.b32.xlu0 %v135, 8
    %v215 = vpop.permute.xlu0 %214
    %216 = vrot.lane.b32.xlu0 %v136, 8
    %v217 = vpop.permute.xlu0 %216
    %218 = vrot.lane.b32.xlu0 %v137, 8
    %v219 = vpop.permute.xlu0 %218
    %220 = vrot.lane.b32.xlu0 %v138, 8
    %v221 = vpop.permute.xlu0 %220
    %222 = vrot.lane.b32.xlu0 %v139, 8
    %v223 = vpop.permute.xlu0 %222
    %224 = vrot.lane.b32.xlu0 %v140, 8
    %v225 = vpop.permute.xlu0 %224
    %226 = vrot.lane.b32.xlu0 %v141, 8
    %v227 = vpop.permute.xlu0 %226
    %228 = vrot.lane.b32.xlu0 %v142, 8
    %v229 = vpop.permute.xlu0 %228
    %230 = vrot.lane.b32.xlu0 %v143, 8
    %v231 = vpop.permute.xlu0 %230
    %232 = vrot.lane.b32.xlu0 %v144, 8
    %v233 = vpop.permute.xlu0 %232
    %234 = vrot.lane.b32.xlu0 %v145, 8
    %v235 = vpop.permute.xlu0 %234
    %236 = vrot.lane.b32.xlu0 %v146, 8
    %v237 = vpop.permute.xlu0 %236
    %238 = vrot.lane.b32.xlu0 %v147, 8
    %v239 = vpop.permute.xlu0 %238
    %240 = vrot.lane.b32.xlu0 %v148, 8
    %v241 = vpop.permute.xlu0 %240
    %242 = vrot.lane.b32.xlu0 %v149, 8
    %v243 = vpop.permute.xlu0 %242
    %244 = vrot.lane.b32.xlu0 %v150, 8
    %v245 = vpop.permute.xlu0 %244
    %246 = vrot.lane.b32.xlu0 %v151, 8
    %v247 = vpop.permute.xlu0 %246
    %248 = vrot.lane.b32.xlu0 %v152, 8
    %v249 = vpop.permute.xlu0 %248
    %250 = vrot.lane.b32.xlu0 %v153, 8
    %v251 = vpop.permute.xlu0 %250
    %252 = vrot.lane.b32.xlu0 %v154, 8
    %v253 = vpop.permute.xlu0 %252
    %254 = vrot.lane.b32.xlu0 %v155, 8
    %v255 = vpop.permute.xlu0 %254
    %256 = vrot.lane.b32.xlu0 %v156, 8
    %v257 = vpop.permute.xlu0 %256
    %258 = vrot.lane.b32.xlu0 %v157, 8
    %v259 = vpop.permute.xlu0 %258
    %260 = vrot.lane.b32.xlu0 %v158, 8
    %v261 = vpop.permute.xlu0 %260
    %262 = vrot.lane.b32.xlu0 %v159, 8
    %v263 = vpop.permute.xlu0 %262
    %264 = vrot.lane.b32.xlu0 %v160, 8
    %v265 = vpop.permute.xlu0 %264
    %266 = vrot.lane.b32.xlu0 %v161, 8
    %v267 = vpop.permute.xlu0 %266
    %268 = vrot.lane.b32.xlu0 %v162, 8
    %v269 = vpop.permute.xlu0 %268
    %270 = vrot.lane.b32.xlu0 %v163, 8
    %v271 = vpop.permute.xlu0 %270
    %vm308 = vcmask 130112
    %309 = vst.msk [vmem:[#allocation2] sm:$0xff] %vm308, %v201
    %310 = vst.msk [vmem:[#allocation2 + $0x8] sm:$0xff] %vm308, %v203
    %311 = vst.msk [vmem:[#allocation2 + $0x10] sm:$0xff] %vm308, %v205
    %312 = vst.msk [vmem:[#allocation2 + $0x18] sm:$0xff] %vm308, %v207
    %313 = vst.msk [vmem:[#allocation2 + $0x20] sm:$0xff] %vm308, %v209
    %314 = vst.msk [vmem:[#allocation2 + $0x28] sm:$0xff] %vm308, %v211
    %315 = vst.msk [vmem:[#allocation2 + $0x30] sm:$0xff] %vm308, %v213
    %316 = vst.msk [vmem:[#allocation2 + $0x38] sm:$0xff] %vm308, %v215
    %317 = vst.msk [vmem:[#allocation2 + $0x40] sm:$0xff] %vm308, %v217
    %318 = vst.msk [vmem:[#allocation2 + $0x48] sm:$0xff] %vm308, %v219
    %319 = vst.msk [vmem:[#allocation2 + $0x50] sm:$0xff] %vm308, %v221
    %320 = vst.msk [vmem:[#allocation2 + $0x58] sm:$0xff] %vm308, %v223
    %321 = vst.msk [vmem:[#allocation2 + $0x60] sm:$0xff] %vm308, %v225
    %322 = vst.msk [vmem:[#allocation2 + $0x68] sm:$0xff] %vm308, %v227
    %323 = vst.msk [vmem:[#allocation2 + $0x70] sm:$0xff] %vm308, %v229
    %324 = vst.msk [vmem:[#allocation2 + $0x78] sm:$0xff] %vm308, %v231
    %325 = vst.msk [vmem:[#allocation2 + $0x80] sm:$0xff] %vm308, %v233
    %326 = vst.msk [vmem:[#allocation2 + $0x88] sm:$0xff] %vm308, %v235
    %327 = vst.msk [vmem:[#allocation2 + $0x90] sm:$0xff] %vm308, %v237
    %328 = vst.msk [vmem:[#allocation2 + $0x98] sm:$0xff] %vm308, %v239
    %329 = vst.msk [vmem:[#allocation2 + $0xa0] sm:$0xff] %vm308, %v241
    %330 = vst.msk [vmem:[#allocation2 + $0xa8] sm:$0xff] %vm308, %v243
    %331 = vst.msk [vmem:[#allocation2 + $0xb0] sm:$0xff] %vm308, %v245
    %332 = vst.msk [vmem:[#allocation2 + $0xb8] sm:$0xff] %vm308, %v247
    %333 = vst.msk [vmem:[#allocation2 + $0xc0] sm:$0xff] %vm308, %v249
    %334 = vst.msk [vmem:[#allocation2 + $0xc8] sm:$0xff] %vm308, %v251
    %335 = vst.msk [vmem:[#allocation2 + $0xd0] sm:$0xff] %vm308, %v253
    %336 = vst.msk [vmem:[#allocation2 + $0xd8] sm:$0xff] %vm308, %v255
    %337 = vst.msk [vmem:[#allocation2 + $0xe0] sm:$0xff] %vm308, %v257
    %338 = vst.msk [vmem:[#allocation2 + $0xe8] sm:$0xff] %vm308, %v259
    %339 = vst.msk [vmem:[#allocation2 + $0xf0] sm:$0xff] %vm308, %v261
    %340 = vst.msk [vmem:[#allocation2 + $0xf8] sm:$0xff] %vm308, %v263
    %341 = vst.msk [vmem:[#allocation2 + $0x100] sm:$0xff] %vm308, %v265
    %342 = vst.msk [vmem:[#allocation2 + $0x108] sm:$0xff] %vm308, %v267
    %343 = vst.msk [vmem:[#allocation2 + $0x110] sm:$0xff] %vm308, %v269
    %344 = vst.msk [vmem:[#allocation2 + $0x118] sm:$0xff] %vm308, %v271
    %v345 = vld [vmem:[%s0 + $0x2] sm:$0xff]
    %v346 = vld [vmem:[%s0 + $0xa] sm:$0xff]
    %v347 = vld [vmem:[%s0 + $0x12] sm:$0xff]
    %v348 = vld [vmem:[%s0 + $0x1a] sm:$0xff]
    %v349 = vld [vmem:[%s0 + $0x22] sm:$0xff]
    %v350 = vld [vmem:[%s0 + $0x2a] sm:$0xff]
    %v351 = vld [vmem:[%s0 + $0x32] sm:$0xff]
    %v352 = vld [vmem:[%s0 + $0x3a] sm:$0xff]
    %v353 = vld [vmem:[%s0 + $0x42] sm:$0xff]
    %v354 = vld [vmem:[%s0 + $0x4a] sm:$0xff]
    %v355 = vld [vmem:[%s0 + $0x52] sm:$0xff]
    %v356 = vld [vmem:[%s0 + $0x5a] sm:$0xff]
    %v357 = vld [vmem:[%s0 + $0x62] sm:$0xff]
    %v358 = vld [vmem:[%s0 + $0x6a] sm:$0xff]
    %v359 = vld [vmem:[%s0 + $0x72] sm:$0xff]
    %v360 = vld [vmem:[%s0 + $0x7a] sm:$0xff]
    %v361 = vld [vmem:[%s0 + $0x82] sm:$0xff]
    %v362 = vld [vmem:[%s0 + $0x8a] sm:$0xff]
    %v363 = vld [vmem:[%s0 + $0x92] sm:$0xff]
    %v364 = vld [vmem:[%s0 + $0x9a] sm:$0xff]
    %v365 = vld [vmem:[%s0 + $0xa2] sm:$0xff]
    %v366 = vld [vmem:[%s0 + $0xaa] sm:$0xff]
    %v367 = vld [vmem:[%s0 + $0xb2] sm:$0xff]
    %v368 = vld [vmem:[%s0 + $0xba] sm:$0xff]
    %v369 = vld [vmem:[%s0 + $0xc2] sm:$0xff]
    %v370 = vld [vmem:[%s0 + $0xca] sm:$0xff]
    %v371 = vld [vmem:[%s0 + $0xd2] sm:$0xff]
    %v372 = vld [vmem:[%s0 + $0xda] sm:$0xff]
    %v373 = vld [vmem:[%s0 + $0xe2] sm:$0xff]
    %v374 = vld [vmem:[%s0 + $0xea] sm:$0xff]
    %v375 = vld [vmem:[%s0 + $0xf2] sm:$0xff]
    %v376 = vld [vmem:[%s0 + $0xfa] sm:$0xff]
    %v377 = vld [vmem:[%s0 + $0x102] sm:$0xff]
    %v378 = vld [vmem:[%s0 + $0x10a] sm:$0xff]
    %v379 = vld [vmem:[%s0 + $0x112] sm:$0xff]
    %v380 = vld [vmem:[%s0 + $0x11a] sm:$0xff]
    %417 = vrot.lane.b32.xlu0 %v345, 16
    %v418 = vpop.permute.xlu0 %417
    %419 = vrot.lane.b32.xlu0 %v346, 16
    %v420 = vpop.permute.xlu0 %419
    %421 = vrot.lane.b32.xlu0 %v347, 16
    %v422 = vpop.permute.xlu0 %421
    %423 = vrot.lane.b32.xlu0 %v348, 16
    %v424 = vpop.permute.xlu0 %423
    %425 = vrot.lane.b32.xlu0 %v349, 16
    %v426 = vpop.permute.xlu0 %425
    %427 = vrot.lane.b32.xlu0 %v350, 16
    %v428 = vpop.permute.xlu0 %427
    %429 = vrot.lane.b32.xlu0 %v351, 16
    %v430 = vpop.permute.xlu0 %429
    %431 = vrot.lane.b32.xlu0 %v352, 16
    %v432 = vpop.permute.xlu0 %431
    %433 = vrot.lane.b32.xlu0 %v353, 16
    %v434 = vpop.permute.xlu0 %433
    %435 = vrot.lane.b32.xlu0 %v354, 16
    %v436 = vpop.permute.xlu0 %435
    %437 = vrot.lane.b32.xlu0 %v355, 16
    %v438 = vpop.permute.xlu0 %437
    %439 = vrot.lane.b32.xlu0 %v356, 16
    %v440 = vpop.permute.xlu0 %439
    %441 = vrot.lane.b32.xlu0 %v357, 16
    %v442 = vpop.permute.xlu0 %441
    %443 = vrot.lane.b32.xlu0 %v358, 16
    %v444 = vpop.permute.xlu0 %443
    %445 = vrot.lane.b32.xlu0 %v359, 16
    %v446 = vpop.permute.xlu0 %445
    %447 = vrot.lane.b32.xlu0 %v360, 16
    %v448 = vpop.permute.xlu0 %447
    %449 = vrot.lane.b32.xlu0 %v361, 16
    %v450 = vpop.permute.xlu0 %449
    %451 = vrot.lane.b32.xlu0 %v362, 16
    %v452 = vpop.permute.xlu0 %451
    %453 = vrot.lane.b32.xlu0 %v363, 16
    %v454 = vpop.permute.xlu0 %453
    %455 = vrot.lane.b32.xlu0 %v364, 16
    %v456 = vpop.permute.xlu0 %455
    %457 = vrot.lane.b32.xlu0 %v365, 16
    %v458 = vpop.permute.xlu0 %457
    %459 = vrot.lane.b32.xlu0 %v366, 16
    %v460 = vpop.permute.xlu0 %459
    %461 = vrot.lane.b32.xlu0 %v367, 16
    %v462 = vpop.permute.xlu0 %461
    %463 = vrot.lane.b32.xlu0 %v368, 16
    %v464 = vpop.permute.xlu0 %463
    %465 = vrot.lane.b32.xlu0 %v369, 16
    %v466 = vpop.permute.xlu0 %465
    %467 = vrot.lane.b32.xlu0 %v370, 16
    %v468 = vpop.permute.xlu0 %467
    %469 = vrot.lane.b32.xlu0 %v371, 16
    %v470 = vpop.permute.xlu0 %469
    %471 = vrot.lane.b32.xlu0 %v372, 16
    %v472 = vpop.permute.xlu0 %471
    %473 = vrot.lane.b32.xlu0 %v373, 16
    %v474 = vpop.permute.xlu0 %473
    %475 = vrot.lane.b32.xlu0 %v374, 16
    %v476 = vpop.permute.xlu0 %475
    %477 = vrot.lane.b32.xlu0 %v375, 16
    %v478 = vpop.permute.xlu0 %477
    %479 = vrot.lane.b32.xlu0 %v376, 16
    %v480 = vpop.permute.xlu0 %479
    %481 = vrot.lane.b32.xlu0 %v377, 16
    %v482 = vpop.permute.xlu0 %481
    %483 = vrot.lane.b32.xlu0 %v378, 16
    %v484 = vpop.permute.xlu0 %483
    %485 = vrot.lane.b32.xlu0 %v379, 16
    %v486 = vpop.permute.xlu0 %485
    %487 = vrot.lane.b32.xlu0 %v380, 16
    %v488 = vpop.permute.xlu0 %487
    %vm525 = vcmask 195712
    %526 = vst.msk [vmem:[#allocation2] sm:$0xff] %vm525, %v418
    %527 = vst.msk [vmem:[#allocation2 + $0x8] sm:$0xff] %vm525, %v420
    %528 = vst.msk [vmem:[#allocation2 + $0x10] sm:$0xff] %vm525, %v422
    %529 = vst.msk [vmem:[#allocation2 + $0x18] sm:$0xff] %vm525, %v424
    %530 = vst.msk [vmem:[#allocation2 + $0x20] sm:$0xff] %vm525, %v426
    %531 = vst.msk [vmem:[#allocation2 + $0x28] sm:$0xff] %vm525, %v428
    %532 = vst.msk [vmem:[#allocation2 + $0x30] sm:$0xff] %vm525, %v430
    %533 = vst.msk [vmem:[#allocation2 + $0x38] sm:$0xff] %vm525, %v432
    %534 = vst.msk [vmem:[#allocation2 + $0x40] sm:$0xff] %vm525, %v434
    %535 = vst.msk [vmem:[#allocation2 + $0x48] sm:$0xff] %vm525, %v436
    %536 = vst.msk [vmem:[#allocation2 + $0x50] sm:$0xff] %vm525, %v438
    %537 = vst.msk [vmem:[#allocation2 + $0x58] sm:$0xff] %vm525, %v440
    %538 = vst.msk [vmem:[#allocation2 + $0x60] sm:$0xff] %vm525, %v442
    %539 = vst.msk [vmem:[#allocation2 + $0x68] sm:$0xff] %vm525, %v444
    %540 = vst.msk [vmem:[#allocation2 + $0x70] sm:$0xff] %vm525, %v446
    %541 = vst.msk [vmem:[#allocation2 + $0x78] sm:$0xff] %vm525, %v448
    %542 = vst.msk [vmem:[#allocation2 + $0x80] sm:$0xff] %vm525, %v450
    %543 = vst.msk [vmem:[#allocation2 + $0x88] sm:$0xff] %vm525, %v452
    %544 = vst.msk [vmem:[#allocation2 + $0x90] sm:$0xff] %vm525, %v454
    %545 = vst.msk [vmem:[#allocation2 + $0x98] sm:$0xff] %vm525, %v456
    %546 = vst.msk [vmem:[#allocation2 + $0xa0] sm:$0xff] %vm525, %v458
    %547 = vst.msk [vmem:[#allocation2 + $0xa8] sm:$0xff] %vm525, %v460
    %548 = vst.msk [vmem:[#allocation2 + $0xb0] sm:$0xff] %vm525, %v462
    %549 = vst.msk [vmem:[#allocation2 + $0xb8] sm:$0xff] %vm525, %v464
    %550 = vst.msk [vmem:[#allocation2 + $0xc0] sm:$0xff] %vm525, %v466
    %551 = vst.msk [vmem:[#allocation2 + $0xc8] sm:$0xff] %vm525, %v468
    %552 = vst.msk [vmem:[#allocation2 + $0xd0] sm:$0xff] %vm525, %v470
    %553 = vst.msk [vmem:[#allocation2 + $0xd8] sm:$0xff] %vm525, %v472
    %554 = vst.msk [vmem:[#allocation2 + $0xe0] sm:$0xff] %vm525, %v474
    %555 = vst.msk [vmem:[#allocation2 + $0xe8] sm:$0xff] %vm525, %v476
    %556 = vst.msk [vmem:[#allocation2 + $0xf0] sm:$0xff] %vm525, %v478
    %557 = vst.msk [vmem:[#allocation2 + $0xf8] sm:$0xff] %vm525, %v480
    %558 = vst.msk [vmem:[#allocation2 + $0x100] sm:$0xff] %vm525, %v482
    %559 = vst.msk [vmem:[#allocation2 + $0x108] sm:$0xff] %vm525, %v484
    %560 = vst.msk [vmem:[#allocation2 + $0x110] sm:$0xff] %vm525, %v486
    %561 = vst.msk [vmem:[#allocation2 + $0x118] sm:$0xff] %vm525, %v488
    %v562 = vld [vmem:[%s0 + $0x12] sm:$0xff]
    %v563 = vld [vmem:[%s0 + $0x1a] sm:$0xff]
    %v564 = vld [vmem:[%s0 + $0x22] sm:$0xff]
    %v565 = vld [vmem:[%s0 + $0x2a] sm:$0xff]
    %v566 = vld [vmem:[%s0 + $0x32] sm:$0xff]
    %v567 = vld [vmem:[%s0 + $0x3a] sm:$0xff]
    %v568 = vld [vmem:[%s0 + $0x42] sm:$0xff]
    %v569 = vld [vmem:[%s0 + $0x4a] sm:$0xff]
    %v570 = vld [vmem:[%s0 + $0x52] sm:$0xff]
    %v571 = vld [vmem:[%s0 + $0x5a] sm:$0xff]
    %v572 = vld [vmem:[%s0 + $0x62] sm:$0xff]
    %v573 = vld [vmem:[%s0 + $0x6a] sm:$0xff]
    %v574 = vld [vmem:[%s0 + $0x72] sm:$0xff]
    %v575 = vld [vmem:[%s0 + $0x7a] sm:$0xff]
    %v576 = vld [vmem:[%s0 + $0x82] sm:$0xff]
    %v577 = vld [vmem:[%s0 + $0x8a] sm:$0xff]
    %v578 = vld [vmem:[%s0 + $0x92] sm:$0xff]
    %v579 = vld [vmem:[%s0 + $0x9a] sm:$0xff]
    %v580 = vld [vmem:[%s0 + $0xa2] sm:$0xff]
    %v581 = vld [vmem:[%s0 + $0xaa] sm:$0xff]
    %v582 = vld [vmem:[%s0 + $0xb2] sm:$0xff]
    %v583 = vld [vmem:[%s0 + $0xba] sm:$0xff]
    %v584 = vld [vmem:[%s0 + $0xc2] sm:$0xff]
    %v585 = vld [vmem:[%s0 + $0xca] sm:$0xff]
    %v586 = vld [vmem:[%s0 + $0xd2] sm:$0xff]
    %v587 = vld [vmem:[%s0 + $0xda] sm:$0xff]
    %v588 = vld [vmem:[%s0 + $0xe2] sm:$0xff]
    %v589 = vld [vmem:[%s0 + $0xea] sm:$0xff]
    %v590 = vld [vmem:[%s0 + $0xf2] sm:$0xff]
    %v591 = vld [vmem:[%s0 + $0xfa] sm:$0xff]
    %v592 = vld [vmem:[%s0 + $0x102] sm:$0xff]
    %v593 = vld [vmem:[%s0 + $0x10a] sm:$0xff]
    %v594 = vld [vmem:[%s0 + $0x112] sm:$0xff]
    %v595 = vld [vmem:[%s0 + $0x11a] sm:$0xff]
    %v596 = vld [vmem:[%s0 + $0x122] sm:$0xff]
    %v597 = vld [vmem:[%s0 + $0x12a] sm:$0xff]
    %634 = vrot.lane.b32.xlu0 %v562, 24
    %v635 = vpop.permute.xlu0 %634
    %636 = vrot.lane.b32.xlu0 %v563, 24
    %v637 = vpop.permute.xlu0 %636
    %638 = vrot.lane.b32.xlu0 %v564, 24
    %v639 = vpop.permute.xlu0 %638
    %640 = vrot.lane.b32.xlu0 %v565, 24
    %v641 = vpop.permute.xlu0 %640
    %642 = vrot.lane.b32.xlu0 %v566, 24
    %v643 = vpop.permute.xlu0 %642
    %644 = vrot.lane.b32.xlu0 %v567, 24
    %v645 = vpop.permute.xlu0 %644
    %646 = vrot.lane.b32.xlu0 %v568, 24
    %v647 = vpop.permute.xlu0 %646
    %648 = vrot.lane.b32.xlu0 %v569, 24
    %v649 = vpop.permute.xlu0 %648
    %650 = vrot.lane.b32.xlu0 %v570, 24
    %v651 = vpop.permute.xlu0 %650
    %652 = vrot.lane.b32.xlu0 %v571, 24
    %v653 = vpop.permute.xlu0 %652
    %654 = vrot.lane.b32.xlu0 %v572, 24
    %v655 = vpop.permute.xlu0 %654
    %656 = vrot.lane.b32.xlu0 %v573, 24
    %v657 = vpop.permute.xlu0 %656
    %658 = vrot.lane.b32.xlu0 %v574, 24
    %v659 = vpop.permute.xlu0 %658
    %660 = vrot.lane.b32.xlu0 %v575, 24
    %v661 = vpop.permute.xlu0 %660
    %662 = vrot.lane.b32.xlu0 %v576, 24
    %v663 = vpop.permute.xlu0 %662
    %664 = vrot.lane.b32.xlu0 %v577, 24
    %v665 = vpop.permute.xlu0 %664
    %666 = vrot.lane.b32.xlu0 %v578, 24
    %v667 = vpop.permute.xlu0 %666
    %668 = vrot.lane.b32.xlu0 %v579, 24
    %v669 = vpop.permute.xlu0 %668
    %670 = vrot.lane.b32.xlu0 %v580, 24
    %v671 = vpop.permute.xlu0 %670
    %672 = vrot.lane.b32.xlu0 %v581, 24
    %v673 = vpop.permute.xlu0 %672
    %674 = vrot.lane.b32.xlu0 %v582, 24
    %v675 = vpop.permute.xlu0 %674
    %676 = vrot.lane.b32.xlu0 %v583, 24
    %v677 = vpop.permute.xlu0 %676
    %678 = vrot.lane.b32.xlu0 %v584, 24
    %v679 = vpop.permute.xlu0 %678
    %680 = vrot.lane.b32.xlu0 %v585, 24
    %v681 = vpop.permute.xlu0 %680
    %682 = vrot.lane.b32.xlu0 %v586, 24
    %v683 = vpop.permute.xlu0 %682
    %684 = vrot.lane.b32.xlu0 %v587, 24
    %v685 = vpop.permute.xlu0 %684
    %686 = vrot.lane.b32.xlu0 %v588, 24
    %v687 = vpop.permute.xlu0 %686
    %688 = vrot.lane.b32.xlu0 %v589, 24
    %v689 = vpop.permute.xlu0 %688
    %690 = vrot.lane.b32.xlu0 %v590, 24
    %v691 = vpop.permute.xlu0 %690
    %692 = vrot.lane.b32.xlu0 %v591, 24
    %v693 = vpop.permute.xlu0 %692
    %694 = vrot.lane.b32.xlu0 %v592, 24
    %v695 = vpop.permute.xlu0 %694
    %696 = vrot.lane.b32.xlu0 %v593, 24
    %v697 = vpop.permute.xlu0 %696
    %698 = vrot.lane.b32.xlu0 %v594, 24
    %v699 = vpop.permute.xlu0 %698
    %700 = vrot.lane.b32.xlu0 %v595, 24
    %v701 = vpop.permute.xlu0 %700
    %702 = vrot.lane.b32.xlu0 %v596, 24
    %v703 = vpop.permute.xlu0 %702
    %704 = vrot.lane.b32.xlu0 %v597, 24
    %v705 = vpop.permute.xlu0 %704
    %vm742 = vcmask 261312
    %743 = vst.msk [vmem:[#allocation2] sm:$0xff] %vm742, %v635
    %744 = vst.msk [vmem:[#allocation2 + $0x8] sm:$0xff] %vm742, %v637
    %745 = vst.msk [vmem:[#allocation2 + $0x10] sm:$0xff] %vm742, %v639
    %746 = vst.msk [vmem:[#allocation2 + $0x18] sm:$0xff] %vm742, %v641
    %747 = vst.msk [vmem:[#allocation2 + $0x20] sm:$0xff] %vm742, %v643
    %748 = vst.msk [vmem:[#allocation2 + $0x28] sm:$0xff] %vm742, %v645
    %749 = vst.msk [vmem:[#allocation2 + $0x30] sm:$0xff] %vm742, %v647
    %750 = vst.msk [vmem:[#allocation2 + $0x38] sm:$0xff] %vm742, %v649
    %751 = vst.msk [vmem:[#allocation2 + $0x40] sm:$0xff] %vm742, %v651
    %752 = vst.msk [vmem:[#allocation2 + $0x48] sm:$0xff] %vm742, %v653
    %753 = vst.msk [vmem:[#allocation2 + $0x50] sm:$0xff] %vm742, %v655
    %754 = vst.msk [vmem:[#allocation2 + $0x58] sm:$0xff] %vm742, %v657
    %755 = vst.msk [vmem:[#allocation2 + $0x60] sm:$0xff] %vm742, %v659
    %756 = vst.msk [vmem:[#allocation2 + $0x68] sm:$0xff] %vm742, %v661
    %757 = vst.msk [vmem:[#allocation2 + $0x70] sm:$0xff] %vm742, %v663
    %758 = vst.msk [vmem:[#allocation2 + $0x78] sm:$0xff] %vm742, %v665
    %759 = vst.msk [vmem:[#allocation2 + $0x80] sm:$0xff] %vm742, %v667
    %760 = vst.msk [vmem:[#allocation2 + $0x88] sm:$0xff] %vm742, %v669
    %761 = vst.msk [vmem:[#allocation2 + $0x90] sm:$0xff] %vm742, %v671
    %762 = vst.msk [vmem:[#allocation2 + $0x98] sm:$0xff] %vm742, %v673
    %763 = vst.msk [vmem:[#allocation2 + $0xa0] sm:$0xff] %vm742, %v675
    %764 = vst.msk [vmem:[#allocation2 + $0xa8] sm:$0xff] %vm742, %v677
    %765 = vst.msk [vmem:[#allocation2 + $0xb0] sm:$0xff] %vm742, %v679
    %766 = vst.msk [vmem:[#allocation2 + $0xb8] sm:$0xff] %vm742, %v681
    %767 = vst.msk [vmem:[#allocation2 + $0xc0] sm:$0xff] %vm742, %v683
    %768 = vst.msk [vmem:[#allocation2 + $0xc8] sm:$0xff] %vm742, %v685
    %769 = vst.msk [vmem:[#allocation2 + $0xd0] sm:$0xff] %vm742, %v687
    %770 = vst.msk [vmem:[#allocation2 + $0xd8] sm:$0xff] %vm742, %v689
    %771 = vst.msk [vmem:[#allocation2 + $0xe0] sm:$0xff] %vm742, %v691
    %772 = vst.msk [vmem:[#allocation2 + $0xe8] sm:$0xff] %vm742, %v693
    %773 = vst.msk [vmem:[#allocation2 + $0xf0] sm:$0xff] %vm742, %v695
    %774 = vst.msk [vmem:[#allocation2 + $0xf8] sm:$0xff] %vm742, %v697
    %775 = vst.msk [vmem:[#allocation2 + $0x100] sm:$0xff] %vm742, %v699
    %776 = vst.msk [vmem:[#allocation2 + $0x108] sm:$0xff] %vm742, %v701
    %777 = vst.msk [vmem:[#allocation2 + $0x110] sm:$0xff] %vm742, %v703
    %778 = vst.msk [vmem:[#allocation2 + $0x118] sm:$0xff] %vm742, %v705
    %v779 = vld [vmem:[%s0 + $0x13] sm:$0xff]
    %v780 = vld [vmem:[%s0 + $0x1b] sm:$0xff]
    %v781 = vld [vmem:[%s0 + $0x23] sm:$0xff]
    %v782 = vld [vmem:[%s0 + $0x2b] sm:$0xff]
    %v783 = vld [vmem:[%s0 + $0x33] sm:$0xff]
    %v784 = vld [vmem:[%s0 + $0x3b] sm:$0xff]
    %v785 = vld [vmem:[%s0 + $0x43] sm:$0xff]
    %v786 = vld [vmem:[%s0 + $0x4b] sm:$0xff]
    %v787 = vld [vmem:[%s0 + $0x53] sm:$0xff]
    %v788 = vld [vmem:[%s0 + $0x5b] sm:$0xff]
    %v789 = vld [vmem:[%s0 + $0x63] sm:$0xff]
    %v790 = vld [vmem:[%s0 + $0x6b] sm:$0xff]
    %v791 = vld [vmem:[%s0 + $0x73] sm:$0xff]
    %v792 = vld [vmem:[%s0 + $0x7b] sm:$0xff]
    %v793 = vld [vmem:[%s0 + $0x83] sm:$0xff]
    %v794 = vld [vmem:[%s0 + $0x8b] sm:$0xff]
    %v795 = vld [vmem:[%s0 + $0x93] sm:$0xff]
    %v796 = vld [vmem:[%s0 + $0x9b] sm:$0xff]
    %v797 = vld [vmem:[%s0 + $0xa3] sm:$0xff]
    %v798 = vld [vmem:[%s0 + $0xab] sm:$0xff]
    %v799 = vld [vmem:[%s0 + $0xb3] sm:$0xff]
    %v800 = vld [vmem:[%s0 + $0xbb] sm:$0xff]
    %v801 = vld [vmem:[%s0 + $0xc3] sm:$0xff]
    %v802 = vld [vmem:[%s0 + $0xcb] sm:$0xff]
    %v803 = vld [vmem:[%s0 + $0xd3] sm:$0xff]
    %v804 = vld [vmem:[%s0 + $0xdb] sm:$0xff]
    %v805 = vld [vmem:[%s0 + $0xe3] sm:$0xff]
    %v806 = vld [vmem:[%s0 + $0xeb] sm:$0xff]
    %v807 = vld [vmem:[%s0 + $0xf3] sm:$0xff]
    %v808 = vld [vmem:[%s0 + $0xfb] sm:$0xff]
    %v809 = vld [vmem:[%s0 + $0x103] sm:$0xff]
    %v810 = vld [vmem:[%s0 + $0x10b] sm:$0xff]
    %v811 = vld [vmem:[%s0 + $0x113] sm:$0xff]
    %v812 = vld [vmem:[%s0 + $0x11b] sm:$0xff]
    %v813 = vld [vmem:[%s0 + $0x123] sm:$0xff]
    %v814 = vld [vmem:[%s0 + $0x12b] sm:$0xff]
    %851 = vrot.lane.b32.xlu0 %v779, 32
    %v852 = vpop.permute.xlu0 %851
    %853 = vrot.lane.b32.xlu0 %v780, 32
    %v854 = vpop.permute.xlu0 %853
    %855 = vrot.lane.b32.xlu0 %v781, 32
    %v856 = vpop.permute.xlu0 %855
    %857 = vrot.lane.b32.xlu0 %v782, 32
    %v858 = vpop.permute.xlu0 %857
    %859 = vrot.lane.b32.xlu0 %v783, 32
    %v860 = vpop.permute.xlu0 %859
    %861 = vrot.lane.b32.xlu0 %v784, 32
    %v862 = vpop.permute.xlu0 %861
    %863 = vrot.lane.b32.xlu0 %v785, 32
    %v864 = vpop.permute.xlu0 %863
    %865 = vrot.lane.b32.xlu0 %v786, 32
    %v866 = vpop.permute.xlu0 %865
    %867 = vrot.lane.b32.xlu0 %v787, 32
    %v868 = vpop.permute.xlu0 %867
    %869 = vrot.lane.b32.xlu0 %v788, 32
    %v870 = vpop.permute.xlu0 %869
    %871 = vrot.lane.b32.xlu0 %v789, 32
    %v872 = vpop.permute.xlu0 %871
    %873 = vrot.lane.b32.xlu0 %v790, 32
    %v874 = vpop.permute.xlu0 %873
    %875 = vrot.lane.b32.xlu0 %v791, 32
    %v876 = vpop.permute.xlu0 %875
    %877 = vrot.lane.b32.xlu0 %v792, 32
    %v878 = vpop.permute.xlu0 %877
    %879 = vrot.lane.b32.xlu0 %v793, 32
    %v880 = vpop.permute.xlu0 %879
    %881 = vrot.lane.b32.xlu0 %v794, 32
    %v882 = vpop.permute.xlu0 %881
    %883 = vrot.lane.b32.xlu0 %v795, 32
    %v884 = vpop.permute.xlu0 %883
    %885 = vrot.lane.b32.xlu0 %v796, 32
    %v886 = vpop.permute.xlu0 %885
    %887 = vrot.lane.b32.xlu0 %v797, 32
    %v888 = vpop.permute.xlu0 %887
    %889 = vrot.lane.b32.xlu0 %v798, 32
    %v890 = vpop.permute.xlu0 %889
    %891 = vrot.lane.b32.xlu0 %v799, 32
    %v892 = vpop.permute.xlu0 %891
    %893 = vrot.lane.b32.xlu0 %v800, 32
    %v894 = vpop.permute.xlu0 %893
    %895 = vrot.lane.b32.xlu0 %v801, 32
    %v896 = vpop.permute.xlu0 %895
    %897 = vrot.lane.b32.xlu0 %v802, 32
    %v898 = vpop.permute.xlu0 %897
    %899 = vrot.lane.b32.xlu0 %v803, 32
    %v900 = vpop.permute.xlu0 %899
    %901 = vrot.lane.b32.xlu0 %v804, 32
    %v902 = vpop.permute.xlu0 %901
    %903 = vrot.lane.b32.xlu0 %v805, 32
    %v904 = vpop.permute.xlu0 %903
    %905 = vrot.lane.b32.xlu0 %v806, 32
    %v906 = vpop.permute.xlu0 %905
    %907 = vrot.lane.b32.xlu0 %v807, 32
    %v908 = vpop.permute.xlu0 %907
    %909 = vrot.lane.b32.xlu0 %v808, 32
    %v910 = vpop.permute.xlu0 %909
    %911 = vrot.lane.b32.xlu0 %v809, 32
    %v912 = vpop.permute.xlu0 %911
    %913 = vrot.lane.b32.xlu0 %v810, 32
    %v914 = vpop.permute.xlu0 %913
    %915 = vrot.lane.b32.xlu0 %v811, 32
    %v916 = vpop.permute.xlu0 %915
    %917 = vrot.lane.b32.xlu0 %v812, 32
    %v918 = vpop.permute.xlu0 %917
    %919 = vrot.lane.b32.xlu0 %v813, 32
    %v920 = vpop.permute.xlu0 %919
    %921 = vrot.lane.b32.xlu0 %v814, 32
    %v922 = vpop.permute.xlu0 %921
    %vm959 = vcmask 326912
    %960 = vst.msk [vmem:[#allocation2] sm:$0xff] %vm959, %v852
    %961 = vst.msk [vmem:[#allocation2 + $0x8] sm:$0xff] %vm959, %v854
    %962 = vst.msk [vmem:[#allocation2 + $0x10] sm:$0xff] %vm959, %v856
    %963 = vst.msk [vmem:[#allocation2 + $0x18] sm:$0xff] %vm959, %v858
    %964 = vst.msk [vmem:[#allocation2 + $0x20] sm:$0xff] %vm959, %v860
    %965 = vst.msk [vmem:[#allocation2 + $0x28] sm:$0xff] %vm959, %v862
    %966 = vst.msk [vmem:[#allocation2 + $0x30] sm:$0xff] %vm959, %v864
    %967 = vst.msk [vmem:[#allocation2 + $0x38] sm:$0xff] %vm959, %v866
    %968 = vst.msk [vmem:[#allocation2 + $0x40] sm:$0xff] %vm959, %v868
    %969 = vst.msk [vmem:[#allocation2 + $0x48] sm:$0xff] %vm959, %v870
    %970 = vst.msk [vmem:[#allocation2 + $0x50] sm:$0xff] %vm959, %v872
    %971 = vst.msk [vmem:[#allocation2 + $0x58] sm:$0xff] %vm959, %v874
    %972 = vst.msk [vmem:[#allocation2 + $0x60] sm:$0xff] %vm959, %v876
    %973 = vst.msk [vmem:[#allocation2 + $0x68] sm:$0xff] %vm959, %v878
    %974 = vst.msk [vmem:[#allocation2 + $0x70] sm:$0xff] %vm959, %v880
    %975 = vst.msk [vmem:[#allocation2 + $0x78] sm:$0xff] %vm959, %v882
    %976 = vst.msk [vmem:[#allocation2 + $0x80] sm:$0xff] %vm959, %v884
    %977 = vst.msk [vmem:[#allocation2 + $0x88] sm:$0xff] %vm959, %v886
    %978 = vst.msk [vmem:[#allocation2 + $0x90] sm:$0xff] %vm959, %v888
    %979 = vst.msk [vmem:[#allocation2 + $0x98] sm:$0xff] %vm959, %v890
    %980 = vst.msk [vmem:[#allocation2 + $0xa0] sm:$0xff] %vm959, %v892
    %981 = vst.msk [vmem:[#allocation2 + $0xa8] sm:$0xff] %vm959, %v894
    %982 = vst.msk [vmem:[#allocation2 + $0xb0] sm:$0xff] %vm959, %v896
    %983 = vst.msk [vmem:[#allocation2 + $0xb8] sm:$0xff] %vm959, %v898
    %984 = vst.msk [vmem:[#allocation2 + $0xc0] sm:$0xff] %vm959, %v900
    %985 = vst.msk [vmem:[#allocation2 + $0xc8] sm:$0xff] %vm959, %v902
    %986 = vst.msk [vmem:[#allocation2 + $0xd0] sm:$0xff] %vm959, %v904
    %987 = vst.msk [vmem:[#allocation2 + $0xd8] sm:$0xff] %vm959, %v906
    %988 = vst.msk [vmem:[#allocation2 + $0xe0] sm:$0xff] %vm959, %v908
    %989 = vst.msk [vmem:[#allocation2 + $0xe8] sm:$0xff] %vm959, %v910
    %990 = vst.msk [vmem:[#allocation2 + $0xf0] sm:$0xff] %vm959, %v912
    %991 = vst.msk [vmem:[#allocation2 + $0xf8] sm:$0xff] %vm959, %v914
    %992 = vst.msk [vmem:[#allocation2 + $0x100] sm:$0xff] %vm959, %v916
    %993 = vst.msk [vmem:[#allocation2 + $0x108] sm:$0xff] %vm959, %v918
    %994 = vst.msk [vmem:[#allocation2 + $0x110] sm:$0xff] %vm959, %v920
    %995 = vst.msk [vmem:[#allocation2 + $0x118] sm:$0xff] %vm959, %v922
    %v996 = vld [vmem:[%s0 + $0x14] sm:$0xff]
    %v997 = vld [vmem:[%s0 + $0x1c] sm:$0xff]
    %v998 = vld [vmem:[%s0 + $0x24] sm:$0xff]
    %v999 = vld [vmem:[%s0 + $0x2c] sm:$0xff]
    %v1000 = vld [vmem:[%s0 + $0x34] sm:$0xff]
    %v1001 = vld [vmem:[%s0 + $0x3c] sm:$0xff]
    %v1002 = vld [vmem:[%s0 + $0x44] sm:$0xff]
    %v1003 = vld [vmem:[%s0 + $0x4c] sm:$0xff]
    %v1004 = vld [vmem:[%s0 + $0x54] sm:$0xff]
    %v1005 = vld [vmem:[%s0 + $0x5c] sm:$0xff]
    %v1006 = vld [vmem:[%s0 + $0x64] sm:$0xff]
    %v1007 = vld [vmem:[%s0 + $0x6c] sm:$0xff]
    %v1008 = vld [vmem:[%s0 + $0x74] sm:$0xff]
    %v1009 = vld [vmem:[%s0 + $0x7c] sm:$0xff]
    %v1010 = vld [vmem:[%s0 + $0x84] sm:$0xff]
    %v1011 = vld [vmem:[%s0 + $0x8c] sm:$0xff]
    %v1012 = vld [vmem:[%s0 + $0x94] sm:$0xff]
    %v1013 = vld [vmem:[%s0 + $0x9c] sm:$0xff]
    %v1014 = vld [vmem:[%s0 + $0xa4] sm:$0xff]
    %v1015 = vld [vmem:[%s0 + $0xac] sm:$0xff]
    %v1016 = vld [vmem:[%s0 + $0xb4] sm:$0xff]
    %v1017 = vld [vmem:[%s0 + $0xbc] sm:$0xff]
    %v1018 = vld [vmem:[%s0 + $0xc4] sm:$0xff]
    %v1019 = vld [vmem:[%s0 + $0xcc] sm:$0xff]
    %v1020 = vld [vmem:[%s0 + $0xd4] sm:$0xff]
    %v1021 = vld [vmem:[%s0 + $0xdc] sm:$0xff]
    %v1022 = vld [vmem:[%s0 + $0xe4] sm:$0xff]
    %v1023 = vld [vmem:[%s0 + $0xec] sm:$0xff]
    %v1024 = vld [vmem:[%s0 + $0xf4] sm:$0xff]
    %v1025 = vld [vmem:[%s0 + $0xfc] sm:$0xff]
    %v1026 = vld [vmem:[%s0 + $0x104] sm:$0xff]
    %v1027 = vld [vmem:[%s0 + $0x10c] sm:$0xff]
    %v1028 = vld [vmem:[%s0 + $0x114] sm:$0xff]
    %v1029 = vld [vmem:[%s0 + $0x11c] sm:$0xff]
    %v1030 = vld [vmem:[%s0 + $0x124] sm:$0xff]
    %v1031 = vld [vmem:[%s0 + $0x12c] sm:$0xff]
    %1068 = vrot.lane.b32.xlu0 %v996, 40
    %v1069 = vpop.permute.xlu0 %1068
    %1070 = vrot.lane.b32.xlu0 %v997, 40
    %v1071 = vpop.permute.xlu0 %1070
    %1072 = vrot.lane.b32.xlu0 %v998, 40
    %v1073 = vpop.permute.xlu0 %1072
    %1074 = vrot.lane.b32.xlu0 %v999, 40
    %v1075 = vpop.permute.xlu0 %1074
    %1076 = vrot.lane.b32.xlu0 %v1000, 40
    %v1077 = vpop.permute.xlu0 %1076
    %1078 = vrot.lane.b32.xlu0 %v1001, 40
    %v1079 = vpop.permute.xlu0 %1078
    %1080 = vrot.lane.b32.xlu0 %v1002, 40
    %v1081 = vpop.permute.xlu0 %1080
    %1082 = vrot.lane.b32.xlu0 %v1003, 40
    %v1083 = vpop.permute.xlu0 %1082
    %1084 = vrot.lane.b32.xlu0 %v1004, 40
    %v1085 = vpop.permute.xlu0 %1084
    %1086 = vrot.lane.b32.xlu0 %v1005, 40
    %v1087 = vpop.permute.xlu0 %1086
    %1088 = vrot.lane.b32.xlu0 %v1006, 40
    %v1089 = vpop.permute.xlu0 %1088
    %1090 = vrot.lane.b32.xlu0 %v1007, 40
    %v1091 = vpop.permute.xlu0 %1090
    %1092 = vrot.lane.b32.xlu0 %v1008, 40
    %v1093 = vpop.permute.xlu0 %1092
    %1094 = vrot.lane.b32.xlu0 %v1009, 40
    %v1095 = vpop.permute.xlu0 %1094
    %1096 = vrot.lane.b32.xlu0 %v1010, 40
    %v1097 = vpop.permute.xlu0 %1096
    %1098 = vrot.lane.b32.xlu0 %v1011, 40
    %v1099 = vpop.permute.xlu0 %1098
    %1100 = vrot.lane.b32.xlu0 %v1012, 40
    %v1101 = vpop.permute.xlu0 %1100
    %1102 = vrot.lane.b32.xlu0 %v1013, 40
    %v1103 = vpop.permute.xlu0 %1102
    %1104 = vrot.lane.b32.xlu0 %v1014, 40
    %v1105 = vpop.permute.xlu0 %1104
    %1106 = vrot.lane.b32.xlu0 %v1015, 40
    %v1107 = vpop.permute.xlu0 %1106
    %1108 = vrot.lane.b32.xlu0 %v1016, 40
    %v1109 = vpop.permute.xlu0 %1108
    %1110 = vrot.lane.b32.xlu0 %v1017, 40
    %v1111 = vpop.permute.xlu0 %1110
    %1112 = vrot.lane.b32.xlu0 %v1018, 40
    %v1113 = vpop.permute.xlu0 %1112
    %1114 = vrot.lane.b32.xlu0 %v1019, 40
    %v1115 = vpop.permute.xlu0 %1114
    %1116 = vrot.lane.b32.xlu0 %v1020, 40
    %v1117 = vpop.permute.xlu0 %1116
    %1118 = vrot.lane.b32.xlu0 %v1021, 40
    %v1119 = vpop.permute.xlu0 %1118
    %1120 = vrot.lane.b32.xlu0 %v1022, 40
    %v1121 = vpop.permute.xlu0 %1120
    %1122 = vrot.lane.b32.xlu0 %v1023, 40
    %v1123 = vpop.permute.xlu0 %1122
    %1124 = vrot.lane.b32.xlu0 %v1024, 40
    %v1125 = vpop.permute.xlu0 %1124
    %1126 = vrot.lane.b32.xlu0 %v1025, 40
    %v1127 = vpop.permute.xlu0 %1126
    %1128 = vrot.lane.b32.xlu0 %v1026, 40
    %v1129 = vpop.permute.xlu0 %1128
    %1130 = vrot.lane.b32.xlu0 %v1027, 40
    %v1131 = vpop.permute.xlu0 %1130
    %1132 = vrot.lane.b32.xlu0 %v1028, 40
    %v1133 = vpop.permute.xlu0 %1132
    %1134 = vrot.lane.b32.xlu0 %v1029, 40
    %v1135 = vpop.permute.xlu0 %1134
    %1136 = vrot.lane.b32.xlu0 %v1030, 40
    %v1137 = vpop.permute.xlu0 %1136
    %1138 = vrot.lane.b32.xlu0 %v1031, 40
    %v1139 = vpop.permute.xlu0 %1138
    %vm1176 = vcmask 392512
    %1177 = vst.msk [vmem:[#allocation2] sm:$0xff] %vm1176, %v1069
    %1178 = vst.msk [vmem:[#allocation2 + $0x8] sm:$0xff] %vm1176, %v1071
    %1179 = vst.msk [vmem:[#allocation2 + $0x10] sm:$0xff] %vm1176, %v1073
    %1180 = vst.msk [vmem:[#allocation2 + $0x18] sm:$0xff] %vm1176, %v1075
    %1181 = vst.msk [vmem:[#allocation2 + $0x20] sm:$0xff] %vm1176, %v1077
    %1182 = vst.msk [vmem:[#allocation2 + $0x28] sm:$0xff] %vm1176, %v1079
    %1183 = vst.msk [vmem:[#allocation2 + $0x30] sm:$0xff] %vm1176, %v1081
    %1184 = vst.msk [vmem:[#allocation2 + $0x38] sm:$0xff] %vm1176, %v1083
    %1185 = vst.msk [vmem:[#allocation2 + $0x40] sm:$0xff] %vm1176, %v1085
    %1186 = vst.msk [vmem:[#allocation2 + $0x48] sm:$0xff] %vm1176, %v1087
    %1187 = vst.msk [vmem:[#allocation2 + $0x50] sm:$0xff] %vm1176, %v1089
    %1188 = vst.msk [vmem:[#allocation2 + $0x58] sm:$0xff] %vm1176, %v1091
    %1189 = vst.msk [vmem:[#allocation2 + $0x60] sm:$0xff] %vm1176, %v1093
    %1190 = vst.msk [vmem:[#allocation2 + $0x68] sm:$0xff] %vm1176, %v1095
    %1191 = vst.msk [vmem:[#allocation2 + $0x70] sm:$0xff] %vm1176, %v1097
    %1192 = vst.msk [vmem:[#allocation2 + $0x78] sm:$0xff] %vm1176, %v1099
    %1193 = vst.msk [vmem:[#allocation2 + $0x80] sm:$0xff] %vm1176, %v1101
    %1194 = vst.msk [vmem:[#allocation2 + $0x88] sm:$0xff] %vm1176, %v1103
    %1195 = vst.msk [vmem:[#allocation2 + $0x90] sm:$0xff] %vm1176, %v1105
    %1196 = vst.msk [vmem:[#allocation2 + $0x98] sm:$0xff] %vm1176, %v1107
    %1197 = vst.msk [vmem:[#allocation2 + $0xa0] sm:$0xff] %vm1176, %v1109
    %1198 = vst.msk [vmem:[#allocation2 + $0xa8] sm:$0xff] %vm1176, %v1111
    %1199 = vst.msk [vmem:[#allocation2 + $0xb0] sm:$0xff] %vm1176, %v1113
    %1200 = vst.msk [vmem:[#allocation2 + $0xb8] sm:$0xff] %vm1176, %v1115
    %1201 = vst.msk [vmem:[#allocation2 + $0xc0] sm:$0xff] %vm1176, %v1117
    %1202 = vst.msk [vmem:[#allocation2 + $0xc8] sm:$0xff] %vm1176, %v1119
    %1203 = vst.msk [vmem:[#allocation2 + $0xd0] sm:$0xff] %vm1176, %v1121
    %1204 = vst.msk [vmem:[#allocation2 + $0xd8] sm:$0xff] %vm1176, %v1123
    %1205 = vst.msk [vmem:[#allocation2 + $0xe0] sm:$0xff] %vm1176, %v1125
    %1206 = vst.msk [vmem:[#allocation2 + $0xe8] sm:$0xff] %vm1176, %v1127
    %1207 = vst.msk [vmem:[#allocation2 + $0xf0] sm:$0xff] %vm1176, %v1129
    %1208 = vst.msk [vmem:[#allocation2 + $0xf8] sm:$0xff] %vm1176, %v1131
    %1209 = vst.msk [vmem:[#allocation2 + $0x100] sm:$0xff] %vm1176, %v1133
    %1210 = vst.msk [vmem:[#allocation2 + $0x108] sm:$0xff] %vm1176, %v1135
    %1211 = vst.msk [vmem:[#allocation2 + $0x110] sm:$0xff] %vm1176, %v1137
    %1212 = vst.msk [vmem:[#allocation2 + $0x118] sm:$0xff] %vm1176, %v1139
    %v1213 = vld [vmem:[%s0 + $0x24] sm:$0xff]
    %v1214 = vld [vmem:[%s0 + $0x2c] sm:$0xff]
    %v1215 = vld [vmem:[%s0 + $0x34] sm:$0xff]
    %v1216 = vld [vmem:[%s0 + $0x3c] sm:$0xff]
    %v1217 = vld [vmem:[%s0 + $0x44] sm:$0xff]
    %v1218 = vld [vmem:[%s0 + $0x4c] sm:$0xff]
    %v1219 = vld [vmem:[%s0 + $0x54] sm:$0xff]
    %v1220 = vld [vmem:[%s0 + $0x5c] sm:$0xff]
    %v1221 = vld [vmem:[%s0 + $0x64] sm:$0xff]
    %v1222 = vld [vmem:[%s0 + $0x6c] sm:$0xff]
    %v1223 = vld [vmem:[%s0 + $0x74] sm:$0xff]
    %v1224 = vld [vmem:[%s0 + $0x7c] sm:$0xff]
    %v1225 = vld [vmem:[%s0 + $0x84] sm:$0xff]
    %v1226 = vld [vmem:[%s0 + $0x8c] sm:$0xff]
    %v1227 = vld [vmem:[%s0 + $0x94] sm:$0xff]
    %v1228 = vld [vmem:[%s0 + $0x9c] sm:$0xff]
    %v1229 = vld [vmem:[%s0 + $0xa4] sm:$0xff]
    %v1230 = vld [vmem:[%s0 + $0xac] sm:$0xff]
    %v1231 = vld [vmem:[%s0 + $0xb4] sm:$0xff]
    %v1232 = vld [vmem:[%s0 + $0xbc] sm:$0xff]
    %v1233 = vld [vmem:[%s0 + $0xc4] sm:$0xff]
    %v1234 = vld [vmem:[%s0 + $0xcc] sm:$0xff]
    %v1235 = vld [vmem:[%s0 + $0xd4] sm:$0xff]
    %v1236 = vld [vmem:[%s0 + $0xdc] sm:$0xff]
    %v1237 = vld [vmem:[%s0 + $0xe4] sm:$0xff]
    %v1238 = vld [vmem:[%s0 + $0xec] sm:$0xff]
    %v1239 = vld [vmem:[%s0 + $0xf4] sm:$0xff]
    %v1240 = vld [vmem:[%s0 + $0xfc] sm:$0xff]
    %v1241 = vld [vmem:[%s0 + $0x104] sm:$0xff]
    %v1242 = vld [vmem:[%s0 + $0x10c] sm:$0xff]
    %v1243 = vld [vmem:[%s0 + $0x114] sm:$0xff]
    %v1244 = vld [vmem:[%s0 + $0x11c] sm:$0xff]
    %v1245 = vld [vmem:[%s0 + $0x124] sm:$0xff]
    %v1246 = vld [vmem:[%s0 + $0x12c] sm:$0xff]
    %v1247 = vld [vmem:[%s0 + $0x134] sm:$0xff]
    %v1248 = vld [vmem:[%s0 + $0x13c] sm:$0xff]
    %1285 = vrot.lane.b32.xlu0 %v1213, 48
    %v1286 = vpop.permute.xlu0 %1285
    %1287 = vrot.lane.b32.xlu0 %v1214, 48
    %v1288 = vpop.permute.xlu0 %1287
    %1289 = vrot.lane.b32.xlu0 %v1215, 48
    %v1290 = vpop.permute.xlu0 %1289
    %1291 = vrot.lane.b32.xlu0 %v1216, 48
    %v1292 = vpop.permute.xlu0 %1291
    %1293 = vrot.lane.b32.xlu0 %v1217, 48
    %v1294 = vpop.permute.xlu0 %1293
    %1295 = vrot.lane.b32.xlu0 %v1218, 48
    %v1296 = vpop.permute.xlu0 %1295
    %1297 = vrot.lane.b32.xlu0 %v1219, 48
    %v1298 = vpop.permute.xlu0 %1297
    %1299 = vrot.lane.b32.xlu0 %v1220, 48
    %v1300 = vpop.permute.xlu0 %1299
    %1301 = vrot.lane.b32.xlu0 %v1221, 48
    %v1302 = vpop.permute.xlu0 %1301
    %1303 = vrot.lane.b32.xlu0 %v1222, 48
    %v1304 = vpop.permute.xlu0 %1303
    %1305 = vrot.lane.b32.xlu0 %v1223, 48
    %v1306 = vpop.permute.xlu0 %1305
    %1307 = vrot.lane.b32.xlu0 %v1224, 48
    %v1308 = vpop.permute.xlu0 %1307
    %1309 = vrot.lane.b32.xlu0 %v1225, 48
    %v1310 = vpop.permute.xlu0 %1309
    %1311 = vrot.lane.b32.xlu0 %v1226, 48
    %v1312 = vpop.permute.xlu0 %1311
    %1313 = vrot.lane.b32.xlu0 %v1227, 48
    %v1314 = vpop.permute.xlu0 %1313
    %1315 = vrot.lane.b32.xlu0 %v1228, 48
    %v1316 = vpop.permute.xlu0 %1315
    %1317 = vrot.lane.b32.xlu0 %v1229, 48
    %v1318 = vpop.permute.xlu0 %1317
    %1319 = vrot.lane.b32.xlu0 %v1230, 48
    %v1320 = vpop.permute.xlu0 %1319
    %1321 = vrot.lane.b32.xlu0 %v1231, 48
    %v1322 = vpop.permute.xlu0 %1321
    %1323 = vrot.lane.b32.xlu0 %v1232, 48
    %v1324 = vpop.permute.xlu0 %1323
    %1325 = vrot.lane.b32.xlu0 %v1233, 48
    %v1326 = vpop.permute.xlu0 %1325
    %1327 = vrot.lane.b32.xlu0 %v1234, 48
    %v1328 = vpop.permute.xlu0 %1327
    %1329 = vrot.lane.b32.xlu0 %v1235, 48
    %v1330 = vpop.permute.xlu0 %1329
    %1331 = vrot.lane.b32.xlu0 %v1236, 48
    %v1332 = vpop.permute.xlu0 %1331
    %1333 = vrot.lane.b32.xlu0 %v1237, 48
    %v1334 = vpop.permute.xlu0 %1333
    %1335 = vrot.lane.b32.xlu0 %v1238, 48
    %v1336 = vpop.permute.xlu0 %1335
    %1337 = vrot.lane.b32.xlu0 %v1239, 48
    %v1338 = vpop.permute.xlu0 %1337
    %1339 = vrot.lane.b32.xlu0 %v1240, 48
    %v1340 = vpop.permute.xlu0 %1339
    %1341 = vrot.lane.b32.xlu0 %v1241, 48
    %v1342 = vpop.permute.xlu0 %1341
    %1343 = vrot.lane.b32.xlu0 %v1242, 48
    %v1344 = vpop.permute.xlu0 %1343
    %1345 = vrot.lane.b32.xlu0 %v1243, 48
    %v1346 = vpop.permute.xlu0 %1345
    %1347 = vrot.lane.b32.xlu0 %v1244, 48
    %v1348 = vpop.permute.xlu0 %1347
    %1349 = vrot.lane.b32.xlu0 %v1245, 48
    %v1350 = vpop.permute.xlu0 %1349
    %1351 = vrot.lane.b32.xlu0 %v1246, 48
    %v1352 = vpop.permute.xlu0 %1351
    %1353 = vrot.lane.b32.xlu0 %v1247, 48
    %v1354 = vpop.permute.xlu0 %1353
    %1355 = vrot.lane.b32.xlu0 %v1248, 48
    %v1356 = vpop.permute.xlu0 %1355
    %vm1393 = vcmask 458112
    %1394 = vst.msk [vmem:[#allocation2] sm:$0xff] %vm1393, %v1286
    %1395 = vst.msk [vmem:[#allocation2 + $0x8] sm:$0xff] %vm1393, %v1288
    %1396 = vst.msk [vmem:[#allocation2 + $0x10] sm:$0xff] %vm1393, %v1290
    %1397 = vst.msk [vmem:[#allocation2 + $0x18] sm:$0xff] %vm1393, %v1292
    %1398 = vst.msk [vmem:[#allocation2 + $0x20] sm:$0xff] %vm1393, %v1294
    %1399 = vst.msk [vmem:[#allocation2 + $0x28] sm:$0xff] %vm1393, %v1296
    %1400 = vst.msk [vmem:[#allocation2 + $0x30] sm:$0xff] %vm1393, %v1298
    %1401 = vst.msk [vmem:[#allocation2 + $0x38] sm:$0xff] %vm1393, %v1300
    %1402 = vst.msk [vmem:[#allocation2 + $0x40] sm:$0xff] %vm1393, %v1302
    %1403 = vst.msk [vmem:[#allocation2 + $0x48] sm:$0xff] %vm1393, %v1304
    %1404 = vst.msk [vmem:[#allocation2 + $0x50] sm:$0xff] %vm1393, %v1306
    %1405 = vst.msk [vmem:[#allocation2 + $0x58] sm:$0xff] %vm1393, %v1308
    %1406 = vst.msk [vmem:[#allocation2 + $0x60] sm:$0xff] %vm1393, %v1310
    %1407 = vst.msk [vmem:[#allocation2 + $0x68] sm:$0xff] %vm1393, %v1312
    %1408 = vst.msk [vmem:[#allocation2 + $0x70] sm:$0xff] %vm1393, %v1314
    %1409 = vst.msk [vmem:[#allocation2 + $0x78] sm:$0xff] %vm1393, %v1316
    %1410 = vst.msk [vmem:[#allocation2 + $0x80] sm:$0xff] %vm1393, %v1318
    %1411 = vst.msk [vmem:[#allocation2 + $0x88] sm:$0xff] %vm1393, %v1320
    %1412 = vst.msk [vmem:[#allocation2 + $0x90] sm:$0xff] %vm1393, %v1322
    %1413 = vst.msk [vmem:[#allocation2 + $0x98] sm:$0xff] %vm1393, %v1324
    %1414 = vst.msk [vmem:[#allocation2 + $0xa0] sm:$0xff] %vm1393, %v1326
    %1415 = vst.msk [vmem:[#allocation2 + $0xa8] sm:$0xff] %vm1393, %v1328
    %1416 = vst.msk [vmem:[#allocation2 + $0xb0] sm:$0xff] %vm1393, %v1330
    %1417 = vst.msk [vmem:[#allocation2 + $0xb8] sm:$0xff] %vm1393, %v1332
    %1418 = vst.msk [vmem:[#allocation2 + $0xc0] sm:$0xff] %vm1393, %v1334
    %1419 = vst.msk [vmem:[#allocation2 + $0xc8] sm:$0xff] %vm1393, %v1336
    %1420 = vst.msk [vmem:[#allocation2 + $0xd0] sm:$0xff] %vm1393, %v1338
    %1421 = vst.msk [vmem:[#allocation2 + $0xd8] sm:$0xff] %vm1393, %v1340
    %1422 = vst.msk [vmem:[#allocation2 + $0xe0] sm:$0xff] %vm1393, %v1342
    %1423 = vst.msk [vmem:[#allocation2 + $0xe8] sm:$0xff] %vm1393, %v1344
    %1424 = vst.msk [vmem:[#allocation2 + $0xf0] sm:$0xff] %vm1393, %v1346
    %1425 = vst.msk [vmem:[#allocation2 + $0xf8] sm:$0xff] %vm1393, %v1348
    %1426 = vst.msk [vmem:[#allocation2 + $0x100] sm:$0xff] %vm1393, %v1350
    %1427 = vst.msk [vmem:[#allocation2 + $0x108] sm:$0xff] %vm1393, %v1352
    %1428 = vst.msk [vmem:[#allocation2 + $0x110] sm:$0xff] %vm1393, %v1354
    %1429 = vst.msk [vmem:[#allocation2 + $0x118] sm:$0xff] %vm1393, %v1356
    %v1430 = vld [vmem:[%s0 + $0x25] sm:$0xff]
    %v1431 = vld [vmem:[%s0 + $0x2d] sm:$0xff]
    %v1432 = vld [vmem:[%s0 + $0x35] sm:$0xff]
    %v1433 = vld [vmem:[%s0 + $0x3d] sm:$0xff]
    %v1434 = vld [vmem:[%s0 + $0x45] sm:$0xff]
    %v1435 = vld [vmem:[%s0 + $0x4d] sm:$0xff]
    %v1436 = vld [vmem:[%s0 + $0x55] sm:$0xff]
    %v1437 = vld [vmem:[%s0 + $0x5d] sm:$0xff]
    %v1438 = vld [vmem:[%s0 + $0x65] sm:$0xff]
    %v1439 = vld [vmem:[%s0 + $0x6d] sm:$0xff]
    %v1440 = vld [vmem:[%s0 + $0x75] sm:$0xff]
    %v1441 = vld [vmem:[%s0 + $0x7d] sm:$0xff]
    %v1442 = vld [vmem:[%s0 + $0x85] sm:$0xff]
    %v1443 = vld [vmem:[%s0 + $0x8d] sm:$0xff]
    %v1444 = vld [vmem:[%s0 + $0x95] sm:$0xff]
    %v1445 = vld [vmem:[%s0 + $0x9d] sm:$0xff]
    %v1446 = vld [vmem:[%s0 + $0xa5] sm:$0xff]
    %v1447 = vld [vmem:[%s0 + $0xad] sm:$0xff]
    %v1448 = vld [vmem:[%s0 + $0xb5] sm:$0xff]
    %v1449 = vld [vmem:[%s0 + $0xbd] sm:$0xff]
    %v1450 = vld [vmem:[%s0 + $0xc5] sm:$0xff]
    %v1451 = vld [vmem:[%s0 + $0xcd] sm:$0xff]
    %v1452 = vld [vmem:[%s0 + $0xd5] sm:$0xff]
    %v1453 = vld [vmem:[%s0 + $0xdd] sm:$0xff]
    %v1454 = vld [vmem:[%s0 + $0xe5] sm:$0xff]
    %v1455 = vld [vmem:[%s0 + $0xed] sm:$0xff]
    %v1456 = vld [vmem:[%s0 + $0xf5] sm:$0xff]
    %v1457 = vld [vmem:[%s0 + $0xfd] sm:$0xff]
    %v1458 = vld [vmem:[%s0 + $0x105] sm:$0xff]
    %v1459 = vld [vmem:[%s0 + $0x10d] sm:$0xff]
    %v1460 = vld [vmem:[%s0 + $0x115] sm:$0xff]
    %v1461 = vld [vmem:[%s0 + $0x11d] sm:$0xff]
    %v1462 = vld [vmem:[%s0 + $0x125] sm:$0xff]
    %v1463 = vld [vmem:[%s0 + $0x12d] sm:$0xff]
    %v1464 = vld [vmem:[%s0 + $0x135] sm:$0xff]
    %v1465 = vld [vmem:[%s0 + $0x13d] sm:$0xff]
    %1502 = vrot.lane.b32.xlu0 %v1430, 56
    %v1503 = vpop.permute.xlu0 %1502
    %1504 = vrot.lane.b32.xlu0 %v1431, 56
    %v1505 = vpop.permute.xlu0 %1504
    %1506 = vrot.lane.b32.xlu0 %v1432, 56
    %v1507 = vpop.permute.xlu0 %1506
    %1508 = vrot.lane.b32.xlu0 %v1433, 56
    %v1509 = vpop.permute.xlu0 %1508
    %1510 = vrot.lane.b32.xlu0 %v1434, 56
    %v1511 = vpop.permute.xlu0 %1510
    %1512 = vrot.lane.b32.xlu0 %v1435, 56
    %v1513 = vpop.permute.xlu0 %1512
    %1514 = vrot.lane.b32.xlu0 %v1436, 56
    %v1515 = vpop.permute.xlu0 %1514
    %1516 = vrot.lane.b32.xlu0 %v1437, 56
    %v1517 = vpop.permute.xlu0 %1516
    %1518 = vrot.lane.b32.xlu0 %v1438, 56
    %v1519 = vpop.permute.xlu0 %1518
    %1520 = vrot.lane.b32.xlu0 %v1439, 56
    %v1521 = vpop.permute.xlu0 %1520
    %1522 = vrot.lane.b32.xlu0 %v1440, 56
    %v1523 = vpop.permute.xlu0 %1522
    %1524 = vrot.lane.b32.xlu0 %v1441, 56
    %v1525 = vpop.permute.xlu0 %1524
    %1526 = vrot.lane.b32.xlu0 %v1442, 56
    %v1527 = vpop.permute.xlu0 %1526
    %1528 = vrot.lane.b32.xlu0 %v1443, 56
    %v1529 = vpop.permute.xlu0 %1528
    %1530 = vrot.lane.b32.xlu0 %v1444, 56
    %v1531 = vpop.permute.xlu0 %1530
    %1532 = vrot.lane.b32.xlu0 %v1445, 56
    %v1533 = vpop.permute.xlu0 %1532
    %1534 = vrot.lane.b32.xlu0 %v1446, 56
    %v1535 = vpop.permute.xlu0 %1534
    %1536 = vrot.lane.b32.xlu0 %v1447, 56
    %v1537 = vpop.permute.xlu0 %1536
    %1538 = vrot.lane.b32.xlu0 %v1448, 56
    %v1539 = vpop.permute.xlu0 %1538
    %1540 = vrot.lane.b32.xlu0 %v1449, 56
    %v1541 = vpop.permute.xlu0 %1540
    %1542 = vrot.lane.b32.xlu0 %v1450, 56
    %v1543 = vpop.permute.xlu0 %1542
    %1544 = vrot.lane.b32.xlu0 %v1451, 56
    %v1545 = vpop.permute.xlu0 %1544
    %1546 = vrot.lane.b32.xlu0 %v1452, 56
    %v1547 = vpop.permute.xlu0 %1546
    %1548 = vrot.lane.b32.xlu0 %v1453, 56
    %v1549 = vpop.permute.xlu0 %1548
    %1550 = vrot.lane.b32.xlu0 %v1454, 56
    %v1551 = vpop.permute.xlu0 %1550
    %1552 = vrot.lane.b32.xlu0 %v1455, 56
    %v1553 = vpop.permute.xlu0 %1552
    %1554 = vrot.lane.b32.xlu0 %v1456, 56
    %v1555 = vpop.permute.xlu0 %1554
    %1556 = vrot.lane.b32.xlu0 %v1457, 56
    %v1557 = vpop.permute.xlu0 %1556
    %1558 = vrot.lane.b32.xlu0 %v1458, 56
    %v1559 = vpop.permute.xlu0 %1558
    %1560 = vrot.lane.b32.xlu0 %v1459, 56
    %v1561 = vpop.permute.xlu0 %1560
    %1562 = vrot.lane.b32.xlu0 %v1460, 56
    %v1563 = vpop.permute.xlu0 %1562
    %1564 = vrot.lane.b32.xlu0 %v1461, 56
    %v1565 = vpop.permute.xlu0 %1564
    %1566 = vrot.lane.b32.xlu0 %v1462, 56
    %v1567 = vpop.permute.xlu0 %1566
    %1568 = vrot.lane.b32.xlu0 %v1463, 56
    %v1569 = vpop.permute.xlu0 %1568
    %1570 = vrot.lane.b32.xlu0 %v1464, 56
    %v1571 = vpop.permute.xlu0 %1570
    %1572 = vrot.lane.b32.xlu0 %v1465, 56
    %v1573 = vpop.permute.xlu0 %1572
    %vm1610 = vcmask 523712
    %1611 = vst.msk [vmem:[#allocation2] sm:$0xff] %vm1610, %v1503
    %1612 = vst.msk [vmem:[#allocation2 + $0x8] sm:$0xff] %vm1610, %v1505
    %1613 = vst.msk [vmem:[#allocation2 + $0x10] sm:$0xff] %vm1610, %v1507
    %1614 = vst.msk [vmem:[#allocation2 + $0x18] sm:$0xff] %vm1610, %v1509
    %1615 = vst.msk [vmem:[#allocation2 + $0x20] sm:$0xff] %vm1610, %v1511
    %1616 = vst.msk [vmem:[#allocation2 + $0x28] sm:$0xff] %vm1610, %v1513
    %1617 = vst.msk [vmem:[#allocation2 + $0x30] sm:$0xff] %vm1610, %v1515
    %1618 = vst.msk [vmem:[#allocation2 + $0x38] sm:$0xff] %vm1610, %v1517
    %1619 = vst.msk [vmem:[#allocation2 + $0x40] sm:$0xff] %vm1610, %v1519
    %1620 = vst.msk [vmem:[#allocation2 + $0x48] sm:$0xff] %vm1610, %v1521
    %1621 = vst.msk [vmem:[#allocation2 + $0x50] sm:$0xff] %vm1610, %v1523
    %1622 = vst.msk [vmem:[#allocation2 + $0x58] sm:$0xff] %vm1610, %v1525
    %1623 = vst.msk [vmem:[#allocation2 + $0x60] sm:$0xff] %vm1610, %v1527
    %1624 = vst.msk [vmem:[#allocation2 + $0x68] sm:$0xff] %vm1610, %v1529
    %1625 = vst.msk [vmem:[#allocation2 + $0x70] sm:$0xff] %vm1610, %v1531
    %1626 = vst.msk [vmem:[#allocation2 + $0x78] sm:$0xff] %vm1610, %v1533
    %1627 = vst.msk [vmem:[#allocation2 + $0x80] sm:$0xff] %vm1610, %v1535
    %1628 = vst.msk [vmem:[#allocation2 + $0x88] sm:$0xff] %vm1610, %v1537
    %1629 = vst.msk [vmem:[#allocation2 + $0x90] sm:$0xff] %vm1610, %v1539
    %1630 = vst.msk [vmem:[#allocation2 + $0x98] sm:$0xff] %vm1610, %v1541
    %1631 = vst.msk [vmem:[#allocation2 + $0xa0] sm:$0xff] %vm1610, %v1543
    %1632 = vst.msk [vmem:[#allocation2 + $0xa8] sm:$0xff] %vm1610, %v1545
    %1633 = vst.msk [vmem:[#allocation2 + $0xb0] sm:$0xff] %vm1610, %v1547
    %1634 = vst.msk [vmem:[#allocation2 + $0xb8] sm:$0xff] %vm1610, %v1549
    %1635 = vst.msk [vmem:[#allocation2 + $0xc0] sm:$0xff] %vm1610, %v1551
    %1636 = vst.msk [vmem:[#allocation2 + $0xc8] sm:$0xff] %vm1610, %v1553
    %1637 = vst.msk [vmem:[#allocation2 + $0xd0] sm:$0xff] %vm1610, %v1555
    %1638 = vst.msk [vmem:[#allocation2 + $0xd8] sm:$0xff] %vm1610, %v1557
    %1639 = vst.msk [vmem:[#allocation2 + $0xe0] sm:$0xff] %vm1610, %v1559
    %1640 = vst.msk [vmem:[#allocation2 + $0xe8] sm:$0xff] %vm1610, %v1561
    %1641 = vst.msk [vmem:[#allocation2 + $0xf0] sm:$0xff] %vm1610, %v1563
    %1642 = vst.msk [vmem:[#allocation2 + $0xf8] sm:$0xff] %vm1610, %v1565
    %1643 = vst.msk [vmem:[#allocation2 + $0x100] sm:$0xff] %vm1610, %v1567
    %1644 = vst.msk [vmem:[#allocation2 + $0x108] sm:$0xff] %vm1610, %v1569
    %1645 = vst.msk [vmem:[#allocation2 + $0x110] sm:$0xff] %vm1610, %v1571
    %1646 = vst.msk [vmem:[#allocation2 + $0x118] sm:$0xff] %vm1610, %v1573
    %v1647 = vld [vmem:[%s0 + $0x26] sm:$0xff]
    %v1648 = vld [vmem:[%s0 + $0x2e] sm:$0xff]
    %v1649 = vld [vmem:[%s0 + $0x36] sm:$0xff]
    %v1650 = vld [vmem:[%s0 + $0x3e] sm:$0xff]
    %v1651 = vld [vmem:[%s0 + $0x46] sm:$0xff]
    %v1652 = vld [vmem:[%s0 + $0x4e] sm:$0xff]
    %v1653 = vld [vmem:[%s0 + $0x56] sm:$0xff]
    %v1654 = vld [vmem:[%s0 + $0x5e] sm:$0xff]
    %v1655 = vld [vmem:[%s0 + $0x66] sm:$0xff]
    %v1656 = vld [vmem:[%s0 + $0x6e] sm:$0xff]
    %v1657 = vld [vmem:[%s0 + $0x76] sm:$0xff]
    %v1658 = vld [vmem:[%s0 + $0x7e] sm:$0xff]
    %v1659 = vld [vmem:[%s0 + $0x86] sm:$0xff]
    %v1660 = vld [vmem:[%s0 + $0x8e] sm:$0xff]
    %v1661 = vld [vmem:[%s0 + $0x96] sm:$0xff]
    %v1662 = vld [vmem:[%s0 + $0x9e] sm:$0xff]
    %v1663 = vld [vmem:[%s0 + $0xa6] sm:$0xff]
    %v1664 = vld [vmem:[%s0 + $0xae] sm:$0xff]
    %v1665 = vld [vmem:[%s0 + $0xb6] sm:$0xff]
    %v1666 = vld [vmem:[%s0 + $0xbe] sm:$0xff]
    %v1667 = vld [vmem:[%s0 + $0xc6] sm:$0xff]
    %v1668 = vld [vmem:[%s0 + $0xce] sm:$0xff]
    %v1669 = vld [vmem:[%s0 + $0xd6] sm:$0xff]
    %v1670 = vld [vmem:[%s0 + $0xde] sm:$0xff]
    %v1671 = vld [vmem:[%s0 + $0xe6] sm:$0xff]
    %v1672 = vld [vmem:[%s0 + $0xee] sm:$0xff]
    %v1673 = vld [vmem:[%s0 + $0xf6] sm:$0xff]
    %v1674 = vld [vmem:[%s0 + $0xfe] sm:$0xff]
    %v1675 = vld [vmem:[%s0 + $0x106] sm:$0xff]
    %v1676 = vld [vmem:[%s0 + $0x10e] sm:$0xff]
    %v1677 = vld [vmem:[%s0 + $0x116] sm:$0xff]
    %v1678 = vld [vmem:[%s0 + $0x11e] sm:$0xff]
    %v1679 = vld [vmem:[%s0 + $0x126] sm:$0xff]
    %v1680 = vld [vmem:[%s0 + $0x12e] sm:$0xff]
    %v1681 = vld [vmem:[%s0 + $0x136] sm:$0xff]
    %v1682 = vld [vmem:[%s0 + $0x13e] sm:$0xff]
    %1719 = vrot.lane.b32.xlu0 %v1647, 64
    %v1720 = vpop.permute.xlu0 %1719
    %1721 = vrot.lane.b32.xlu0 %v1648, 64
    %v1722 = vpop.permute.xlu0 %1721
    %1723 = vrot.lane.b32.xlu0 %v1649, 64
    %v1724 = vpop.permute.xlu0 %1723
    %1725 = vrot.lane.b32.xlu0 %v1650, 64
    %v1726 = vpop.permute.xlu0 %1725
    %1727 = vrot.lane.b32.xlu0 %v1651, 64
    %v1728 = vpop.permute.xlu0 %1727
    %1729 = vrot.lane.b32.xlu0 %v1652, 64
    %v1730 = vpop.permute.xlu0 %1729
    %1731 = vrot.lane.b32.xlu0 %v1653, 64
    %v1732 = vpop.permute.xlu0 %1731
    %1733 = vrot.lane.b32.xlu0 %v1654, 64
    %v1734 = vpop.permute.xlu0 %1733
    %1735 = vrot.lane.b32.xlu0 %v1655, 64
    %v1736 = vpop.permute.xlu0 %1735
    %1737 = vrot.lane.b32.xlu0 %v1656, 64
    %v1738 = vpop.permute.xlu0 %1737
    %1739 = vrot.lane.b32.xlu0 %v1657, 64
    %v1740 = vpop.permute.xlu0 %1739
    %1741 = vrot.lane.b32.xlu0 %v1658, 64
    %v1742 = vpop.permute.xlu0 %1741
    %1743 = vrot.lane.b32.xlu0 %v1659, 64
    %v1744 = vpop.permute.xlu0 %1743
    %1745 = vrot.lane.b32.xlu0 %v1660, 64
    %v1746 = vpop.permute.xlu0 %1745
    %1747 = vrot.lane.b32.xlu0 %v1661, 64
    %v1748 = vpop.permute.xlu0 %1747
    %1749 = vrot.lane.b32.xlu0 %v1662, 64
    %v1750 = vpop.permute.xlu0 %1749
    %1751 = vrot.lane.b32.xlu0 %v1663, 64
    %v1752 = vpop.permute.xlu0 %1751
    %1753 = vrot.lane.b32.xlu0 %v1664, 64
    %v1754 = vpop.permute.xlu0 %1753
    %1755 = vrot.lane.b32.xlu0 %v1665, 64
    %v1756 = vpop.permute.xlu0 %1755
    %1757 = vrot.lane.b32.xlu0 %v1666, 64
    %v1758 = vpop.permute.xlu0 %1757
    %1759 = vrot.lane.b32.xlu0 %v1667, 64
    %v1760 = vpop.permute.xlu0 %1759
    %1761 = vrot.lane.b32.xlu0 %v1668, 64
    %v1762 = vpop.permute.xlu0 %1761
    %1763 = vrot.lane.b32.xlu0 %v1669, 64
    %v1764 = vpop.permute.xlu0 %1763
    %1765 = vrot.lane.b32.xlu0 %v1670, 64
    %v1766 = vpop.permute.xlu0 %1765
    %1767 = vrot.lane.b32.xlu0 %v1671, 64
    %v1768 = vpop.permute.xlu0 %1767
    %1769 = vrot.lane.b32.xlu0 %v1672, 64
    %v1770 = vpop.permute.xlu0 %1769
    %1771 = vrot.lane.b32.xlu0 %v1673, 64
    %v1772 = vpop.permute.xlu0 %1771
    %1773 = vrot.lane.b32.xlu0 %v1674, 64
    %v1774 = vpop.permute.xlu0 %1773
    %1775 = vrot.lane.b32.xlu0 %v1675, 64
    %v1776 = vpop.permute.xlu0 %1775
    %1777 = vrot.lane.b32.xlu0 %v1676, 64
    %v1778 = vpop.permute.xlu0 %1777
    %1779 = vrot.lane.b32.xlu0 %v1677, 64
    %v1780 = vpop.permute.xlu0 %1779
    %1781 = vrot.lane.b32.xlu0 %v1678, 64
    %v1782 = vpop.permute.xlu0 %1781
    %1783 = vrot.lane.b32.xlu0 %v1679, 64
    %v1784 = vpop.permute.xlu0 %1783
    %1785 = vrot.lane.b32.xlu0 %v1680, 64
    %v1786 = vpop.permute.xlu0 %1785
    %1787 = vrot.lane.b32.xlu0 %v1681, 64
    %v1788 = vpop.permute.xlu0 %1787
    %1789 = vrot.lane.b32.xlu0 %v1682, 64
    %v1790 = vpop.permute.xlu0 %1789
    %vm1827 = vcmask 589312
    %1828 = vst.msk [vmem:[#allocation2] sm:$0xff] %vm1827, %v1720
    %1829 = vst.msk [vmem:[#allocation2 + $0x8] sm:$0xff] %vm1827, %v1722
    %1830 = vst.msk [vmem:[#allocation2 + $0x10] sm:$0xff] %vm1827, %v1724
    %1831 = vst.msk [vmem:[#allocation2 + $0x18] sm:$0xff] %vm1827, %v1726
    %1832 = vst.msk [vmem:[#allocation2 + $0x20] sm:$0xff] %vm1827, %v1728
    %1833 = vst.msk [vmem:[#allocation2 + $0x28] sm:$0xff] %vm1827, %v1730
    %1834 = vst.msk [vmem:[#allocation2 + $0x30] sm:$0xff] %vm1827, %v1732
    %1835 = vst.msk [vmem:[#allocation2 + $0x38] sm:$0xff] %vm1827, %v1734
    %1836 = vst.msk [vmem:[#allocation2 + $0x40] sm:$0xff] %vm1827, %v1736
    %1837 = vst.msk [vmem:[#allocation2 + $0x48] sm:$0xff] %vm1827, %v1738
    %1838 = vst.msk [vmem:[#allocation2 + $0x50] sm:$0xff] %vm1827, %v1740
    %1839 = vst.msk [vmem:[#allocation2 + $0x58] sm:$0xff] %vm1827, %v1742
    %1840 = vst.msk [vmem:[#allocation2 + $0x60] sm:$0xff] %vm1827, %v1744
    %1841 = vst.msk [vmem:[#allocation2 + $0x68] sm:$0xff] %vm1827, %v1746
    %1842 = vst.msk [vmem:[#allocation2 + $0x70] sm:$0xff] %vm1827, %v1748
    %1843 = vst.msk [vmem:[#allocation2 + $0x78] sm:$0xff] %vm1827, %v1750
    %1844 = vst.msk [vmem:[#allocation2 + $0x80] sm:$0xff] %vm1827, %v1752
    %1845 = vst.msk [vmem:[#allocation2 + $0x88] sm:$0xff] %vm1827, %v1754
    %1846 = vst.msk [vmem:[#allocation2 + $0x90] sm:$0xff] %vm1827, %v1756
    %1847 = vst.msk [vmem:[#allocation2 + $0x98] sm:$0xff] %vm1827, %v1758
    %1848 = vst.msk [vmem:[#allocation2 + $0xa0] sm:$0xff] %vm1827, %v1760
    %1849 = vst.msk [vmem:[#allocation2 + $0xa8] sm:$0xff] %vm1827, %v1762
    %1850 = vst.msk [vmem:[#allocation2 + $0xb0] sm:$0xff] %vm1827, %v1764
    %1851 = vst.msk [vmem:[#allocation2 + $0xb8] sm:$0xff] %vm1827, %v1766
    %1852 = vst.msk [vmem:[#allocation2 + $0xc0] sm:$0xff] %vm1827, %v1768
    %1853 = vst.msk [vmem:[#allocation2 + $0xc8] sm:$0xff] %vm1827, %v1770
    %1854 = vst.msk [vmem:[#allocation2 + $0xd0] sm:$0xff] %vm1827, %v1772
    %1855 = vst.msk [vmem:[#allocation2 + $0xd8] sm:$0xff] %vm1827, %v1774
    %1856 = vst.msk [vmem:[#allocation2 + $0xe0] sm:$0xff] %vm1827, %v1776
    %1857 = vst.msk [vmem:[#allocation2 + $0xe8] sm:$0xff] %vm1827, %v1778
    %1858 = vst.msk [vmem:[#allocation2 + $0xf0] sm:$0xff] %vm1827, %v1780
    %1859 = vst.msk [vmem:[#allocation2 + $0xf8] sm:$0xff] %vm1827, %v1782
    %1860 = vst.msk [vmem:[#allocation2 + $0x100] sm:$0xff] %vm1827, %v1784
    %1861 = vst.msk [vmem:[#allocation2 + $0x108] sm:$0xff] %vm1827, %v1786
    %1862 = vst.msk [vmem:[#allocation2 + $0x110] sm:$0xff] %vm1827, %v1788
    %1863 = vst.msk [vmem:[#allocation2 + $0x118] sm:$0xff] %vm1827, %v1790
    %v1864 = vld [vmem:[%s0 + $0x144] sm:$0xff]
    %v1865 = vld [vmem:[%s0 + $0x14c] sm:$0xff]
    %v1866 = vld [vmem:[%s0 + $0x154] sm:$0xff]
    %v1867 = vld [vmem:[%s0 + $0x15c] sm:$0xff]
    %v1868 = vld [vmem:[%s0 + $0x164] sm:$0xff]
    %v1869 = vld [vmem:[%s0 + $0x16c] sm:$0xff]
    %v1870 = vld [vmem:[%s0 + $0x174] sm:$0xff]
    %v1871 = vld [vmem:[%s0 + $0x17c] sm:$0xff]
    %v1872 = vld [vmem:[%s0 + $0x184] sm:$0xff]
    %v1873 = vld [vmem:[%s0 + $0x18c] sm:$0xff]
    %v1874 = vld [vmem:[%s0 + $0x194] sm:$0xff]
    %v1875 = vld [vmem:[%s0 + $0x19c] sm:$0xff]
    %v1876 = vld [vmem:[%s0 + $0x1a4] sm:$0xff]
    %v1877 = vld [vmem:[%s0 + $0x1ac] sm:$0xff]
    %v1878 = vld [vmem:[%s0 + $0x1b4] sm:$0xff]
    %v1879 = vld [vmem:[%s0 + $0x1bc] sm:$0xff]
    %v1880 = vld [vmem:[%s0 + $0x1c4] sm:$0xff]
    %v1881 = vld [vmem:[%s0 + $0x1cc] sm:$0xff]
    %v1882 = vld [vmem:[%s0 + $0x1d4] sm:$0xff]
    %v1883 = vld [vmem:[%s0 + $0x1dc] sm:$0xff]
    %v1884 = vld [vmem:[%s0 + $0x1e4] sm:$0xff]
    %v1885 = vld [vmem:[%s0 + $0x1ec] sm:$0xff]
    %v1886 = vld [vmem:[%s0 + $0x1f4] sm:$0xff]
    %v1887 = vld [vmem:[%s0 + $0x1fc] sm:$0xff]
    %v1888 = vld [vmem:[%s0 + $0x204] sm:$0xff]
    %v1889 = vld [vmem:[%s0 + $0x20c] sm:$0xff]
    %v1890 = vld [vmem:[%s0 + $0x214] sm:$0xff]
    %v1891 = vld [vmem:[%s0 + $0x21c] sm:$0xff]
    %v1892 = vld [vmem:[%s0 + $0x224] sm:$0xff]
    %v1893 = vld [vmem:[%s0 + $0x22c] sm:$0xff]
    %v1894 = vld [vmem:[%s0 + $0x234] sm:$0xff]
    %v1895 = vld [vmem:[%s0 + $0x23c] sm:$0xff]
    %v1896 = vld [vmem:[%s0 + $0x244] sm:$0xff]
    %v1897 = vld [vmem:[%s0 + $0x24c] sm:$0xff]
    %v1898 = vld [vmem:[%s0 + $0x254] sm:$0xff]
    %v1899 = vld [vmem:[%s0 + $0x25c] sm:$0xff]
    %1900 = vst.msk [vmem:[#allocation2 + $0x120] sm:$0xff] %vm91, %v1864
    %1901 = vst.msk [vmem:[#allocation2 + $0x128] sm:$0xff] %vm91, %v1865
    %1902 = vst.msk [vmem:[#allocation2 + $0x130] sm:$0xff] %vm91, %v1866
    %1903 = vst.msk [vmem:[#allocation2 + $0x138] sm:$0xff] %vm91, %v1867
    %1904 = vst.msk [vmem:[#allocation2 + $0x140] sm:$0xff] %vm91, %v1868
    %1905 = vst.msk [vmem:[#allocation2 + $0x148] sm:$0xff] %vm91, %v1869
    %1906 = vst.msk [vmem:[#allocation2 + $0x150] sm:$0xff] %vm91, %v1870
    %1907 = vst.msk [vmem:[#allocation2 + $0x158] sm:$0xff] %vm91, %v1871
    %1908 = vst.msk [vmem:[#allocation2 + $0x160] sm:$0xff] %vm91, %v1872
    %1909 = vst.msk [vmem:[#allocation2 + $0x168] sm:$0xff] %vm91, %v1873
    %1910 = vst.msk [vmem:[#allocation2 + $0x170] sm:$0xff] %vm91, %v1874
    %1911 = vst.msk [vmem:[#allocation2 + $0x178] sm:$0xff] %vm91, %v1875
    %1912 = vst.msk [vmem:[#allocation2 + $0x180] sm:$0xff] %vm91, %v1876
    %1913 = vst.msk [vmem:[#allocation2 + $0x188] sm:$0xff] %vm91, %v1877
    %1914 = vst.msk [vmem:[#allocation2 + $0x190] sm:$0xff] %vm91, %v1878
    %1915 = vst.msk [vmem:[#allocation2 + $0x198] sm:$0xff] %vm91, %v1879
    %1916 = vst.msk [vmem:[#allocation2 + $0x1a0] sm:$0xff] %vm91, %v1880
    %1917 = vst.msk [vmem:[#allocation2 + $0x1a8] sm:$0xff] %vm91, %v1881
    %1918 = vst.msk [vmem:[#allocation2 + $0x1b0] sm:$0xff] %vm91, %v1882
    %1919 = vst.msk [vmem:[#allocation2 + $0x1b8] sm:$0xff] %vm91, %v1883
    %1920 = vst.msk [vmem:[#allocation2 + $0x1c0] sm:$0xff] %vm91, %v1884
    %1921 = vst.msk [vmem:[#allocation2 + $0x1c8] sm:$0xff] %vm91, %v1885
    %1922 = vst.msk [vmem:[#allocation2 + $0x1d0] sm:$0xff] %vm91, %v1886
    %1923 = vst.msk [vmem:[#allocation2 + $0x1d8] sm:$0xff] %vm91, %v1887
    %1924 = vst.msk [vmem:[#allocation2 + $0x1e0] sm:$0xff] %vm91, %v1888
    %1925 = vst.msk [vmem:[#allocation2 + $0x1e8] sm:$0xff] %vm91, %v1889
    %1926 = vst.msk [vmem:[#allocation2 + $0x1f0] sm:$0xff] %vm91, %v1890
    %1927 = vst.msk [vmem:[#allocation2 + $0x1f8] sm:$0xff] %vm91, %v1891
    %1928 = vst.msk [vmem:[#allocation2 + $0x200] sm:$0xff] %vm91, %v1892
    %1929 = vst.msk [vmem:[#allocation2 + $0x208] sm:$0xff] %vm91, %v1893
    %1930 = vst.msk [vmem:[#allocation2 + $0x210] sm:$0xff] %vm91, %v1894
    %1931 = vst.msk [vmem:[#allocation2 + $0x218] sm:$0xff] %vm91, %v1895
    %1932 = vst.msk [vmem:[#allocation2 + $0x220] sm:$0xff] %vm91, %v1896
    %1933 = vst.msk [vmem:[#allocation2 + $0x228] sm:$0xff] %vm91, %v1897
    %1934 = vst.msk [vmem:[#allocation2 + $0x230] sm:$0xff] %vm91, %v1898
    %1935 = vst.msk [vmem:[#allocation2 + $0x238] sm:$0xff] %vm91, %v1899
    %v1936 = vld [vmem:[%s0 + $0x145] sm:$0xff]
    %v1937 = vld [vmem:[%s0 + $0x14d] sm:$0xff]
    %v1938 = vld [vmem:[%s0 + $0x155] sm:$0xff]
    %v1939 = vld [vmem:[%s0 + $0x15d] sm:$0xff]
    %v1940 = vld [vmem:[%s0 + $0x165] sm:$0xff]
    %v1941 = vld [vmem:[%s0 + $0x16d] sm:$0xff]
    %v1942 = vld [vmem:[%s0 + $0x175] sm:$0xff]
    %v1943 = vld [vmem:[%s0 + $0x17d] sm:$0xff]
    %v1944 = vld [vmem:[%s0 + $0x185] sm:$0xff]
    %v1945 = vld [vmem:[%s0 + $0x18d] sm:$0xff]
    %v1946 = vld [vmem:[%s0 + $0x195] sm:$0xff]
    %v1947 = vld [vmem:[%s0 + $0x19d] sm:$0xff]
    %v1948 = vld [vmem:[%s0 + $0x1a5] sm:$0xff]
    %v1949 = vld [vmem:[%s0 + $0x1ad] sm:$0xff]
    %v1950 = vld [vmem:[%s0 + $0x1b5] sm:$0xff]
    %v1951 = vld [vmem:[%s0 + $0x1bd] sm:$0xff]
    %v1952 = vld [vmem:[%s0 + $0x1c5] sm:$0xff]
    %v1953 = vld [vmem:[%s0 + $0x1cd] sm:$0xff]
    %v1954 = vld [vmem:[%s0 + $0x1d5] sm:$0xff]
    %v1955 = vld [vmem:[%s0 + $0x1dd] sm:$0xff]
    %v1956 = vld [vmem:[%s0 + $0x1e5] sm:$0xff]
    %v1957 = vld [vmem:[%s0 + $0x1ed] sm:$0xff]
    %v1958 = vld [vmem:[%s0 + $0x1f5] sm:$0xff]
    %v1959 = vld [vmem:[%s0 + $0x1fd] sm:$0xff]
    %v1960 = vld [vmem:[%s0 + $0x205] sm:$0xff]
    %v1961 = vld [vmem:[%s0 + $0x20d] sm:$0xff]
    %v1962 = vld [vmem:[%s0 + $0x215] sm:$0xff]
    %v1963 = vld [vmem:[%s0 + $0x21d] sm:$0xff]
    %v1964 = vld [vmem:[%s0 + $0x225] sm:$0xff]
    %v1965 = vld [vmem:[%s0 + $0x22d] sm:$0xff]
    %v1966 = vld [vmem:[%s0 + $0x235] sm:$0xff]
    %v1967 = vld [vmem:[%s0 + $0x23d] sm:$0xff]
    %v1968 = vld [vmem:[%s0 + $0x245] sm:$0xff]
    %v1969 = vld [vmem:[%s0 + $0x24d] sm:$0xff]
    %v1970 = vld [vmem:[%s0 + $0x255] sm:$0xff]
    %v1971 = vld [vmem:[%s0 + $0x25d] sm:$0xff]
    %2008 = vrot.lane.b32.xlu0 %v1936, 8
    %v2009 = vpop.permute.xlu0 %2008
    %2010 = vrot.lane.b32.xlu0 %v1937, 8
    %v2011 = vpop.permute.xlu0 %2010
    %2012 = vrot.lane.b32.xlu0 %v1938, 8
    %v2013 = vpop.permute.xlu0 %2012
    %2014 = vrot.lane.b32.xlu0 %v1939, 8
    %v2015 = vpop.permute.xlu0 %2014
    %2016 = vrot.lane.b32.xlu0 %v1940, 8
    %v2017 = vpop.permute.xlu0 %2016
    %2018 = vrot.lane.b32.xlu0 %v1941, 8
    %v2019 = vpop.permute.xlu0 %2018
    %2020 = vrot.lane.b32.xlu0 %v1942, 8
    %v2021 = vpop.permute.xlu0 %2020
    %2022 = vrot.lane.b32.xlu0 %v1943, 8
    %v2023 = vpop.permute.xlu0 %2022
    %2024 = vrot.lane.b32.xlu0 %v1944, 8
    %v2025 = vpop.permute.xlu0 %2024
    %2026 = vrot.lane.b32.xlu0 %v1945, 8
    %v2027 = vpop.permute.xlu0 %2026
    %2028 = vrot.lane.b32.xlu0 %v1946, 8
    %v2029 = vpop.permute.xlu0 %2028
    %2030 = vrot.lane.b32.xlu0 %v1947, 8
    %v2031 = vpop.permute.xlu0 %2030
    %2032 = vrot.lane.b32.xlu0 %v1948, 8
    %v2033 = vpop.permute.xlu0 %2032
    %2034 = vrot.lane.b32.xlu0 %v1949, 8
    %v2035 = vpop.permute.xlu0 %2034
    %2036 = vrot.lane.b32.xlu0 %v1950, 8
    %v2037 = vpop.permute.xlu0 %2036
    %2038 = vrot.lane.b32.xlu0 %v1951, 8
    %v2039 = vpop.permute.xlu0 %2038
    %2040 = vrot.lane.b32.xlu0 %v1952, 8
    %v2041 = vpop.permute.xlu0 %2040
    %2042 = vrot.lane.b32.xlu0 %v1953, 8
    %v2043 = vpop.permute.xlu0 %2042
    %2044 = vrot.lane.b32.xlu0 %v1954, 8
    %v2045 = vpop.permute.xlu0 %2044
    %2046 = vrot.lane.b32.xlu0 %v1955, 8
    %v2047 = vpop.permute.xlu0 %2046
    %2048 = vrot.lane.b32.xlu0 %v1956, 8
    %v2049 = vpop.permute.xlu0 %2048
    %2050 = vrot.lane.b32.xlu0 %v1957, 8
    %v2051 = vpop.permute.xlu0 %2050
    %2052 = vrot.lane.b32.xlu0 %v1958, 8
    %v2053 = vpop.permute.xlu0 %2052
    %2054 = vrot.lane.b32.xlu0 %v1959, 8
    %v2055 = vpop.permute.xlu0 %2054
    %2056 = vrot.lane.b32.xlu0 %v1960, 8
    %v2057 = vpop.permute.xlu0 %2056
    %2058 = vrot.lane.b32.xlu0 %v1961, 8
    %v2059 = vpop.permute.xlu0 %2058
    %2060 = vrot.lane.b32.xlu0 %v1962, 8
    %v2061 = vpop.permute.xlu0 %2060
    %2062 = vrot.lane.b32.xlu0 %v1963, 8
    %v2063 = vpop.permute.xlu0 %2062
    %2064 = vrot.lane.b32.xlu0 %v1964, 8
    %v2065 = vpop.permute.xlu0 %2064
    %2066 = vrot.lane.b32.xlu0 %v1965, 8
    %v2067 = vpop.permute.xlu0 %2066
    %2068 = vrot.lane.b32.xlu0 %v1966, 8
    %v2069 = vpop.permute.xlu0 %2068
    %2070 = vrot.lane.b32.xlu0 %v1967, 8
    %v2071 = vpop.permute.xlu0 %2070
    %2072 = vrot.lane.b32.xlu0 %v1968, 8
    %v2073 = vpop.permute.xlu0 %2072
    %2074 = vrot.lane.b32.xlu0 %v1969, 8
    %v2075 = vpop.permute.xlu0 %2074
    %2076 = vrot.lane.b32.xlu0 %v1970, 8
    %v2077 = vpop.permute.xlu0 %2076
    %2078 = vrot.lane.b32.xlu0 %v1971, 8
    %v2079 = vpop.permute.xlu0 %2078
    %2116 = vst.msk [vmem:[#allocation2 + $0x120] sm:$0xff] %vm308, %v2009
    %2117 = vst.msk [vmem:[#allocation2 + $0x128] sm:$0xff] %vm308, %v2011
    %2118 = vst.msk [vmem:[#allocation2 + $0x130] sm:$0xff] %vm308, %v2013
    %2119 = vst.msk [vmem:[#allocation2 + $0x138] sm:$0xff] %vm308, %v2015
    %2120 = vst.msk [vmem:[#allocation2 + $0x140] sm:$0xff] %vm308, %v2017
    %2121 = vst.msk [vmem:[#allocation2 + $0x148] sm:$0xff] %vm308, %v2019
    %2122 = vst.msk [vmem:[#allocation2 + $0x150] sm:$0xff] %vm308, %v2021
    %2123 = vst.msk [vmem:[#allocation2 + $0x158] sm:$0xff] %vm308, %v2023
    %2124 = vst.msk [vmem:[#allocation2 + $0x160] sm:$0xff] %vm308, %v2025
    %2125 = vst.msk [vmem:[#allocation2 + $0x168] sm:$0xff] %vm308, %v2027
    %2126 = vst.msk [vmem:[#allocation2 + $0x170] sm:$0xff] %vm308, %v2029
    %2127 = vst.msk [vmem:[#allocation2 + $0x178] sm:$0xff] %vm308, %v2031
    %2128 = vst.msk [vmem:[#allocation2 + $0x180] sm:$0xff] %vm308, %v2033
    %2129 = vst.msk [vmem:[#allocation2 + $0x188] sm:$0xff] %vm308, %v2035
    %2130 = vst.msk [vmem:[#allocation2 + $0x190] sm:$0xff] %vm308, %v2037
    %2131 = vst.msk [vmem:[#allocation2 + $0x198] sm:$0xff] %vm308, %v2039
    %2132 = vst.msk [vmem:[#allocation2 + $0x1a0] sm:$0xff] %vm308, %v2041
    %2133 = vst.msk [vmem:[#allocation2 + $0x1a8] sm:$0xff] %vm308, %v2043
    %2134 = vst.msk [vmem:[#allocation2 + $0x1b0] sm:$0xff] %vm308, %v2045
    %2135 = vst.msk [vmem:[#allocation2 + $0x1b8] sm:$0xff] %vm308, %v2047
    %2136 = vst.msk [vmem:[#allocation2 + $0x1c0] sm:$0xff] %vm308, %v2049
    %2137 = vst.msk [vmem:[#allocation2 + $0x1c8] sm:$0xff] %vm308, %v2051
    %2138 = vst.msk [vmem:[#allocation2 + $0x1d0] sm:$0xff] %vm308, %v2053
    %2139 = vst.msk [vmem:[#allocation2 + $0x1d8] sm:$0xff] %vm308, %v2055
    %2140 = vst.msk [vmem:[#allocation2 + $0x1e0] sm:$0xff] %vm308, %v2057
    %2141 = vst.msk [vmem:[#allocation2 + $0x1e8] sm:$0xff] %vm308, %v2059
    %2142 = vst.msk [vmem:[#allocation2 + $0x1f0] sm:$0xff] %vm308, %v2061
    %2143 = vst.msk [vmem:[#allocation2 + $0x1f8] sm:$0xff] %vm308, %v2063
    %2144 = vst.msk [vmem:[#allocation2 + $0x200] sm:$0xff] %vm308, %v2065
    %2145 = vst.msk [vmem:[#allocation2 + $0x208] sm:$0xff] %vm308, %v2067
    %2146 = vst.msk [vmem:[#allocation2 + $0x210] sm:$0xff] %vm308, %v2069
    %2147 = vst.msk [vmem:[#allocation2 + $0x218] sm:$0xff] %vm308, %v2071
    %2148 = vst.msk [vmem:[#allocation2 + $0x220] sm:$0xff] %vm308, %v2073
    %2149 = vst.msk [vmem:[#allocation2 + $0x228] sm:$0xff] %vm308, %v2075
    %2150 = vst.msk [vmem:[#allocation2 + $0x230] sm:$0xff] %vm308, %v2077
    %2151 = vst.msk [vmem:[#allocation2 + $0x238] sm:$0xff] %vm308, %v2079
    %v2152 = vld [vmem:[%s0 + $0x146] sm:$0xff]
    %v2153 = vld [vmem:[%s0 + $0x14e] sm:$0xff]
    %v2154 = vld [vmem:[%s0 + $0x156] sm:$0xff]
    %v2155 = vld [vmem:[%s0 + $0x15e] sm:$0xff]
    %v2156 = vld [vmem:[%s0 + $0x166] sm:$0xff]
    %v2157 = vld [vmem:[%s0 + $0x16e] sm:$0xff]
    %v2158 = vld [vmem:[%s0 + $0x176] sm:$0xff]
    %v2159 = vld [vmem:[%s0 + $0x17e] sm:$0xff]
    %v2160 = vld [vmem:[%s0 + $0x186] sm:$0xff]
    %v2161 = vld [vmem:[%s0 + $0x18e] sm:$0xff]
    %v2162 = vld [vmem:[%s0 + $0x196] sm:$0xff]
    %v2163 = vld [vmem:[%s0 + $0x19e] sm:$0xff]
    %v2164 = vld [vmem:[%s0 + $0x1a6] sm:$0xff]
    %v2165 = vld [vmem:[%s0 + $0x1ae] sm:$0xff]
    %v2166 = vld [vmem:[%s0 + $0x1b6] sm:$0xff]
    %v2167 = vld [vmem:[%s0 + $0x1be] sm:$0xff]
    %v2168 = vld [vmem:[%s0 + $0x1c6] sm:$0xff]
    %v2169 = vld [vmem:[%s0 + $0x1ce] sm:$0xff]
    %v2170 = vld [vmem:[%s0 + $0x1d6] sm:$0xff]
    %v2171 = vld [vmem:[%s0 + $0x1de] sm:$0xff]
    %v2172 = vld [vmem:[%s0 + $0x1e6] sm:$0xff]
    %v2173 = vld [vmem:[%s0 + $0x1ee] sm:$0xff]
    %v2174 = vld [vmem:[%s0 + $0x1f6] sm:$0xff]
    %v2175 = vld [vmem:[%s0 + $0x1fe] sm:$0xff]
    %v2176 = vld [vmem:[%s0 + $0x206] sm:$0xff]
    %v2177 = vld [vmem:[%s0 + $0x20e] sm:$0xff]
    %v2178 = vld [vmem:[%s0 + $0x216] sm:$0xff]
    %v2179 = vld [vmem:[%s0 + $0x21e] sm:$0xff]
    %v2180 = vld [vmem:[%s0 + $0x226] sm:$0xff]
    %v2181 = vld [vmem:[%s0 + $0x22e] sm:$0xff]
    %v2182 = vld [vmem:[%s0 + $0x236] sm:$0xff]
    %v2183 = vld [vmem:[%s0 + $0x23e] sm:$0xff]
    %v2184 = vld [vmem:[%s0 + $0x246] sm:$0xff]
    %v2185 = vld [vmem:[%s0 + $0x24e] sm:$0xff]
    %v2186 = vld [vmem:[%s0 + $0x256] sm:$0xff]
    %v2187 = vld [vmem:[%s0 + $0x25e] sm:$0xff]
    %2224 = vrot.lane.b32.xlu0 %v2152, 16
    %v2225 = vpop.permute.xlu0 %2224
    %2226 = vrot.lane.b32.xlu0 %v2153, 16
    %v2227 = vpop.permute.xlu0 %2226
    %2228 = vrot.lane.b32.xlu0 %v2154, 16
    %v2229 = vpop.permute.xlu0 %2228
    %2230 = vrot.lane.b32.xlu0 %v2155, 16
    %v2231 = vpop.permute.xlu0 %2230
    %2232 = vrot.lane.b32.xlu0 %v2156, 16
    %v2233 = vpop.permute.xlu0 %2232
    %2234 = vrot.lane.b32.xlu0 %v2157, 16
    %v2235 = vpop.permute.xlu0 %2234
    %2236 = vrot.lane.b32.xlu0 %v2158, 16
    %v2237 = vpop.permute.xlu0 %2236
    %2238 = vrot.lane.b32.xlu0 %v2159, 16
    %v2239 = vpop.permute.xlu0 %2238
    %2240 = vrot.lane.b32.xlu0 %v2160, 16
    %v2241 = vpop.permute.xlu0 %2240
    %2242 = vrot.lane.b32.xlu0 %v2161, 16
    %v2243 = vpop.permute.xlu0 %2242
    %2244 = vrot.lane.b32.xlu0 %v2162, 16
    %v2245 = vpop.permute.xlu0 %2244
    %2246 = vrot.lane.b32.xlu0 %v2163, 16
    %v2247 = vpop.permute.xlu0 %2246
    %2248 = vrot.lane.b32.xlu0 %v2164, 16
    %v2249 = vpop.permute.xlu0 %2248
    %2250 = vrot.lane.b32.xlu0 %v2165, 16
    %v2251 = vpop.permute.xlu0 %2250
    %2252 = vrot.lane.b32.xlu0 %v2166, 16
    %v2253 = vpop.permute.xlu0 %2252
    %2254 = vrot.lane.b32.xlu0 %v2167, 16
    %v2255 = vpop.permute.xlu0 %2254
    %2256 = vrot.lane.b32.xlu0 %v2168, 16
    %v2257 = vpop.permute.xlu0 %2256
    %2258 = vrot.lane.b32.xlu0 %v2169, 16
    %v2259 = vpop.permute.xlu0 %2258
    %2260 = vrot.lane.b32.xlu0 %v2170, 16
    %v2261 = vpop.permute.xlu0 %2260
    %2262 = vrot.lane.b32.xlu0 %v2171, 16
    %v2263 = vpop.permute.xlu0 %2262
    %2264 = vrot.lane.b32.xlu0 %v2172, 16
    %v2265 = vpop.permute.xlu0 %2264
    %2266 = vrot.lane.b32.xlu0 %v2173, 16
    %v2267 = vpop.permute.xlu0 %2266
    %2268 = vrot.lane.b32.xlu0 %v2174, 16
    %v2269 = vpop.permute.xlu0 %2268
    %2270 = vrot.lane.b32.xlu0 %v2175, 16
    %v2271 = vpop.permute.xlu0 %2270
    %2272 = vrot.lane.b32.xlu0 %v2176, 16
    %v2273 = vpop.permute.xlu0 %2272
    %2274 = vrot.lane.b32.xlu0 %v2177, 16
    %v2275 = vpop.permute.xlu0 %2274
    %2276 = vrot.lane.b32.xlu0 %v2178, 16
    %v2277 = vpop.permute.xlu0 %2276
    %2278 = vrot.lane.b32.xlu0 %v2179, 16
    %v2279 = vpop.permute.xlu0 %2278
    %2280 = vrot.lane.b32.xlu0 %v2180, 16
    %v2281 = vpop.permute.xlu0 %2280
    %2282 = vrot.lane.b32.xlu0 %v2181, 16
    %v2283 = vpop.permute.xlu0 %2282
    %2284 = vrot.lane.b32.xlu0 %v2182, 16
    %v2285 = vpop.permute.xlu0 %2284
    %2286 = vrot.lane.b32.xlu0 %v2183, 16
    %v2287 = vpop.permute.xlu0 %2286
    %2288 = vrot.lane.b32.xlu0 %v2184, 16
    %v2289 = vpop.permute.xlu0 %2288
    %2290 = vrot.lane.b32.xlu0 %v2185, 16
    %v2291 = vpop.permute.xlu0 %2290
    %2292 = vrot.lane.b32.xlu0 %v2186, 16
    %v2293 = vpop.permute.xlu0 %2292
    %2294 = vrot.lane.b32.xlu0 %v2187, 16
    %v2295 = vpop.permute.xlu0 %2294
    %2332 = vst.msk [vmem:[#allocation2 + $0x120] sm:$0xff] %vm525, %v2225
    %2333 = vst.msk [vmem:[#allocation2 + $0x128] sm:$0xff] %vm525, %v2227
    %2334 = vst.msk [vmem:[#allocation2 + $0x130] sm:$0xff] %vm525, %v2229
    %2335 = vst.msk [vmem:[#allocation2 + $0x138] sm:$0xff] %vm525, %v2231
    %2336 = vst.msk [vmem:[#allocation2 + $0x140] sm:$0xff] %vm525, %v2233
    %2337 = vst.msk [vmem:[#allocation2 + $0x148] sm:$0xff] %vm525, %v2235
    %2338 = vst.msk [vmem:[#allocation2 + $0x150] sm:$0xff] %vm525, %v2237
    %2339 = vst.msk [vmem:[#allocation2 + $0x158] sm:$0xff] %vm525, %v2239
    %2340 = vst.msk [vmem:[#allocation2 + $0x160] sm:$0xff] %vm525, %v2241
    %2341 = vst.msk [vmem:[#allocation2 + $0x168] sm:$0xff] %vm525, %v2243
    %2342 = vst.msk [vmem:[#allocation2 + $0x170] sm:$0xff] %vm525, %v2245
    %2343 = vst.msk [vmem:[#allocation2 + $0x178] sm:$0xff] %vm525, %v2247
    %2344 = vst.msk [vmem:[#allocation2 + $0x180] sm:$0xff] %vm525, %v2249
    %2345 = vst.msk [vmem:[#allocation2 + $0x188] sm:$0xff] %vm525, %v2251
    %2346 = vst.msk [vmem:[#allocation2 + $0x190] sm:$0xff] %vm525, %v2253
    %2347 = vst.msk [vmem:[#allocation2 + $0x198] sm:$0xff] %vm525, %v2255
    %2348 = vst.msk [vmem:[#allocation2 + $0x1a0] sm:$0xff] %vm525, %v2257
    %2349 = vst.msk [vmem:[#allocation2 + $0x1a8] sm:$0xff] %vm525, %v2259
    %2350 = vst.msk [vmem:[#allocation2 + $0x1b0] sm:$0xff] %vm525, %v2261
    %2351 = vst.msk [vmem:[#allocation2 + $0x1b8] sm:$0xff] %vm525, %v2263
    %2352 = vst.msk [vmem:[#allocation2 + $0x1c0] sm:$0xff] %vm525, %v2265
    %2353 = vst.msk [vmem:[#allocation2 + $0x1c8] sm:$0xff] %vm525, %v2267
    %2354 = vst.msk [vmem:[#allocation2 + $0x1d0] sm:$0xff] %vm525, %v2269
    %2355 = vst.msk [vmem:[#allocation2 + $0x1d8] sm:$0xff] %vm525, %v2271
    %2356 = vst.msk [vmem:[#allocation2 + $0x1e0] sm:$0xff] %vm525, %v2273
    %2357 = vst.msk [vmem:[#allocation2 + $0x1e8] sm:$0xff] %vm525, %v2275
    %2358 = vst.msk [vmem:[#allocation2 + $0x1f0] sm:$0xff] %vm525, %v2277
    %2359 = vst.msk [vmem:[#allocation2 + $0x1f8] sm:$0xff] %vm525, %v2279
    %2360 = vst.msk [vmem:[#allocation2 + $0x200] sm:$0xff] %vm525, %v2281
    %2361 = vst.msk [vmem:[#allocation2 + $0x208] sm:$0xff] %vm525, %v2283
    %2362 = vst.msk [vmem:[#allocation2 + $0x210] sm:$0xff] %vm525, %v2285
    %2363 = vst.msk [vmem:[#allocation2 + $0x218] sm:$0xff] %vm525, %v2287
    %2364 = vst.msk [vmem:[#allocation2 + $0x220] sm:$0xff] %vm525, %v2289
    %2365 = vst.msk [vmem:[#allocation2 + $0x228] sm:$0xff] %vm525, %v2291
    %2366 = vst.msk [vmem:[#allocation2 + $0x230] sm:$0xff] %vm525, %v2293
    %2367 = vst.msk [vmem:[#allocation2 + $0x238] sm:$0xff] %vm525, %v2295
    %v2368 = vld [vmem:[%s0 + $0x156] sm:$0xff]
    %v2369 = vld [vmem:[%s0 + $0x15e] sm:$0xff]
    %v2370 = vld [vmem:[%s0 + $0x166] sm:$0xff]
    %v2371 = vld [vmem:[%s0 + $0x16e] sm:$0xff]
    %v2372 = vld [vmem:[%s0 + $0x176] sm:$0xff]
    %v2373 = vld [vmem:[%s0 + $0x17e] sm:$0xff]
    %v2374 = vld [vmem:[%s0 + $0x186] sm:$0xff]
    %v2375 = vld [vmem:[%s0 + $0x18e] sm:$0xff]
    %v2376 = vld [vmem:[%s0 + $0x196] sm:$0xff]
    %v2377 = vld [vmem:[%s0 + $0x19e] sm:$0xff]
    %v2378 = vld [vmem:[%s0 + $0x1a6] sm:$0xff]
    %v2379 = vld [vmem:[%s0 + $0x1ae] sm:$0xff]
    %v2380 = vld [vmem:[%s0 + $0x1b6] sm:$0xff]
    %v2381 = vld [vmem:[%s0 + $0x1be] sm:$0xff]
    %v2382 = vld [vmem:[%s0 + $0x1c6] sm:$0xff]
    %v2383 = vld [vmem:[%s0 + $0x1ce] sm:$0xff]
    %v2384 = vld [vmem:[%s0 + $0x1d6] sm:$0xff]
    %v2385 = vld [vmem:[%s0 + $0x1de] sm:$0xff]
    %v2386 = vld [vmem:[%s0 + $0x1e6] sm:$0xff]
    %v2387 = vld [vmem:[%s0 + $0x1ee] sm:$0xff]
    %v2388 = vld [vmem:[%s0 + $0x1f6] sm:$0xff]
    %v2389 = vld [vmem:[%s0 + $0x1fe] sm:$0xff]
    %v2390 = vld [vmem:[%s0 + $0x206] sm:$0xff]
    %v2391 = vld [vmem:[%s0 + $0x20e] sm:$0xff]
    %v2392 = vld [vmem:[%s0 + $0x216] sm:$0xff]
    %v2393 = vld [vmem:[%s0 + $0x21e] sm:$0xff]
    %v2394 = vld [vmem:[%s0 + $0x226] sm:$0xff]
    %v2395 = vld [vmem:[%s0 + $0x22e] sm:$0xff]
    %v2396 = vld [vmem:[%s0 + $0x236] sm:$0xff]
    %v2397 = vld [vmem:[%s0 + $0x23e] sm:$0xff]
    %v2398 = vld [vmem:[%s0 + $0x246] sm:$0xff]
    %v2399 = vld [vmem:[%s0 + $0x24e] sm:$0xff]
    %v2400 = vld [vmem:[%s0 + $0x256] sm:$0xff]
    %v2401 = vld [vmem:[%s0 + $0x25e] sm:$0xff]
    %v2402 = vld [vmem:[%s0 + $0x266] sm:$0xff]
    %v2403 = vld [vmem:[%s0 + $0x26e] sm:$0xff]
    %2440 = vrot.lane.b32.xlu0 %v2368, 24
    %v2441 = vpop.permute.xlu0 %2440
    %2442 = vrot.lane.b32.xlu0 %v2369, 24
    %v2443 = vpop.permute.xlu0 %2442
    %2444 = vrot.lane.b32.xlu0 %v2370, 24
    %v2445 = vpop.permute.xlu0 %2444
    %2446 = vrot.lane.b32.xlu0 %v2371, 24
    %v2447 = vpop.permute.xlu0 %2446
    %2448 = vrot.lane.b32.xlu0 %v2372, 24
    %v2449 = vpop.permute.xlu0 %2448
    %2450 = vrot.lane.b32.xlu0 %v2373, 24
    %v2451 = vpop.permute.xlu0 %2450
    %2452 = vrot.lane.b32.xlu0 %v2374, 24
    %v2453 = vpop.permute.xlu0 %2452
    %2454 = vrot.lane.b32.xlu0 %v2375, 24
    %v2455 = vpop.permute.xlu0 %2454
    %2456 = vrot.lane.b32.xlu0 %v2376, 24
    %v2457 = vpop.permute.xlu0 %2456
    %2458 = vrot.lane.b32.xlu0 %v2377, 24
    %v2459 = vpop.permute.xlu0 %2458
    %2460 = vrot.lane.b32.xlu0 %v2378, 24
    %v2461 = vpop.permute.xlu0 %2460
    %2462 = vrot.lane.b32.xlu0 %v2379, 24
    %v2463 = vpop.permute.xlu0 %2462
    %2464 = vrot.lane.b32.xlu0 %v2380, 24
    %v2465 = vpop.permute.xlu0 %2464
    %2466 = vrot.lane.b32.xlu0 %v2381, 24
    %v2467 = vpop.permute.xlu0 %2466
    %2468 = vrot.lane.b32.xlu0 %v2382, 24
    %v2469 = vpop.permute.xlu0 %2468
    %2470 = vrot.lane.b32.xlu0 %v2383, 24
    %v2471 = vpop.permute.xlu0 %2470
    %2472 = vrot.lane.b32.xlu0 %v2384, 24
    %v2473 = vpop.permute.xlu0 %2472
    %2474 = vrot.lane.b32.xlu0 %v2385, 24
    %v2475 = vpop.permute.xlu0 %2474
    %2476 = vrot.lane.b32.xlu0 %v2386, 24
    %v2477 = vpop.permute.xlu0 %2476
    %2478 = vrot.lane.b32.xlu0 %v2387, 24
    %v2479 = vpop.permute.xlu0 %2478
    %2480 = vrot.lane.b32.xlu0 %v2388, 24
    %v2481 = vpop.permute.xlu0 %2480
    %2482 = vrot.lane.b32.xlu0 %v2389, 24
    %v2483 = vpop.permute.xlu0 %2482
    %2484 = vrot.lane.b32.xlu0 %v2390, 24
    %v2485 = vpop.permute.xlu0 %2484
    %2486 = vrot.lane.b32.xlu0 %v2391, 24
    %v2487 = vpop.permute.xlu0 %2486
    %2488 = vrot.lane.b32.xlu0 %v2392, 24
    %v2489 = vpop.permute.xlu0 %2488
    %2490 = vrot.lane.b32.xlu0 %v2393, 24
    %v2491 = vpop.permute.xlu0 %2490
    %2492 = vrot.lane.b32.xlu0 %v2394, 24
    %v2493 = vpop.permute.xlu0 %2492
    %2494 = vrot.lane.b32.xlu0 %v2395, 24
    %v2495 = vpop.permute.xlu0 %2494
    %2496 = vrot.lane.b32.xlu0 %v2396, 24
    %v2497 = vpop.permute.xlu0 %2496
    %2498 = vrot.lane.b32.xlu0 %v2397, 24
    %v2499 = vpop.permute.xlu0 %2498
    %2500 = vrot.lane.b32.xlu0 %v2398, 24
    %v2501 = vpop.permute.xlu0 %2500
    %2502 = vrot.lane.b32.xlu0 %v2399, 24
    %v2503 = vpop.permute.xlu0 %2502
    %2504 = vrot.lane.b32.xlu0 %v2400, 24
    %v2505 = vpop.permute.xlu0 %2504
    %2506 = vrot.lane.b32.xlu0 %v2401, 24
    %v2507 = vpop.permute.xlu0 %2506
    %2508 = vrot.lane.b32.xlu0 %v2402, 24
    %v2509 = vpop.permute.xlu0 %2508
    %2510 = vrot.lane.b32.xlu0 %v2403, 24
    %v2511 = vpop.permute.xlu0 %2510
    %2548 = vst.msk [vmem:[#allocation2 + $0x120] sm:$0xff] %vm742, %v2441
    %2549 = vst.msk [vmem:[#allocation2 + $0x128] sm:$0xff] %vm742, %v2443
    %2550 = vst.msk [vmem:[#allocation2 + $0x130] sm:$0xff] %vm742, %v2445
    %2551 = vst.msk [vmem:[#allocation2 + $0x138] sm:$0xff] %vm742, %v2447
    %2552 = vst.msk [vmem:[#allocation2 + $0x140] sm:$0xff] %vm742, %v2449
    %2553 = vst.msk [vmem:[#allocation2 + $0x148] sm:$0xff] %vm742, %v2451
    %2554 = vst.msk [vmem:[#allocation2 + $0x150] sm:$0xff] %vm742, %v2453
    %2555 = vst.msk [vmem:[#allocation2 + $0x158] sm:$0xff] %vm742, %v2455
    %2556 = vst.msk [vmem:[#allocation2 + $0x160] sm:$0xff] %vm742, %v2457
    %2557 = vst.msk [vmem:[#allocation2 + $0x168] sm:$0xff] %vm742, %v2459
    %2558 = vst.msk [vmem:[#allocation2 + $0x170] sm:$0xff] %vm742, %v2461
    %2559 = vst.msk [vmem:[#allocation2 + $0x178] sm:$0xff] %vm742, %v2463
    %2560 = vst.msk [vmem:[#allocation2 + $0x180] sm:$0xff] %vm742, %v2465
    %2561 = vst.msk [vmem:[#allocation2 + $0x188] sm:$0xff] %vm742, %v2467
    %2562 = vst.msk [vmem:[#allocation2 + $0x190] sm:$0xff] %vm742, %v2469
    %2563 = vst.msk [vmem:[#allocation2 + $0x198] sm:$0xff] %vm742, %v2471
    %2564 = vst.msk [vmem:[#allocation2 + $0x1a0] sm:$0xff] %vm742, %v2473
    %2565 = vst.msk [vmem:[#allocation2 + $0x1a8] sm:$0xff] %vm742, %v2475
    %2566 = vst.msk [vmem:[#allocation2 + $0x1b0] sm:$0xff] %vm742, %v2477
    %2567 = vst.msk [vmem:[#allocation2 + $0x1b8] sm:$0xff] %vm742, %v2479
    %2568 = vst.msk [vmem:[#allocation2 + $0x1c0] sm:$0xff] %vm742, %v2481
    %2569 = vst.msk [vmem:[#allocation2 + $0x1c8] sm:$0xff] %vm742, %v2483
    %2570 = vst.msk [vmem:[#allocation2 + $0x1d0] sm:$0xff] %vm742, %v2485
    %2571 = vst.msk [vmem:[#allocation2 + $0x1d8] sm:$0xff] %vm742, %v2487
    %2572 = vst.msk [vmem:[#allocation2 + $0x1e0] sm:$0xff] %vm742, %v2489
    %2573 = vst.msk [vmem:[#allocation2 + $0x1e8] sm:$0xff] %vm742, %v2491
    %2574 = vst.msk [vmem:[#allocation2 + $0x1f0] sm:$0xff] %vm742, %v2493
    %2575 = vst.msk [vmem:[#allocation2 + $0x1f8] sm:$0xff] %vm742, %v2495
    %2576 = vst.msk [vmem:[#allocation2 + $0x200] sm:$0xff] %vm742, %v2497
    %2577 = vst.msk [vmem:[#allocation2 + $0x208] sm:$0xff] %vm742, %v2499
    %2578 = vst.msk [vmem:[#allocation2 + $0x210] sm:$0xff] %vm742, %v2501
    %2579 = vst.msk [vmem:[#allocation2 + $0x218] sm:$0xff] %vm742, %v2503
    %2580 = vst.msk [vmem:[#allocation2 + $0x220] sm:$0xff] %vm742, %v2505
    %2581 = vst.msk [vmem:[#allocation2 + $0x228] sm:$0xff] %vm742, %v2507
    %2582 = vst.msk [vmem:[#allocation2 + $0x230] sm:$0xff] %vm742, %v2509
    %2583 = vst.msk [vmem:[#allocation2 + $0x238] sm:$0xff] %vm742, %v2511
    %v2584 = vld [vmem:[%s0 + $0x157] sm:$0xff]
    %v2585 = vld [vmem:[%s0 + $0x15f] sm:$0xff]
    %v2586 = vld [vmem:[%s0 + $0x167] sm:$0xff]
    %v2587 = vld [vmem:[%s0 + $0x16f] sm:$0xff]
    %v2588 = vld [vmem:[%s0 + $0x177] sm:$0xff]
    %v2589 = vld [vmem:[%s0 + $0x17f] sm:$0xff]
    %v2590 = vld [vmem:[%s0 + $0x187] sm:$0xff]
    %v2591 = vld [vmem:[%s0 + $0x18f] sm:$0xff]
    %v2592 = vld [vmem:[%s0 + $0x197] sm:$0xff]
    %v2593 = vld [vmem:[%s0 + $0x19f] sm:$0xff]
    %v2594 = vld [vmem:[%s0 + $0x1a7] sm:$0xff]
    %v2595 = vld [vmem:[%s0 + $0x1af] sm:$0xff]
    %v2596 = vld [vmem:[%s0 + $0x1b7] sm:$0xff]
    %v2597 = vld [vmem:[%s0 + $0x1bf] sm:$0xff]
    %v2598 = vld [vmem:[%s0 + $0x1c7] sm:$0xff]
    %v2599 = vld [vmem:[%s0 + $0x1cf] sm:$0xff]
    %v2600 = vld [vmem:[%s0 + $0x1d7] sm:$0xff]
    %v2601 = vld [vmem:[%s0 + $0x1df] sm:$0xff]
    %v2602 = vld [vmem:[%s0 + $0x1e7] sm:$0xff]
    %v2603 = vld [vmem:[%s0 + $0x1ef] sm:$0xff]
    %v2604 = vld [vmem:[%s0 + $0x1f7] sm:$0xff]
    %v2605 = vld [vmem:[%s0 + $0x1ff] sm:$0xff]
    %v2606 = vld [vmem:[%s0 + $0x207] sm:$0xff]
    %v2607 = vld [vmem:[%s0 + $0x20f] sm:$0xff]
    %v2608 = vld [vmem:[%s0 + $0x217] sm:$0xff]
    %v2609 = vld [vmem:[%s0 + $0x21f] sm:$0xff]
    %v2610 = vld [vmem:[%s0 + $0x227] sm:$0xff]
    %v2611 = vld [vmem:[%s0 + $0x22f] sm:$0xff]
    %v2612 = vld [vmem:[%s0 + $0x237] sm:$0xff]
    %v2613 = vld [vmem:[%s0 + $0x23f] sm:$0xff]
    %v2614 = vld [vmem:[%s0 + $0x247] sm:$0xff]
    %v2615 = vld [vmem:[%s0 + $0x24f] sm:$0xff]
    %v2616 = vld [vmem:[%s0 + $0x257] sm:$0xff]
    %v2617 = vld [vmem:[%s0 + $0x25f] sm:$0xff]
    %v2618 = vld [vmem:[%s0 + $0x267] sm:$0xff]
    %v2619 = vld [vmem:[%s0 + $0x26f] sm:$0xff]
    %2656 = vrot.lane.b32.xlu0 %v2584, 32
    %v2657 = vpop.permute.xlu0 %2656
    %2658 = vrot.lane.b32.xlu0 %v2585, 32
    %v2659 = vpop.permute.xlu0 %2658
    %2660 = vrot.lane.b32.xlu0 %v2586, 32
    %v2661 = vpop.permute.xlu0 %2660
    %2662 = vrot.lane.b32.xlu0 %v2587, 32
    %v2663 = vpop.permute.xlu0 %2662
    %2664 = vrot.lane.b32.xlu0 %v2588, 32
    %v2665 = vpop.permute.xlu0 %2664
    %2666 = vrot.lane.b32.xlu0 %v2589, 32
    %v2667 = vpop.permute.xlu0 %2666
    %2668 = vrot.lane.b32.xlu0 %v2590, 32
    %v2669 = vpop.permute.xlu0 %2668
    %2670 = vrot.lane.b32.xlu0 %v2591, 32
    %v2671 = vpop.permute.xlu0 %2670
    %2672 = vrot.lane.b32.xlu0 %v2592, 32
    %v2673 = vpop.permute.xlu0 %2672
    %2674 = vrot.lane.b32.xlu0 %v2593, 32
    %v2675 = vpop.permute.xlu0 %2674
    %2676 = vrot.lane.b32.xlu0 %v2594, 32
    %v2677 = vpop.permute.xlu0 %2676
    %2678 = vrot.lane.b32.xlu0 %v2595, 32
    %v2679 = vpop.permute.xlu0 %2678
    %2680 = vrot.lane.b32.xlu0 %v2596, 32
    %v2681 = vpop.permute.xlu0 %2680
    %2682 = vrot.lane.b32.xlu0 %v2597, 32
    %v2683 = vpop.permute.xlu0 %2682
    %2684 = vrot.lane.b32.xlu0 %v2598, 32
    %v2685 = vpop.permute.xlu0 %2684
    %2686 = vrot.lane.b32.xlu0 %v2599, 32
    %v2687 = vpop.permute.xlu0 %2686
    %2688 = vrot.lane.b32.xlu0 %v2600, 32
    %v2689 = vpop.permute.xlu0 %2688
    %2690 = vrot.lane.b32.xlu0 %v2601, 32
    %v2691 = vpop.permute.xlu0 %2690
    %2692 = vrot.lane.b32.xlu0 %v2602, 32
    %v2693 = vpop.permute.xlu0 %2692
    %2694 = vrot.lane.b32.xlu0 %v2603, 32
    %v2695 = vpop.permute.xlu0 %2694
    %2696 = vrot.lane.b32.xlu0 %v2604, 32
    %v2697 = vpop.permute.xlu0 %2696
    %2698 = vrot.lane.b32.xlu0 %v2605, 32
    %v2699 = vpop.permute.xlu0 %2698
    %2700 = vrot.lane.b32.xlu0 %v2606, 32
    %v2701 = vpop.permute.xlu0 %2700
    %2702 = vrot.lane.b32.xlu0 %v2607, 32
    %v2703 = vpop.permute.xlu0 %2702
    %2704 = vrot.lane.b32.xlu0 %v2608, 32
    %v2705 = vpop.permute.xlu0 %2704
    %2706 = vrot.lane.b32.xlu0 %v2609, 32
    %v2707 = vpop.permute.xlu0 %2706
    %2708 = vrot.lane.b32.xlu0 %v2610, 32
    %v2709 = vpop.permute.xlu0 %2708
    %2710 = vrot.lane.b32.xlu0 %v2611, 32
    %v2711 = vpop.permute.xlu0 %2710
    %2712 = vrot.lane.b32.xlu0 %v2612, 32
    %v2713 = vpop.permute.xlu0 %2712
    %2714 = vrot.lane.b32.xlu0 %v2613, 32
    %v2715 = vpop.permute.xlu0 %2714
    %2716 = vrot.lane.b32.xlu0 %v2614, 32
    %v2717 = vpop.permute.xlu0 %2716
    %2718 = vrot.lane.b32.xlu0 %v2615, 32
    %v2719 = vpop.permute.xlu0 %2718
    %2720 = vrot.lane.b32.xlu0 %v2616, 32
    %v2721 = vpop.permute.xlu0 %2720
    %2722 = vrot.lane.b32.xlu0 %v2617, 32
    %v2723 = vpop.permute.xlu0 %2722
    %2724 = vrot.lane.b32.xlu0 %v2618, 32
    %v2725 = vpop.permute.xlu0 %2724
    %2726 = vrot.lane.b32.xlu0 %v2619, 32
    %v2727 = vpop.permute.xlu0 %2726
    %2764 = vst.msk [vmem:[#allocation2 + $0x120] sm:$0xff] %vm959, %v2657
    %2765 = vst.msk [vmem:[#allocation2 + $0x128] sm:$0xff] %vm959, %v2659
    %2766 = vst.msk [vmem:[#allocation2 + $0x130] sm:$0xff] %vm959, %v2661
    %2767 = vst.msk [vmem:[#allocation2 + $0x138] sm:$0xff] %vm959, %v2663
    %2768 = vst.msk [vmem:[#allocation2 + $0x140] sm:$0xff] %vm959, %v2665
    %2769 = vst.msk [vmem:[#allocation2 + $0x148] sm:$0xff] %vm959, %v2667
    %2770 = vst.msk [vmem:[#allocation2 + $0x150] sm:$0xff] %vm959, %v2669
    %2771 = vst.msk [vmem:[#allocation2 + $0x158] sm:$0xff] %vm959, %v2671
    %2772 = vst.msk [vmem:[#allocation2 + $0x160] sm:$0xff] %vm959, %v2673
    %2773 = vst.msk [vmem:[#allocation2 + $0x168] sm:$0xff] %vm959, %v2675
    %2774 = vst.msk [vmem:[#allocation2 + $0x170] sm:$0xff] %vm959, %v2677
    %2775 = vst.msk [vmem:[#allocation2 + $0x178] sm:$0xff] %vm959, %v2679
    %2776 = vst.msk [vmem:[#allocation2 + $0x180] sm:$0xff] %vm959, %v2681
    %2777 = vst.msk [vmem:[#allocation2 + $0x188] sm:$0xff] %vm959, %v2683
    %2778 = vst.msk [vmem:[#allocation2 + $0x190] sm:$0xff] %vm959, %v2685
    %2779 = vst.msk [vmem:[#allocation2 + $0x198] sm:$0xff] %vm959, %v2687
    %2780 = vst.msk [vmem:[#allocation2 + $0x1a0] sm:$0xff] %vm959, %v2689
    %2781 = vst.msk [vmem:[#allocation2 + $0x1a8] sm:$0xff] %vm959, %v2691
    %2782 = vst.msk [vmem:[#allocation2 + $0x1b0] sm:$0xff] %vm959, %v2693
    %2783 = vst.msk [vmem:[#allocation2 + $0x1b8] sm:$0xff] %vm959, %v2695
    %2784 = vst.msk [vmem:[#allocation2 + $0x1c0] sm:$0xff] %vm959, %v2697
    %2785 = vst.msk [vmem:[#allocation2 + $0x1c8] sm:$0xff] %vm959, %v2699
    %2786 = vst.msk [vmem:[#allocation2 + $0x1d0] sm:$0xff] %vm959, %v2701
    %2787 = vst.msk [vmem:[#allocation2 + $0x1d8] sm:$0xff] %vm959, %v2703
    %2788 = vst.msk [vmem:[#allocation2 + $0x1e0] sm:$0xff] %vm959, %v2705
    %2789 = vst.msk [vmem:[#allocation2 + $0x1e8] sm:$0xff] %vm959, %v2707
    %2790 = vst.msk [vmem:[#allocation2 + $0x1f0] sm:$0xff] %vm959, %v2709
    %2791 = vst.msk [vmem:[#allocation2 + $0x1f8] sm:$0xff] %vm959, %v2711
    %2792 = vst.msk [vmem:[#allocation2 + $0x200] sm:$0xff] %vm959, %v2713
    %2793 = vst.msk [vmem:[#allocation2 + $0x208] sm:$0xff] %vm959, %v2715
    %2794 = vst.msk [vmem:[#allocation2 + $0x210] sm:$0xff] %vm959, %v2717
    %2795 = vst.msk [vmem:[#allocation2 + $0x218] sm:$0xff] %vm959, %v2719
    %2796 = vst.msk [vmem:[#allocation2 + $0x220] sm:$0xff] %vm959, %v2721
    %2797 = vst.msk [vmem:[#allocation2 + $0x228] sm:$0xff] %vm959, %v2723
    %2798 = vst.msk [vmem:[#allocation2 + $0x230] sm:$0xff] %vm959, %v2725
    %2799 = vst.msk [vmem:[#allocation2 + $0x238] sm:$0xff] %vm959, %v2727
    %v2800 = vld [vmem:[%s0 + $0x158] sm:$0xff]
    %v2801 = vld [vmem:[%s0 + $0x160] sm:$0xff]
    %v2802 = vld [vmem:[%s0 + $0x168] sm:$0xff]
    %v2803 = vld [vmem:[%s0 + $0x170] sm:$0xff]
    %v2804 = vld [vmem:[%s0 + $0x178] sm:$0xff]
    %v2805 = vld [vmem:[%s0 + $0x180] sm:$0xff]
    %v2806 = vld [vmem:[%s0 + $0x188] sm:$0xff]
    %v2807 = vld [vmem:[%s0 + $0x190] sm:$0xff]
    %v2808 = vld [vmem:[%s0 + $0x198] sm:$0xff]
    %v2809 = vld [vmem:[%s0 + $0x1a0] sm:$0xff]
    %v2810 = vld [vmem:[%s0 + $0x1a8] sm:$0xff]
    %v2811 = vld [vmem:[%s0 + $0x1b0] sm:$0xff]
    %v2812 = vld [vmem:[%s0 + $0x1b8] sm:$0xff]
    %v2813 = vld [vmem:[%s0 + $0x1c0] sm:$0xff]
    %v2814 = vld [vmem:[%s0 + $0x1c8] sm:$0xff]
    %v2815 = vld [vmem:[%s0 + $0x1d0] sm:$0xff]
    %v2816 = vld [vmem:[%s0 + $0x1d8] sm:$0xff]
    %v2817 = vld [vmem:[%s0 + $0x1e0] sm:$0xff]
    %v2818 = vld [vmem:[%s0 + $0x1e8] sm:$0xff]
    %v2819 = vld [vmem:[%s0 + $0x1f0] sm:$0xff]
    %v2820 = vld [vmem:[%s0 + $0x1f8] sm:$0xff]
    %v2821 = vld [vmem:[%s0 + $0x200] sm:$0xff]
    %v2822 = vld [vmem:[%s0 + $0x208] sm:$0xff]
    %v2823 = vld [vmem:[%s0 + $0x210] sm:$0xff]
    %v2824 = vld [vmem:[%s0 + $0x218] sm:$0xff]
    %v2825 = vld [vmem:[%s0 + $0x220] sm:$0xff]
    %v2826 = vld [vmem:[%s0 + $0x228] sm:$0xff]
    %v2827 = vld [vmem:[%s0 + $0x230] sm:$0xff]
    %v2828 = vld [vmem:[%s0 + $0x238] sm:$0xff]
    %v2829 = vld [vmem:[%s0 + $0x240] sm:$0xff]
    %v2830 = vld [vmem:[%s0 + $0x248] sm:$0xff]
    %v2831 = vld [vmem:[%s0 + $0x250] sm:$0xff]
    %v2832 = vld [vmem:[%s0 + $0x258] sm:$0xff]
    %v2833 = vld [vmem:[%s0 + $0x260] sm:$0xff]
    %v2834 = vld [vmem:[%s0 + $0x268] sm:$0xff]
    %v2835 = vld [vmem:[%s0 + $0x270] sm:$0xff]
    %2872 = vrot.lane.b32.xlu0 %v2800, 40
    %v2873 = vpop.permute.xlu0 %2872
    %2874 = vrot.lane.b32.xlu0 %v2801, 40
    %v2875 = vpop.permute.xlu0 %2874
    %2876 = vrot.lane.b32.xlu0 %v2802, 40
    %v2877 = vpop.permute.xlu0 %2876
    %2878 = vrot.lane.b32.xlu0 %v2803, 40
    %v2879 = vpop.permute.xlu0 %2878
    %2880 = vrot.lane.b32.xlu0 %v2804, 40
    %v2881 = vpop.permute.xlu0 %2880
    %2882 = vrot.lane.b32.xlu0 %v2805, 40
    %v2883 = vpop.permute.xlu0 %2882
    %2884 = vrot.lane.b32.xlu0 %v2806, 40
    %v2885 = vpop.permute.xlu0 %2884
    %2886 = vrot.lane.b32.xlu0 %v2807, 40
    %v2887 = vpop.permute.xlu0 %2886
    %2888 = vrot.lane.b32.xlu0 %v2808, 40
    %v2889 = vpop.permute.xlu0 %2888
    %2890 = vrot.lane.b32.xlu0 %v2809, 40
    %v2891 = vpop.permute.xlu0 %2890
    %2892 = vrot.lane.b32.xlu0 %v2810, 40
    %v2893 = vpop.permute.xlu0 %2892
    %2894 = vrot.lane.b32.xlu0 %v2811, 40
    %v2895 = vpop.permute.xlu0 %2894
    %2896 = vrot.lane.b32.xlu0 %v2812, 40
    %v2897 = vpop.permute.xlu0 %2896
    %2898 = vrot.lane.b32.xlu0 %v2813, 40
    %v2899 = vpop.permute.xlu0 %2898
    %2900 = vrot.lane.b32.xlu0 %v2814, 40
    %v2901 = vpop.permute.xlu0 %2900
    %2902 = vrot.lane.b32.xlu0 %v2815, 40
    %v2903 = vpop.permute.xlu0 %2902
    %2904 = vrot.lane.b32.xlu0 %v2816, 40
    %v2905 = vpop.permute.xlu0 %2904
    %2906 = vrot.lane.b32.xlu0 %v2817, 40
    %v2907 = vpop.permute.xlu0 %2906
    %2908 = vrot.lane.b32.xlu0 %v2818, 40
    %v2909 = vpop.permute.xlu0 %2908
    %2910 = vrot.lane.b32.xlu0 %v2819, 40
    %v2911 = vpop.permute.xlu0 %2910
    %2912 = vrot.lane.b32.xlu0 %v2820, 40
    %v2913 = vpop.permute.xlu0 %2912
    %2914 = vrot.lane.b32.xlu0 %v2821, 40
    %v2915 = vpop.permute.xlu0 %2914
    %2916 = vrot.lane.b32.xlu0 %v2822, 40
    %v2917 = vpop.permute.xlu0 %2916
    %2918 = vrot.lane.b32.xlu0 %v2823, 40
    %v2919 = vpop.permute.xlu0 %2918
    %2920 = vrot.lane.b32.xlu0 %v2824, 40
    %v2921 = vpop.permute.xlu0 %2920
    %2922 = vrot.lane.b32.xlu0 %v2825, 40
    %v2923 = vpop.permute.xlu0 %2922
    %2924 = vrot.lane.b32.xlu0 %v2826, 40
    %v2925 = vpop.permute.xlu0 %2924
    %2926 = vrot.lane.b32.xlu0 %v2827, 40
    %v2927 = vpop.permute.xlu0 %2926
    %2928 = vrot.lane.b32.xlu0 %v2828, 40
    %v2929 = vpop.permute.xlu0 %2928
    %2930 = vrot.lane.b32.xlu0 %v2829, 40
    %v2931 = vpop.permute.xlu0 %2930
    %2932 = vrot.lane.b32.xlu0 %v2830, 40
    %v2933 = vpop.permute.xlu0 %2932
    %2934 = vrot.lane.b32.xlu0 %v2831, 40
    %v2935 = vpop.permute.xlu0 %2934
    %2936 = vrot.lane.b32.xlu0 %v2832, 40
    %v2937 = vpop.permute.xlu0 %2936
    %2938 = vrot.lane.b32.xlu0 %v2833, 40
    %v2939 = vpop.permute.xlu0 %2938
    %2940 = vrot.lane.b32.xlu0 %v2834, 40
    %v2941 = vpop.permute.xlu0 %2940
    %2942 = vrot.lane.b32.xlu0 %v2835, 40
    %v2943 = vpop.permute.xlu0 %2942
    %2980 = vst.msk [vmem:[#allocation2 + $0x120] sm:$0xff] %vm1176, %v2873
    %2981 = vst.msk [vmem:[#allocation2 + $0x128] sm:$0xff] %vm1176, %v2875
    %2982 = vst.msk [vmem:[#allocation2 + $0x130] sm:$0xff] %vm1176, %v2877
    %2983 = vst.msk [vmem:[#allocation2 + $0x138] sm:$0xff] %vm1176, %v2879
    %2984 = vst.msk [vmem:[#allocation2 + $0x140] sm:$0xff] %vm1176, %v2881
    %2985 = vst.msk [vmem:[#allocation2 + $0x148] sm:$0xff] %vm1176, %v2883
    %2986 = vst.msk [vmem:[#allocation2 + $0x150] sm:$0xff] %vm1176, %v2885
    %2987 = vst.msk [vmem:[#allocation2 + $0x158] sm:$0xff] %vm1176, %v2887
    %2988 = vst.msk [vmem:[#allocation2 + $0x160] sm:$0xff] %vm1176, %v2889
    %2989 = vst.msk [vmem:[#allocation2 + $0x168] sm:$0xff] %vm1176, %v2891
    %2990 = vst.msk [vmem:[#allocation2 + $0x170] sm:$0xff] %vm1176, %v2893
    %2991 = vst.msk [vmem:[#allocation2 + $0x178] sm:$0xff] %vm1176, %v2895
    %2992 = vst.msk [vmem:[#allocation2 + $0x180] sm:$0xff] %vm1176, %v2897
    %2993 = vst.msk [vmem:[#allocation2 + $0x188] sm:$0xff] %vm1176, %v2899
    %2994 = vst.msk [vmem:[#allocation2 + $0x190] sm:$0xff] %vm1176, %v2901
    %2995 = vst.msk [vmem:[#allocation2 + $0x198] sm:$0xff] %vm1176, %v2903
    %2996 = vst.msk [vmem:[#allocation2 + $0x1a0] sm:$0xff] %vm1176, %v2905
    %2997 = vst.msk [vmem:[#allocation2 + $0x1a8] sm:$0xff] %vm1176, %v2907
    %2998 = vst.msk [vmem:[#allocation2 + $0x1b0] sm:$0xff] %vm1176, %v2909
    %2999 = vst.msk [vmem:[#allocation2 + $0x1b8] sm:$0xff] %vm1176, %v2911
    %3000 = vst.msk [vmem:[#allocation2 + $0x1c0] sm:$0xff] %vm1176, %v2913
    %3001 = vst.msk [vmem:[#allocation2 + $0x1c8] sm:$0xff] %vm1176, %v2915
    %3002 = vst.msk [vmem:[#allocation2 + $0x1d0] sm:$0xff] %vm1176, %v2917
    %3003 = vst.msk [vmem:[#allocation2 + $0x1d8] sm:$0xff] %vm1176, %v2919
    %3004 = vst.msk [vmem:[#allocation2 + $0x1e0] sm:$0xff] %vm1176, %v2921
    %3005 = vst.msk [vmem:[#allocation2 + $0x1e8] sm:$0xff] %vm1176, %v2923
    %3006 = vst.msk [vmem:[#allocation2 + $0x1f0] sm:$0xff] %vm1176, %v2925
    %3007 = vst.msk [vmem:[#allocation2 + $0x1f8] sm:$0xff] %vm1176, %v2927
    %3008 = vst.msk [vmem:[#allocation2 + $0x200] sm:$0xff] %vm1176, %v2929
    %3009 = vst.msk [vmem:[#allocation2 + $0x208] sm:$0xff] %vm1176, %v2931
    %3010 = vst.msk [vmem:[#allocation2 + $0x210] sm:$0xff] %vm1176, %v2933
    %3011 = vst.msk [vmem:[#allocation2 + $0x218] sm:$0xff] %vm1176, %v2935
    %3012 = vst.msk [vmem:[#allocation2 + $0x220] sm:$0xff] %vm1176, %v2937
    %3013 = vst.msk [vmem:[#allocation2 + $0x228] sm:$0xff] %vm1176, %v2939
    %3014 = vst.msk [vmem:[#allocation2 + $0x230] sm:$0xff] %vm1176, %v2941
    %3015 = vst.msk [vmem:[#allocation2 + $0x238] sm:$0xff] %vm1176, %v2943
    %v3016 = vld [vmem:[%s0 + $0x168] sm:$0xff]
    %v3017 = vld [vmem:[%s0 + $0x170] sm:$0xff]
    %v3018 = vld [vmem:[%s0 + $0x178] sm:$0xff]
    %v3019 = vld [vmem:[%s0 + $0x180] sm:$0xff]
    %v3020 = vld [vmem:[%s0 + $0x188] sm:$0xff]
    %v3021 = vld [vmem:[%s0 + $0x190] sm:$0xff]
    %v3022 = vld [vmem:[%s0 + $0x198] sm:$0xff]
    %v3023 = vld [vmem:[%s0 + $0x1a0] sm:$0xff]
    %v3024 = vld [vmem:[%s0 + $0x1a8] sm:$0xff]
    %v3025 = vld [vmem:[%s0 + $0x1b0] sm:$0xff]
    %v3026 = vld [vmem:[%s0 + $0x1b8] sm:$0xff]
    %v3027 = vld [vmem:[%s0 + $0x1c0] sm:$0xff]
    %v3028 = vld [vmem:[%s0 + $0x1c8] sm:$0xff]
    %v3029 = vld [vmem:[%s0 + $0x1d0] sm:$0xff]
    %v3030 = vld [vmem:[%s0 + $0x1d8] sm:$0xff]
    %v3031 = vld [vmem:[%s0 + $0x1e0] sm:$0xff]
    %v3032 = vld [vmem:[%s0 + $0x1e8] sm:$0xff]
    %v3033 = vld [vmem:[%s0 + $0x1f0] sm:$0xff]
    %v3034 = vld [vmem:[%s0 + $0x1f8] sm:$0xff]
    %v3035 = vld [vmem:[%s0 + $0x200] sm:$0xff]
    %v3036 = vld [vmem:[%s0 + $0x208] sm:$0xff]
    %v3037 = vld [vmem:[%s0 + $0x210] sm:$0xff]
    %v3038 = vld [vmem:[%s0 + $0x218] sm:$0xff]
    %v3039 = vld [vmem:[%s0 + $0x220] sm:$0xff]
    %v3040 = vld [vmem:[%s0 + $0x228] sm:$0xff]
    %v3041 = vld [vmem:[%s0 + $0x230] sm:$0xff]
    %v3042 = vld [vmem:[%s0 + $0x238] sm:$0xff]
    %v3043 = vld [vmem:[%s0 + $0x240] sm:$0xff]
    %v3044 = vld [vmem:[%s0 + $0x248] sm:$0xff]
    %v3045 = vld [vmem:[%s0 + $0x250] sm:$0xff]
    %v3046 = vld [vmem:[%s0 + $0x258] sm:$0xff]
    %v3047 = vld [vmem:[%s0 + $0x260] sm:$0xff]
    %v3048 = vld [vmem:[%s0 + $0x268] sm:$0xff]
    %v3049 = vld [vmem:[%s0 + $0x270] sm:$0xff]
    %v3050 = vld [vmem:[%s0 + $0x278] sm:$0xff]
    %v3051 = vld [vmem:[%s0 + $0x280] sm:$0xff]
    %3088 = vrot.lane.b32.xlu0 %v3016, 48
    %v3089 = vpop.permute.xlu0 %3088
    %3090 = vrot.lane.b32.xlu0 %v3017, 48
    %v3091 = vpop.permute.xlu0 %3090
    %3092 = vrot.lane.b32.xlu0 %v3018, 48
    %v3093 = vpop.permute.xlu0 %3092
    %3094 = vrot.lane.b32.xlu0 %v3019, 48
    %v3095 = vpop.permute.xlu0 %3094
    %3096 = vrot.lane.b32.xlu0 %v3020, 48
    %v3097 = vpop.permute.xlu0 %3096
    %3098 = vrot.lane.b32.xlu0 %v3021, 48
    %v3099 = vpop.permute.xlu0 %3098
    %3100 = vrot.lane.b32.xlu0 %v3022, 48
    %v3101 = vpop.permute.xlu0 %3100
    %3102 = vrot.lane.b32.xlu0 %v3023, 48
    %v3103 = vpop.permute.xlu0 %3102
    %3104 = vrot.lane.b32.xlu0 %v3024, 48
    %v3105 = vpop.permute.xlu0 %3104
    %3106 = vrot.lane.b32.xlu0 %v3025, 48
    %v3107 = vpop.permute.xlu0 %3106
    %3108 = vrot.lane.b32.xlu0 %v3026, 48
    %v3109 = vpop.permute.xlu0 %3108
    %3110 = vrot.lane.b32.xlu0 %v3027, 48
    %v3111 = vpop.permute.xlu0 %3110
    %3112 = vrot.lane.b32.xlu0 %v3028, 48
    %v3113 = vpop.permute.xlu0 %3112
    %3114 = vrot.lane.b32.xlu0 %v3029, 48
    %v3115 = vpop.permute.xlu0 %3114
    %3116 = vrot.lane.b32.xlu0 %v3030, 48
    %v3117 = vpop.permute.xlu0 %3116
    %3118 = vrot.lane.b32.xlu0 %v3031, 48
    %v3119 = vpop.permute.xlu0 %3118
    %3120 = vrot.lane.b32.xlu0 %v3032, 48
    %v3121 = vpop.permute.xlu0 %3120
    %3122 = vrot.lane.b32.xlu0 %v3033, 48
    %v3123 = vpop.permute.xlu0 %3122
    %3124 = vrot.lane.b32.xlu0 %v3034, 48
    %v3125 = vpop.permute.xlu0 %3124
    %3126 = vrot.lane.b32.xlu0 %v3035, 48
    %v3127 = vpop.permute.xlu0 %3126
    %3128 = vrot.lane.b32.xlu0 %v3036, 48
    %v3129 = vpop.permute.xlu0 %3128
    %3130 = vrot.lane.b32.xlu0 %v3037, 48
    %v3131 = vpop.permute.xlu0 %3130
    %3132 = vrot.lane.b32.xlu0 %v3038, 48
    %v3133 = vpop.permute.xlu0 %3132
    %3134 = vrot.lane.b32.xlu0 %v3039, 48
    %v3135 = vpop.permute.xlu0 %3134
    %3136 = vrot.lane.b32.xlu0 %v3040, 48
    %v3137 = vpop.permute.xlu0 %3136
    %3138 = vrot.lane.b32.xlu0 %v3041, 48
    %v3139 = vpop.permute.xlu0 %3138
    %3140 = vrot.lane.b32.xlu0 %v3042, 48
    %v3141 = vpop.permute.xlu0 %3140
    %3142 = vrot.lane.b32.xlu0 %v3043, 48
    %v3143 = vpop.permute.xlu0 %3142
    %3144 = vrot.lane.b32.xlu0 %v3044, 48
    %v3145 = vpop.permute.xlu0 %3144
    %3146 = vrot.lane.b32.xlu0 %v3045, 48
    %v3147 = vpop.permute.xlu0 %3146
    %3148 = vrot.lane.b32.xlu0 %v3046, 48
    %v3149 = vpop.permute.xlu0 %3148
    %3150 = vrot.lane.b32.xlu0 %v3047, 48
    %v3151 = vpop.permute.xlu0 %3150
    %3152 = vrot.lane.b32.xlu0 %v3048, 48
    %v3153 = vpop.permute.xlu0 %3152
    %3154 = vrot.lane.b32.xlu0 %v3049, 48
    %v3155 = vpop.permute.xlu0 %3154
    %3156 = vrot.lane.b32.xlu0 %v3050, 48
    %v3157 = vpop.permute.xlu0 %3156
    %3158 = vrot.lane.b32.xlu0 %v3051, 48
    %v3159 = vpop.permute.xlu0 %3158
    %3196 = vst.msk [vmem:[#allocation2 + $0x120] sm:$0xff] %vm1393, %v3089
    %3197 = vst.msk [vmem:[#allocation2 + $0x128] sm:$0xff] %vm1393, %v3091
    %3198 = vst.msk [vmem:[#allocation2 + $0x130] sm:$0xff] %vm1393, %v3093
    %3199 = vst.msk [vmem:[#allocation2 + $0x138] sm:$0xff] %vm1393, %v3095
    %3200 = vst.msk [vmem:[#allocation2 + $0x140] sm:$0xff] %vm1393, %v3097
    %3201 = vst.msk [vmem:[#allocation2 + $0x148] sm:$0xff] %vm1393, %v3099
    %3202 = vst.msk [vmem:[#allocation2 + $0x150] sm:$0xff] %vm1393, %v3101
    %3203 = vst.msk [vmem:[#allocation2 + $0x158] sm:$0xff] %vm1393, %v3103
    %3204 = vst.msk [vmem:[#allocation2 + $0x160] sm:$0xff] %vm1393, %v3105
    %3205 = vst.msk [vmem:[#allocation2 + $0x168] sm:$0xff] %vm1393, %v3107
    %3206 = vst.msk [vmem:[#allocation2 + $0x170] sm:$0xff] %vm1393, %v3109
    %3207 = vst.msk [vmem:[#allocation2 + $0x178] sm:$0xff] %vm1393, %v3111
    %3208 = vst.msk [vmem:[#allocation2 + $0x180] sm:$0xff] %vm1393, %v3113
    %3209 = vst.msk [vmem:[#allocation2 + $0x188] sm:$0xff] %vm1393, %v3115
    %3210 = vst.msk [vmem:[#allocation2 + $0x190] sm:$0xff] %vm1393, %v3117
    %3211 = vst.msk [vmem:[#allocation2 + $0x198] sm:$0xff] %vm1393, %v3119
    %3212 = vst.msk [vmem:[#allocation2 + $0x1a0] sm:$0xff] %vm1393, %v3121
    %3213 = vst.msk [vmem:[#allocation2 + $0x1a8] sm:$0xff] %vm1393, %v3123
    %3214 = vst.msk [vmem:[#allocation2 + $0x1b0] sm:$0xff] %vm1393, %v3125
    %3215 = vst.msk [vmem:[#allocation2 + $0x1b8] sm:$0xff] %vm1393, %v3127
    %3216 = vst.msk [vmem:[#allocation2 + $0x1c0] sm:$0xff] %vm1393, %v3129
    %3217 = vst.msk [vmem:[#allocation2 + $0x1c8] sm:$0xff] %vm1393, %v3131
    %3218 = vst.msk [vmem:[#allocation2 + $0x1d0] sm:$0xff] %vm1393, %v3133
    %3219 = vst.msk [vmem:[#allocation2 + $0x1d8] sm:$0xff] %vm1393, %v3135
    %3220 = vst.msk [vmem:[#allocation2 + $0x1e0] sm:$0xff] %vm1393, %v3137
    %3221 = vst.msk [vmem:[#allocation2 + $0x1e8] sm:$0xff] %vm1393, %v3139
    %3222 = vst.msk [vmem:[#allocation2 + $0x1f0] sm:$0xff] %vm1393, %v3141
    %3223 = vst.msk [vmem:[#allocation2 + $0x1f8] sm:$0xff] %vm1393, %v3143
    %3224 = vst.msk [vmem:[#allocation2 + $0x200] sm:$0xff] %vm1393, %v3145
    %3225 = vst.msk [vmem:[#allocation2 + $0x208] sm:$0xff] %vm1393, %v3147
    %3226 = vst.msk [vmem:[#allocation2 + $0x210] sm:$0xff] %vm1393, %v3149
    %3227 = vst.msk [vmem:[#allocation2 + $0x218] sm:$0xff] %vm1393, %v3151
    %3228 = vst.msk [vmem:[#allocation2 + $0x220] sm:$0xff] %vm1393, %v3153
    %3229 = vst.msk [vmem:[#allocation2 + $0x228] sm:$0xff] %vm1393, %v3155
    %3230 = vst.msk [vmem:[#allocation2 + $0x230] sm:$0xff] %vm1393, %v3157
    %3231 = vst.msk [vmem:[#allocation2 + $0x238] sm:$0xff] %vm1393, %v3159
    %v3232 = vld [vmem:[%s0 + $0x169] sm:$0xff]
    %v3233 = vld [vmem:[%s0 + $0x171] sm:$0xff]
    %v3234 = vld [vmem:[%s0 + $0x179] sm:$0xff]
    %v3235 = vld [vmem:[%s0 + $0x181] sm:$0xff]
    %v3236 = vld [vmem:[%s0 + $0x189] sm:$0xff]
    %v3237 = vld [vmem:[%s0 + $0x191] sm:$0xff]
    %v3238 = vld [vmem:[%s0 + $0x199] sm:$0xff]
    %v3239 = vld [vmem:[%s0 + $0x1a1] sm:$0xff]
    %v3240 = vld [vmem:[%s0 + $0x1a9] sm:$0xff]
    %v3241 = vld [vmem:[%s0 + $0x1b1] sm:$0xff]
    %v3242 = vld [vmem:[%s0 + $0x1b9] sm:$0xff]
    %v3243 = vld [vmem:[%s0 + $0x1c1] sm:$0xff]
    %v3244 = vld [vmem:[%s0 + $0x1c9] sm:$0xff]
    %v3245 = vld [vmem:[%s0 + $0x1d1] sm:$0xff]
    %v3246 = vld [vmem:[%s0 + $0x1d9] sm:$0xff]
    %v3247 = vld [vmem:[%s0 + $0x1e1] sm:$0xff]
    %v3248 = vld [vmem:[%s0 + $0x1e9] sm:$0xff]
    %v3249 = vld [vmem:[%s0 + $0x1f1] sm:$0xff]
    %v3250 = vld [vmem:[%s0 + $0x1f9] sm:$0xff]
    %v3251 = vld [vmem:[%s0 + $0x201] sm:$0xff]
    %v3252 = vld [vmem:[%s0 + $0x209] sm:$0xff]
    %v3253 = vld [vmem:[%s0 + $0x211] sm:$0xff]
    %v3254 = vld [vmem:[%s0 + $0x219] sm:$0xff]
    %v3255 = vld [vmem:[%s0 + $0x221] sm:$0xff]
    %v3256 = vld [vmem:[%s0 + $0x229] sm:$0xff]
    %v3257 = vld [vmem:[%s0 + $0x231] sm:$0xff]
    %v3258 = vld [vmem:[%s0 + $0x239] sm:$0xff]
    %v3259 = vld [vmem:[%s0 + $0x241] sm:$0xff]
    %v3260 = vld [vmem:[%s0 + $0x249] sm:$0xff]
    %v3261 = vld [vmem:[%s0 + $0x251] sm:$0xff]
    %v3262 = vld [vmem:[%s0 + $0x259] sm:$0xff]
    %v3263 = vld [vmem:[%s0 + $0x261] sm:$0xff]
    %v3264 = vld [vmem:[%s0 + $0x269] sm:$0xff]
    %v3265 = vld [vmem:[%s0 + $0x271] sm:$0xff]
    %v3266 = vld [vmem:[%s0 + $0x279] sm:$0xff]
    %v3267 = vld [vmem:[%s0 + $0x281] sm:$0xff]
    %3304 = vrot.lane.b32.xlu0 %v3232, 56
    %v3305 = vpop.permute.xlu0 %3304
    %3306 = vrot.lane.b32.xlu0 %v3233, 56
    %v3307 = vpop.permute.xlu0 %3306
    %3308 = vrot.lane.b32.xlu0 %v3234, 56
    %v3309 = vpop.permute.xlu0 %3308
    %3310 = vrot.lane.b32.xlu0 %v3235, 56
    %v3311 = vpop.permute.xlu0 %3310
    %3312 = vrot.lane.b32.xlu0 %v3236, 56
    %v3313 = vpop.permute.xlu0 %3312
    %3314 = vrot.lane.b32.xlu0 %v3237, 56
    %v3315 = vpop.permute.xlu0 %3314
    %3316 = vrot.lane.b32.xlu0 %v3238, 56
    %v3317 = vpop.permute.xlu0 %3316
    %3318 = vrot.lane.b32.xlu0 %v3239, 56
    %v3319 = vpop.permute.xlu0 %3318
    %3320 = vrot.lane.b32.xlu0 %v3240, 56
    %v3321 = vpop.permute.xlu0 %3320
    %3322 = vrot.lane.b32.xlu0 %v3241, 56
    %v3323 = vpop.permute.xlu0 %3322
    %3324 = vrot.lane.b32.xlu0 %v3242, 56
    %v3325 = vpop.permute.xlu0 %3324
    %3326 = vrot.lane.b32.xlu0 %v3243, 56
    %v3327 = vpop.permute.xlu0 %3326
    %3328 = vrot.lane.b32.xlu0 %v3244, 56
    %v3329 = vpop.permute.xlu0 %3328
    %3330 = vrot.lane.b32.xlu0 %v3245, 56
    %v3331 = vpop.permute.xlu0 %3330
    %3332 = vrot.lane.b32.xlu0 %v3246, 56
    %v3333 = vpop.permute.xlu0 %3332
    %3334 = vrot.lane.b32.xlu0 %v3247, 56
    %v3335 = vpop.permute.xlu0 %3334
    %3336 = vrot.lane.b32.xlu0 %v3248, 56
    %v3337 = vpop.permute.xlu0 %3336
    %3338 = vrot.lane.b32.xlu0 %v3249, 56
    %v3339 = vpop.permute.xlu0 %3338
    %3340 = vrot.lane.b32.xlu0 %v3250, 56
    %v3341 = vpop.permute.xlu0 %3340
    %3342 = vrot.lane.b32.xlu0 %v3251, 56
    %v3343 = vpop.permute.xlu0 %3342
    %3344 = vrot.lane.b32.xlu0 %v3252, 56
    %v3345 = vpop.permute.xlu0 %3344
    %3346 = vrot.lane.b32.xlu0 %v3253, 56
    %v3347 = vpop.permute.xlu0 %3346
    %3348 = vrot.lane.b32.xlu0 %v3254, 56
    %v3349 = vpop.permute.xlu0 %3348
    %3350 = vrot.lane.b32.xlu0 %v3255, 56
    %v3351 = vpop.permute.xlu0 %3350
    %3352 = vrot.lane.b32.xlu0 %v3256, 56
    %v3353 = vpop.permute.xlu0 %3352
    %3354 = vrot.lane.b32.xlu0 %v3257, 56
    %v3355 = vpop.permute.xlu0 %3354
    %3356 = vrot.lane.b32.xlu0 %v3258, 56
    %v3357 = vpop.permute.xlu0 %3356
    %3358 = vrot.lane.b32.xlu0 %v3259, 56
    %v3359 = vpop.permute.xlu0 %3358
    %3360 = vrot.lane.b32.xlu0 %v3260, 56
    %v3361 = vpop.permute.xlu0 %3360
    %3362 = vrot.lane.b32.xlu0 %v3261, 56
    %v3363 = vpop.permute.xlu0 %3362
    %3364 = vrot.lane.b32.xlu0 %v3262, 56
    %v3365 = vpop.permute.xlu0 %3364
    %3366 = vrot.lane.b32.xlu0 %v3263, 56
    %v3367 = vpop.permute.xlu0 %3366
    %3368 = vrot.lane.b32.xlu0 %v3264, 56
    %v3369 = vpop.permute.xlu0 %3368
    %3370 = vrot.lane.b32.xlu0 %v3265, 56
    %v3371 = vpop.permute.xlu0 %3370
    %3372 = vrot.lane.b32.xlu0 %v3266, 56
    %v3373 = vpop.permute.xlu0 %3372
    %3374 = vrot.lane.b32.xlu0 %v3267, 56
    %v3375 = vpop.permute.xlu0 %3374
    %3412 = vst.msk [vmem:[#allocation2 + $0x120] sm:$0xff] %vm1610, %v3305
    %3413 = vst.msk [vmem:[#allocation2 + $0x128] sm:$0xff] %vm1610, %v3307
    %3414 = vst.msk [vmem:[#allocation2 + $0x130] sm:$0xff] %vm1610, %v3309
    %3415 = vst.msk [vmem:[#allocation2 + $0x138] sm:$0xff] %vm1610, %v3311
    %3416 = vst.msk [vmem:[#allocation2 + $0x140] sm:$0xff] %vm1610, %v3313
    %3417 = vst.msk [vmem:[#allocation2 + $0x148] sm:$0xff] %vm1610, %v3315
    %3418 = vst.msk [vmem:[#allocation2 + $0x150] sm:$0xff] %vm1610, %v3317
    %3419 = vst.msk [vmem:[#allocation2 + $0x158] sm:$0xff] %vm1610, %v3319
    %3420 = vst.msk [vmem:[#allocation2 + $0x160] sm:$0xff] %vm1610, %v3321
    %3421 = vst.msk [vmem:[#allocation2 + $0x168] sm:$0xff] %vm1610, %v3323
    %3422 = vst.msk [vmem:[#allocation2 + $0x170] sm:$0xff] %vm1610, %v3325
    %3423 = vst.msk [vmem:[#allocation2 + $0x178] sm:$0xff] %vm1610, %v3327
    %3424 = vst.msk [vmem:[#allocation2 + $0x180] sm:$0xff] %vm1610, %v3329
    %3425 = vst.msk [vmem:[#allocation2 + $0x188] sm:$0xff] %vm1610, %v3331
    %3426 = vst.msk [vmem:[#allocation2 + $0x190] sm:$0xff] %vm1610, %v3333
    %3427 = vst.msk [vmem:[#allocation2 + $0x198] sm:$0xff] %vm1610, %v3335
    %3428 = vst.msk [vmem:[#allocation2 + $0x1a0] sm:$0xff] %vm1610, %v3337
    %3429 = vst.msk [vmem:[#allocation2 + $0x1a8] sm:$0xff] %vm1610, %v3339
    %3430 = vst.msk [vmem:[#allocation2 + $0x1b0] sm:$0xff] %vm1610, %v3341
    %3431 = vst.msk [vmem:[#allocation2 + $0x1b8] sm:$0xff] %vm1610, %v3343
    %3432 = vst.msk [vmem:[#allocation2 + $0x1c0] sm:$0xff] %vm1610, %v3345
    %3433 = vst.msk [vmem:[#allocation2 + $0x1c8] sm:$0xff] %vm1610, %v3347
    %3434 = vst.msk [vmem:[#allocation2 + $0x1d0] sm:$0xff] %vm1610, %v3349
    %3435 = vst.msk [vmem:[#allocation2 + $0x1d8] sm:$0xff] %vm1610, %v3351
    %3436 = vst.msk [vmem:[#allocation2 + $0x1e0] sm:$0xff] %vm1610, %v3353
    %3437 = vst.msk [vmem:[#allocation2 + $0x1e8] sm:$0xff] %vm1610, %v3355
    %3438 = vst.msk [vmem:[#allocation2 + $0x1f0] sm:$0xff] %vm1610, %v3357
    %3439 = vst.msk [vmem:[#allocation2 + $0x1f8] sm:$0xff] %vm1610, %v3359
    %3440 = vst.msk [vmem:[#allocation2 + $0x200] sm:$0xff] %vm1610, %v3361
    %3441 = vst.msk [vmem:[#allocation2 + $0x208] sm:$0xff] %vm1610, %v3363
    %3442 = vst.msk [vmem:[#allocation2 + $0x210] sm:$0xff] %vm1610, %v3365
    %3443 = vst.msk [vmem:[#allocation2 + $0x218] sm:$0xff] %vm1610, %v3367
    %3444 = vst.msk [vmem:[#allocation2 + $0x220] sm:$0xff] %vm1610, %v3369
    %3445 = vst.msk [vmem:[#allocation2 + $0x228] sm:$0xff] %vm1610, %v3371
    %3446 = vst.msk [vmem:[#allocation2 + $0x230] sm:$0xff] %vm1610, %v3373
    %3447 = vst.msk [vmem:[#allocation2 + $0x238] sm:$0xff] %vm1610, %v3375
    %v3448 = vld [vmem:[%s0 + $0x16a] sm:$0xff]
    %v3449 = vld [vmem:[%s0 + $0x172] sm:$0xff]
    %v3450 = vld [vmem:[%s0 + $0x17a] sm:$0xff]
    %v3451 = vld [vmem:[%s0 + $0x182] sm:$0xff]
    %v3452 = vld [vmem:[%s0 + $0x18a] sm:$0xff]
    %v3453 = vld [vmem:[%s0 + $0x192] sm:$0xff]
    %v3454 = vld [vmem:[%s0 + $0x19a] sm:$0xff]
    %v3455 = vld [vmem:[%s0 + $0x1a2] sm:$0xff]
    %v3456 = vld [vmem:[%s0 + $0x1aa] sm:$0xff]
    %v3457 = vld [vmem:[%s0 + $0x1b2] sm:$0xff]
    %v3458 = vld [vmem:[%s0 + $0x1ba] sm:$0xff]
    %v3459 = vld [vmem:[%s0 + $0x1c2] sm:$0xff]
    %v3460 = vld [vmem:[%s0 + $0x1ca] sm:$0xff]
    %v3461 = vld [vmem:[%s0 + $0x1d2] sm:$0xff]
    %v3462 = vld [vmem:[%s0 + $0x1da] sm:$0xff]
    %v3463 = vld [vmem:[%s0 + $0x1e2] sm:$0xff]
    %v3464 = vld [vmem:[%s0 + $0x1ea] sm:$0xff]
    %v3465 = vld [vmem:[%s0 + $0x1f2] sm:$0xff]
    %v3466 = vld [vmem:[%s0 + $0x1fa] sm:$0xff]
    %v3467 = vld [vmem:[%s0 + $0x202] sm:$0xff]
    %v3468 = vld [vmem:[%s0 + $0x20a] sm:$0xff]
    %v3469 = vld [vmem:[%s0 + $0x212] sm:$0xff]
    %v3470 = vld [vmem:[%s0 + $0x21a] sm:$0xff]
    %v3471 = vld [vmem:[%s0 + $0x222] sm:$0xff]
    %v3472 = vld [vmem:[%s0 + $0x22a] sm:$0xff]
    %v3473 = vld [vmem:[%s0 + $0x232] sm:$0xff]
    %v3474 = vld [vmem:[%s0 + $0x23a] sm:$0xff]
    %v3475 = vld [vmem:[%s0 + $0x242] sm:$0xff]
    %v3476 = vld [vmem:[%s0 + $0x24a] sm:$0xff]
    %v3477 = vld [vmem:[%s0 + $0x252] sm:$0xff]
    %v3478 = vld [vmem:[%s0 + $0x25a] sm:$0xff]
    %v3479 = vld [vmem:[%s0 + $0x262] sm:$0xff]
    %v3480 = vld [vmem:[%s0 + $0x26a] sm:$0xff]
    %v3481 = vld [vmem:[%s0 + $0x272] sm:$0xff]
    %v3482 = vld [vmem:[%s0 + $0x27a] sm:$0xff]
    %v3483 = vld [vmem:[%s0 + $0x282] sm:$0xff]
    %3520 = vrot.lane.b32.xlu0 %v3448, 64
    %v3521 = vpop.permute.xlu0 %3520
    %3522 = vrot.lane.b32.xlu0 %v3449, 64
    %v3523 = vpop.permute.xlu0 %3522
    %3524 = vrot.lane.b32.xlu0 %v3450, 64
    %v3525 = vpop.permute.xlu0 %3524
    %3526 = vrot.lane.b32.xlu0 %v3451, 64
    %v3527 = vpop.permute.xlu0 %3526
    %3528 = vrot.lane.b32.xlu0 %v3452, 64
    %v3529 = vpop.permute.xlu0 %3528
    %3530 = vrot.lane.b32.xlu0 %v3453, 64
    %v3531 = vpop.permute.xlu0 %3530
    %3532 = vrot.lane.b32.xlu0 %v3454, 64
    %v3533 = vpop.permute.xlu0 %3532
    %3534 = vrot.lane.b32.xlu0 %v3455, 64
    %v3535 = vpop.permute.xlu0 %3534
    %3536 = vrot.lane.b32.xlu0 %v3456, 64
    %v3537 = vpop.permute.xlu0 %3536
    %3538 = vrot.lane.b32.xlu0 %v3457, 64
    %v3539 = vpop.permute.xlu0 %3538
    %3540 = vrot.lane.b32.xlu0 %v3458, 64
    %v3541 = vpop.permute.xlu0 %3540
    %3542 = vrot.lane.b32.xlu0 %v3459, 64
    %v3543 = vpop.permute.xlu0 %3542
    %3544 = vrot.lane.b32.xlu0 %v3460, 64
    %v3545 = vpop.permute.xlu0 %3544
    %3546 = vrot.lane.b32.xlu0 %v3461, 64
    %v3547 = vpop.permute.xlu0 %3546
    %3548 = vrot.lane.b32.xlu0 %v3462, 64
    %v3549 = vpop.permute.xlu0 %3548
    %3550 = vrot.lane.b32.xlu0 %v3463, 64
    %v3551 = vpop.permute.xlu0 %3550
    %3552 = vrot.lane.b32.xlu0 %v3464, 64
    %v3553 = vpop.permute.xlu0 %3552
    %3554 = vrot.lane.b32.xlu0 %v3465, 64
    %v3555 = vpop.permute.xlu0 %3554
    %3556 = vrot.lane.b32.xlu0 %v3466, 64
    %v3557 = vpop.permute.xlu0 %3556
    %3558 = vrot.lane.b32.xlu0 %v3467, 64
    %v3559 = vpop.permute.xlu0 %3558
    %3560 = vrot.lane.b32.xlu0 %v3468, 64
    %v3561 = vpop.permute.xlu0 %3560
    %3562 = vrot.lane.b32.xlu0 %v3469, 64
    %v3563 = vpop.permute.xlu0 %3562
    %3564 = vrot.lane.b32.xlu0 %v3470, 64
    %v3565 = vpop.permute.xlu0 %3564
    %3566 = vrot.lane.b32.xlu0 %v3471, 64
    %v3567 = vpop.permute.xlu0 %3566
    %3568 = vrot.lane.b32.xlu0 %v3472, 64
    %v3569 = vpop.permute.xlu0 %3568
    %3570 = vrot.lane.b32.xlu0 %v3473, 64
    %v3571 = vpop.permute.xlu0 %3570
    %3572 = vrot.lane.b32.xlu0 %v3474, 64
    %v3573 = vpop.permute.xlu0 %3572
    %3574 = vrot.lane.b32.xlu0 %v3475, 64
    %v3575 = vpop.permute.xlu0 %3574
    %3576 = vrot.lane.b32.xlu0 %v3476, 64
    %v3577 = vpop.permute.xlu0 %3576
    %3578 = vrot.lane.b32.xlu0 %v3477, 64
    %v3579 = vpop.permute.xlu0 %3578
    %3580 = vrot.lane.b32.xlu0 %v3478, 64
    %v3581 = vpop.permute.xlu0 %3580
    %3582 = vrot.lane.b32.xlu0 %v3479, 64
    %v3583 = vpop.permute.xlu0 %3582
    %3584 = vrot.lane.b32.xlu0 %v3480, 64
    %v3585 = vpop.permute.xlu0 %3584
    %3586 = vrot.lane.b32.xlu0 %v3481, 64
    %v3587 = vpop.permute.xlu0 %3586
    %3588 = vrot.lane.b32.xlu0 %v3482, 64
    %v3589 = vpop.permute.xlu0 %3588
    %3590 = vrot.lane.b32.xlu0 %v3483, 64
    %v3591 = vpop.permute.xlu0 %3590
    %3628 = vst.msk [vmem:[#allocation2 + $0x120] sm:$0xff] %vm1827, %v3521
    %3629 = vst.msk [vmem:[#allocation2 + $0x128] sm:$0xff] %vm1827, %v3523
    %3630 = vst.msk [vmem:[#allocation2 + $0x130] sm:$0xff] %vm1827, %v3525
    %3631 = vst.msk [vmem:[#allocation2 + $0x138] sm:$0xff] %vm1827, %v3527
    %3632 = vst.msk [vmem:[#allocation2 + $0x140] sm:$0xff] %vm1827, %v3529
    %3633 = vst.msk [vmem:[#allocation2 + $0x148] sm:$0xff] %vm1827, %v3531
    %3634 = vst.msk [vmem:[#allocation2 + $0x150] sm:$0xff] %vm1827, %v3533
    %3635 = vst.msk [vmem:[#allocation2 + $0x158] sm:$0xff] %vm1827, %v3535
    %3636 = vst.msk [vmem:[#allocation2 + $0x160] sm:$0xff] %vm1827, %v3537
    %3637 = vst.msk [vmem:[#allocation2 + $0x168] sm:$0xff] %vm1827, %v3539
    %3638 = vst.msk [vmem:[#allocation2 + $0x170] sm:$0xff] %vm1827, %v3541
    %3639 = vst.msk [vmem:[#allocation2 + $0x178] sm:$0xff] %vm1827, %v3543
    %3640 = vst.msk [vmem:[#allocation2 + $0x180] sm:$0xff] %vm1827, %v3545
    %3641 = vst.msk [vmem:[#allocation2 + $0x188] sm:$0xff] %vm1827, %v3547
    %3642 = vst.msk [vmem:[#allocation2 + $0x190] sm:$0xff] %vm1827, %v3549
    %3643 = vst.msk [vmem:[#allocation2 + $0x198] sm:$0xff] %vm1827, %v3551
    %3644 = vst.msk [vmem:[#allocation2 + $0x1a0] sm:$0xff] %vm1827, %v3553
    %3645 = vst.msk [vmem:[#allocation2 + $0x1a8] sm:$0xff] %vm1827, %v3555
    %3646 = vst.msk [vmem:[#allocation2 + $0x1b0] sm:$0xff] %vm1827, %v3557
    %3647 = vst.msk [vmem:[#allocation2 + $0x1b8] sm:$0xff] %vm1827, %v3559
    %3648 = vst.msk [vmem:[#allocation2 + $0x1c0] sm:$0xff] %vm1827, %v3561
    %3649 = vst.msk [vmem:[#allocation2 + $0x1c8] sm:$0xff] %vm1827, %v3563
    %3650 = vst.msk [vmem:[#allocation2 + $0x1d0] sm:$0xff] %vm1827, %v3565
    %3651 = vst.msk [vmem:[#allocation2 + $0x1d8] sm:$0xff] %vm1827, %v3567
    %3652 = vst.msk [vmem:[#allocation2 + $0x1e0] sm:$0xff] %vm1827, %v3569
    %3653 = vst.msk [vmem:[#allocation2 + $0x1e8] sm:$0xff] %vm1827, %v3571
    %3654 = vst.msk [vmem:[#allocation2 + $0x1f0] sm:$0xff] %vm1827, %v3573
    %3655 = vst.msk [vmem:[#allocation2 + $0x1f8] sm:$0xff] %vm1827, %v3575
    %3656 = vst.msk [vmem:[#allocation2 + $0x200] sm:$0xff] %vm1827, %v3577
    %3657 = vst.msk [vmem:[#allocation2 + $0x208] sm:$0xff] %vm1827, %v3579
    %3658 = vst.msk [vmem:[#allocation2 + $0x210] sm:$0xff] %vm1827, %v3581
    %3659 = vst.msk [vmem:[#allocation2 + $0x218] sm:$0xff] %vm1827, %v3583
    %3660 = vst.msk [vmem:[#allocation2 + $0x220] sm:$0xff] %vm1827, %v3585
    %3661 = vst.msk [vmem:[#allocation2 + $0x228] sm:$0xff] %vm1827, %v3587
    %3662 = vst.msk [vmem:[#allocation2 + $0x230] sm:$0xff] %vm1827, %v3589
    %3663 = vst.msk [vmem:[#allocation2 + $0x238] sm:$0xff] %vm1827, %v3591
    %v3664 = vld [vmem:[%s1] sm:$0xf]
    %v3665 = vld [vmem:[%s1 + $0x4] sm:$0xf]
    %v3666 = vld [vmem:[%s1 + $0x8] sm:$0xf]
    %v3667 = vld [vmem:[%s1 + $0xc] sm:$0xf]
    %v3668 = vld [vmem:[%s1 + $0x10] sm:$0xf]
    %v3669 = vld [vmem:[%s1 + $0x14] sm:$0xf]
    %v3670 = vld [vmem:[%s1 + $0x18] sm:$0xf]
    %v3671 = vld [vmem:[%s1 + $0x1c] sm:$0xf]
    %v3672 = vld [vmem:[%s1 + $0x20] sm:$0xf]
    %v3673 = vld [vmem:[#allocation2] sm:$0xff]
    %v3674 = vld [vmem:[#allocation2 + $0x8] sm:$0xff]
    %v3675 = vld [vmem:[#allocation2 + $0x10] sm:$0xff]
    %v3676 = vld [vmem:[#allocation2 + $0x18] sm:$0xff]
    %v3677 = vld [vmem:[#allocation2 + $0x20] sm:$0xff]
    %v3678 = vld [vmem:[#allocation2 + $0x28] sm:$0xff]
    %v3679 = vld [vmem:[#allocation2 + $0x30] sm:$0xff]
    %v3680 = vld [vmem:[#allocation2 + $0x38] sm:$0xff]
    %v3681 = vld [vmem:[#allocation2 + $0x40] sm:$0xff]
    %v3682 = vld [vmem:[#allocation2 + $0x48] sm:$0xff]
    %v3683 = vld [vmem:[#allocation2 + $0x50] sm:$0xff]
    %v3684 = vld [vmem:[#allocation2 + $0x58] sm:$0xff]
    %v3685 = vld [vmem:[#allocation2 + $0x60] sm:$0xff]
    %v3686 = vld [vmem:[#allocation2 + $0x68] sm:$0xff]
    %v3687 = vld [vmem:[#allocation2 + $0x70] sm:$0xff]
    %v3688 = vld [vmem:[#allocation2 + $0x78] sm:$0xff]
    %v3689 = vld [vmem:[#allocation2 + $0x80] sm:$0xff]
    %v3690 = vld [vmem:[#allocation2 + $0x88] sm:$0xff]
    %v3691 = vld [vmem:[#allocation2 + $0x90] sm:$0xff]
    %v3692 = vld [vmem:[#allocation2 + $0x98] sm:$0xff]
    %v3693 = vld [vmem:[#allocation2 + $0xa0] sm:$0xff]
    %v3694 = vld [vmem:[#allocation2 + $0xa8] sm:$0xff]
    %v3695 = vld [vmem:[#allocation2 + $0xb0] sm:$0xff]
    %v3696 = vld [vmem:[#allocation2 + $0xb8] sm:$0xff]
    %v3697 = vpack.c.bf16 %v3674, %v3673
    %v3698 = vpack.c.bf16 %v3676, %v3675
    %v3699 = vpack.c.bf16 %v3678, %v3677
    %v3700 = vpack.c.bf16 %v3680, %v3679
    %v3701 = vpack.c.bf16 %v3682, %v3681
    %v3702 = vpack.c.bf16 %v3684, %v3683
    %v3703 = vpack.c.bf16 %v3686, %v3685
    %v3704 = vpack.c.bf16 %v3688, %v3687
    %v3705 = vpack.c.bf16 %v3690, %v3689
    %v3706 = vpack.c.bf16 %v3692, %v3691
    %v3707 = vpack.c.bf16 %v3694, %v3693
    %v3708 = vpack.c.bf16 %v3696, %v3695
    %v3718 = vunpack.c.l.b16 %v3664
    %v3719 = vunpack.c.l.b16 %v3665
    %v3720 = vunpack.c.l.b16 %v3666
    %v3721 = vunpack.c.l.b16 %v3667
    %v3722 = vunpack.c.l.b16 %v3668
    %v3723 = vunpack.c.l.b16 %v3669
    %v3724 = vunpack.c.l.b16 %v3670
    %v3725 = vunpack.c.l.b16 %v3671
    %v3726 = vunpack.c.l.b16 %v3672
    %v3727 = vpack.c.b16 %v3719, %v3718
    %v3728 = vpack.c.b16 %v3721, %v3720
    %v3729 = vpack.c.b16 %v3723, %v3722
    %v3730 = vpack.c.b16 %v3725, %v3724
    %v3731 = vpack.c.b16 %v3726, %v3726
    %vm3736 = vcmask 588800
    %v3738 = vsel %vm3736, %v3697, 0
    %v3741 = vsel %vm3736, %v3698, 0
    %v3744 = vsel %vm3736, %v3699, 0
    %v3747 = vsel %vm3736, %v3700, 0
    %v3750 = vsel %vm3736, %v3701, 0
    %v3753 = vsel %vm3736, %v3702, 0
    %v3756 = vsel %vm3736, %v3703, 0
    %v3759 = vsel %vm3736, %v3704, 0
    %v3762 = vsel %vm3736, %v3705, 0
    %v3765 = vsel %vm3736, %v3706, 0
    %v3768 = vsel %vm3736, %v3707, 0
    %v3771 = vsel %vm3736, %v3708, 0
    %vm3773 = vcmask 1043456
    %v3775 = vsel %vm3773, %v3731, 0
    %3777 = vmatprep.subr.bf16.mxu0 0
    %3778 = vmatpush1.bf16.msra.mxu0 0
    %3779 = vmatprep.subr.bf16.mxu0 0
    %3780 = vmatpush1.bf16.msra.mxu0 0
    %3781 = vmatprep.subr.bf16.mxu0 0
    %3782 = vmatpush1.bf16.msra.mxu0 0
    %3783 = vmatprep.subr.bf16.mxu0 0
    %3784 = vmatpush1.bf16.msra.mxu0 %v3775
    %3785 = vmatprep.subr.bf16.mxu0 0
    %3786 = vmatpush1.bf16.msra.mxu0 %v3730
    %3787 = vmatprep.subr.bf16.mxu0 0
    %3788 = vmatpush1.bf16.msra.mxu0 %v3729
    %3789 = vmatprep.subr.bf16.mxu0 0
    %3790 = vmatpush1.bf16.msra.mxu0 %v3728
    %3791 = vmatprep.subr.bf16.mxu0 0
    %3792 = vmatpush1.bf16.msra.mxu0 %v3727
    %3793 = vmatprep.subr.bf16.mxu0 0
    %3794 = vmatpush2.bf16.msra.mxu0 0
    %3795 = vmatprep.subr.bf16.mxu0 0
    %3796 = vmatpush2.bf16.msra.mxu0 0
    %3797 = vmatprep.subr.bf16.mxu0 0
    %3798 = vmatpush2.bf16.msra.mxu0 0
    %3799 = vmatprep.subr.bf16.mxu0 0
    %3800 = vmatpush2.bf16.msra.mxu0 0
    %3801 = vmatprep.subr.bf16.mxu0 0
    %3802 = vmatpush2.bf16.msra.mxu0 0
    %3803 = vmatprep.subr.bf16.mxu0 0
    %3804 = vmatpush2.bf16.msra.mxu0 0
    %3805 = vmatprep.subr.bf16.mxu0 0
    %3806 = vmatpush2.bf16.msra.mxu0 0
    %3807 = vmatprep.subr.bf16.mxu0 0
    %3808 = vmatpush2.bf16.msra.mxu0 0
    %3809 = vmatprep.mubr.bf16.mxu0 0
    %3810 = vmatmul.mubr.bf16.gmra.mxu0 %v3738
    %v3811 = vpop.f32.mrf.mxu0
    %v3812 = vadd.f32 0.0, %v3811
    %v3813 = vpop.f32.mrf.mxu0
    %v3814 = vpop.f32.mrf.mxu0
    %v3815 = vadd.f32 0.0, %v3814
    %v3816 = vpop.f32.mrf.mxu0
    %3817 = vmatprep.mubr.bf16.mxu0 0
    %3818 = vmatmul.mubr.bf16.gmra.mxu0 %v3741
    %v3819 = vpop.f32.mrf.mxu0
    %v3820 = vadd.f32 0.0, %v3819
    %v3821 = vpop.f32.mrf.mxu0
    %v3822 = vpop.f32.mrf.mxu0
    %v3823 = vadd.f32 0.0, %v3822
    %v3824 = vpop.f32.mrf.mxu0
    %3825 = vmatprep.mubr.bf16.mxu0 0
    %3826 = vmatmul.mubr.bf16.gmra.mxu0 %v3744
    %v3827 = vpop.f32.mrf.mxu0
    %v3828 = vadd.f32 0.0, %v3827
    %v3829 = vpop.f32.mrf.mxu0
    %v3830 = vpop.f32.mrf.mxu0
    %v3831 = vadd.f32 0.0, %v3830
    %v3832 = vpop.f32.mrf.mxu0
    %3833 = vmatprep.mubr.bf16.mxu0 0
    %3834 = vmatmul.mubr.bf16.gmra.mxu0 %v3747
    %v3835 = vpop.f32.mrf.mxu0
    %v3836 = vadd.f32 0.0, %v3835
    %v3837 = vpop.f32.mrf.mxu0
    %v3838 = vpop.f32.mrf.mxu0
    %v3839 = vadd.f32 0.0, %v3838
    %v3840 = vpop.f32.mrf.mxu0
    %3841 = vmatprep.mubr.bf16.mxu0 0
    %3842 = vmatmul.mubr.bf16.gmra.mxu0 %v3750
    %v3843 = vpop.f32.mrf.mxu0
    %v3844 = vadd.f32 0.0, %v3843
    %v3845 = vpop.f32.mrf.mxu0
    %v3846 = vpop.f32.mrf.mxu0
    %v3847 = vadd.f32 0.0, %v3846
    %v3848 = vpop.f32.mrf.mxu0
    %3849 = vmatprep.mubr.bf16.mxu0 0
    %3850 = vmatmul.mubr.bf16.gmra.mxu0 %v3753
    %v3851 = vpop.f32.mrf.mxu0
    %v3852 = vadd.f32 0.0, %v3851
    %v3853 = vpop.f32.mrf.mxu0
    %v3854 = vpop.f32.mrf.mxu0
    %v3855 = vadd.f32 0.0, %v3854
    %v3856 = vpop.f32.mrf.mxu0
    %3857 = vmatprep.mubr.bf16.mxu0 0
    %3858 = vmatmul.mubr.bf16.gmra.mxu0 %v3756
    %v3859 = vpop.f32.mrf.mxu0
    %v3860 = vadd.f32 0.0, %v3859
    %v3861 = vpop.f32.mrf.mxu0
    %v3862 = vpop.f32.mrf.mxu0
    %v3863 = vadd.f32 0.0, %v3862
    %v3864 = vpop.f32.mrf.mxu0
    %3865 = vmatprep.mubr.bf16.mxu0 0
    %3866 = vmatmul.mubr.bf16.gmra.mxu0 %v3759
    %v3867 = vpop.f32.mrf.mxu0
    %v3868 = vadd.f32 0.0, %v3867
    %v3869 = vpop.f32.mrf.mxu0
    %v3870 = vpop.f32.mrf.mxu0
    %v3871 = vadd.f32 0.0, %v3870
    %v3872 = vpop.f32.mrf.mxu0
    %3873 = vmatprep.mubr.bf16.mxu0 0
    %3874 = vmatmul.mubr.bf16.gmra.mxu0 %v3762
    %v3875 = vpop.f32.mrf.mxu0
    %v3876 = vadd.f32 0.0, %v3875
    %v3877 = vpop.f32.mrf.mxu0
    %v3878 = vpop.f32.mrf.mxu0
    %v3879 = vadd.f32 0.0, %v3878
    %v3880 = vpop.f32.mrf.mxu0
    %3881 = vmatprep.mubr.bf16.mxu0 0
    %3882 = vmatmul.mubr.bf16.gmra.mxu0 %v3765
    %v3883 = vpop.f32.mrf.mxu0
    %v3884 = vadd.f32 0.0, %v3883
    %v3885 = vpop.f32.mrf.mxu0
    %v3886 = vpop.f32.mrf.mxu0
    %v3887 = vadd.f32 0.0, %v3886
    %v3888 = vpop.f32.mrf.mxu0
    %3889 = vmatprep.mubr.bf16.mxu0 0
    %3890 = vmatmul.mubr.bf16.gmra.mxu0 %v3768
    %v3891 = vpop.f32.mrf.mxu0
    %v3892 = vadd.f32 0.0, %v3891
    %v3893 = vpop.f32.mrf.mxu0
    %v3894 = vpop.f32.mrf.mxu0
    %v3895 = vadd.f32 0.0, %v3894
    %v3896 = vpop.f32.mrf.mxu0
    %3897 = vmatprep.mubr.bf16.mxu0 0
    %3898 = vmatmul.mubr.bf16.gmra.mxu0 %v3771
    %v3899 = vpop.f32.mrf.mxu0
    %v3900 = vadd.f32 0.0, %v3899
    %v3901 = vpop.f32.mrf.mxu0
    %v3902 = vpop.f32.mrf.mxu0
    %v3903 = vadd.f32 0.0, %v3902
    %v3904 = vpop.f32.mrf.mxu0
    %3905 = vdwg.mxu0
    %3906 = vst.msk [vmem:[#allocation3] sm:$0xff] %vm28, %v3812
    %3907 = vst.msk [vmem:[#allocation3 + $0x8] sm:$0xff] %vm28, %v3815
    %3908 = vst.msk [vmem:[#allocation3 + $0x10] sm:$0xff] %vm28, %v3820
    %3909 = vst.msk [vmem:[#allocation3 + $0x18] sm:$0xff] %vm28, %v3823
    %3910 = vst.msk [vmem:[#allocation3 + $0x20] sm:$0xff] %vm28, %v3828
    %3911 = vst.msk [vmem:[#allocation3 + $0x28] sm:$0xff] %vm28, %v3831
    %3912 = vst.msk [vmem:[#allocation3 + $0x30] sm:$0xff] %vm28, %v3836
    %3913 = vst.msk [vmem:[#allocation3 + $0x38] sm:$0xff] %vm28, %v3839
    %3914 = vst.msk [vmem:[#allocation3 + $0x40] sm:$0xff] %vm28, %v3844
    %3915 = vst.msk [vmem:[#allocation3 + $0x48] sm:$0xff] %vm28, %v3847
    %3916 = vst.msk [vmem:[#allocation3 + $0x50] sm:$0xff] %vm28, %v3852
    %3917 = vst.msk [vmem:[#allocation3 + $0x58] sm:$0xff] %vm28, %v3855
    %3918 = vst.msk [vmem:[#allocation3 + $0x60] sm:$0xff] %vm28, %v3860
    %3919 = vst.msk [vmem:[#allocation3 + $0x68] sm:$0xff] %vm28, %v3863
    %3920 = vst.msk [vmem:[#allocation3 + $0x70] sm:$0xff] %vm28, %v3868
    %3921 = vst.msk [vmem:[#allocation3 + $0x78] sm:$0xff] %vm28, %v3871
    %3922 = vst.msk [vmem:[#allocation3 + $0x80] sm:$0xff] %vm28, %v3876
    %3923 = vst.msk [vmem:[#allocation3 + $0x88] sm:$0xff] %vm28, %v3879
    %3924 = vst.msk [vmem:[#allocation3 + $0x90] sm:$0xff] %vm28, %v3884
    %3925 = vst.msk [vmem:[#allocation3 + $0x98] sm:$0xff] %vm28, %v3887
    %3926 = vst.msk [vmem:[#allocation3 + $0xa0] sm:$0xff] %vm28, %v3892
    %3927 = vst.msk [vmem:[#allocation3 + $0xa8] sm:$0xff] %vm28, %v3895
    %3928 = vst.msk [vmem:[#allocation3 + $0xb0] sm:$0xff] %vm28, %v3900
    %3929 = vst.msk [vmem:[#allocation3 + $0xb8] sm:$0xff] %vm28, %v3903
    %v3930 = vlaneseq
    %v3931 = vshrl.u32 %v3930, 7
    %v3932 = vadd.s32 %v3931, 8
    %v3933 = vadd.s32 %v3931, 16
    %v3934 = vadd.s32 %v3931, 24
    %v3935 = vadd.s32 %v3931, 32
    %v3936 = vadd.s32 %v3931, 40
    %v3937 = vadd.s32 %v3931, 48
    %v3938 = vadd.s32 %v3931, 56
    %v3939 = vadd.s32 %v3931, 64
    %v3940 = vadd.s32 %v3931, 72
    %v3941 = vadd.s32 %v3931, 80
    %v3942 = vadd.s32 %v3931, 88
    %v3943 = vadd.s32 %v3931, 96
    %v3944 = vadd.s32 %v3931, 104
    %v3945 = vadd.s32 %v3931, 112
    %v3946 = vadd.s32 %v3931, 120
    %v3947 = vadd.s32 %v3931, 128
    %v3948 = vadd.s32 %v3931, 136
    %v3949 = vadd.s32 %v3931, 144
    %v3950 = vadd.s32 %v3931, 152
    %v3951 = vadd.s32 %v3931, 160
    %v3952 = vadd.s32 %v3931, 168
    %v3953 = vadd.s32 %v3931, 176
    %v3954 = vadd.s32 %v3931, 184
    %vm3955 = vcmp.lt.s32.totalorder %v3931, 0
    %v3956 = vsub.s32 0, %v3931
    %v3957 = vsel %vm3955, %v3956, %v3931
    %v3958 = vmul.u32.u64.compose %v3957, 3817748708
    %v3959 = vextract.low.u32 %v3958
    %v3960 = vextract.high.u32 %v3958
    %v3961 = vshrl.u32 %v3960, 4
    %v3962 = vmul.u32 %v3961, 18
    %v3963 = vsub.s32 %v3957, %v3962
    %v3964 = vsub.s32 0, %v3963
    %v3965 = vsel %vm3955, %v3964, %v3963
    %vm3966 = vcmp.lt.s32.totalorder %v3932, 0
    %v3967 = vsub.s32 0, %v3932
    %v3968 = vsel %vm3966, %v3967, %v3932
    %v3969 = vmul.u32.u64.compose %v3968, 3817748708
    %v3970 = vextract.low.u32 %v3969
    %v3971 = vextract.high.u32 %v3969
    %v3972 = vshrl.u32 %v3971, 4
    %v3973 = vmul.u32 %v3972, 18
    %v3974 = vsub.s32 %v3968, %v3973
    %v3975 = vsub.s32 0, %v3974
    %v3976 = vsel %vm3966, %v3975, %v3974
    %vm3977 = vcmp.lt.s32.totalorder %v3933, 0
    %v3978 = vsub.s32 0, %v3933
    %v3979 = vsel %vm3977, %v3978, %v3933
    %v3980 = vmul.u32.u64.compose %v3979, 3817748708
    %v3981 = vextract.low.u32 %v3980
    %v3982 = vextract.high.u32 %v3980
    %v3983 = vshrl.u32 %v3982, 4
    %v3984 = vmul.u32 %v3983, 18
    %v3985 = vsub.s32 %v3979, %v3984
    %v3986 = vsub.s32 0, %v3985
    %v3987 = vsel %vm3977, %v3986, %v3985
    %vm3988 = vcmp.lt.s32.totalorder %v3934, 0
    %v3989 = vsub.s32 0, %v3934
    %v3990 = vsel %vm3988, %v3989, %v3934
    %v3991 = vmul.u32.u64.compose %v3990, 3817748708
    %v3992 = vextract.low.u32 %v3991
    %v3993 = vextract.high.u32 %v3991
    %v3994 = vshrl.u32 %v3993, 4
    %v3995 = vmul.u32 %v3994, 18
    %v3996 = vsub.s32 %v3990, %v3995
    %v3997 = vsub.s32 0, %v3996
    %v3998 = vsel %vm3988, %v3997, %v3996
    %vm3999 = vcmp.lt.s32.totalorder %v3935, 0
    %v4000 = vsub.s32 0, %v3935
    %v4001 = vsel %vm3999, %v4000, %v3935
    %v4002 = vmul.u32.u64.compose %v4001, 3817748708
    %v4003 = vextract.low.u32 %v4002
    %v4004 = vextract.high.u32 %v4002
    %v4005 = vshrl.u32 %v4004, 4
    %v4006 = vmul.u32 %v4005, 18
    %v4007 = vsub.s32 %v4001, %v4006
    %v4008 = vsub.s32 0, %v4007
    %v4009 = vsel %vm3999, %v4008, %v4007
    %vm4010 = vcmp.lt.s32.totalorder %v3936, 0
    %v4011 = vsub.s32 0, %v3936
    %v4012 = vsel %vm4010, %v4011, %v3936
    %v4013 = vmul.u32.u64.compose %v4012, 3817748708
    %v4014 = vextract.low.u32 %v4013
    %v4015 = vextract.high.u32 %v4013
    %v4016 = vshrl.u32 %v4015, 4
    %v4017 = vmul.u32 %v4016, 18
    %v4018 = vsub.s32 %v4012, %v4017
    %v4019 = vsub.s32 0, %v4018
    %v4020 = vsel %vm4010, %v4019, %v4018
    %vm4021 = vcmp.lt.s32.totalorder %v3937, 0
    %v4022 = vsub.s32 0, %v3937
    %v4023 = vsel %vm4021, %v4022, %v3937
    %v4024 = vmul.u32.u64.compose %v4023, 3817748708
    %v4025 = vextract.low.u32 %v4024
    %v4026 = vextract.high.u32 %v4024
    %v4027 = vshrl.u32 %v4026, 4
    %v4028 = vmul.u32 %v4027, 18
    %v4029 = vsub.s32 %v4023, %v4028
    %v4030 = vsub.s32 0, %v4029
    %v4031 = vsel %vm4021, %v4030, %v4029
    %vm4032 = vcmp.lt.s32.totalorder %v3938, 0
    %v4033 = vsub.s32 0, %v3938
    %v4034 = vsel %vm4032, %v4033, %v3938
    %v4035 = vmul.u32.u64.compose %v4034, 3817748708
    %v4036 = vextract.low.u32 %v4035
    %v4037 = vextract.high.u32 %v4035
    %v4038 = vshrl.u32 %v4037, 4
    %v4039 = vmul.u32 %v4038, 18
    %v4040 = vsub.s32 %v4034, %v4039
    %v4041 = vsub.s32 0, %v4040
    %v4042 = vsel %vm4032, %v4041, %v4040
    %vm4043 = vcmp.lt.s32.totalorder %v3939, 0
    %v4044 = vsub.s32 0, %v3939
    %v4045 = vsel %vm4043, %v4044, %v3939
    %v4046 = vmul.u32.u64.compose %v4045, 3817748708
    %v4047 = vextract.low.u32 %v4046
    %v4048 = vextract.high.u32 %v4046
    %v4049 = vshrl.u32 %v4048, 4
    %v4050 = vmul.u32 %v4049, 18
    %v4051 = vsub.s32 %v4045, %v4050
    %v4052 = vsub.s32 0, %v4051
    %v4053 = vsel %vm4043, %v4052, %v4051
    %vm4054 = vcmp.lt.s32.totalorder %v3940, 0
    %v4055 = vsub.s32 0, %v3940
    %v4056 = vsel %vm4054, %v4055, %v3940
    %v4057 = vmul.u32.u64.compose %v4056, 3817748708
    %v4058 = vextract.low.u32 %v4057
    %v4059 = vextract.high.u32 %v4057
    %v4060 = vshrl.u32 %v4059, 4
    %v4061 = vmul.u32 %v4060, 18
    %v4062 = vsub.s32 %v4056, %v4061
    %v4063 = vsub.s32 0, %v4062
    %v4064 = vsel %vm4054, %v4063, %v4062
    %vm4065 = vcmp.lt.s32.totalorder %v3941, 0
    %v4066 = vsub.s32 0, %v3941
    %v4067 = vsel %vm4065, %v4066, %v3941
    %v4068 = vmul.u32.u64.compose %v4067, 3817748708
    %v4069 = vextract.low.u32 %v4068
    %v4070 = vextract.high.u32 %v4068
    %v4071 = vshrl.u32 %v4070, 4
    %v4072 = vmul.u32 %v4071, 18
    %v4073 = vsub.s32 %v4067, %v4072
    %v4074 = vsub.s32 0, %v4073
    %v4075 = vsel %vm4065, %v4074, %v4073
    %vm4076 = vcmp.lt.s32.totalorder %v3942, 0
    %v4077 = vsub.s32 0, %v3942
    %v4078 = vsel %vm4076, %v4077, %v3942
    %v4079 = vmul.u32.u64.compose %v4078, 3817748708
    %v4080 = vextract.low.u32 %v4079
    %v4081 = vextract.high.u32 %v4079
    %v4082 = vshrl.u32 %v4081, 4
    %v4083 = vmul.u32 %v4082, 18
    %v4084 = vsub.s32 %v4078, %v4083
    %v4085 = vsub.s32 0, %v4084
    %v4086 = vsel %vm4076, %v4085, %v4084
    %vm4087 = vcmp.lt.s32.totalorder %v3943, 0
    %v4088 = vsub.s32 0, %v3943
    %v4089 = vsel %vm4087, %v4088, %v3943
    %v4090 = vmul.u32.u64.compose %v4089, 3817748708
    %v4091 = vextract.low.u32 %v4090
    %v4092 = vextract.high.u32 %v4090
    %v4093 = vshrl.u32 %v4092, 4
    %v4094 = vmul.u32 %v4093, 18
    %v4095 = vsub.s32 %v4089, %v4094
    %v4096 = vsub.s32 0, %v4095
    %v4097 = vsel %vm4087, %v4096, %v4095
    %vm4098 = vcmp.lt.s32.totalorder %v3944, 0
    %v4099 = vsub.s32 0, %v3944
    %v4100 = vsel %vm4098, %v4099, %v3944
    %v4101 = vmul.u32.u64.compose %v4100, 3817748708
    %v4102 = vextract.low.u32 %v4101
    %v4103 = vextract.high.u32 %v4101
    %v4104 = vshrl.u32 %v4103, 4
    %v4105 = vmul.u32 %v4104, 18
    %v4106 = vsub.s32 %v4100, %v4105
    %v4107 = vsub.s32 0, %v4106
    %v4108 = vsel %vm4098, %v4107, %v4106
    %vm4109 = vcmp.lt.s32.totalorder %v3945, 0
    %v4110 = vsub.s32 0, %v3945
    %v4111 = vsel %vm4109, %v4110, %v3945
    %v4112 = vmul.u32.u64.compose %v4111, 3817748708
    %v4113 = vextract.low.u32 %v4112
    %v4114 = vextract.high.u32 %v4112
    %v4115 = vshrl.u32 %v4114, 4
    %v4116 = vmul.u32 %v4115, 18
    %v4117 = vsub.s32 %v4111, %v4116
    %v4118 = vsub.s32 0, %v4117
    %v4119 = vsel %vm4109, %v4118, %v4117
    %vm4120 = vcmp.lt.s32.totalorder %v3946, 0
    %v4121 = vsub.s32 0, %v3946
    %v4122 = vsel %vm4120, %v4121, %v3946
    %v4123 = vmul.u32.u64.compose %v4122, 3817748708
    %v4124 = vextract.low.u32 %v4123
    %v4125 = vextract.high.u32 %v4123
    %v4126 = vshrl.u32 %v4125, 4
    %v4127 = vmul.u32 %v4126, 18
    %v4128 = vsub.s32 %v4122, %v4127
    %v4129 = vsub.s32 0, %v4128
    %v4130 = vsel %vm4120, %v4129, %v4128
    %vm4131 = vcmp.lt.s32.totalorder %v3947, 0
    %v4132 = vsub.s32 0, %v3947
    %v4133 = vsel %vm4131, %v4132, %v3947
    %v4134 = vmul.u32.u64.compose %v4133, 3817748708
    %v4135 = vextract.low.u32 %v4134
    %v4136 = vextract.high.u32 %v4134
    %v4137 = vshrl.u32 %v4136, 4
    %v4138 = vmul.u32 %v4137, 18
    %v4139 = vsub.s32 %v4133, %v4138
    %v4140 = vsub.s32 0, %v4139
    %v4141 = vsel %vm4131, %v4140, %v4139
    %vm4142 = vcmp.lt.s32.totalorder %v3948, 0
    %v4143 = vsub.s32 0, %v3948
    %v4144 = vsel %vm4142, %v4143, %v3948
    %v4145 = vmul.u32.u64.compose %v4144, 3817748708
    %v4146 = vextract.low.u32 %v4145
    %v4147 = vextract.high.u32 %v4145
    %v4148 = vshrl.u32 %v4147, 4
    %v4149 = vmul.u32 %v4148, 18
    %v4150 = vsub.s32 %v4144, %v4149
    %v4151 = vsub.s32 0, %v4150
    %v4152 = vsel %vm4142, %v4151, %v4150
    %vm4153 = vcmp.lt.s32.totalorder %v3949, 0
    %v4154 = vsub.s32 0, %v3949
    %v4155 = vsel %vm4153, %v4154, %v3949
    %v4156 = vmul.u32.u64.compose %v4155, 3817748708
    %v4157 = vextract.low.u32 %v4156
    %v4158 = vextract.high.u32 %v4156
    %v4159 = vshrl.u32 %v4158, 4
    %v4160 = vmul.u32 %v4159, 18
    %v4161 = vsub.s32 %v4155, %v4160
    %v4162 = vsub.s32 0, %v4161
    %v4163 = vsel %vm4153, %v4162, %v4161
    %vm4164 = vcmp.lt.s32.totalorder %v3950, 0
    %v4165 = vsub.s32 0, %v3950
    %v4166 = vsel %vm4164, %v4165, %v3950
    %v4167 = vmul.u32.u64.compose %v4166, 3817748708
    %v4168 = vextract.low.u32 %v4167
    %v4169 = vextract.high.u32 %v4167
    %v4170 = vshrl.u32 %v4169, 4
    %v4171 = vmul.u32 %v4170, 18
    %v4172 = vsub.s32 %v4166, %v4171
    %v4173 = vsub.s32 0, %v4172
    %v4174 = vsel %vm4164, %v4173, %v4172
    %vm4175 = vcmp.lt.s32.totalorder %v3951, 0
    %v4176 = vsub.s32 0, %v3951
    %v4177 = vsel %vm4175, %v4176, %v3951
    %v4178 = vmul.u32.u64.compose %v4177, 3817748708
    %v4179 = vextract.low.u32 %v4178
    %v4180 = vextract.high.u32 %v4178
    %v4181 = vshrl.u32 %v4180, 4
    %v4182 = vmul.u32 %v4181, 18
    %v4183 = vsub.s32 %v4177, %v4182
    %v4184 = vsub.s32 0, %v4183
    %v4185 = vsel %vm4175, %v4184, %v4183
    %vm4186 = vcmp.lt.s32.totalorder %v3952, 0
    %v4187 = vsub.s32 0, %v3952
    %v4188 = vsel %vm4186, %v4187, %v3952
    %v4189 = vmul.u32.u64.compose %v4188, 3817748708
    %v4190 = vextract.low.u32 %v4189
    %v4191 = vextract.high.u32 %v4189
    %v4192 = vshrl.u32 %v4191, 4
    %v4193 = vmul.u32 %v4192, 18
    %v4194 = vsub.s32 %v4188, %v4193
    %v4195 = vsub.s32 0, %v4194
    %v4196 = vsel %vm4186, %v4195, %v4194
    %vm4197 = vcmp.lt.s32.totalorder %v3953, 0
    %v4198 = vsub.s32 0, %v3953
    %v4199 = vsel %vm4197, %v4198, %v3953
    %v4200 = vmul.u32.u64.compose %v4199, 3817748708
    %v4201 = vextract.low.u32 %v4200
    %v4202 = vextract.high.u32 %v4200
    %v4203 = vshrl.u32 %v4202, 4
    %v4204 = vmul.u32 %v4203, 18
    %v4205 = vsub.s32 %v4199, %v4204
    %v4206 = vsub.s32 0, %v4205
    %v4207 = vsel %vm4197, %v4206, %v4205
    %vm4208 = vcmp.lt.s32.totalorder %v3954, 0
    %v4209 = vsub.s32 0, %v3954
    %v4210 = vsel %vm4208, %v4209, %v3954
    %v4211 = vmul.u32.u64.compose %v4210, 3817748708
    %v4212 = vextract.low.u32 %v4211
    %v4213 = vextract.high.u32 %v4211
    %v4214 = vshrl.u32 %v4213, 4
    %v4215 = vmul.u32 %v4214, 18
    %v4216 = vsub.s32 %v4210, %v4215
    %v4217 = vsub.s32 0, %v4216
    %v4218 = vsel %vm4208, %v4217, %v4216
    %vm4219 = vcmp.ne.s32.totalorder %v3965, 0
    %vm4220 = vcmp.ne.s32.totalorder %v3976, 0
    %vm4221 = vcmp.ne.s32.totalorder %v3987, 0
    %vm4222 = vcmp.ne.s32.totalorder %v3998, 0
    %vm4223 = vcmp.ne.s32.totalorder %v4009, 0
    %vm4224 = vcmp.ne.s32.totalorder %v4020, 0
    %vm4225 = vcmp.ne.s32.totalorder %v4031, 0
    %vm4226 = vcmp.ne.s32.totalorder %v4042, 0
    %vm4227 = vcmp.ne.s32.totalorder %v4053, 0
    %vm4228 = vcmp.ne.s32.totalorder %v4064, 0
    %vm4229 = vcmp.ne.s32.totalorder %v4075, 0
    %vm4230 = vcmp.ne.s32.totalorder %v4086, 0
    %vm4231 = vcmp.ne.s32.totalorder %v4097, 0
    %vm4232 = vcmp.ne.s32.totalorder %v4108, 0
    %vm4233 = vcmp.ne.s32.totalorder %v4119, 0
    %vm4234 = vcmp.ne.s32.totalorder %v4130, 0
    %vm4235 = vcmp.ne.s32.totalorder %v4141, 0
    %vm4236 = vcmp.ne.s32.totalorder %v4152, 0
    %vm4237 = vcmp.ne.s32.totalorder %v4163, 0
    %vm4238 = vcmp.ne.s32.totalorder %v4174, 0
    %vm4239 = vcmp.ne.s32.totalorder %v4185, 0
    %vm4240 = vcmp.ne.s32.totalorder %v4196, 0
    %vm4241 = vcmp.ne.s32.totalorder %v4207, 0
    %vm4242 = vcmp.ne.s32.totalorder %v4218, 0
    %vm4243 = vcmp.lt.s32.totalorder %v3965, 0
    %vm4244 = vcmp.lt.s32.totalorder %v3976, 0
    %vm4245 = vcmp.lt.s32.totalorder %v3987, 0
    %vm4246 = vcmp.lt.s32.totalorder %v3998, 0
    %vm4247 = vcmp.lt.s32.totalorder %v4009, 0
    %vm4248 = vcmp.lt.s32.totalorder %v4020, 0
    %vm4249 = vcmp.lt.s32.totalorder %v4031, 0
    %vm4250 = vcmp.lt.s32.totalorder %v4042, 0
    %vm4251 = vcmp.lt.s32.totalorder %v4053, 0
    %vm4252 = vcmp.lt.s32.totalorder %v4064, 0
    %vm4253 = vcmp.lt.s32.totalorder %v4075, 0
    %vm4254 = vcmp.lt.s32.totalorder %v4086, 0
    %vm4255 = vcmp.lt.s32.totalorder %v4097, 0
    %vm4256 = vcmp.lt.s32.totalorder %v4108, 0
    %vm4257 = vcmp.lt.s32.totalorder %v4119, 0
    %vm4258 = vcmp.lt.s32.totalorder %v4130, 0
    %vm4259 = vcmp.lt.s32.totalorder %v4141, 0
    %vm4260 = vcmp.lt.s32.totalorder %v4152, 0
    %vm4261 = vcmp.lt.s32.totalorder %v4163, 0
    %vm4262 = vcmp.lt.s32.totalorder %v4174, 0
    %vm4263 = vcmp.lt.s32.totalorder %v4185, 0
    %vm4264 = vcmp.lt.s32.totalorder %v4196, 0
    %vm4265 = vcmp.lt.s32.totalorder %v4207, 0
    %vm4266 = vcmp.lt.s32.totalorder %v4218, 0
    %vm4267 = vmand %vm4243, %vm4219
    %vm4268 = vmand %vm4244, %vm4220
    %vm4269 = vmand %vm4245, %vm4221
    %vm4270 = vmand %vm4246, %vm4222
    %vm4271 = vmand %vm4247, %vm4223
    %vm4272 = vmand %vm4248, %vm4224
    %vm4273 = vmand %vm4249, %vm4225
    %vm4274 = vmand %vm4250, %vm4226
    %vm4275 = vmand %vm4251, %vm4227
    %vm4276 = vmand %vm4252, %vm4228
    %vm4277 = vmand %vm4253, %vm4229
    %vm4278 = vmand %vm4254, %vm4230
    %vm4279 = vmand %vm4255, %vm4231
    %vm4280 = vmand %vm4256, %vm4232
    %vm4281 = vmand %vm4257, %vm4233
    %vm4282 = vmand %vm4258, %vm4234
    %vm4283 = vmand %vm4259, %vm4235
    %vm4284 = vmand %vm4260, %vm4236
    %vm4285 = vmand %vm4261, %vm4237
    %vm4286 = vmand %vm4262, %vm4238
    %vm4287 = vmand %vm4263, %vm4239
    %vm4288 = vmand %vm4264, %vm4240
    %vm4289 = vmand %vm4265, %vm4241
    %vm4290 = vmand %vm4266, %vm4242
    %v4291 = vadd.s32 %v3965, 18
    %v4292 = vadd.s32 %v3976, 18
    %v4293 = vadd.s32 %v3987, 18
    %v4294 = vadd.s32 %v3998, 18
    %v4295 = vadd.s32 %v4009, 18
    %v4296 = vadd.s32 %v4020, 18
    %v4297 = vadd.s32 %v4031, 18
    %v4298 = vadd.s32 %v4042, 18
    %v4299 = vadd.s32 %v4053, 18
    %v4300 = vadd.s32 %v4064, 18
    %v4301 = vadd.s32 %v4075, 18
    %v4302 = vadd.s32 %v4086, 18
    %v4303 = vadd.s32 %v4097, 18
    %v4304 = vadd.s32 %v4108, 18
    %v4305 = vadd.s32 %v4119, 18
    %v4306 = vadd.s32 %v4130, 18
    %v4307 = vadd.s32 %v4141, 18
    %v4308 = vadd.s32 %v4152, 18
    %v4309 = vadd.s32 %v4163, 18
    %v4310 = vadd.s32 %v4174, 18
    %v4311 = vadd.s32 %v4185, 18
    %v4312 = vadd.s32 %v4196, 18
    %v4313 = vadd.s32 %v4207, 18
    %v4314 = vadd.s32 %v4218, 18
    %v4315 = vsel %vm4267, %v4291, %v3965
    %v4316 = vsel %vm4268, %v4292, %v3976
    %v4317 = vsel %vm4269, %v4293, %v3987
    %v4318 = vsel %vm4270, %v4294, %v3998
    %v4319 = vsel %vm4271, %v4295, %v4009
    %v4320 = vsel %vm4272, %v4296, %v4020
    %v4321 = vsel %vm4273, %v4297, %v4031
    %v4322 = vsel %vm4274, %v4298, %v4042
    %v4323 = vsel %vm4275, %v4299, %v4053
    %v4324 = vsel %vm4276, %v4300, %v4064
    %v4325 = vsel %vm4277, %v4301, %v4075
    %v4326 = vsel %vm4278, %v4302, %v4086
    %v4327 = vsel %vm4279, %v4303, %v4097
    %v4328 = vsel %vm4280, %v4304, %v4108
    %v4329 = vsel %vm4281, %v4305, %v4119
    %v4330 = vsel %vm4282, %v4306, %v4130
    %v4331 = vsel %vm4283, %v4307, %v4141
    %v4332 = vsel %vm4284, %v4308, %v4152
    %v4333 = vsel %vm4285, %v4309, %v4163
    %v4334 = vsel %vm4286, %v4310, %v4174
    %v4335 = vsel %vm4287, %v4311, %v4185
    %v4336 = vsel %vm4288, %v4312, %v4196
    %v4337 = vsel %vm4289, %v4313, %v4207
    %v4338 = vsel %vm4290, %v4314, %v4218
    %vm4339 = vcmp.lt.s32.totalorder %v4315, 16
    %vm4340 = vcmp.lt.s32.totalorder %v4316, 16
    %vm4341 = vcmp.lt.s32.totalorder %v4317, 16
    %vm4342 = vcmp.lt.s32.totalorder %v4318, 16
    %vm4343 = vcmp.lt.s32.totalorder %v4319, 16
    %vm4344 = vcmp.lt.s32.totalorder %v4320, 16
    %vm4345 = vcmp.lt.s32.totalorder %v4321, 16
    %vm4346 = vcmp.lt.s32.totalorder %v4322, 16
    %vm4347 = vcmp.lt.s32.totalorder %v4323, 16
    %vm4348 = vcmp.lt.s32.totalorder %v4324, 16
    %vm4349 = vcmp.lt.s32.totalorder %v4325, 16
    %vm4350 = vcmp.lt.s32.totalorder %v4326, 16
    %vm4351 = vcmp.lt.s32.totalorder %v4327, 16
    %vm4352 = vcmp.lt.s32.totalorder %v4328, 16
    %vm4353 = vcmp.lt.s32.totalorder %v4329, 16
    %vm4354 = vcmp.lt.s32.totalorder %v4330, 16
    %vm4355 = vcmp.lt.s32.totalorder %v4331, 16
    %vm4356 = vcmp.lt.s32.totalorder %v4332, 16
    %vm4357 = vcmp.lt.s32.totalorder %v4333, 16
    %vm4358 = vcmp.lt.s32.totalorder %v4334, 16
    %vm4359 = vcmp.lt.s32.totalorder %v4335, 16
    %vm4360 = vcmp.lt.s32.totalorder %v4336, 16
    %vm4361 = vcmp.lt.s32.totalorder %v4337, 16
    %vm4362 = vcmp.lt.s32.totalorder %v4338, 16
    %v4363 = vsel %vm4339, 1, 0
    %v4364 = vsel %vm4340, 1, 0
    %v4365 = vsel %vm4341, 1, 0
    %v4366 = vsel %vm4342, 1, 0
    %v4367 = vsel %vm4343, 1, 0
    %v4368 = vsel %vm4344, 1, 0
    %v4369 = vsel %vm4345, 1, 0
    %v4370 = vsel %vm4346, 1, 0
    %v4371 = vsel %vm4347, 1, 0
    %v4372 = vsel %vm4348, 1, 0
    %v4373 = vsel %vm4349, 1, 0
    %v4374 = vsel %vm4350, 1, 0
    %v4375 = vsel %vm4351, 1, 0
    %v4376 = vsel %vm4352, 1, 0
    %v4377 = vsel %vm4353, 1, 0
    %v4378 = vsel %vm4354, 1, 0
    %v4379 = vsel %vm4355, 1, 0
    %v4380 = vsel %vm4356, 1, 0
    %v4381 = vsel %vm4357, 1, 0
    %v4382 = vsel %vm4358, 1, 0
    %v4383 = vsel %vm4359, 1, 0
    %v4384 = vsel %vm4360, 1, 0
    %v4385 = vsel %vm4361, 1, 0
    %v4386 = vsel %vm4362, 1, 0
    %vm4387 = vcmp.eq.s32.totalorder %v4363, 1
    %vm4388 = vcmp.eq.s32.totalorder %v4364, 1
    %vm4389 = vcmp.eq.s32.totalorder %v4365, 1
    %vm4390 = vcmp.eq.s32.totalorder %v4366, 1
    %vm4391 = vcmp.eq.s32.totalorder %v4367, 1
    %vm4392 = vcmp.eq.s32.totalorder %v4368, 1
    %vm4393 = vcmp.eq.s32.totalorder %v4369, 1
    %vm4394 = vcmp.eq.s32.totalorder %v4370, 1
    %vm4395 = vcmp.eq.s32.totalorder %v4371, 1
    %vm4396 = vcmp.eq.s32.totalorder %v4372, 1
    %vm4397 = vcmp.eq.s32.totalorder %v4373, 1
    %vm4398 = vcmp.eq.s32.totalorder %v4374, 1
    %vm4399 = vcmp.eq.s32.totalorder %v4375, 1
    %vm4400 = vcmp.eq.s32.totalorder %v4376, 1
    %vm4401 = vcmp.eq.s32.totalorder %v4377, 1
    %vm4402 = vcmp.eq.s32.totalorder %v4378, 1
    %vm4403 = vcmp.eq.s32.totalorder %v4379, 1
    %vm4404 = vcmp.eq.s32.totalorder %v4380, 1
    %vm4405 = vcmp.eq.s32.totalorder %v4381, 1
    %vm4406 = vcmp.eq.s32.totalorder %v4382, 1
    %vm4407 = vcmp.eq.s32.totalorder %v4383, 1
    %vm4408 = vcmp.eq.s32.totalorder %v4384, 1
    %vm4409 = vcmp.eq.s32.totalorder %v4385, 1
    %vm4410 = vcmp.eq.s32.totalorder %v4386, 1
    %v4411 = vsel %vm4387, %v3812, 0.0
    %v4412 = vsel %vm4388, %v3815, 0.0
    %v4413 = vsel %vm4389, %v3820, 0.0
    %v4414 = vsel %vm4390, %v3823, 0.0
    %v4415 = vsel %vm4391, %v3828, 0.0
    %v4416 = vsel %vm4392, %v3831, 0.0
    %v4417 = vsel %vm4393, %v3836, 0.0
    %v4418 = vsel %vm4394, %v3839, 0.0
    %v4419 = vsel %vm4395, %v3844, 0.0
    %v4420 = vsel %vm4396, %v3847, 0.0
    %v4421 = vsel %vm4397, %v3852, 0.0
    %v4422 = vsel %vm4398, %v3855, 0.0
    %v4423 = vsel %vm4399, %v3860, 0.0
    %v4424 = vsel %vm4400, %v3863, 0.0
    %v4425 = vsel %vm4401, %v3868, 0.0
    %v4426 = vsel %vm4402, %v3871, 0.0
    %v4427 = vsel %vm4403, %v3876, 0.0
    %v4428 = vsel %vm4404, %v3879, 0.0
    %v4429 = vsel %vm4405, %v3884, 0.0
    %v4430 = vsel %vm4406, %v3887, 0.0
    %v4431 = vsel %vm4407, %v3892, 0.0
    %v4432 = vsel %vm4408, %v3895, 0.0
    %v4433 = vsel %vm4409, %v3900, 0.0
    %v4434 = vsel %vm4410, %v3903, 0.0
    %v4435 = vsel %vm28, %v4411, 0.0
    %v4436 = vsel %vm28, %v4412, 0.0
    %v4437 = vadd.f32 %v4435, %v4436
    %v4438 = vsel %vm28, %v4413, 0.0
    %v4439 = vadd.f32 %v4437, %v4438
    %v4440 = vsel %vm28, %v4414, 0.0
    %v4441 = vadd.f32 %v4439, %v4440
    %v4442 = vsel %vm28, %v4415, 0.0
    %v4443 = vadd.f32 %v4441, %v4442
    %v4444 = vsel %vm28, %v4416, 0.0
    %v4445 = vadd.f32 %v4443, %v4444
    %v4446 = vsel %vm28, %v4417, 0.0
    %v4447 = vadd.f32 %v4445, %v4446
    %v4448 = vsel %vm28, %v4418, 0.0
    %v4449 = vadd.f32 %v4447, %v4448
    %v4450 = vsel %vm28, %v4419, 0.0
    %v4451 = vadd.f32 %v4449, %v4450
    %v4452 = vsel %vm28, %v4420, 0.0
    %v4453 = vadd.f32 %v4451, %v4452
    %v4454 = vsel %vm28, %v4421, 0.0
    %v4455 = vadd.f32 %v4453, %v4454
    %v4456 = vsel %vm28, %v4422, 0.0
    %v4457 = vadd.f32 %v4455, %v4456
    %v4458 = vsel %vm28, %v4423, 0.0
    %v4459 = vadd.f32 %v4457, %v4458
    %v4460 = vsel %vm28, %v4424, 0.0
    %v4461 = vadd.f32 %v4459, %v4460
    %v4462 = vsel %vm28, %v4425, 0.0
    %v4463 = vadd.f32 %v4461, %v4462
    %v4464 = vsel %vm28, %v4426, 0.0
    %v4465 = vadd.f32 %v4463, %v4464
    %v4466 = vsel %vm28, %v4427, 0.0
    %v4467 = vadd.f32 %v4465, %v4466
    %v4468 = vsel %vm28, %v4428, 0.0
    %v4469 = vadd.f32 %v4467, %v4468
    %v4470 = vsel %vm28, %v4429, 0.0
    %v4471 = vadd.f32 %v4469, %v4470
    %v4472 = vsel %vm28, %v4430, 0.0
    %v4473 = vadd.f32 %v4471, %v4472
    %v4474 = vsel %vm28, %v4431, 0.0
    %v4475 = vadd.f32 %v4473, %v4474
    %v4476 = vsel %vm28, %v4432, 0.0
    %v4477 = vadd.f32 %v4475, %v4476
    %v4478 = vsel %vm28, %v4433, 0.0
    %v4479 = vadd.f32 %v4477, %v4478
    %v4480 = vsel %vm28, %v4434, 0.0
    %v4481 = vadd.f32 %v4479, %v4480
    %v4482 = vrot.slane %v4481, 4
    %v4483 = vadd.f32 %v4481, %v4482
    %v4484 = vrot.slane %v4483, 2
    %v4485 = vadd.f32 %v4483, %v4484
    %v4486 = vrot.slane %v4485, 1
    %v4487 = vadd.f32 %v4485, %v4486
    %v4488 = vadd.f32 %v4487, 0.0
    %v4489 = vmul.f32 %v4411, %v3812
    %v4490 = vmul.f32 %v4412, %v3815
    %v4491 = vmul.f32 %v4413, %v3820
    %v4492 = vmul.f32 %v4414, %v3823
    %v4493 = vmul.f32 %v4415, %v3828
    %v4494 = vmul.f32 %v4416, %v3831
    %v4495 = vmul.f32 %v4417, %v3836
    %v4496 = vmul.f32 %v4418, %v3839
    %v4497 = vmul.f32 %v4419, %v3844
    %v4498 = vmul.f32 %v4420, %v3847
    %v4499 = vmul.f32 %v4421, %v3852
    %v4500 = vmul.f32 %v4422, %v3855
    %v4501 = vmul.f32 %v4423, %v3860
    %v4502 = vmul.f32 %v4424, %v3863
    %v4503 = vmul.f32 %v4425, %v3868
    %v4504 = vmul.f32 %v4426, %v3871
    %v4505 = vmul.f32 %v4427, %v3876
    %v4506 = vmul.f32 %v4428, %v3879
    %v4507 = vmul.f32 %v4429, %v3884
    %v4508 = vmul.f32 %v4430, %v3887
    %v4509 = vmul.f32 %v4431, %v3892
    %v4510 = vmul.f32 %v4432, %v3895
    %v4511 = vmul.f32 %v4433, %v3900
    %v4512 = vmul.f32 %v4434, %v3903
    %v4513 = vsel %vm28, %v4489, 0.0
    %v4514 = vsel %vm28, %v4490, 0.0
    %v4515 = vadd.f32 %v4513, %v4514
    %v4516 = vsel %vm28, %v4491, 0.0
    %v4517 = vadd.f32 %v4515, %v4516
    %v4518 = vsel %vm28, %v4492, 0.0
    %v4519 = vadd.f32 %v4517, %v4518
    %v4520 = vsel %vm28, %v4493, 0.0
    %v4521 = vadd.f32 %v4519, %v4520
    %v4522 = vsel %vm28, %v4494, 0.0
    %v4523 = vadd.f32 %v4521, %v4522
    %v4524 = vsel %vm28, %v4495, 0.0
    %v4525 = vadd.f32 %v4523, %v4524
    %v4526 = vsel %vm28, %v4496, 0.0
    %v4527 = vadd.f32 %v4525, %v4526
    %v4528 = vsel %vm28, %v4497, 0.0
    %v4529 = vadd.f32 %v4527, %v4528
    %v4530 = vsel %vm28, %v4498, 0.0
    %v4531 = vadd.f32 %v4529, %v4530
    %v4532 = vsel %vm28, %v4499, 0.0
    %v4533 = vadd.f32 %v4531, %v4532
    %v4534 = vsel %vm28, %v4500, 0.0
    %v4535 = vadd.f32 %v4533, %v4534
    %v4536 = vsel %vm28, %v4501, 0.0
    %v4537 = vadd.f32 %v4535, %v4536
    %v4538 = vsel %vm28, %v4502, 0.0
    %v4539 = vadd.f32 %v4537, %v4538
    %v4540 = vsel %vm28, %v4503, 0.0
    %v4541 = vadd.f32 %v4539, %v4540
    %v4542 = vsel %vm28, %v4504, 0.0
    %v4543 = vadd.f32 %v4541, %v4542
    %v4544 = vsel %vm28, %v4505, 0.0
    %v4545 = vadd.f32 %v4543, %v4544
    %v4546 = vsel %vm28, %v4506, 0.0
    %v4547 = vadd.f32 %v4545, %v4546
    %v4548 = vsel %vm28, %v4507, 0.0
    %v4549 = vadd.f32 %v4547, %v4548
    %v4550 = vsel %vm28, %v4508, 0.0
    %v4551 = vadd.f32 %v4549, %v4550
    %v4552 = vsel %vm28, %v4509, 0.0
    %v4553 = vadd.f32 %v4551, %v4552
    %v4554 = vsel %vm28, %v4510, 0.0
    %v4555 = vadd.f32 %v4553, %v4554
    %v4556 = vsel %vm28, %v4511, 0.0
    %v4557 = vadd.f32 %v4555, %v4556
    %v4558 = vsel %vm28, %v4512, 0.0
    %v4559 = vadd.f32 %v4557, %v4558
    %v4560 = vrot.slane %v4559, 4
    %v4561 = vadd.f32 %v4559, %v4560
    %v4562 = vrot.slane %v4561, 2
    %v4563 = vadd.f32 %v4561, %v4562
    %v4564 = vrot.slane %v4563, 1
    %v4565 = vadd.f32 %v4563, %v4564
    %v4566 = vadd.f32 %v4565, 0.0
    %v4567 = vld [vmem:[#allocation2 + $0xc0] sm:$0xff]
    %v4568 = vld [vmem:[#allocation2 + $0xc8] sm:$0xff]
    %v4569 = vld [vmem:[#allocation2 + $0xd0] sm:$0xff]
    %v4570 = vld [vmem:[#allocation2 + $0xd8] sm:$0xff]
    %v4571 = vld [vmem:[#allocation2 + $0xe0] sm:$0xff]
    %v4572 = vld [vmem:[#allocation2 + $0xe8] sm:$0xff]
    %v4573 = vld [vmem:[#allocation2 + $0xf0] sm:$0xff]
    %v4574 = vld [vmem:[#allocation2 + $0xf8] sm:$0xff]
    %v4575 = vld [vmem:[#allocation2 + $0x100] sm:$0xff]
    %v4576 = vld [vmem:[#allocation2 + $0x108] sm:$0xff]
    %v4577 = vld [vmem:[#allocation2 + $0x110] sm:$0xff]
    %v4578 = vld [vmem:[#allocation2 + $0x118] sm:$0xff]
    %v4579 = vld [vmem:[#allocation2 + $0x120] sm:$0xff]
    %v4580 = vld [vmem:[#allocation2 + $0x128] sm:$0xff]
    %v4581 = vld [vmem:[#allocation2 + $0x130] sm:$0xff]
    %v4582 = vld [vmem:[#allocation2 + $0x138] sm:$0xff]
    %v4583 = vld [vmem:[#allocation2 + $0x140] sm:$0xff]
    %v4584 = vld [vmem:[#allocation2 + $0x148] sm:$0xff]
    %v4585 = vld [vmem:[#allocation2 + $0x150] sm:$0xff]
    %v4586 = vld [vmem:[#allocation2 + $0x158] sm:$0xff]
    %v4587 = vld [vmem:[#allocation2 + $0x160] sm:$0xff]
    %v4588 = vld [vmem:[#allocation2 + $0x168] sm:$0xff]
    %v4589 = vld [vmem:[#allocation2 + $0x170] sm:$0xff]
    %v4590 = vld [vmem:[#allocation2 + $0x178] sm:$0xff]
    %v4591 = vpack.c.bf16 %v4568, %v4567
    %v4592 = vpack.c.bf16 %v4570, %v4569
    %v4593 = vpack.c.bf16 %v4572, %v4571
    %v4594 = vpack.c.bf16 %v4574, %v4573
    %v4595 = vpack.c.bf16 %v4576, %v4575
    %v4596 = vpack.c.bf16 %v4578, %v4577
    %v4597 = vpack.c.bf16 %v4580, %v4579
    %v4598 = vpack.c.bf16 %v4582, %v4581
    %v4599 = vpack.c.bf16 %v4584, %v4583
    %v4600 = vpack.c.bf16 %v4586, %v4585
    %v4601 = vpack.c.bf16 %v4588, %v4587
    %v4602 = vpack.c.bf16 %v4590, %v4589
    %v4604 = vsel %vm3736, %v4591, 0
    %v4607 = vsel %vm3736, %v4592, 0
    %v4610 = vsel %vm3736, %v4593, 0
    %v4613 = vsel %vm3736, %v4594, 0
    %v4616 = vsel %vm3736, %v4595, 0
    %v4619 = vsel %vm3736, %v4596, 0
    %v4622 = vsel %vm3736, %v4597, 0
    %v4625 = vsel %vm3736, %v4598, 0
    %v4628 = vsel %vm3736, %v4599, 0
    %v4631 = vsel %vm3736, %v4600, 0
    %v4634 = vsel %vm3736, %v4601, 0
    %v4637 = vsel %vm3736, %v4602, 0
    %4639 = vmatprep.subr.bf16.mxu0 0
    %4640 = vmatpush1.bf16.msra.mxu0 0
    %4641 = vmatprep.subr.bf16.mxu0 0
    %4642 = vmatpush1.bf16.msra.mxu0 0
    %4643 = vmatprep.subr.bf16.mxu0 0
    %4644 = vmatpush1.bf16.msra.mxu0 0
    %4645 = vmatprep.subr.bf16.mxu0 0
    %4646 = vmatpush1.bf16.msra.mxu0 %v3775
    %4647 = vmatprep.subr.bf16.mxu0 0
    %4648 = vmatpush1.bf16.msra.mxu0 %v3730
    %4649 = vmatprep.subr.bf16.mxu0 0
    %4650 = vmatpush1.bf16.msra.mxu0 %v3729
    %4651 = vmatprep.subr.bf16.mxu0 0
    %4652 = vmatpush1.bf16.msra.mxu0 %v3728
    %4653 = vmatprep.subr.bf16.mxu0 0
    %4654 = vmatpush1.bf16.msra.mxu0 %v3727
    %4655 = vmatprep.subr.bf16.mxu0 0
    %4656 = vmatpush2.bf16.msra.mxu0 0
    %4657 = vmatprep.subr.bf16.mxu0 0
    %4658 = vmatpush2.bf16.msra.mxu0 0
    %4659 = vmatprep.subr.bf16.mxu0 0
    %4660 = vmatpush2.bf16.msra.mxu0 0
    %4661 = vmatprep.subr.bf16.mxu0 0
    %4662 = vmatpush2.bf16.msra.mxu0 0
    %4663 = vmatprep.subr.bf16.mxu0 0
    %4664 = vmatpush2.bf16.msra.mxu0 0
    %4665 = vmatprep.subr.bf16.mxu0 0
    %4666 = vmatpush2.bf16.msra.mxu0 0
    %4667 = vmatprep.subr.bf16.mxu0 0
    %4668 = vmatpush2.bf16.msra.mxu0 0
    %4669 = vmatprep.subr.bf16.mxu0 0
    %4670 = vmatpush2.bf16.msra.mxu0 0
    %4671 = vmatprep.mubr.bf16.mxu0 0
    %4672 = vmatmul.mubr.bf16.gmra.mxu0 %v4604
    %v4673 = vpop.f32.mrf.mxu0
    %v4674 = vadd.f32 0.0, %v4673
    %v4675 = vpop.f32.mrf.mxu0
    %v4676 = vpop.f32.mrf.mxu0
    %v4677 = vadd.f32 0.0, %v4676
    %v4678 = vpop.f32.mrf.mxu0
    %4679 = vmatprep.mubr.bf16.mxu0 0
    %4680 = vmatmul.mubr.bf16.gmra.mxu0 %v4607
    %v4681 = vpop.f32.mrf.mxu0
    %v4682 = vadd.f32 0.0, %v4681
    %v4683 = vpop.f32.mrf.mxu0
    %v4684 = vpop.f32.mrf.mxu0
    %v4685 = vadd.f32 0.0, %v4684
    %v4686 = vpop.f32.mrf.mxu0
    %4687 = vmatprep.mubr.bf16.mxu0 0
    %4688 = vmatmul.mubr.bf16.gmra.mxu0 %v4610
    %v4689 = vpop.f32.mrf.mxu0
    %v4690 = vadd.f32 0.0, %v4689
    %v4691 = vpop.f32.mrf.mxu0
    %v4692 = vpop.f32.mrf.mxu0
    %v4693 = vadd.f32 0.0, %v4692
    %v4694 = vpop.f32.mrf.mxu0
    %4695 = vmatprep.mubr.bf16.mxu0 0
    %4696 = vmatmul.mubr.bf16.gmra.mxu0 %v4613
    %v4697 = vpop.f32.mrf.mxu0
    %v4698 = vadd.f32 0.0, %v4697
    %v4699 = vpop.f32.mrf.mxu0
    %v4700 = vpop.f32.mrf.mxu0
    %v4701 = vadd.f32 0.0, %v4700
    %v4702 = vpop.f32.mrf.mxu0
    %4703 = vmatprep.mubr.bf16.mxu0 0
    %4704 = vmatmul.mubr.bf16.gmra.mxu0 %v4616
    %v4705 = vpop.f32.mrf.mxu0
    %v4706 = vadd.f32 0.0, %v4705
    %v4707 = vpop.f32.mrf.mxu0
    %v4708 = vpop.f32.mrf.mxu0
    %v4709 = vadd.f32 0.0, %v4708
    %v4710 = vpop.f32.mrf.mxu0
    %4711 = vmatprep.mubr.bf16.mxu0 0
    %4712 = vmatmul.mubr.bf16.gmra.mxu0 %v4619
    %v4713 = vpop.f32.mrf.mxu0
    %v4714 = vadd.f32 0.0, %v4713
    %v4715 = vpop.f32.mrf.mxu0
    %v4716 = vpop.f32.mrf.mxu0
    %v4717 = vadd.f32 0.0, %v4716
    %v4718 = vpop.f32.mrf.mxu0
    %4719 = vmatprep.mubr.bf16.mxu0 0
    %4720 = vmatmul.mubr.bf16.gmra.mxu0 %v4622
    %v4721 = vpop.f32.mrf.mxu0
    %v4722 = vadd.f32 0.0, %v4721
    %v4723 = vpop.f32.mrf.mxu0
    %v4724 = vpop.f32.mrf.mxu0
    %v4725 = vadd.f32 0.0, %v4724
    %v4726 = vpop.f32.mrf.mxu0
    %4727 = vmatprep.mubr.bf16.mxu0 0
    %4728 = vmatmul.mubr.bf16.gmra.mxu0 %v4625
    %v4729 = vpop.f32.mrf.mxu0
    %v4730 = vadd.f32 0.0, %v4729
    %v4731 = vpop.f32.mrf.mxu0
    %v4732 = vpop.f32.mrf.mxu0
    %v4733 = vadd.f32 0.0, %v4732
    %v4734 = vpop.f32.mrf.mxu0
    %4735 = vmatprep.mubr.bf16.mxu0 0
    %4736 = vmatmul.mubr.bf16.gmra.mxu0 %v4628
    %v4737 = vpop.f32.mrf.mxu0
    %v4738 = vadd.f32 0.0, %v4737
    %v4739 = vpop.f32.mrf.mxu0
    %v4740 = vpop.f32.mrf.mxu0
    %v4741 = vadd.f32 0.0, %v4740
    %v4742 = vpop.f32.mrf.mxu0
    %4743 = vmatprep.mubr.bf16.mxu0 0
    %4744 = vmatmul.mubr.bf16.gmra.mxu0 %v4631
    %v4745 = vpop.f32.mrf.mxu0
    %v4746 = vadd.f32 0.0, %v4745
    %v4747 = vpop.f32.mrf.mxu0
    %v4748 = vpop.f32.mrf.mxu0
    %v4749 = vadd.f32 0.0, %v4748
    %v4750 = vpop.f32.mrf.mxu0
    %4751 = vmatprep.mubr.bf16.mxu0 0
    %4752 = vmatmul.mubr.bf16.gmra.mxu0 %v4634
    %v4753 = vpop.f32.mrf.mxu0
    %v4754 = vadd.f32 0.0, %v4753
    %v4755 = vpop.f32.mrf.mxu0
    %v4756 = vpop.f32.mrf.mxu0
    %v4757 = vadd.f32 0.0, %v4756
    %v4758 = vpop.f32.mrf.mxu0
    %4759 = vmatprep.mubr.bf16.mxu0 0
    %4760 = vmatmul.mubr.bf16.gmra.mxu0 %v4637
    %v4761 = vpop.f32.mrf.mxu0
    %v4762 = vadd.f32 0.0, %v4761
    %v4763 = vpop.f32.mrf.mxu0
    %v4764 = vpop.f32.mrf.mxu0
    %v4765 = vadd.f32 0.0, %v4764
    %v4766 = vpop.f32.mrf.mxu0
    %4767 = vdwg.mxu0
    %4768 = vst.msk [vmem:[#allocation3 + $0xc0] sm:$0xff] %vm28, %v4674
    %4769 = vst.msk [vmem:[#allocation3 + $0xc8] sm:$0xff] %vm28, %v4677
    %4770 = vst.msk [vmem:[#allocation3 + $0xd0] sm:$0xff] %vm28, %v4682
    %4771 = vst.msk [vmem:[#allocation3 + $0xd8] sm:$0xff] %vm28, %v4685
    %4772 = vst.msk [vmem:[#allocation3 + $0xe0] sm:$0xff] %vm28, %v4690
    %4773 = vst.msk [vmem:[#allocation3 + $0xe8] sm:$0xff] %vm28, %v4693
    %4774 = vst.msk [vmem:[#allocation3 + $0xf0] sm:$0xff] %vm28, %v4698
    %4775 = vst.msk [vmem:[#allocation3 + $0xf8] sm:$0xff] %vm28, %v4701
    %4776 = vst.msk [vmem:[#allocation3 + $0x100] sm:$0xff] %vm28, %v4706
    %4777 = vst.msk [vmem:[#allocation3 + $0x108] sm:$0xff] %vm28, %v4709
    %4778 = vst.msk [vmem:[#allocation3 + $0x110] sm:$0xff] %vm28, %v4714
    %4779 = vst.msk [vmem:[#allocation3 + $0x118] sm:$0xff] %vm28, %v4717
    %4780 = vst.msk [vmem:[#allocation3 + $0x120] sm:$0xff] %vm28, %v4722
    %4781 = vst.msk [vmem:[#allocation3 + $0x128] sm:$0xff] %vm28, %v4725
    %4782 = vst.msk [vmem:[#allocation3 + $0x130] sm:$0xff] %vm28, %v4730
    %4783 = vst.msk [vmem:[#allocation3 + $0x138] sm:$0xff] %vm28, %v4733
    %4784 = vst.msk [vmem:[#allocation3 + $0x140] sm:$0xff] %vm28, %v4738
    %4785 = vst.msk [vmem:[#allocation3 + $0x148] sm:$0xff] %vm28, %v4741
    %4786 = vst.msk [vmem:[#allocation3 + $0x150] sm:$0xff] %vm28, %v4746
    %4787 = vst.msk [vmem:[#allocation3 + $0x158] sm:$0xff] %vm28, %v4749
    %4788 = vst.msk [vmem:[#allocation3 + $0x160] sm:$0xff] %vm28, %v4754
    %4789 = vst.msk [vmem:[#allocation3 + $0x168] sm:$0xff] %vm28, %v4757
    %4790 = vst.msk [vmem:[#allocation3 + $0x170] sm:$0xff] %vm28, %v4762
    %4791 = vst.msk [vmem:[#allocation3 + $0x178] sm:$0xff] %vm28, %v4765
    %v4792 = vadd.s32 %v3931, 192
    %v4793 = vadd.s32 %v3932, 192
    %v4794 = vadd.s32 %v3933, 192
    %v4795 = vadd.s32 %v3934, 192
    %v4796 = vadd.s32 %v3935, 192
    %v4797 = vadd.s32 %v3936, 192
    %v4798 = vadd.s32 %v3937, 192
    %v4799 = vadd.s32 %v3938, 192
    %v4800 = vadd.s32 %v3939, 192
    %v4801 = vadd.s32 %v3940, 192
    %v4802 = vadd.s32 %v3941, 192
    %v4803 = vadd.s32 %v3942, 192
    %v4804 = vadd.s32 %v3943, 192
    %v4805 = vadd.s32 %v3944, 192
    %v4806 = vadd.s32 %v3945, 192
    %v4807 = vadd.s32 %v3946, 192
    %v4808 = vadd.s32 %v3947, 192
    %v4809 = vadd.s32 %v3948, 192
    %v4810 = vadd.s32 %v3949, 192
    %v4811 = vadd.s32 %v3950, 192
    %v4812 = vadd.s32 %v3951, 192
    %v4813 = vadd.s32 %v3952, 192
    %v4814 = vadd.s32 %v3953, 192
    %v4815 = vadd.s32 %v3954, 192
    %vm4816 = vcmp.lt.s32.totalorder %v4792, 0
    %v4817 = vsub.s32 0, %v4792
    %v4818 = vsel %vm4816, %v4817, %v4792
    %v4819 = vmul.u32.u64.compose %v4818, 3817748708
    %v4820 = vextract.low.u32 %v4819
    %v4821 = vextract.high.u32 %v4819
    %v4822 = vshrl.u32 %v4821, 4
    %v4823 = vmul.u32 %v4822, 18
    %v4824 = vsub.s32 %v4818, %v4823
    %v4825 = vsub.s32 0, %v4824
    %v4826 = vsel %vm4816, %v4825, %v4824
    %vm4827 = vcmp.lt.s32.totalorder %v4793, 0
    %v4828 = vsub.s32 0, %v4793
    %v4829 = vsel %vm4827, %v4828, %v4793
    %v4830 = vmul.u32.u64.compose %v4829, 3817748708
    %v4831 = vextract.low.u32 %v4830
    %v4832 = vextract.high.u32 %v4830
    %v4833 = vshrl.u32 %v4832, 4
    %v4834 = vmul.u32 %v4833, 18
    %v4835 = vsub.s32 %v4829, %v4834
    %v4836 = vsub.s32 0, %v4835
    %v4837 = vsel %vm4827, %v4836, %v4835
    %vm4838 = vcmp.lt.s32.totalorder %v4794, 0
    %v4839 = vsub.s32 0, %v4794
    %v4840 = vsel %vm4838, %v4839, %v4794
    %v4841 = vmul.u32.u64.compose %v4840, 3817748708
    %v4842 = vextract.low.u32 %v4841
    %v4843 = vextract.high.u32 %v4841
    %v4844 = vshrl.u32 %v4843, 4
    %v4845 = vmul.u32 %v4844, 18
    %v4846 = vsub.s32 %v4840, %v4845
    %v4847 = vsub.s32 0, %v4846
    %v4848 = vsel %vm4838, %v4847, %v4846
    %vm4849 = vcmp.lt.s32.totalorder %v4795, 0
    %v4850 = vsub.s32 0, %v4795
    %v4851 = vsel %vm4849, %v4850, %v4795
    %v4852 = vmul.u32.u64.compose %v4851, 3817748708
    %v4853 = vextract.low.u32 %v4852
    %v4854 = vextract.high.u32 %v4852
    %v4855 = vshrl.u32 %v4854, 4
    %v4856 = vmul.u32 %v4855, 18
    %v4857 = vsub.s32 %v4851, %v4856
    %v4858 = vsub.s32 0, %v4857
    %v4859 = vsel %vm4849, %v4858, %v4857
    %vm4860 = vcmp.lt.s32.totalorder %v4796, 0
    %v4861 = vsub.s32 0, %v4796
    %v4862 = vsel %vm4860, %v4861, %v4796
    %v4863 = vmul.u32.u64.compose %v4862, 3817748708
    %v4864 = vextract.low.u32 %v4863
    %v4865 = vextract.high.u32 %v4863
    %v4866 = vshrl.u32 %v4865, 4
    %v4867 = vmul.u32 %v4866, 18
    %v4868 = vsub.s32 %v4862, %v4867
    %v4869 = vsub.s32 0, %v4868
    %v4870 = vsel %vm4860, %v4869, %v4868
    %vm4871 = vcmp.lt.s32.totalorder %v4797, 0
    %v4872 = vsub.s32 0, %v4797
    %v4873 = vsel %vm4871, %v4872, %v4797
    %v4874 = vmul.u32.u64.compose %v4873, 3817748708
    %v4875 = vextract.low.u32 %v4874
    %v4876 = vextract.high.u32 %v4874
    %v4877 = vshrl.u32 %v4876, 4
    %v4878 = vmul.u32 %v4877, 18
    %v4879 = vsub.s32 %v4873, %v4878
    %v4880 = vsub.s32 0, %v4879
    %v4881 = vsel %vm4871, %v4880, %v4879
    %vm4882 = vcmp.lt.s32.totalorder %v4798, 0
    %v4883 = vsub.s32 0, %v4798
    %v4884 = vsel %vm4882, %v4883, %v4798
    %v4885 = vmul.u32.u64.compose %v4884, 3817748708
    %v4886 = vextract.low.u32 %v4885
    %v4887 = vextract.high.u32 %v4885
    %v4888 = vshrl.u32 %v4887, 4
    %v4889 = vmul.u32 %v4888, 18
    %v4890 = vsub.s32 %v4884, %v4889
    %v4891 = vsub.s32 0, %v4890
    %v4892 = vsel %vm4882, %v4891, %v4890
    %vm4893 = vcmp.lt.s32.totalorder %v4799, 0
    %v4894 = vsub.s32 0, %v4799
    %v4895 = vsel %vm4893, %v4894, %v4799
    %v4896 = vmul.u32.u64.compose %v4895, 3817748708
    %v4897 = vextract.low.u32 %v4896
    %v4898 = vextract.high.u32 %v4896
    %v4899 = vshrl.u32 %v4898, 4
    %v4900 = vmul.u32 %v4899, 18
    %v4901 = vsub.s32 %v4895, %v4900
    %v4902 = vsub.s32 0, %v4901
    %v4903 = vsel %vm4893, %v4902, %v4901
    %vm4904 = vcmp.lt.s32.totalorder %v4800, 0
    %v4905 = vsub.s32 0, %v4800
    %v4906 = vsel %vm4904, %v4905, %v4800
    %v4907 = vmul.u32.u64.compose %v4906, 3817748708
    %v4908 = vextract.low.u32 %v4907
    %v4909 = vextract.high.u32 %v4907
    %v4910 = vshrl.u32 %v4909, 4
    %v4911 = vmul.u32 %v4910, 18
    %v4912 = vsub.s32 %v4906, %v4911
    %v4913 = vsub.s32 0, %v4912
    %v4914 = vsel %vm4904, %v4913, %v4912
    %vm4915 = vcmp.lt.s32.totalorder %v4801, 0
    %v4916 = vsub.s32 0, %v4801
    %v4917 = vsel %vm4915, %v4916, %v4801
    %v4918 = vmul.u32.u64.compose %v4917, 3817748708
    %v4919 = vextract.low.u32 %v4918
    %v4920 = vextract.high.u32 %v4918
    %v4921 = vshrl.u32 %v4920, 4
    %v4922 = vmul.u32 %v4921, 18
    %v4923 = vsub.s32 %v4917, %v4922
    %v4924 = vsub.s32 0, %v4923
    %v4925 = vsel %vm4915, %v4924, %v4923
    %vm4926 = vcmp.lt.s32.totalorder %v4802, 0
    %v4927 = vsub.s32 0, %v4802
    %v4928 = vsel %vm4926, %v4927, %v4802
    %v4929 = vmul.u32.u64.compose %v4928, 3817748708
    %v4930 = vextract.low.u32 %v4929
    %v4931 = vextract.high.u32 %v4929
    %v4932 = vshrl.u32 %v4931, 4
    %v4933 = vmul.u32 %v4932, 18
    %v4934 = vsub.s32 %v4928, %v4933
    %v4935 = vsub.s32 0, %v4934
    %v4936 = vsel %vm4926, %v4935, %v4934
    %vm4937 = vcmp.lt.s32.totalorder %v4803, 0
    %v4938 = vsub.s32 0, %v4803
    %v4939 = vsel %vm4937, %v4938, %v4803
    %v4940 = vmul.u32.u64.compose %v4939, 3817748708
    %v4941 = vextract.low.u32 %v4940
    %v4942 = vextract.high.u32 %v4940
    %v4943 = vshrl.u32 %v4942, 4
    %v4944 = vmul.u32 %v4943, 18
    %v4945 = vsub.s32 %v4939, %v4944
    %v4946 = vsub.s32 0, %v4945
    %v4947 = vsel %vm4937, %v4946, %v4945
    %vm4948 = vcmp.lt.s32.totalorder %v4804, 0
    %v4949 = vsub.s32 0, %v4804
    %v4950 = vsel %vm4948, %v4949, %v4804
    %v4951 = vmul.u32.u64.compose %v4950, 3817748708
    %v4952 = vextract.low.u32 %v4951
    %v4953 = vextract.high.u32 %v4951
    %v4954 = vshrl.u32 %v4953, 4
    %v4955 = vmul.u32 %v4954, 18
    %v4956 = vsub.s32 %v4950, %v4955
    %v4957 = vsub.s32 0, %v4956
    %v4958 = vsel %vm4948, %v4957, %v4956
    %vm4959 = vcmp.lt.s32.totalorder %v4805, 0
    %v4960 = vsub.s32 0, %v4805
    %v4961 = vsel %vm4959, %v4960, %v4805
    %v4962 = vmul.u32.u64.compose %v4961, 3817748708
    %v4963 = vextract.low.u32 %v4962
    %v4964 = vextract.high.u32 %v4962
    %v4965 = vshrl.u32 %v4964, 4
    %v4966 = vmul.u32 %v4965, 18
    %v4967 = vsub.s32 %v4961, %v4966
    %v4968 = vsub.s32 0, %v4967
    %v4969 = vsel %vm4959, %v4968, %v4967
    %vm4970 = vcmp.lt.s32.totalorder %v4806, 0
    %v4971 = vsub.s32 0, %v4806
    %v4972 = vsel %vm4970, %v4971, %v4806
    %v4973 = vmul.u32.u64.compose %v4972, 3817748708
    %v4974 = vextract.low.u32 %v4973
    %v4975 = vextract.high.u32 %v4973
    %v4976 = vshrl.u32 %v4975, 4
    %v4977 = vmul.u32 %v4976, 18
    %v4978 = vsub.s32 %v4972, %v4977
    %v4979 = vsub.s32 0, %v4978
    %v4980 = vsel %vm4970, %v4979, %v4978
    %vm4981 = vcmp.lt.s32.totalorder %v4807, 0
    %v4982 = vsub.s32 0, %v4807
    %v4983 = vsel %vm4981, %v4982, %v4807
    %v4984 = vmul.u32.u64.compose %v4983, 3817748708
    %v4985 = vextract.low.u32 %v4984
    %v4986 = vextract.high.u32 %v4984
    %v4987 = vshrl.u32 %v4986, 4
    %v4988 = vmul.u32 %v4987, 18
    %v4989 = vsub.s32 %v4983, %v4988
    %v4990 = vsub.s32 0, %v4989
    %v4991 = vsel %vm4981, %v4990, %v4989
    %vm4992 = vcmp.lt.s32.totalorder %v4808, 0
    %v4993 = vsub.s32 0, %v4808
    %v4994 = vsel %vm4992, %v4993, %v4808
    %v4995 = vmul.u32.u64.compose %v4994, 3817748708
    %v4996 = vextract.low.u32 %v4995
    %v4997 = vextract.high.u32 %v4995
    %v4998 = vshrl.u32 %v4997, 4
    %v4999 = vmul.u32 %v4998, 18
    %v5000 = vsub.s32 %v4994, %v4999
    %v5001 = vsub.s32 0, %v5000
    %v5002 = vsel %vm4992, %v5001, %v5000
    %vm5003 = vcmp.lt.s32.totalorder %v4809, 0
    %v5004 = vsub.s32 0, %v4809
    %v5005 = vsel %vm5003, %v5004, %v4809
    %v5006 = vmul.u32.u64.compose %v5005, 3817748708
    %v5007 = vextract.low.u32 %v5006
    %v5008 = vextract.high.u32 %v5006
    %v5009 = vshrl.u32 %v5008, 4
    %v5010 = vmul.u32 %v5009, 18
    %v5011 = vsub.s32 %v5005, %v5010
    %v5012 = vsub.s32 0, %v5011
    %v5013 = vsel %vm5003, %v5012, %v5011
    %vm5014 = vcmp.lt.s32.totalorder %v4810, 0
    %v5015 = vsub.s32 0, %v4810
    %v5016 = vsel %vm5014, %v5015, %v4810
    %v5017 = vmul.u32.u64.compose %v5016, 3817748708
    %v5018 = vextract.low.u32 %v5017
    %v5019 = vextract.high.u32 %v5017
    %v5020 = vshrl.u32 %v5019, 4
    %v5021 = vmul.u32 %v5020, 18
    %v5022 = vsub.s32 %v5016, %v5021
    %v5023 = vsub.s32 0, %v5022
    %v5024 = vsel %vm5014, %v5023, %v5022
    %vm5025 = vcmp.lt.s32.totalorder %v4811, 0
    %v5026 = vsub.s32 0, %v4811
    %v5027 = vsel %vm5025, %v5026, %v4811
    %v5028 = vmul.u32.u64.compose %v5027, 3817748708
    %v5029 = vextract.low.u32 %v5028
    %v5030 = vextract.high.u32 %v5028
    %v5031 = vshrl.u32 %v5030, 4
    %v5032 = vmul.u32 %v5031, 18
    %v5033 = vsub.s32 %v5027, %v5032
    %v5034 = vsub.s32 0, %v5033
    %v5035 = vsel %vm5025, %v5034, %v5033
    %vm5036 = vcmp.lt.s32.totalorder %v4812, 0
    %v5037 = vsub.s32 0, %v4812
    %v5038 = vsel %vm5036, %v5037, %v4812
    %v5039 = vmul.u32.u64.compose %v5038, 3817748708
    %v5040 = vextract.low.u32 %v5039
    %v5041 = vextract.high.u32 %v5039
    %v5042 = vshrl.u32 %v5041, 4
    %v5043 = vmul.u32 %v5042, 18
    %v5044 = vsub.s32 %v5038, %v5043
    %v5045 = vsub.s32 0, %v5044
    %v5046 = vsel %vm5036, %v5045, %v5044
    %vm5047 = vcmp.lt.s32.totalorder %v4813, 0
    %v5048 = vsub.s32 0, %v4813
    %v5049 = vsel %vm5047, %v5048, %v4813
    %v5050 = vmul.u32.u64.compose %v5049, 3817748708
    %v5051 = vextract.low.u32 %v5050
    %v5052 = vextract.high.u32 %v5050
    %v5053 = vshrl.u32 %v5052, 4
    %v5054 = vmul.u32 %v5053, 18
    %v5055 = vsub.s32 %v5049, %v5054
    %v5056 = vsub.s32 0, %v5055
    %v5057 = vsel %vm5047, %v5056, %v5055
    %vm5058 = vcmp.lt.s32.totalorder %v4814, 0
    %v5059 = vsub.s32 0, %v4814
    %v5060 = vsel %vm5058, %v5059, %v4814
    %v5061 = vmul.u32.u64.compose %v5060, 3817748708
    %v5062 = vextract.low.u32 %v5061
    %v5063 = vextract.high.u32 %v5061
    %v5064 = vshrl.u32 %v5063, 4
    %v5065 = vmul.u32 %v5064, 18
    %v5066 = vsub.s32 %v5060, %v5065
    %v5067 = vsub.s32 0, %v5066
    %v5068 = vsel %vm5058, %v5067, %v5066
    %vm5069 = vcmp.lt.s32.totalorder %v4815, 0
    %v5070 = vsub.s32 0, %v4815
    %v5071 = vsel %vm5069, %v5070, %v4815
    %v5072 = vmul.u32.u64.compose %v5071, 3817748708
    %v5073 = vextract.low.u32 %v5072
    %v5074 = vextract.high.u32 %v5072
    %v5075 = vshrl.u32 %v5074, 4
    %v5076 = vmul.u32 %v5075, 18
    %v5077 = vsub.s32 %v5071, %v5076
    %v5078 = vsub.s32 0, %v5077
    %v5079 = vsel %vm5069, %v5078, %v5077
    %vm5080 = vcmp.ne.s32.totalorder %v4826, 0
    %vm5081 = vcmp.ne.s32.totalorder %v4837, 0
    %vm5082 = vcmp.ne.s32.totalorder %v4848, 0
    %vm5083 = vcmp.ne.s32.totalorder %v4859, 0
    %vm5084 = vcmp.ne.s32.totalorder %v4870, 0
    %vm5085 = vcmp.ne.s32.totalorder %v4881, 0
    %vm5086 = vcmp.ne.s32.totalorder %v4892, 0
    %vm5087 = vcmp.ne.s32.totalorder %v4903, 0
    %vm5088 = vcmp.ne.s32.totalorder %v4914, 0
    %vm5089 = vcmp.ne.s32.totalorder %v4925, 0
    %vm5090 = vcmp.ne.s32.totalorder %v4936, 0
    %vm5091 = vcmp.ne.s32.totalorder %v4947, 0
    %vm5092 = vcmp.ne.s32.totalorder %v4958, 0
    %vm5093 = vcmp.ne.s32.totalorder %v4969, 0
    %vm5094 = vcmp.ne.s32.totalorder %v4980, 0
    %vm5095 = vcmp.ne.s32.totalorder %v4991, 0
    %vm5096 = vcmp.ne.s32.totalorder %v5002, 0
    %vm5097 = vcmp.ne.s32.totalorder %v5013, 0
    %vm5098 = vcmp.ne.s32.totalorder %v5024, 0
    %vm5099 = vcmp.ne.s32.totalorder %v5035, 0
    %vm5100 = vcmp.ne.s32.totalorder %v5046, 0
    %vm5101 = vcmp.ne.s32.totalorder %v5057, 0
    %vm5102 = vcmp.ne.s32.totalorder %v5068, 0
    %vm5103 = vcmp.ne.s32.totalorder %v5079, 0
    %vm5104 = vcmp.lt.s32.totalorder %v4826, 0
    %vm5105 = vcmp.lt.s32.totalorder %v4837, 0
    %vm5106 = vcmp.lt.s32.totalorder %v4848, 0
    %vm5107 = vcmp.lt.s32.totalorder %v4859, 0
    %vm5108 = vcmp.lt.s32.totalorder %v4870, 0
    %vm5109 = vcmp.lt.s32.totalorder %v4881, 0
    %vm5110 = vcmp.lt.s32.totalorder %v4892, 0
    %vm5111 = vcmp.lt.s32.totalorder %v4903, 0
    %vm5112 = vcmp.lt.s32.totalorder %v4914, 0
    %vm5113 = vcmp.lt.s32.totalorder %v4925, 0
    %vm5114 = vcmp.lt.s32.totalorder %v4936, 0
    %vm5115 = vcmp.lt.s32.totalorder %v4947, 0
    %vm5116 = vcmp.lt.s32.totalorder %v4958, 0
    %vm5117 = vcmp.lt.s32.totalorder %v4969, 0
    %vm5118 = vcmp.lt.s32.totalorder %v4980, 0
    %vm5119 = vcmp.lt.s32.totalorder %v4991, 0
    %vm5120 = vcmp.lt.s32.totalorder %v5002, 0
    %vm5121 = vcmp.lt.s32.totalorder %v5013, 0
    %vm5122 = vcmp.lt.s32.totalorder %v5024, 0
    %vm5123 = vcmp.lt.s32.totalorder %v5035, 0
    %vm5124 = vcmp.lt.s32.totalorder %v5046, 0
    %vm5125 = vcmp.lt.s32.totalorder %v5057, 0
    %vm5126 = vcmp.lt.s32.totalorder %v5068, 0
    %vm5127 = vcmp.lt.s32.totalorder %v5079, 0
    %vm5128 = vmand %vm5104, %vm5080
    %vm5129 = vmand %vm5105, %vm5081
    %vm5130 = vmand %vm5106, %vm5082
    %vm5131 = vmand %vm5107, %vm5083
    %vm5132 = vmand %vm5108, %vm5084
    %vm5133 = vmand %vm5109, %vm5085
    %vm5134 = vmand %vm5110, %vm5086
    %vm5135 = vmand %vm5111, %vm5087
    %vm5136 = vmand %vm5112, %vm5088
    %vm5137 = vmand %vm5113, %vm5089
    %vm5138 = vmand %vm5114, %vm5090
    %vm5139 = vmand %vm5115, %vm5091
    %vm5140 = vmand %vm5116, %vm5092
    %vm5141 = vmand %vm5117, %vm5093
    %vm5142 = vmand %vm5118, %vm5094
    %vm5143 = vmand %vm5119, %vm5095
    %vm5144 = vmand %vm5120, %vm5096
    %vm5145 = vmand %vm5121, %vm5097
    %vm5146 = vmand %vm5122, %vm5098
    %vm5147 = vmand %vm5123, %vm5099
    %vm5148 = vmand %vm5124, %vm5100
    %vm5149 = vmand %vm5125, %vm5101
    %vm5150 = vmand %vm5126, %vm5102
    %vm5151 = vmand %vm5127, %vm5103
    %v5152 = vadd.s32 %v4826, 18
    %v5153 = vadd.s32 %v4837, 18
    %v5154 = vadd.s32 %v4848, 18
    %v5155 = vadd.s32 %v4859, 18
    %v5156 = vadd.s32 %v4870, 18
    %v5157 = vadd.s32 %v4881, 18
    %v5158 = vadd.s32 %v4892, 18
    %v5159 = vadd.s32 %v4903, 18
    %v5160 = vadd.s32 %v4914, 18
    %v5161 = vadd.s32 %v4925, 18
    %v5162 = vadd.s32 %v4936, 18
    %v5163 = vadd.s32 %v4947, 18
    %v5164 = vadd.s32 %v4958, 18
    %v5165 = vadd.s32 %v4969, 18
    %v5166 = vadd.s32 %v4980, 18
    %v5167 = vadd.s32 %v4991, 18
    %v5168 = vadd.s32 %v5002, 18
    %v5169 = vadd.s32 %v5013, 18
    %v5170 = vadd.s32 %v5024, 18
    %v5171 = vadd.s32 %v5035, 18
    %v5172 = vadd.s32 %v5046, 18
    %v5173 = vadd.s32 %v5057, 18
    %v5174 = vadd.s32 %v5068, 18
    %v5175 = vadd.s32 %v5079, 18
    %v5176 = vsel %vm5128, %v5152, %v4826
    %v5177 = vsel %vm5129, %v5153, %v4837
    %v5178 = vsel %vm5130, %v5154, %v4848
    %v5179 = vsel %vm5131, %v5155, %v4859
    %v5180 = vsel %vm5132, %v5156, %v4870
    %v5181 = vsel %vm5133, %v5157, %v4881
    %v5182 = vsel %vm5134, %v5158, %v4892
    %v5183 = vsel %vm5135, %v5159, %v4903
    %v5184 = vsel %vm5136, %v5160, %v4914
    %v5185 = vsel %vm5137, %v5161, %v4925
    %v5186 = vsel %vm5138, %v5162, %v4936
    %v5187 = vsel %vm5139, %v5163, %v4947
    %v5188 = vsel %vm5140, %v5164, %v4958
    %v5189 = vsel %vm5141, %v5165, %v4969
    %v5190 = vsel %vm5142, %v5166, %v4980
    %v5191 = vsel %vm5143, %v5167, %v4991
    %v5192 = vsel %vm5144, %v5168, %v5002
    %v5193 = vsel %vm5145, %v5169, %v5013
    %v5194 = vsel %vm5146, %v5170, %v5024
    %v5195 = vsel %vm5147, %v5171, %v5035
    %v5196 = vsel %vm5148, %v5172, %v5046
    %v5197 = vsel %vm5149, %v5173, %v5057
    %v5198 = vsel %vm5150, %v5174, %v5068
    %v5199 = vsel %vm5151, %v5175, %v5079
    %vm5200 = vcmp.lt.s32.totalorder %v5176, 16
    %vm5201 = vcmp.lt.s32.totalorder %v5177, 16
    %vm5202 = vcmp.lt.s32.totalorder %v5178, 16
    %vm5203 = vcmp.lt.s32.totalorder %v5179, 16
    %vm5204 = vcmp.lt.s32.totalorder %v5180, 16
    %vm5205 = vcmp.lt.s32.totalorder %v5181, 16
    %vm5206 = vcmp.lt.s32.totalorder %v5182, 16
    %vm5207 = vcmp.lt.s32.totalorder %v5183, 16
    %vm5208 = vcmp.lt.s32.totalorder %v5184, 16
    %vm5209 = vcmp.lt.s32.totalorder %v5185, 16
    %vm5210 = vcmp.lt.s32.totalorder %v5186, 16
    %vm5211 = vcmp.lt.s32.totalorder %v5187, 16
    %vm5212 = vcmp.lt.s32.totalorder %v5188, 16
    %vm5213 = vcmp.lt.s32.totalorder %v5189, 16
    %vm5214 = vcmp.lt.s32.totalorder %v5190, 16
    %vm5215 = vcmp.lt.s32.totalorder %v5191, 16
    %vm5216 = vcmp.lt.s32.totalorder %v5192, 16
    %vm5217 = vcmp.lt.s32.totalorder %v5193, 16
    %vm5218 = vcmp.lt.s32.totalorder %v5194, 16
    %vm5219 = vcmp.lt.s32.totalorder %v5195, 16
    %vm5220 = vcmp.lt.s32.totalorder %v5196, 16
    %vm5221 = vcmp.lt.s32.totalorder %v5197, 16
    %vm5222 = vcmp.lt.s32.totalorder %v5198, 16
    %vm5223 = vcmp.lt.s32.totalorder %v5199, 16
    %v5224 = vsel %vm5200, 1, 0
    %v5225 = vsel %vm5201, 1, 0
    %v5226 = vsel %vm5202, 1, 0
    %v5227 = vsel %vm5203, 1, 0
    %v5228 = vsel %vm5204, 1, 0
    %v5229 = vsel %vm5205, 1, 0
    %v5230 = vsel %vm5206, 1, 0
    %v5231 = vsel %vm5207, 1, 0
    %v5232 = vsel %vm5208, 1, 0
    %v5233 = vsel %vm5209, 1, 0
    %v5234 = vsel %vm5210, 1, 0
    %v5235 = vsel %vm5211, 1, 0
    %v5236 = vsel %vm5212, 1, 0
    %v5237 = vsel %vm5213, 1, 0
    %v5238 = vsel %vm5214, 1, 0
    %v5239 = vsel %vm5215, 1, 0
    %v5240 = vsel %vm5216, 1, 0
    %v5241 = vsel %vm5217, 1, 0
    %v5242 = vsel %vm5218, 1, 0
    %v5243 = vsel %vm5219, 1, 0
    %v5244 = vsel %vm5220, 1, 0
    %v5245 = vsel %vm5221, 1, 0
    %v5246 = vsel %vm5222, 1, 0
    %v5247 = vsel %vm5223, 1, 0
    %vm5248 = vcmp.eq.s32.totalorder %v5224, 1
    %vm5249 = vcmp.eq.s32.totalorder %v5225, 1
    %vm5250 = vcmp.eq.s32.totalorder %v5226, 1
    %vm5251 = vcmp.eq.s32.totalorder %v5227, 1
    %vm5252 = vcmp.eq.s32.totalorder %v5228, 1
    %vm5253 = vcmp.eq.s32.totalorder %v5229, 1
    %vm5254 = vcmp.eq.s32.totalorder %v5230, 1
    %vm5255 = vcmp.eq.s32.totalorder %v5231, 1
    %vm5256 = vcmp.eq.s32.totalorder %v5232, 1
    %vm5257 = vcmp.eq.s32.totalorder %v5233, 1
    %vm5258 = vcmp.eq.s32.totalorder %v5234, 1
    %vm5259 = vcmp.eq.s32.totalorder %v5235, 1
    %vm5260 = vcmp.eq.s32.totalorder %v5236, 1
    %vm5261 = vcmp.eq.s32.totalorder %v5237, 1
    %vm5262 = vcmp.eq.s32.totalorder %v5238, 1
    %vm5263 = vcmp.eq.s32.totalorder %v5239, 1
    %vm5264 = vcmp.eq.s32.totalorder %v5240, 1
    %vm5265 = vcmp.eq.s32.totalorder %v5241, 1
    %vm5266 = vcmp.eq.s32.totalorder %v5242, 1
    %vm5267 = vcmp.eq.s32.totalorder %v5243, 1
    %vm5268 = vcmp.eq.s32.totalorder %v5244, 1
    %vm5269 = vcmp.eq.s32.totalorder %v5245, 1
    %vm5270 = vcmp.eq.s32.totalorder %v5246, 1
    %vm5271 = vcmp.eq.s32.totalorder %v5247, 1
    %v5272 = vsel %vm5248, %v4674, 0.0
    %v5273 = vsel %vm5249, %v4677, 0.0
    %v5274 = vsel %vm5250, %v4682, 0.0
    %v5275 = vsel %vm5251, %v4685, 0.0
    %v5276 = vsel %vm5252, %v4690, 0.0
    %v5277 = vsel %vm5253, %v4693, 0.0
    %v5278 = vsel %vm5254, %v4698, 0.0
    %v5279 = vsel %vm5255, %v4701, 0.0
    %v5280 = vsel %vm5256, %v4706, 0.0
    %v5281 = vsel %vm5257, %v4709, 0.0
    %v5282 = vsel %vm5258, %v4714, 0.0
    %v5283 = vsel %vm5259, %v4717, 0.0
    %v5284 = vsel %vm5260, %v4722, 0.0
    %v5285 = vsel %vm5261, %v4725, 0.0
    %v5286 = vsel %vm5262, %v4730, 0.0
    %v5287 = vsel %vm5263, %v4733, 0.0
    %v5288 = vsel %vm5264, %v4738, 0.0
    %v5289 = vsel %vm5265, %v4741, 0.0
    %v5290 = vsel %vm5266, %v4746, 0.0
    %v5291 = vsel %vm5267, %v4749, 0.0
    %v5292 = vsel %vm5268, %v4754, 0.0
    %v5293 = vsel %vm5269, %v4757, 0.0
    %v5294 = vsel %vm5270, %v4762, 0.0
    %v5295 = vsel %vm5271, %v4765, 0.0
    %v5296 = vsel %vm28, %v5272, 0.0
    %v5297 = vsel %vm28, %v5273, 0.0
    %v5298 = vadd.f32 %v5296, %v5297
    %v5299 = vsel %vm28, %v5274, 0.0
    %v5300 = vadd.f32 %v5298, %v5299
    %v5301 = vsel %vm28, %v5275, 0.0
    %v5302 = vadd.f32 %v5300, %v5301
    %v5303 = vsel %vm28, %v5276, 0.0
    %v5304 = vadd.f32 %v5302, %v5303
    %v5305 = vsel %vm28, %v5277, 0.0
    %v5306 = vadd.f32 %v5304, %v5305
    %v5307 = vsel %vm28, %v5278, 0.0
    %v5308 = vadd.f32 %v5306, %v5307
    %v5309 = vsel %vm28, %v5279, 0.0
    %v5310 = vadd.f32 %v5308, %v5309
    %v5311 = vsel %vm28, %v5280, 0.0
    %v5312 = vadd.f32 %v5310, %v5311
    %v5313 = vsel %vm28, %v5281, 0.0
    %v5314 = vadd.f32 %v5312, %v5313
    %v5315 = vsel %vm28, %v5282, 0.0
    %v5316 = vadd.f32 %v5314, %v5315
    %v5317 = vsel %vm28, %v5283, 0.0
    %v5318 = vadd.f32 %v5316, %v5317
    %v5319 = vsel %vm28, %v5284, 0.0
    %v5320 = vadd.f32 %v5318, %v5319
    %v5321 = vsel %vm28, %v5285, 0.0
    %v5322 = vadd.f32 %v5320, %v5321
    %v5323 = vsel %vm28, %v5286, 0.0
    %v5324 = vadd.f32 %v5322, %v5323
    %v5325 = vsel %vm28, %v5287, 0.0
    %v5326 = vadd.f32 %v5324, %v5325
    %v5327 = vsel %vm28, %v5288, 0.0
    %v5328 = vadd.f32 %v5326, %v5327
    %v5329 = vsel %vm28, %v5289, 0.0
    %v5330 = vadd.f32 %v5328, %v5329
    %v5331 = vsel %vm28, %v5290, 0.0
    %v5332 = vadd.f32 %v5330, %v5331
    %v5333 = vsel %vm28, %v5291, 0.0
    %v5334 = vadd.f32 %v5332, %v5333
    %v5335 = vsel %vm28, %v5292, 0.0
    %v5336 = vadd.f32 %v5334, %v5335
    %v5337 = vsel %vm28, %v5293, 0.0
    %v5338 = vadd.f32 %v5336, %v5337
    %v5339 = vsel %vm28, %v5294, 0.0
    %v5340 = vadd.f32 %v5338, %v5339
    %v5341 = vsel %vm28, %v5295, 0.0
    %v5342 = vadd.f32 %v5340, %v5341
    %v5343 = vrot.slane %v5342, 4
    %v5344 = vadd.f32 %v5342, %v5343
    %v5345 = vrot.slane %v5344, 2
    %v5346 = vadd.f32 %v5344, %v5345
    %v5347 = vrot.slane %v5346, 1
    %v5348 = vadd.f32 %v5346, %v5347
    %v5349 = vadd.f32 %v4488, %v5348
    %v5350 = vmul.f32 %v5272, %v4674
    %v5351 = vmul.f32 %v5273, %v4677
    %v5352 = vmul.f32 %v5274, %v4682
    %v5353 = vmul.f32 %v5275, %v4685
    %v5354 = vmul.f32 %v5276, %v4690
    %v5355 = vmul.f32 %v5277, %v4693
    %v5356 = vmul.f32 %v5278, %v4698
    %v5357 = vmul.f32 %v5279, %v4701
    %v5358 = vmul.f32 %v5280, %v4706
    %v5359 = vmul.f32 %v5281, %v4709
    %v5360 = vmul.f32 %v5282, %v4714
    %v5361 = vmul.f32 %v5283, %v4717
    %v5362 = vmul.f32 %v5284, %v4722
    %v5363 = vmul.f32 %v5285, %v4725
    %v5364 = vmul.f32 %v5286, %v4730
    %v5365 = vmul.f32 %v5287, %v4733
    %v5366 = vmul.f32 %v5288, %v4738
    %v5367 = vmul.f32 %v5289, %v4741
    %v5368 = vmul.f32 %v5290, %v4746
    %v5369 = vmul.f32 %v5291, %v4749
    %v5370 = vmul.f32 %v5292, %v4754
    %v5371 = vmul.f32 %v5293, %v4757
    %v5372 = vmul.f32 %v5294, %v4762
    %v5373 = vmul.f32 %v5295, %v4765
    %v5374 = vsel %vm28, %v5350, 0.0
    %v5375 = vsel %vm28, %v5351, 0.0
    %v5376 = vadd.f32 %v5374, %v5375
    %v5377 = vsel %vm28, %v5352, 0.0
    %v5378 = vadd.f32 %v5376, %v5377
    %v5379 = vsel %vm28, %v5353, 0.0
    %v5380 = vadd.f32 %v5378, %v5379
    %v5381 = vsel %vm28, %v5354, 0.0
    %v5382 = vadd.f32 %v5380, %v5381
    %v5383 = vsel %vm28, %v5355, 0.0
    %v5384 = vadd.f32 %v5382, %v5383
    %v5385 = vsel %vm28, %v5356, 0.0
    %v5386 = vadd.f32 %v5384, %v5385
    %v5387 = vsel %vm28, %v5357, 0.0
    %v5388 = vadd.f32 %v5386, %v5387
    %v5389 = vsel %vm28, %v5358, 0.0
    %v5390 = vadd.f32 %v5388, %v5389
    %v5391 = vsel %vm28, %v5359, 0.0
    %v5392 = vadd.f32 %v5390, %v5391
    %v5393 = vsel %vm28, %v5360, 0.0
    %v5394 = vadd.f32 %v5392, %v5393
    %v5395 = vsel %vm28, %v5361, 0.0
    %v5396 = vadd.f32 %v5394, %v5395
    %v5397 = vsel %vm28, %v5362, 0.0
    %v5398 = vadd.f32 %v5396, %v5397
    %v5399 = vsel %vm28, %v5363, 0.0
    %v5400 = vadd.f32 %v5398, %v5399
    %v5401 = vsel %vm28, %v5364, 0.0
    %v5402 = vadd.f32 %v5400, %v5401
    %v5403 = vsel %vm28, %v5365, 0.0
    %v5404 = vadd.f32 %v5402, %v5403
    %v5405 = vsel %vm28, %v5366, 0.0
    %v5406 = vadd.f32 %v5404, %v5405
    %v5407 = vsel %vm28, %v5367, 0.0
    %v5408 = vadd.f32 %v5406, %v5407
    %v5409 = vsel %vm28, %v5368, 0.0
    %v5410 = vadd.f32 %v5408, %v5409
    %v5411 = vsel %vm28, %v5369, 0.0
    %v5412 = vadd.f32 %v5410, %v5411
    %v5413 = vsel %vm28, %v5370, 0.0
    %v5414 = vadd.f32 %v5412, %v5413
    %v5415 = vsel %vm28, %v5371, 0.0
    %v5416 = vadd.f32 %v5414, %v5415
    %v5417 = vsel %vm28, %v5372, 0.0
    %v5418 = vadd.f32 %v5416, %v5417
    %v5419 = vsel %vm28, %v5373, 0.0
    %v5420 = vadd.f32 %v5418, %v5419
    %v5421 = vrot.slane %v5420, 4
    %v5422 = vadd.f32 %v5420, %v5421
    %v5423 = vrot.slane %v5422, 2
    %v5424 = vadd.f32 %v5422, %v5423
    %v5425 = vrot.slane %v5424, 1
    %v5426 = vadd.f32 %v5424, %v5425
    %v5427 = vadd.f32 %v4566, %v5426
    %v5428 = vld [vmem:[#allocation2 + $0x180] sm:$0xff]
    %v5429 = vld [vmem:[#allocation2 + $0x188] sm:$0xff]
    %v5430 = vld [vmem:[#allocation2 + $0x190] sm:$0xff]
    %v5431 = vld [vmem:[#allocation2 + $0x198] sm:$0xff]
    %v5432 = vld [vmem:[#allocation2 + $0x1a0] sm:$0xff]
    %v5433 = vld [vmem:[#allocation2 + $0x1a8] sm:$0xff]
    %v5434 = vld [vmem:[#allocation2 + $0x1b0] sm:$0xff]
    %v5435 = vld [vmem:[#allocation2 + $0x1b8] sm:$0xff]
    %v5436 = vld [vmem:[#allocation2 + $0x1c0] sm:$0xff]
    %v5437 = vld [vmem:[#allocation2 + $0x1c8] sm:$0xff]
    %v5438 = vld [vmem:[#allocation2 + $0x1d0] sm:$0xff]
    %v5439 = vld [vmem:[#allocation2 + $0x1d8] sm:$0xff]
    %v5440 = vld [vmem:[#allocation2 + $0x1e0] sm:$0xff]
    %v5441 = vld [vmem:[#allocation2 + $0x1e8] sm:$0xff]
    %v5442 = vld [vmem:[#allocation2 + $0x1f0] sm:$0xff]
    %v5443 = vld [vmem:[#allocation2 + $0x1f8] sm:$0xff]
    %v5444 = vld [vmem:[#allocation2 + $0x200] sm:$0xff]
    %v5445 = vld [vmem:[#allocation2 + $0x208] sm:$0xff]
    %v5446 = vld [vmem:[#allocation2 + $0x210] sm:$0xff]
    %v5447 = vld [vmem:[#allocation2 + $0x218] sm:$0xff]
    %v5448 = vld [vmem:[#allocation2 + $0x220] sm:$0xff]
    %v5449 = vld [vmem:[#allocation2 + $0x228] sm:$0xff]
    %v5450 = vld [vmem:[#allocation2 + $0x230] sm:$0xff]
    %v5451 = vld [vmem:[#allocation2 + $0x238] sm:$0xff]
    %v5452 = vpack.c.bf16 %v5429, %v5428
    %v5453 = vpack.c.bf16 %v5431, %v5430
    %v5454 = vpack.c.bf16 %v5433, %v5432
    %v5455 = vpack.c.bf16 %v5435, %v5434
    %v5456 = vpack.c.bf16 %v5437, %v5436
    %v5457 = vpack.c.bf16 %v5439, %v5438
    %v5458 = vpack.c.bf16 %v5441, %v5440
    %v5459 = vpack.c.bf16 %v5443, %v5442
    %v5460 = vpack.c.bf16 %v5445, %v5444
    %v5461 = vpack.c.bf16 %v5447, %v5446
    %v5462 = vpack.c.bf16 %v5449, %v5448
    %v5463 = vpack.c.bf16 %v5451, %v5450
    %v5465 = vsel %vm3736, %v5452, 0
    %v5468 = vsel %vm3736, %v5453, 0
    %v5471 = vsel %vm3736, %v5454, 0
    %v5474 = vsel %vm3736, %v5455, 0
    %v5477 = vsel %vm3736, %v5456, 0
    %v5480 = vsel %vm3736, %v5457, 0
    %v5483 = vsel %vm3736, %v5458, 0
    %v5486 = vsel %vm3736, %v5459, 0
    %v5489 = vsel %vm3736, %v5460, 0
    %v5492 = vsel %vm3736, %v5461, 0
    %v5495 = vsel %vm3736, %v5462, 0
    %v5498 = vsel %vm3736, %v5463, 0
    %5500 = vmatprep.subr.bf16.mxu0 0
    %5501 = vmatpush1.bf16.msra.mxu0 0
    %5502 = vmatprep.subr.bf16.mxu0 0
    %5503 = vmatpush1.bf16.msra.mxu0 0
    %5504 = vmatprep.subr.bf16.mxu0 0
    %5505 = vmatpush1.bf16.msra.mxu0 0
    %5506 = vmatprep.subr.bf16.mxu0 0
    %5507 = vmatpush1.bf16.msra.mxu0 %v3775
    %5508 = vmatprep.subr.bf16.mxu0 0
    %5509 = vmatpush1.bf16.msra.mxu0 %v3730
    %5510 = vmatprep.subr.bf16.mxu0 0
    %5511 = vmatpush1.bf16.msra.mxu0 %v3729
    %5512 = vmatprep.subr.bf16.mxu0 0
    %5513 = vmatpush1.bf16.msra.mxu0 %v3728
    %5514 = vmatprep.subr.bf16.mxu0 0
    %5515 = vmatpush1.bf16.msra.mxu0 %v3727
    %5516 = vmatprep.subr.bf16.mxu0 0
    %5517 = vmatpush2.bf16.msra.mxu0 0
    %5518 = vmatprep.subr.bf16.mxu0 0
    %5519 = vmatpush2.bf16.msra.mxu0 0
    %5520 = vmatprep.subr.bf16.mxu0 0
    %5521 = vmatpush2.bf16.msra.mxu0 0
    %5522 = vmatprep.subr.bf16.mxu0 0
    %5523 = vmatpush2.bf16.msra.mxu0 0
    %5524 = vmatprep.subr.bf16.mxu0 0
    %5525 = vmatpush2.bf16.msra.mxu0 0
    %5526 = vmatprep.subr.bf16.mxu0 0
    %5527 = vmatpush2.bf16.msra.mxu0 0
    %5528 = vmatprep.subr.bf16.mxu0 0
    %5529 = vmatpush2.bf16.msra.mxu0 0
    %5530 = vmatprep.subr.bf16.mxu0 0
    %5531 = vmatpush2.bf16.msra.mxu0 0
    %5532 = vmatprep.mubr.bf16.mxu0 0
    %5533 = vmatmul.mubr.bf16.gmra.mxu0 %v5465
    %v5534 = vpop.f32.mrf.mxu0
    %v5535 = vadd.f32 0.0, %v5534
    %v5536 = vpop.f32.mrf.mxu0
    %v5537 = vpop.f32.mrf.mxu0
    %v5538 = vadd.f32 0.0, %v5537
    %v5539 = vpop.f32.mrf.mxu0
    %5540 = vmatprep.mubr.bf16.mxu0 0
    %5541 = vmatmul.mubr.bf16.gmra.mxu0 %v5468
    %v5542 = vpop.f32.mrf.mxu0
    %v5543 = vadd.f32 0.0, %v5542
    %v5544 = vpop.f32.mrf.mxu0
    %v5545 = vpop.f32.mrf.mxu0
    %v5546 = vadd.f32 0.0, %v5545
    %v5547 = vpop.f32.mrf.mxu0
    %5548 = vmatprep.mubr.bf16.mxu0 0
    %5549 = vmatmul.mubr.bf16.gmra.mxu0 %v5471
    %v5550 = vpop.f32.mrf.mxu0
    %v5551 = vadd.f32 0.0, %v5550
    %v5552 = vpop.f32.mrf.mxu0
    %v5553 = vpop.f32.mrf.mxu0
    %v5554 = vadd.f32 0.0, %v5553
    %v5555 = vpop.f32.mrf.mxu0
    %5556 = vmatprep.mubr.bf16.mxu0 0
    %5557 = vmatmul.mubr.bf16.gmra.mxu0 %v5474
    %v5558 = vpop.f32.mrf.mxu0
    %v5559 = vadd.f32 0.0, %v5558
    %v5560 = vpop.f32.mrf.mxu0
    %v5561 = vpop.f32.mrf.mxu0
    %v5562 = vadd.f32 0.0, %v5561
    %v5563 = vpop.f32.mrf.mxu0
    %5564 = vmatprep.mubr.bf16.mxu0 0
    %5565 = vmatmul.mubr.bf16.gmra.mxu0 %v5477
    %v5566 = vpop.f32.mrf.mxu0
    %v5567 = vadd.f32 0.0, %v5566
    %v5568 = vpop.f32.mrf.mxu0
    %v5569 = vpop.f32.mrf.mxu0
    %v5570 = vadd.f32 0.0, %v5569
    %v5571 = vpop.f32.mrf.mxu0
    %5572 = vmatprep.mubr.bf16.mxu0 0
    %5573 = vmatmul.mubr.bf16.gmra.mxu0 %v5480
    %v5574 = vpop.f32.mrf.mxu0
    %v5575 = vadd.f32 0.0, %v5574
    %v5576 = vpop.f32.mrf.mxu0
    %v5577 = vpop.f32.mrf.mxu0
    %v5578 = vadd.f32 0.0, %v5577
    %v5579 = vpop.f32.mrf.mxu0
    %5580 = vmatprep.mubr.bf16.mxu0 0
    %5581 = vmatmul.mubr.bf16.gmra.mxu0 %v5483
    %v5582 = vpop.f32.mrf.mxu0
    %v5583 = vadd.f32 0.0, %v5582
    %v5584 = vpop.f32.mrf.mxu0
    %v5585 = vpop.f32.mrf.mxu0
    %v5586 = vadd.f32 0.0, %v5585
    %v5587 = vpop.f32.mrf.mxu0
    %5588 = vmatprep.mubr.bf16.mxu0 0
    %5589 = vmatmul.mubr.bf16.gmra.mxu0 %v5486
    %v5590 = vpop.f32.mrf.mxu0
    %v5591 = vadd.f32 0.0, %v5590
    %v5592 = vpop.f32.mrf.mxu0
    %v5593 = vpop.f32.mrf.mxu0
    %v5594 = vadd.f32 0.0, %v5593
    %v5595 = vpop.f32.mrf.mxu0
    %5596 = vmatprep.mubr.bf16.mxu0 0
    %5597 = vmatmul.mubr.bf16.gmra.mxu0 %v5489
    %v5598 = vpop.f32.mrf.mxu0
    %v5599 = vadd.f32 0.0, %v5598
    %v5600 = vpop.f32.mrf.mxu0
    %v5601 = vpop.f32.mrf.mxu0
    %v5602 = vadd.f32 0.0, %v5601
    %v5603 = vpop.f32.mrf.mxu0
    %5604 = vmatprep.mubr.bf16.mxu0 0
    %5605 = vmatmul.mubr.bf16.gmra.mxu0 %v5492
    %v5606 = vpop.f32.mrf.mxu0
    %v5607 = vadd.f32 0.0, %v5606
    %v5608 = vpop.f32.mrf.mxu0
    %v5609 = vpop.f32.mrf.mxu0
    %v5610 = vadd.f32 0.0, %v5609
    %v5611 = vpop.f32.mrf.mxu0
    %5612 = vmatprep.mubr.bf16.mxu0 0
    %5613 = vmatmul.mubr.bf16.gmra.mxu0 %v5495
    %v5614 = vpop.f32.mrf.mxu0
    %v5615 = vadd.f32 0.0, %v5614
    %v5616 = vpop.f32.mrf.mxu0
    %v5617 = vpop.f32.mrf.mxu0
    %v5618 = vadd.f32 0.0, %v5617
    %v5619 = vpop.f32.mrf.mxu0
    %5620 = vmatprep.mubr.bf16.mxu0 0
    %5621 = vmatmul.mubr.bf16.gmra.mxu0 %v5498
    %v5622 = vpop.f32.mrf.mxu0
    %v5623 = vadd.f32 0.0, %v5622
    %v5624 = vpop.f32.mrf.mxu0
    %v5625 = vpop.f32.mrf.mxu0
    %v5626 = vadd.f32 0.0, %v5625
    %v5627 = vpop.f32.mrf.mxu0
    %5628 = vdwg.mxu0
    %5629 = vst.msk [vmem:[#allocation3 + $0x180] sm:$0xff] %vm28, %v5535
    %5630 = vst.msk [vmem:[#allocation3 + $0x188] sm:$0xff] %vm28, %v5538
    %5631 = vst.msk [vmem:[#allocation3 + $0x190] sm:$0xff] %vm28, %v5543
    %5632 = vst.msk [vmem:[#allocation3 + $0x198] sm:$0xff] %vm28, %v5546
    %5633 = vst.msk [vmem:[#allocation3 + $0x1a0] sm:$0xff] %vm28, %v5551
    %5634 = vst.msk [vmem:[#allocation3 + $0x1a8] sm:$0xff] %vm28, %v5554
    %5635 = vst.msk [vmem:[#allocation3 + $0x1b0] sm:$0xff] %vm28, %v5559
    %5636 = vst.msk [vmem:[#allocation3 + $0x1b8] sm:$0xff] %vm28, %v5562
    %5637 = vst.msk [vmem:[#allocation3 + $0x1c0] sm:$0xff] %vm28, %v5567
    %5638 = vst.msk [vmem:[#allocation3 + $0x1c8] sm:$0xff] %vm28, %v5570
    %5639 = vst.msk [vmem:[#allocation3 + $0x1d0] sm:$0xff] %vm28, %v5575
    %5640 = vst.msk [vmem:[#allocation3 + $0x1d8] sm:$0xff] %vm28, %v5578
    %5641 = vst.msk [vmem:[#allocation3 + $0x1e0] sm:$0xff] %vm28, %v5583
    %5642 = vst.msk [vmem:[#allocation3 + $0x1e8] sm:$0xff] %vm28, %v5586
    %5643 = vst.msk [vmem:[#allocation3 + $0x1f0] sm:$0xff] %vm28, %v5591
    %5644 = vst.msk [vmem:[#allocation3 + $0x1f8] sm:$0xff] %vm28, %v5594
    %5645 = vst.msk [vmem:[#allocation3 + $0x200] sm:$0xff] %vm28, %v5599
    %5646 = vst.msk [vmem:[#allocation3 + $0x208] sm:$0xff] %vm28, %v5602
    %5647 = vst.msk [vmem:[#allocation3 + $0x210] sm:$0xff] %vm28, %v5607
    %5648 = vst.msk [vmem:[#allocation3 + $0x218] sm:$0xff] %vm28, %v5610
    %5649 = vst.msk [vmem:[#allocation3 + $0x220] sm:$0xff] %vm28, %v5615
    %5650 = vst.msk [vmem:[#allocation3 + $0x228] sm:$0xff] %vm28, %v5618
    %5651 = vst.msk [vmem:[#allocation3 + $0x230] sm:$0xff] %vm28, %v5623
    %5652 = vst.msk [vmem:[#allocation3 + $0x238] sm:$0xff] %vm28, %v5626
    %v5653 = vadd.s32 %v3931, 384
    %v5654 = vadd.s32 %v3932, 384
    %v5655 = vadd.s32 %v3933, 384
    %v5656 = vadd.s32 %v3934, 384
    %v5657 = vadd.s32 %v3935, 384
    %v5658 = vadd.s32 %v3936, 384
    %v5659 = vadd.s32 %v3937, 384
    %v5660 = vadd.s32 %v3938, 384
    %v5661 = vadd.s32 %v3939, 384
    %v5662 = vadd.s32 %v3940, 384
    %v5663 = vadd.s32 %v3941, 384
    %v5664 = vadd.s32 %v3942, 384
    %v5665 = vadd.s32 %v3943, 384
    %v5666 = vadd.s32 %v3944, 384
    %v5667 = vadd.s32 %v3945, 384
    %v5668 = vadd.s32 %v3946, 384
    %v5669 = vadd.s32 %v3947, 384
    %v5670 = vadd.s32 %v3948, 384
    %v5671 = vadd.s32 %v3949, 384
    %v5672 = vadd.s32 %v3950, 384
    %v5673 = vadd.s32 %v3951, 384
    %v5674 = vadd.s32 %v3952, 384
    %v5675 = vadd.s32 %v3953, 384
    %v5676 = vadd.s32 %v3954, 384
    %vm5677 = vcmp.lt.s32.totalorder %v5653, 0
    %v5678 = vsub.s32 0, %v5653
    %v5679 = vsel %vm5677, %v5678, %v5653
    %v5680 = vmul.u32.u64.compose %v5679, 3817748708
    %v5681 = vextract.low.u32 %v5680
    %v5682 = vextract.high.u32 %v5680
    %v5683 = vshrl.u32 %v5682, 4
    %v5684 = vmul.u32 %v5683, 18
    %v5685 = vsub.s32 %v5679, %v5684
    %v5686 = vsub.s32 0, %v5685
    %v5687 = vsel %vm5677, %v5686, %v5685
    %vm5688 = vcmp.lt.s32.totalorder %v5654, 0
    %v5689 = vsub.s32 0, %v5654
    %v5690 = vsel %vm5688, %v5689, %v5654
    %v5691 = vmul.u32.u64.compose %v5690, 3817748708
    %v5692 = vextract.low.u32 %v5691
    %v5693 = vextract.high.u32 %v5691
    %v5694 = vshrl.u32 %v5693, 4
    %v5695 = vmul.u32 %v5694, 18
    %v5696 = vsub.s32 %v5690, %v5695
    %v5697 = vsub.s32 0, %v5696
    %v5698 = vsel %vm5688, %v5697, %v5696
    %vm5699 = vcmp.lt.s32.totalorder %v5655, 0
    %v5700 = vsub.s32 0, %v5655
    %v5701 = vsel %vm5699, %v5700, %v5655
    %v5702 = vmul.u32.u64.compose %v5701, 3817748708
    %v5703 = vextract.low.u32 %v5702
    %v5704 = vextract.high.u32 %v5702
    %v5705 = vshrl.u32 %v5704, 4
    %v5706 = vmul.u32 %v5705, 18
    %v5707 = vsub.s32 %v5701, %v5706
    %v5708 = vsub.s32 0, %v5707
    %v5709 = vsel %vm5699, %v5708, %v5707
    %vm5710 = vcmp.lt.s32.totalorder %v5656, 0
    %v5711 = vsub.s32 0, %v5656
    %v5712 = vsel %vm5710, %v5711, %v5656
    %v5713 = vmul.u32.u64.compose %v5712, 3817748708
    %v5714 = vextract.low.u32 %v5713
    %v5715 = vextract.high.u32 %v5713
    %v5716 = vshrl.u32 %v5715, 4
    %v5717 = vmul.u32 %v5716, 18
    %v5718 = vsub.s32 %v5712, %v5717
    %v5719 = vsub.s32 0, %v5718
    %v5720 = vsel %vm5710, %v5719, %v5718
    %vm5721 = vcmp.lt.s32.totalorder %v5657, 0
    %v5722 = vsub.s32 0, %v5657
    %v5723 = vsel %vm5721, %v5722, %v5657
    %v5724 = vmul.u32.u64.compose %v5723, 3817748708
    %v5725 = vextract.low.u32 %v5724
    %v5726 = vextract.high.u32 %v5724
    %v5727 = vshrl.u32 %v5726, 4
    %v5728 = vmul.u32 %v5727, 18
    %v5729 = vsub.s32 %v5723, %v5728
    %v5730 = vsub.s32 0, %v5729
    %v5731 = vsel %vm5721, %v5730, %v5729
    %vm5732 = vcmp.lt.s32.totalorder %v5658, 0
    %v5733 = vsub.s32 0, %v5658
    %v5734 = vsel %vm5732, %v5733, %v5658
    %v5735 = vmul.u32.u64.compose %v5734, 3817748708
    %v5736 = vextract.low.u32 %v5735
    %v5737 = vextract.high.u32 %v5735
    %v5738 = vshrl.u32 %v5737, 4
    %v5739 = vmul.u32 %v5738, 18
    %v5740 = vsub.s32 %v5734, %v5739
    %v5741 = vsub.s32 0, %v5740
    %v5742 = vsel %vm5732, %v5741, %v5740
    %vm5743 = vcmp.lt.s32.totalorder %v5659, 0
    %v5744 = vsub.s32 0, %v5659
    %v5745 = vsel %vm5743, %v5744, %v5659
    %v5746 = vmul.u32.u64.compose %v5745, 3817748708
    %v5747 = vextract.low.u32 %v5746
    %v5748 = vextract.high.u32 %v5746
    %v5749 = vshrl.u32 %v5748, 4
    %v5750 = vmul.u32 %v5749, 18
    %v5751 = vsub.s32 %v5745, %v5750
    %v5752 = vsub.s32 0, %v5751
    %v5753 = vsel %vm5743, %v5752, %v5751
    %vm5754 = vcmp.lt.s32.totalorder %v5660, 0
    %v5755 = vsub.s32 0, %v5660
    %v5756 = vsel %vm5754, %v5755, %v5660
    %v5757 = vmul.u32.u64.compose %v5756, 3817748708
    %v5758 = vextract.low.u32 %v5757
    %v5759 = vextract.high.u32 %v5757
    %v5760 = vshrl.u32 %v5759, 4
    %v5761 = vmul.u32 %v5760, 18
    %v5762 = vsub.s32 %v5756, %v5761
    %v5763 = vsub.s32 0, %v5762
    %v5764 = vsel %vm5754, %v5763, %v5762
    %vm5765 = vcmp.lt.s32.totalorder %v5661, 0
    %v5766 = vsub.s32 0, %v5661
    %v5767 = vsel %vm5765, %v5766, %v5661
    %v5768 = vmul.u32.u64.compose %v5767, 3817748708
    %v5769 = vextract.low.u32 %v5768
    %v5770 = vextract.high.u32 %v5768
    %v5771 = vshrl.u32 %v5770, 4
    %v5772 = vmul.u32 %v5771, 18
    %v5773 = vsub.s32 %v5767, %v5772
    %v5774 = vsub.s32 0, %v5773
    %v5775 = vsel %vm5765, %v5774, %v5773
    %vm5776 = vcmp.lt.s32.totalorder %v5662, 0
    %v5777 = vsub.s32 0, %v5662
    %v5778 = vsel %vm5776, %v5777, %v5662
    %v5779 = vmul.u32.u64.compose %v5778, 3817748708
    %v5780 = vextract.low.u32 %v5779
    %v5781 = vextract.high.u32 %v5779
    %v5782 = vshrl.u32 %v5781, 4
    %v5783 = vmul.u32 %v5782, 18
    %v5784 = vsub.s32 %v5778, %v5783
    %v5785 = vsub.s32 0, %v5784
    %v5786 = vsel %vm5776, %v5785, %v5784
    %vm5787 = vcmp.lt.s32.totalorder %v5663, 0
    %v5788 = vsub.s32 0, %v5663
    %v5789 = vsel %vm5787, %v5788, %v5663
    %v5790 = vmul.u32.u64.compose %v5789, 3817748708
    %v5791 = vextract.low.u32 %v5790
    %v5792 = vextract.high.u32 %v5790
    %v5793 = vshrl.u32 %v5792, 4
    %v5794 = vmul.u32 %v5793, 18
    %v5795 = vsub.s32 %v5789, %v5794
    %v5796 = vsub.s32 0, %v5795
    %v5797 = vsel %vm5787, %v5796, %v5795
    %vm5798 = vcmp.lt.s32.totalorder %v5664, 0
    %v5799 = vsub.s32 0, %v5664
    %v5800 = vsel %vm5798, %v5799, %v5664
    %v5801 = vmul.u32.u64.compose %v5800, 3817748708
    %v5802 = vextract.low.u32 %v5801
    %v5803 = vextract.high.u32 %v5801
    %v5804 = vshrl.u32 %v5803, 4
    %v5805 = vmul.u32 %v5804, 18
    %v5806 = vsub.s32 %v5800, %v5805
    %v5807 = vsub.s32 0, %v5806
    %v5808 = vsel %vm5798, %v5807, %v5806
    %vm5809 = vcmp.lt.s32.totalorder %v5665, 0
    %v5810 = vsub.s32 0, %v5665
    %v5811 = vsel %vm5809, %v5810, %v5665
    %v5812 = vmul.u32.u64.compose %v5811, 3817748708
    %v5813 = vextract.low.u32 %v5812
    %v5814 = vextract.high.u32 %v5812
    %v5815 = vshrl.u32 %v5814, 4
    %v5816 = vmul.u32 %v5815, 18
    %v5817 = vsub.s32 %v5811, %v5816
    %v5818 = vsub.s32 0, %v5817
    %v5819 = vsel %vm5809, %v5818, %v5817
    %vm5820 = vcmp.lt.s32.totalorder %v5666, 0
    %v5821 = vsub.s32 0, %v5666
    %v5822 = vsel %vm5820, %v5821, %v5666
    %v5823 = vmul.u32.u64.compose %v5822, 3817748708
    %v5824 = vextract.low.u32 %v5823
    %v5825 = vextract.high.u32 %v5823
    %v5826 = vshrl.u32 %v5825, 4
    %v5827 = vmul.u32 %v5826, 18
    %v5828 = vsub.s32 %v5822, %v5827
    %v5829 = vsub.s32 0, %v5828
    %v5830 = vsel %vm5820, %v5829, %v5828
    %vm5831 = vcmp.lt.s32.totalorder %v5667, 0
    %v5832 = vsub.s32 0, %v5667
    %v5833 = vsel %vm5831, %v5832, %v5667
    %v5834 = vmul.u32.u64.compose %v5833, 3817748708
    %v5835 = vextract.low.u32 %v5834
    %v5836 = vextract.high.u32 %v5834
    %v5837 = vshrl.u32 %v5836, 4
    %v5838 = vmul.u32 %v5837, 18
    %v5839 = vsub.s32 %v5833, %v5838
    %v5840 = vsub.s32 0, %v5839
    %v5841 = vsel %vm5831, %v5840, %v5839
    %vm5842 = vcmp.lt.s32.totalorder %v5668, 0
    %v5843 = vsub.s32 0, %v5668
    %v5844 = vsel %vm5842, %v5843, %v5668
    %v5845 = vmul.u32.u64.compose %v5844, 3817748708
    %v5846 = vextract.low.u32 %v5845
    %v5847 = vextract.high.u32 %v5845
    %v5848 = vshrl.u32 %v5847, 4
    %v5849 = vmul.u32 %v5848, 18
    %v5850 = vsub.s32 %v5844, %v5849
    %v5851 = vsub.s32 0, %v5850
    %v5852 = vsel %vm5842, %v5851, %v5850
    %vm5853 = vcmp.lt.s32.totalorder %v5669, 0
    %v5854 = vsub.s32 0, %v5669
    %v5855 = vsel %vm5853, %v5854, %v5669
    %v5856 = vmul.u32.u64.compose %v5855, 3817748708
    %v5857 = vextract.low.u32 %v5856
    %v5858 = vextract.high.u32 %v5856
    %v5859 = vshrl.u32 %v5858, 4
    %v5860 = vmul.u32 %v5859, 18
    %v5861 = vsub.s32 %v5855, %v5860
    %v5862 = vsub.s32 0, %v5861
    %v5863 = vsel %vm5853, %v5862, %v5861
    %vm5864 = vcmp.lt.s32.totalorder %v5670, 0
    %v5865 = vsub.s32 0, %v5670
    %v5866 = vsel %vm5864, %v5865, %v5670
    %v5867 = vmul.u32.u64.compose %v5866, 3817748708
    %v5868 = vextract.low.u32 %v5867
    %v5869 = vextract.high.u32 %v5867
    %v5870 = vshrl.u32 %v5869, 4
    %v5871 = vmul.u32 %v5870, 18
    %v5872 = vsub.s32 %v5866, %v5871
    %v5873 = vsub.s32 0, %v5872
    %v5874 = vsel %vm5864, %v5873, %v5872
    %vm5875 = vcmp.lt.s32.totalorder %v5671, 0
    %v5876 = vsub.s32 0, %v5671
    %v5877 = vsel %vm5875, %v5876, %v5671
    %v5878 = vmul.u32.u64.compose %v5877, 3817748708
    %v5879 = vextract.low.u32 %v5878
    %v5880 = vextract.high.u32 %v5878
    %v5881 = vshrl.u32 %v5880, 4
    %v5882 = vmul.u32 %v5881, 18
    %v5883 = vsub.s32 %v5877, %v5882
    %v5884 = vsub.s32 0, %v5883
    %v5885 = vsel %vm5875, %v5884, %v5883
    %vm5886 = vcmp.lt.s32.totalorder %v5672, 0
    %v5887 = vsub.s32 0, %v5672
    %v5888 = vsel %vm5886, %v5887, %v5672
    %v5889 = vmul.u32.u64.compose %v5888, 3817748708
    %v5890 = vextract.low.u32 %v5889
    %v5891 = vextract.high.u32 %v5889
    %v5892 = vshrl.u32 %v5891, 4
    %v5893 = vmul.u32 %v5892, 18
    %v5894 = vsub.s32 %v5888, %v5893
    %v5895 = vsub.s32 0, %v5894
    %v5896 = vsel %vm5886, %v5895, %v5894
    %vm5897 = vcmp.lt.s32.totalorder %v5673, 0
    %v5898 = vsub.s32 0, %v5673
    %v5899 = vsel %vm5897, %v5898, %v5673
    %v5900 = vmul.u32.u64.compose %v5899, 3817748708
    %v5901 = vextract.low.u32 %v5900
    %v5902 = vextract.high.u32 %v5900
    %v5903 = vshrl.u32 %v5902, 4
    %v5904 = vmul.u32 %v5903, 18
    %v5905 = vsub.s32 %v5899, %v5904
    %v5906 = vsub.s32 0, %v5905
    %v5907 = vsel %vm5897, %v5906, %v5905
    %vm5908 = vcmp.lt.s32.totalorder %v5674, 0
    %v5909 = vsub.s32 0, %v5674
    %v5910 = vsel %vm5908, %v5909, %v5674
    %v5911 = vmul.u32.u64.compose %v5910, 3817748708
    %v5912 = vextract.low.u32 %v5911
    %v5913 = vextract.high.u32 %v5911
    %v5914 = vshrl.u32 %v5913, 4
    %v5915 = vmul.u32 %v5914, 18
    %v5916 = vsub.s32 %v5910, %v5915
    %v5917 = vsub.s32 0, %v5916
    %v5918 = vsel %vm5908, %v5917, %v5916
    %vm5919 = vcmp.lt.s32.totalorder %v5675, 0
    %v5920 = vsub.s32 0, %v5675
    %v5921 = vsel %vm5919, %v5920, %v5675
    %v5922 = vmul.u32.u64.compose %v5921, 3817748708
    %v5923 = vextract.low.u32 %v5922
    %v5924 = vextract.high.u32 %v5922
    %v5925 = vshrl.u32 %v5924, 4
    %v5926 = vmul.u32 %v5925, 18
    %v5927 = vsub.s32 %v5921, %v5926
    %v5928 = vsub.s32 0, %v5927
    %v5929 = vsel %vm5919, %v5928, %v5927
    %vm5930 = vcmp.lt.s32.totalorder %v5676, 0
    %v5931 = vsub.s32 0, %v5676
    %v5932 = vsel %vm5930, %v5931, %v5676
    %v5933 = vmul.u32.u64.compose %v5932, 3817748708
    %v5934 = vextract.low.u32 %v5933
    %v5935 = vextract.high.u32 %v5933
    %v5936 = vshrl.u32 %v5935, 4
    %v5937 = vmul.u32 %v5936, 18
    %v5938 = vsub.s32 %v5932, %v5937
    %v5939 = vsub.s32 0, %v5938
    %v5940 = vsel %vm5930, %v5939, %v5938
    %vm5941 = vcmp.ne.s32.totalorder %v5687, 0
    %vm5942 = vcmp.ne.s32.totalorder %v5698, 0
    %vm5943 = vcmp.ne.s32.totalorder %v5709, 0
    %vm5944 = vcmp.ne.s32.totalorder %v5720, 0
    %vm5945 = vcmp.ne.s32.totalorder %v5731, 0
    %vm5946 = vcmp.ne.s32.totalorder %v5742, 0
    %vm5947 = vcmp.ne.s32.totalorder %v5753, 0
    %vm5948 = vcmp.ne.s32.totalorder %v5764, 0
    %vm5949 = vcmp.ne.s32.totalorder %v5775, 0
    %vm5950 = vcmp.ne.s32.totalorder %v5786, 0
    %vm5951 = vcmp.ne.s32.totalorder %v5797, 0
    %vm5952 = vcmp.ne.s32.totalorder %v5808, 0
    %vm5953 = vcmp.ne.s32.totalorder %v5819, 0
    %vm5954 = vcmp.ne.s32.totalorder %v5830, 0
    %vm5955 = vcmp.ne.s32.totalorder %v5841, 0
    %vm5956 = vcmp.ne.s32.totalorder %v5852, 0
    %vm5957 = vcmp.ne.s32.totalorder %v5863, 0
    %vm5958 = vcmp.ne.s32.totalorder %v5874, 0
    %vm5959 = vcmp.ne.s32.totalorder %v5885, 0
    %vm5960 = vcmp.ne.s32.totalorder %v5896, 0
    %vm5961 = vcmp.ne.s32.totalorder %v5907, 0
    %vm5962 = vcmp.ne.s32.totalorder %v5918, 0
    %vm5963 = vcmp.ne.s32.totalorder %v5929, 0
    %vm5964 = vcmp.ne.s32.totalorder %v5940, 0
    %vm5965 = vcmp.lt.s32.totalorder %v5687, 0
    %vm5966 = vcmp.lt.s32.totalorder %v5698, 0
    %vm5967 = vcmp.lt.s32.totalorder %v5709, 0
    %vm5968 = vcmp.lt.s32.totalorder %v5720, 0
    %vm5969 = vcmp.lt.s32.totalorder %v5731, 0
    %vm5970 = vcmp.lt.s32.totalorder %v5742, 0
    %vm5971 = vcmp.lt.s32.totalorder %v5753, 0
    %vm5972 = vcmp.lt.s32.totalorder %v5764, 0
    %vm5973 = vcmp.lt.s32.totalorder %v5775, 0
    %vm5974 = vcmp.lt.s32.totalorder %v5786, 0
    %vm5975 = vcmp.lt.s32.totalorder %v5797, 0
    %vm5976 = vcmp.lt.s32.totalorder %v5808, 0
    %vm5977 = vcmp.lt.s32.totalorder %v5819, 0
    %vm5978 = vcmp.lt.s32.totalorder %v5830, 0
    %vm5979 = vcmp.lt.s32.totalorder %v5841, 0
    %vm5980 = vcmp.lt.s32.totalorder %v5852, 0
    %vm5981 = vcmp.lt.s32.totalorder %v5863, 0
    %vm5982 = vcmp.lt.s32.totalorder %v5874, 0
    %vm5983 = vcmp.lt.s32.totalorder %v5885, 0
    %vm5984 = vcmp.lt.s32.totalorder %v5896, 0
    %vm5985 = vcmp.lt.s32.totalorder %v5907, 0
    %vm5986 = vcmp.lt.s32.totalorder %v5918, 0
    %vm5987 = vcmp.lt.s32.totalorder %v5929, 0
    %vm5988 = vcmp.lt.s32.totalorder %v5940, 0
    %vm5989 = vmand %vm5965, %vm5941
    %vm5990 = vmand %vm5966, %vm5942
    %vm5991 = vmand %vm5967, %vm5943
    %vm5992 = vmand %vm5968, %vm5944
    %vm5993 = vmand %vm5969, %vm5945
    %vm5994 = vmand %vm5970, %vm5946
    %vm5995 = vmand %vm5971, %vm5947
    %vm5996 = vmand %vm5972, %vm5948
    %vm5997 = vmand %vm5973, %vm5949
    %vm5998 = vmand %vm5974, %vm5950
    %vm5999 = vmand %vm5975, %vm5951
    %vm6000 = vmand %vm5976, %vm5952
    %vm6001 = vmand %vm5977, %vm5953
    %vm6002 = vmand %vm5978, %vm5954
    %vm6003 = vmand %vm5979, %vm5955
    %vm6004 = vmand %vm5980, %vm5956
    %vm6005 = vmand %vm5981, %vm5957
    %vm6006 = vmand %vm5982, %vm5958
    %vm6007 = vmand %vm5983, %vm5959
    %vm6008 = vmand %vm5984, %vm5960
    %vm6009 = vmand %vm5985, %vm5961
    %vm6010 = vmand %vm5986, %vm5962
    %vm6011 = vmand %vm5987, %vm5963
    %vm6012 = vmand %vm5988, %vm5964
    %v6013 = vadd.s32 %v5687, 18
    %v6014 = vadd.s32 %v5698, 18
    %v6015 = vadd.s32 %v5709, 18
    %v6016 = vadd.s32 %v5720, 18
    %v6017 = vadd.s32 %v5731, 18
    %v6018 = vadd.s32 %v5742, 18
    %v6019 = vadd.s32 %v5753, 18
    %v6020 = vadd.s32 %v5764, 18
    %v6021 = vadd.s32 %v5775, 18
    %v6022 = vadd.s32 %v5786, 18
    %v6023 = vadd.s32 %v5797, 18
    %v6024 = vadd.s32 %v5808, 18
    %v6025 = vadd.s32 %v5819, 18
    %v6026 = vadd.s32 %v5830, 18
    %v6027 = vadd.s32 %v5841, 18
    %v6028 = vadd.s32 %v5852, 18
    %v6029 = vadd.s32 %v5863, 18
    %v6030 = vadd.s32 %v5874, 18
    %v6031 = vadd.s32 %v5885, 18
    %v6032 = vadd.s32 %v5896, 18
    %v6033 = vadd.s32 %v5907, 18
    %v6034 = vadd.s32 %v5918, 18
    %v6035 = vadd.s32 %v5929, 18
    %v6036 = vadd.s32 %v5940, 18
    %v6037 = vsel %vm5989, %v6013, %v5687
    %v6038 = vsel %vm5990, %v6014, %v5698
    %v6039 = vsel %vm5991, %v6015, %v5709
    %v6040 = vsel %vm5992, %v6016, %v5720
    %v6041 = vsel %vm5993, %v6017, %v5731
    %v6042 = vsel %vm5994, %v6018, %v5742
    %v6043 = vsel %vm5995, %v6019, %v5753
    %v6044 = vsel %vm5996, %v6020, %v5764
    %v6045 = vsel %vm5997, %v6021, %v5775
    %v6046 = vsel %vm5998, %v6022, %v5786
    %v6047 = vsel %vm5999, %v6023, %v5797
    %v6048 = vsel %vm6000, %v6024, %v5808
    %v6049 = vsel %vm6001, %v6025, %v5819
    %v6050 = vsel %vm6002, %v6026, %v5830
    %v6051 = vsel %vm6003, %v6027, %v5841
    %v6052 = vsel %vm6004, %v6028, %v5852
    %v6053 = vsel %vm6005, %v6029, %v5863
    %v6054 = vsel %vm6006, %v6030, %v5874
    %v6055 = vsel %vm6007, %v6031, %v5885
    %v6056 = vsel %vm6008, %v6032, %v5896
    %v6057 = vsel %vm6009, %v6033, %v5907
    %v6058 = vsel %vm6010, %v6034, %v5918
    %v6059 = vsel %vm6011, %v6035, %v5929
    %v6060 = vsel %vm6012, %v6036, %v5940
    %vm6061 = vcmp.lt.s32.totalorder %v6037, 16
    %vm6062 = vcmp.lt.s32.totalorder %v6038, 16
    %vm6063 = vcmp.lt.s32.totalorder %v6039, 16
    %vm6064 = vcmp.lt.s32.totalorder %v6040, 16
    %vm6065 = vcmp.lt.s32.totalorder %v6041, 16
    %vm6066 = vcmp.lt.s32.totalorder %v6042, 16
    %vm6067 = vcmp.lt.s32.totalorder %v6043, 16
    %vm6068 = vcmp.lt.s32.totalorder %v6044, 16
    %vm6069 = vcmp.lt.s32.totalorder %v6045, 16
    %vm6070 = vcmp.lt.s32.totalorder %v6046, 16
    %vm6071 = vcmp.lt.s32.totalorder %v6047, 16
    %vm6072 = vcmp.lt.s32.totalorder %v6048, 16
    %vm6073 = vcmp.lt.s32.totalorder %v6049, 16
    %vm6074 = vcmp.lt.s32.totalorder %v6050, 16
    %vm6075 = vcmp.lt.s32.totalorder %v6051, 16
    %vm6076 = vcmp.lt.s32.totalorder %v6052, 16
    %vm6077 = vcmp.lt.s32.totalorder %v6053, 16
    %vm6078 = vcmp.lt.s32.totalorder %v6054, 16
    %vm6079 = vcmp.lt.s32.totalorder %v6055, 16
    %vm6080 = vcmp.lt.s32.totalorder %v6056, 16
    %vm6081 = vcmp.lt.s32.totalorder %v6057, 16
    %vm6082 = vcmp.lt.s32.totalorder %v6058, 16
    %vm6083 = vcmp.lt.s32.totalorder %v6059, 16
    %vm6084 = vcmp.lt.s32.totalorder %v6060, 16
    %v6085 = vsel %vm6061, 1, 0
    %v6086 = vsel %vm6062, 1, 0
    %v6087 = vsel %vm6063, 1, 0
    %v6088 = vsel %vm6064, 1, 0
    %v6089 = vsel %vm6065, 1, 0
    %v6090 = vsel %vm6066, 1, 0
    %v6091 = vsel %vm6067, 1, 0
    %v6092 = vsel %vm6068, 1, 0
    %v6093 = vsel %vm6069, 1, 0
    %v6094 = vsel %vm6070, 1, 0
    %v6095 = vsel %vm6071, 1, 0
    %v6096 = vsel %vm6072, 1, 0
    %v6097 = vsel %vm6073, 1, 0
    %v6098 = vsel %vm6074, 1, 0
    %v6099 = vsel %vm6075, 1, 0
    %v6100 = vsel %vm6076, 1, 0
    %v6101 = vsel %vm6077, 1, 0
    %v6102 = vsel %vm6078, 1, 0
    %v6103 = vsel %vm6079, 1, 0
    %v6104 = vsel %vm6080, 1, 0
    %v6105 = vsel %vm6081, 1, 0
    %v6106 = vsel %vm6082, 1, 0
    %v6107 = vsel %vm6083, 1, 0
    %v6108 = vsel %vm6084, 1, 0
    %vm6109 = vcmp.eq.s32.totalorder %v6085, 1
    %vm6110 = vcmp.eq.s32.totalorder %v6086, 1
    %vm6111 = vcmp.eq.s32.totalorder %v6087, 1
    %vm6112 = vcmp.eq.s32.totalorder %v6088, 1
    %vm6113 = vcmp.eq.s32.totalorder %v6089, 1
    %vm6114 = vcmp.eq.s32.totalorder %v6090, 1
    %vm6115 = vcmp.eq.s32.totalorder %v6091, 1
    %vm6116 = vcmp.eq.s32.totalorder %v6092, 1
    %vm6117 = vcmp.eq.s32.totalorder %v6093, 1
    %vm6118 = vcmp.eq.s32.totalorder %v6094, 1
    %vm6119 = vcmp.eq.s32.totalorder %v6095, 1
    %vm6120 = vcmp.eq.s32.totalorder %v6096, 1
    %vm6121 = vcmp.eq.s32.totalorder %v6097, 1
    %vm6122 = vcmp.eq.s32.totalorder %v6098, 1
    %vm6123 = vcmp.eq.s32.totalorder %v6099, 1
    %vm6124 = vcmp.eq.s32.totalorder %v6100, 1
    %vm6125 = vcmp.eq.s32.totalorder %v6101, 1
    %vm6126 = vcmp.eq.s32.totalorder %v6102, 1
    %vm6127 = vcmp.eq.s32.totalorder %v6103, 1
    %vm6128 = vcmp.eq.s32.totalorder %v6104, 1
    %vm6129 = vcmp.eq.s32.totalorder %v6105, 1
    %vm6130 = vcmp.eq.s32.totalorder %v6106, 1
    %vm6131 = vcmp.eq.s32.totalorder %v6107, 1
    %vm6132 = vcmp.eq.s32.totalorder %v6108, 1
    %v6133 = vsel %vm6109, %v5535, 0.0
    %v6134 = vsel %vm6110, %v5538, 0.0
    %v6135 = vsel %vm6111, %v5543, 0.0
    %v6136 = vsel %vm6112, %v5546, 0.0
    %v6137 = vsel %vm6113, %v5551, 0.0
    %v6138 = vsel %vm6114, %v5554, 0.0
    %v6139 = vsel %vm6115, %v5559, 0.0
    %v6140 = vsel %vm6116, %v5562, 0.0
    %v6141 = vsel %vm6117, %v5567, 0.0
    %v6142 = vsel %vm6118, %v5570, 0.0
    %v6143 = vsel %vm6119, %v5575, 0.0
    %v6144 = vsel %vm6120, %v5578, 0.0
    %v6145 = vsel %vm6121, %v5583, 0.0
    %v6146 = vsel %vm6122, %v5586, 0.0
    %v6147 = vsel %vm6123, %v5591, 0.0
    %v6148 = vsel %vm6124, %v5594, 0.0
    %v6149 = vsel %vm6125, %v5599, 0.0
    %v6150 = vsel %vm6126, %v5602, 0.0
    %v6151 = vsel %vm6127, %v5607, 0.0
    %v6152 = vsel %vm6128, %v5610, 0.0
    %v6153 = vsel %vm6129, %v5615, 0.0
    %v6154 = vsel %vm6130, %v5618, 0.0
    %v6155 = vsel %vm6131, %v5623, 0.0
    %v6156 = vsel %vm6132, %v5626, 0.0
    %v6157 = vsel %vm28, %v6133, 0.0
    %v6158 = vsel %vm28, %v6134, 0.0
    %v6159 = vadd.f32 %v6157, %v6158
    %v6160 = vsel %vm28, %v6135, 0.0
    %v6161 = vadd.f32 %v6159, %v6160
    %v6162 = vsel %vm28, %v6136, 0.0
    %v6163 = vadd.f32 %v6161, %v6162
    %v6164 = vsel %vm28, %v6137, 0.0
    %v6165 = vadd.f32 %v6163, %v6164
    %v6166 = vsel %vm28, %v6138, 0.0
    %v6167 = vadd.f32 %v6165, %v6166
    %v6168 = vsel %vm28, %v6139, 0.0
    %v6169 = vadd.f32 %v6167, %v6168
    %v6170 = vsel %vm28, %v6140, 0.0
    %v6171 = vadd.f32 %v6169, %v6170
    %v6172 = vsel %vm28, %v6141, 0.0
    %v6173 = vadd.f32 %v6171, %v6172
    %v6174 = vsel %vm28, %v6142, 0.0
    %v6175 = vadd.f32 %v6173, %v6174
    %v6176 = vsel %vm28, %v6143, 0.0
    %v6177 = vadd.f32 %v6175, %v6176
    %v6178 = vsel %vm28, %v6144, 0.0
    %v6179 = vadd.f32 %v6177, %v6178
    %v6180 = vsel %vm28, %v6145, 0.0
    %v6181 = vadd.f32 %v6179, %v6180
    %v6182 = vsel %vm28, %v6146, 0.0
    %v6183 = vadd.f32 %v6181, %v6182
    %v6184 = vsel %vm28, %v6147, 0.0
    %v6185 = vadd.f32 %v6183, %v6184
    %v6186 = vsel %vm28, %v6148, 0.0
    %v6187 = vadd.f32 %v6185, %v6186
    %v6188 = vsel %vm28, %v6149, 0.0
    %v6189 = vadd.f32 %v6187, %v6188
    %v6190 = vsel %vm28, %v6150, 0.0
    %v6191 = vadd.f32 %v6189, %v6190
    %v6192 = vsel %vm28, %v6151, 0.0
    %v6193 = vadd.f32 %v6191, %v6192
    %v6194 = vsel %vm28, %v6152, 0.0
    %v6195 = vadd.f32 %v6193, %v6194
    %v6196 = vsel %vm28, %v6153, 0.0
    %v6197 = vadd.f32 %v6195, %v6196
    %v6198 = vsel %vm28, %v6154, 0.0
    %v6199 = vadd.f32 %v6197, %v6198
    %v6200 = vsel %vm28, %v6155, 0.0
    %v6201 = vadd.f32 %v6199, %v6200
    %v6202 = vsel %vm28, %v6156, 0.0
    %v6203 = vadd.f32 %v6201, %v6202
    %v6204 = vrot.slane %v6203, 4
    %v6205 = vadd.f32 %v6203, %v6204
    %v6206 = vrot.slane %v6205, 2
    %v6207 = vadd.f32 %v6205, %v6206
    %v6208 = vrot.slane %v6207, 1
    %v6209 = vadd.f32 %v6207, %v6208
    %v6210 = vadd.f32 %v5349, %v6209
    %v6211 = vmul.f32 %v6133, %v5535
    %v6212 = vmul.f32 %v6134, %v5538
    %v6213 = vmul.f32 %v6135, %v5543
    %v6214 = vmul.f32 %v6136, %v5546
    %v6215 = vmul.f32 %v6137, %v5551
    %v6216 = vmul.f32 %v6138, %v5554
    %v6217 = vmul.f32 %v6139, %v5559
    %v6218 = vmul.f32 %v6140, %v5562
    %v6219 = vmul.f32 %v6141, %v5567
    %v6220 = vmul.f32 %v6142, %v5570
    %v6221 = vmul.f32 %v6143, %v5575
    %v6222 = vmul.f32 %v6144, %v5578
    %v6223 = vmul.f32 %v6145, %v5583
    %v6224 = vmul.f32 %v6146, %v5586
    %v6225 = vmul.f32 %v6147, %v5591
    %v6226 = vmul.f32 %v6148, %v5594
    %v6227 = vmul.f32 %v6149, %v5599
    %v6228 = vmul.f32 %v6150, %v5602
    %v6229 = vmul.f32 %v6151, %v5607
    %v6230 = vmul.f32 %v6152, %v5610
    %v6231 = vmul.f32 %v6153, %v5615
    %v6232 = vmul.f32 %v6154, %v5618
    %v6233 = vmul.f32 %v6155, %v5623
    %v6234 = vmul.f32 %v6156, %v5626
    %v6235 = vsel %vm28, %v6211, 0.0
    %v6236 = vsel %vm28, %v6212, 0.0
    %v6237 = vadd.f32 %v6235, %v6236
    %v6238 = vsel %vm28, %v6213, 0.0
    %v6239 = vadd.f32 %v6237, %v6238
    %v6240 = vsel %vm28, %v6214, 0.0
    %v6241 = vadd.f32 %v6239, %v6240
    %v6242 = vsel %vm28, %v6215, 0.0
    %v6243 = vadd.f32 %v6241, %v6242
    %v6244 = vsel %vm28, %v6216, 0.0
    %v6245 = vadd.f32 %v6243, %v6244
    %v6246 = vsel %vm28, %v6217, 0.0
    %v6247 = vadd.f32 %v6245, %v6246
    %v6248 = vsel %vm28, %v6218, 0.0
    %v6249 = vadd.f32 %v6247, %v6248
    %v6250 = vsel %vm28, %v6219, 0.0
    %v6251 = vadd.f32 %v6249, %v6250
    %v6252 = vsel %vm28, %v6220, 0.0
    %v6253 = vadd.f32 %v6251, %v6252
    %v6254 = vsel %vm28, %v6221, 0.0
    %v6255 = vadd.f32 %v6253, %v6254
    %v6256 = vsel %vm28, %v6222, 0.0
    %v6257 = vadd.f32 %v6255, %v6256
    %v6258 = vsel %vm28, %v6223, 0.0
    %v6259 = vadd.f32 %v6257, %v6258
    %v6260 = vsel %vm28, %v6224, 0.0
    %v6261 = vadd.f32 %v6259, %v6260
    %v6262 = vsel %vm28, %v6225, 0.0
    %v6263 = vadd.f32 %v6261, %v6262
    %v6264 = vsel %vm28, %v6226, 0.0
    %v6265 = vadd.f32 %v6263, %v6264
    %v6266 = vsel %vm28, %v6227, 0.0
    %v6267 = vadd.f32 %v6265, %v6266
    %v6268 = vsel %vm28, %v6228, 0.0
    %v6269 = vadd.f32 %v6267, %v6268
    %v6270 = vsel %vm28, %v6229, 0.0
    %v6271 = vadd.f32 %v6269, %v6270
    %v6272 = vsel %vm28, %v6230, 0.0
    %v6273 = vadd.f32 %v6271, %v6272
    %v6274 = vsel %vm28, %v6231, 0.0
    %v6275 = vadd.f32 %v6273, %v6274
    %v6276 = vsel %vm28, %v6232, 0.0
    %v6277 = vadd.f32 %v6275, %v6276
    %v6278 = vsel %vm28, %v6233, 0.0
    %v6279 = vadd.f32 %v6277, %v6278
    %v6280 = vsel %vm28, %v6234, 0.0
    %v6281 = vadd.f32 %v6279, %v6280
    %v6282 = vrot.slane %v6281, 4
    %v6283 = vadd.f32 %v6281, %v6282
    %v6284 = vrot.slane %v6283, 2
    %v6285 = vadd.f32 %v6283, %v6284
    %v6286 = vrot.slane %v6285, 1
    %v6287 = vadd.f32 %v6285, %v6286
    %v6288 = vadd.f32 %v5427, %v6287
    %v6289 = vmul.f32 %v6210, 0.001953125
    %v6290 = vmul.f32 %v6288, 0.001953125
    %v6291 = vmul.f32 %v6289, %v6289
    %v6292 = vsub.f32 %v6290, %v6291
    %v6293 = vld [vmem:[%s2] sm:$0x1]
    %v6294 = vadd.f32 %v6292, 1e-05
    %v6295 = vrsqrt.pop %v6294
    %v6296 = vmul.f32 %v6293, %v6295
    %v6297 = vld [vmem:[%s3] sm:$0x1]
    %v6298 = vmul.f32 %v6289, %v6296
    %v6299 = vsub.f32 %v6297, %v6298
    %v6300 = vld [vmem:[#allocation3] ss:$2 sm:$0xff]
    %s6301 = scalar_lea.vmem [#allocation3], 16
    %v6302 = vld [vmem:[%s6301] ss:$2 sm:$0xff]
    %s6303 = scalar_lea.vmem [#allocation3], 32
    %v6304 = vld [vmem:[%s6303] ss:$2 sm:$0xff]
    %s6305 = scalar_lea.vmem [#allocation3], 48
    %v6306 = vld [vmem:[%s6305] ss:$2 sm:$0xff]
    %s6307 = scalar_lea.vmem [#allocation3], 64
    %v6308 = vld [vmem:[%s6307] ss:$2 sm:$0xff]
    %s6309 = scalar_lea.vmem [#allocation3], 80
    %v6310 = vld [vmem:[%s6309] ss:$2 sm:$0xff]
    %s6311 = scalar_lea.vmem [#allocation3], 96
    %v6312 = vld [vmem:[%s6311] ss:$2 sm:$0xff]
    %s6313 = scalar_lea.vmem [#allocation3], 112
    %v6314 = vld [vmem:[%s6313] ss:$2 sm:$0xff]
    %s6315 = scalar_lea.vmem [#allocation3], 128
    %v6316 = vld [vmem:[%s6315] ss:$2 sm:$0xff]
    %s6317 = scalar_lea.vmem [#allocation3], 144
    %v6318 = vld [vmem:[%s6317] ss:$2 sm:$0xff]
    %s6319 = scalar_lea.vmem [#allocation3], 160
    %v6320 = vld [vmem:[%s6319] ss:$2 sm:$0xff]
    %s6321 = scalar_lea.vmem [#allocation3], 176
    %v6322 = vld [vmem:[%s6321] ss:$2 sm:$0xff]
    %s6323 = scalar_lea.vmem [#allocation3], 192
    %v6324 = vld [vmem:[%s6323] ss:$2 sm:$0xff]
    %s6325 = scalar_lea.vmem [#allocation3], 208
    %v6326 = vld [vmem:[%s6325] ss:$2 sm:$0xff]
    %s6327 = scalar_lea.vmem [#allocation3], 224
    %v6328 = vld [vmem:[%s6327] ss:$2 sm:$0xff]
    %s6329 = scalar_lea.vmem [#allocation3], 240
    %v6330 = vld [vmem:[%s6329] ss:$2 sm:$0xff]
    %s6331 = scalar_lea.vmem [#allocation3], 256
    %v6332 = vld [vmem:[%s6331] ss:$2 sm:$0xff]
    %s6333 = scalar_lea.vmem [#allocation3], 272
    %v6334 = vld [vmem:[%s6333] ss:$2 sm:$0xff]
    %s6335 = scalar_lea.vmem [#allocation3], 1
    %v6336 = vld [vmem:[%s6335] ss:$2 sm:$0xff]
    %s6337 = scalar_lea.vmem [#allocation3], 17
    %v6338 = vld [vmem:[%s6337] ss:$2 sm:$0xff]
    %s6339 = scalar_lea.vmem [#allocation3], 33
    %v6340 = vld [vmem:[%s6339] ss:$2 sm:$0xff]
    %s6341 = scalar_lea.vmem [#allocation3], 49
    %v6342 = vld [vmem:[%s6341] ss:$2 sm:$0xff]
    %s6343 = scalar_lea.vmem [#allocation3], 65
    %v6344 = vld [vmem:[%s6343] ss:$2 sm:$0xff]
    %s6345 = scalar_lea.vmem [#allocation3], 81
    %v6346 = vld [vmem:[%s6345] ss:$2 sm:$0xff]
    %s6347 = scalar_lea.vmem [#allocation3], 97
    %v6348 = vld [vmem:[%s6347] ss:$2 sm:$0xff]
    %s6349 = scalar_lea.vmem [#allocation3], 113
    %v6350 = vld [vmem:[%s6349] ss:$2 sm:$0xff]
    %s6351 = scalar_lea.vmem [#allocation3], 129
    %v6352 = vld [vmem:[%s6351] ss:$2 sm:$0xff]
    %s6353 = scalar_lea.vmem [#allocation3], 145
    %v6354 = vld [vmem:[%s6353] ss:$2 sm:$0xff]
    %s6355 = scalar_lea.vmem [#allocation3], 161
    %v6356 = vld [vmem:[%s6355] ss:$2 sm:$0xff]
    %s6357 = scalar_lea.vmem [#allocation3], 177
    %v6358 = vld [vmem:[%s6357] ss:$2 sm:$0xff]
    %s6359 = scalar_lea.vmem [#allocation3], 193
    %v6360 = vld [vmem:[%s6359] ss:$2 sm:$0xff]
    %s6361 = scalar_lea.vmem [#allocation3], 209
    %v6362 = vld [vmem:[%s6361] ss:$2 sm:$0xff]
    %s6363 = scalar_lea.vmem [#allocation3], 225
    %v6364 = vld [vmem:[%s6363] ss:$2 sm:$0xff]
    %s6365 = scalar_lea.vmem [#allocation3], 241
    %v6366 = vld [vmem:[%s6365] ss:$2 sm:$0xff]
    %s6367 = scalar_lea.vmem [#allocation3], 257
    %v6368 = vld [vmem:[%s6367] ss:$2 sm:$0xff]
    %s6369 = scalar_lea.vmem [#allocation3], 273
    %v6370 = vld [vmem:[%s6369] ss:$2 sm:$0xff]
    %v6372 = vlaneseq
    %v6373 = vshrl.u32 %v6372, 7
    %v6374 = vsub.s32 0, %v6373
    %v6375 = vrot.slane %v6296, %v6374
    %v6377 = vmul.f32 %v6300, %v6375
    %v6378 = vmul.f32 %v6302, %v6375
    %v6379 = vmul.f32 %v6304, %v6375
    %v6380 = vmul.f32 %v6306, %v6375
    %v6381 = vmul.f32 %v6308, %v6375
    %v6382 = vmul.f32 %v6310, %v6375
    %v6383 = vmul.f32 %v6312, %v6375
    %v6384 = vmul.f32 %v6314, %v6375
    %v6385 = vmul.f32 %v6316, %v6375
    %v6386 = vmul.f32 %v6318, %v6375
    %v6387 = vmul.f32 %v6320, %v6375
    %v6388 = vmul.f32 %v6322, %v6375
    %v6389 = vmul.f32 %v6324, %v6375
    %v6390 = vmul.f32 %v6326, %v6375
    %v6391 = vmul.f32 %v6328, %v6375
    %v6392 = vmul.f32 %v6330, %v6375
    %v6393 = vmul.f32 %v6332, %v6375
    %v6394 = vmul.f32 %v6334, %v6375
    %v6396 = vlaneseq
    %v6397 = vshrl.u32 %v6396, 7
    %v6398 = vsub.s32 0, %v6397
    %v6399 = vrot.slane %v6299, %v6398
    %v6401 = vadd.f32 %v6377, %v6399
    %v6402 = vadd.f32 %v6378, %v6399
    %v6403 = vadd.f32 %v6379, %v6399
    %v6404 = vadd.f32 %v6380, %v6399
    %v6405 = vadd.f32 %v6381, %v6399
    %v6406 = vadd.f32 %v6382, %v6399
    %v6407 = vadd.f32 %v6383, %v6399
    %v6408 = vadd.f32 %v6384, %v6399
    %v6409 = vadd.f32 %v6385, %v6399
    %v6410 = vadd.f32 %v6386, %v6399
    %v6411 = vadd.f32 %v6387, %v6399
    %v6412 = vadd.f32 %v6388, %v6399
    %v6413 = vadd.f32 %v6389, %v6399
    %v6414 = vadd.f32 %v6390, %v6399
    %v6415 = vadd.f32 %v6391, %v6399
    %v6416 = vadd.f32 %v6392, %v6399
    %v6417 = vadd.f32 %v6393, %v6399
    %v6418 = vadd.f32 %v6394, %v6399
    %v6419 = vmax.f32 %v6401, 0.0
    %v6420 = vmax.f32 %v6402, 0.0
    %v6421 = vmax.f32 %v6403, 0.0
    %v6422 = vmax.f32 %v6404, 0.0
    %v6423 = vmax.f32 %v6405, 0.0
    %v6424 = vmax.f32 %v6406, 0.0
    %v6425 = vmax.f32 %v6407, 0.0
    %v6426 = vmax.f32 %v6408, 0.0
    %v6427 = vmax.f32 %v6409, 0.0
    %v6428 = vmax.f32 %v6410, 0.0
    %v6429 = vmax.f32 %v6411, 0.0
    %v6430 = vmax.f32 %v6412, 0.0
    %v6431 = vmax.f32 %v6413, 0.0
    %v6432 = vmax.f32 %v6414, 0.0
    %v6433 = vmax.f32 %v6415, 0.0
    %v6434 = vmax.f32 %v6416, 0.0
    %v6435 = vmax.f32 %v6417, 0.0
    %v6436 = vmax.f32 %v6418, 0.0
    %v6437 = vmul.f32 %v6336, %v6375
    %v6438 = vmul.f32 %v6338, %v6375
    %v6439 = vmul.f32 %v6340, %v6375
    %v6440 = vmul.f32 %v6342, %v6375
    %v6441 = vmul.f32 %v6344, %v6375
    %v6442 = vmul.f32 %v6346, %v6375
    %v6443 = vmul.f32 %v6348, %v6375
    %v6444 = vmul.f32 %v6350, %v6375
    %v6445 = vmul.f32 %v6352, %v6375
    %v6446 = vmul.f32 %v6354, %v6375
    %v6447 = vmul.f32 %v6356, %v6375
    %v6448 = vmul.f32 %v6358, %v6375
    %v6449 = vmul.f32 %v6360, %v6375
    %v6450 = vmul.f32 %v6362, %v6375
    %v6451 = vmul.f32 %v6364, %v6375
    %v6452 = vmul.f32 %v6366, %v6375
    %v6453 = vmul.f32 %v6368, %v6375
    %v6454 = vmul.f32 %v6370, %v6375
    %v6455 = vadd.f32 %v6437, %v6399
    %v6456 = vadd.f32 %v6438, %v6399
    %v6457 = vadd.f32 %v6439, %v6399
    %v6458 = vadd.f32 %v6440, %v6399
    %v6459 = vadd.f32 %v6441, %v6399
    %v6460 = vadd.f32 %v6442, %v6399
    %v6461 = vadd.f32 %v6443, %v6399
    %v6462 = vadd.f32 %v6444, %v6399
    %v6463 = vadd.f32 %v6445, %v6399
    %v6464 = vadd.f32 %v6446, %v6399
    %v6465 = vadd.f32 %v6447, %v6399
    %v6466 = vadd.f32 %v6448, %v6399
    %v6467 = vadd.f32 %v6449, %v6399
    %v6468 = vadd.f32 %v6450, %v6399
    %v6469 = vadd.f32 %v6451, %v6399
    %v6470 = vadd.f32 %v6452, %v6399
    %v6471 = vadd.f32 %v6453, %v6399
    %v6472 = vadd.f32 %v6454, %v6399
    %v6473 = vmax.f32 %v6455, 0.0
    %v6474 = vmax.f32 %v6456, 0.0
    %v6475 = vmax.f32 %v6457, 0.0
    %v6476 = vmax.f32 %v6458, 0.0
    %v6477 = vmax.f32 %v6459, 0.0
    %v6478 = vmax.f32 %v6460, 0.0
    %v6479 = vmax.f32 %v6461, 0.0
    %v6480 = vmax.f32 %v6462, 0.0
    %v6481 = vmax.f32 %v6463, 0.0
    %v6482 = vmax.f32 %v6464, 0.0
    %v6483 = vmax.f32 %v6465, 0.0
    %v6484 = vmax.f32 %v6466, 0.0
    %v6485 = vmax.f32 %v6467, 0.0
    %v6486 = vmax.f32 %v6468, 0.0
    %v6487 = vmax.f32 %v6469, 0.0
    %v6488 = vmax.f32 %v6470, 0.0
    %v6489 = vmax.f32 %v6471, 0.0
    %v6490 = vmax.f32 %v6472, 0.0
    %v6491 = vmax.f32 %v6419, %v6473
    %v6492 = vmax.f32 %v6420, %v6474
    %v6493 = vmax.f32 %v6421, %v6475
    %v6494 = vmax.f32 %v6422, %v6476
    %v6495 = vmax.f32 %v6423, %v6477
    %v6496 = vmax.f32 %v6424, %v6478
    %v6497 = vmax.f32 %v6425, %v6479
    %v6498 = vmax.f32 %v6426, %v6480
    %v6499 = vmax.f32 %v6427, %v6481
    %v6500 = vmax.f32 %v6428, %v6482
    %v6501 = vmax.f32 %v6429, %v6483
    %v6502 = vmax.f32 %v6430, %v6484
    %v6503 = vmax.f32 %v6431, %v6485
    %v6504 = vmax.f32 %v6432, %v6486
    %v6505 = vmax.f32 %v6433, %v6487
    %v6506 = vmax.f32 %v6434, %v6488
    %v6507 = vmax.f32 %v6435, %v6489
    %v6508 = vmax.f32 %v6436, %v6490
    %6509 = vst.msk [vmem:[#allocation4] sm:$0xff] %vm28, %v6491
    %6510 = vst.msk [vmem:[#allocation4 + $0x8] sm:$0xff] %vm28, %v6492
    %6511 = vst.msk [vmem:[#allocation4 + $0x10] sm:$0xff] %vm28, %v6493
    %6512 = vst.msk [vmem:[#allocation4 + $0x18] sm:$0xff] %vm28, %v6494
    %6513 = vst.msk [vmem:[#allocation4 + $0x20] sm:$0xff] %vm28, %v6495
    %6514 = vst.msk [vmem:[#allocation4 + $0x28] sm:$0xff] %vm28, %v6496
    %6515 = vst.msk [vmem:[#allocation4 + $0x30] sm:$0xff] %vm28, %v6497
    %6516 = vst.msk [vmem:[#allocation4 + $0x38] sm:$0xff] %vm28, %v6498
    %6517 = vst.msk [vmem:[#allocation4 + $0x40] sm:$0xff] %vm28, %v6499
    %6518 = vst.msk [vmem:[#allocation4 + $0x48] sm:$0xff] %vm28, %v6500
    %6519 = vst.msk [vmem:[#allocation4 + $0x50] sm:$0xff] %vm28, %v6501
    %6520 = vst.msk [vmem:[#allocation4 + $0x58] sm:$0xff] %vm28, %v6502
    %6521 = vst.msk [vmem:[#allocation4 + $0x60] sm:$0xff] %vm28, %v6503
    %6522 = vst.msk [vmem:[#allocation4 + $0x68] sm:$0xff] %vm28, %v6504
    %6523 = vst.msk [vmem:[#allocation4 + $0x70] sm:$0xff] %vm28, %v6505
    %6524 = vst.msk [vmem:[#allocation4 + $0x78] sm:$0xff] %vm28, %v6506
    %6525 = vst.msk [vmem:[#allocation4 + $0x80] sm:$0xff] %vm28, %v6507
    %6526 = vst.msk [vmem:[#allocation4 + $0x88] sm:$0xff] %vm28, %v6508
    %s6527 = scalar_lea.vmem [#allocation3], 288
    %v6528 = vld [vmem:[%s6527] ss:$2 sm:$0xff]
    %s6529 = scalar_lea.vmem [#allocation3], 304
    %v6530 = vld [vmem:[%s6529] ss:$2 sm:$0xff]
    %s6531 = scalar_lea.vmem [#allocation3], 320
    %v6532 = vld [vmem:[%s6531] ss:$2 sm:$0xff]
    %s6533 = scalar_lea.vmem [#allocation3], 336
    %v6534 = vld [vmem:[%s6533] ss:$2 sm:$0xff]
    %s6535 = scalar_lea.vmem [#allocation3], 352
    %v6536 = vld [vmem:[%s6535] ss:$2 sm:$0xff]
    %s6537 = scalar_lea.vmem [#allocation3], 368
    %v6538 = vld [vmem:[%s6537] ss:$2 sm:$0xff]
    %s6539 = scalar_lea.vmem [#allocation3], 384
    %v6540 = vld [vmem:[%s6539] ss:$2 sm:$0xff]
    %s6541 = scalar_lea.vmem [#allocation3], 400
    %v6542 = vld [vmem:[%s6541] ss:$2 sm:$0xff]
    %s6543 = scalar_lea.vmem [#allocation3], 416
    %v6544 = vld [vmem:[%s6543] ss:$2 sm:$0xff]
    %s6545 = scalar_lea.vmem [#allocation3], 432
    %v6546 = vld [vmem:[%s6545] ss:$2 sm:$0xff]
    %s6547 = scalar_lea.vmem [#allocation3], 448
    %v6548 = vld [vmem:[%s6547] ss:$2 sm:$0xff]
    %s6549 = scalar_lea.vmem [#allocation3], 464
    %v6550 = vld [vmem:[%s6549] ss:$2 sm:$0xff]
    %s6551 = scalar_lea.vmem [#allocation3], 480
    %v6552 = vld [vmem:[%s6551] ss:$2 sm:$0xff]
    %s6553 = scalar_lea.vmem [#allocation3], 496
    %v6554 = vld [vmem:[%s6553] ss:$2 sm:$0xff]
    %s6555 = scalar_lea.vmem [#allocation3], 512
    %v6556 = vld [vmem:[%s6555] ss:$2 sm:$0xff]
    %s6557 = scalar_lea.vmem [#allocation3], 528
    %v6558 = vld [vmem:[%s6557] ss:$2 sm:$0xff]
    %s6559 = scalar_lea.vmem [#allocation3], 544
    %v6560 = vld [vmem:[%s6559] ss:$2 sm:$0xff]
    %s6561 = scalar_lea.vmem [#allocation3], 560
    %v6562 = vld [vmem:[%s6561] ss:$2 sm:$0xff]
    %s6563 = scalar_lea.vmem [#allocation3], 289
    %v6564 = vld [vmem:[%s6563] ss:$2 sm:$0xff]
    %s6565 = scalar_lea.vmem [#allocation3], 305
    %v6566 = vld [vmem:[%s6565] ss:$2 sm:$0xff]
    %s6567 = scalar_lea.vmem [#allocation3], 321
    %v6568 = vld [vmem:[%s6567] ss:$2 sm:$0xff]
    %s6569 = scalar_lea.vmem [#allocation3], 337
    %v6570 = vld [vmem:[%s6569] ss:$2 sm:$0xff]
    %s6571 = scalar_lea.vmem [#allocation3], 353
    %v6572 = vld [vmem:[%s6571] ss:$2 sm:$0xff]
    %s6573 = scalar_lea.vmem [#allocation3], 369
    %v6574 = vld [vmem:[%s6573] ss:$2 sm:$0xff]
    %s6575 = scalar_lea.vmem [#allocation3], 385
    %v6576 = vld [vmem:[%s6575] ss:$2 sm:$0xff]
    %s6577 = scalar_lea.vmem [#allocation3], 401
    %v6578 = vld [vmem:[%s6577] ss:$2 sm:$0xff]
    %s6579 = scalar_lea.vmem [#allocation3], 417
    %v6580 = vld [vmem:[%s6579] ss:$2 sm:$0xff]
    %s6581 = scalar_lea.vmem [#allocation3], 433
    %v6582 = vld [vmem:[%s6581] ss:$2 sm:$0xff]
    %s6583 = scalar_lea.vmem [#allocation3], 449
    %v6584 = vld [vmem:[%s6583] ss:$2 sm:$0xff]
    %s6585 = scalar_lea.vmem [#allocation3], 465
    %v6586 = vld [vmem:[%s6585] ss:$2 sm:$0xff]
    %s6587 = scalar_lea.vmem [#allocation3], 481
    %v6588 = vld [vmem:[%s6587] ss:$2 sm:$0xff]
    %s6589 = scalar_lea.vmem [#allocation3], 497
    %v6590 = vld [vmem:[%s6589] ss:$2 sm:$0xff]
    %s6591 = scalar_lea.vmem [#allocation3], 513
    %v6592 = vld [vmem:[%s6591] ss:$2 sm:$0xff]
    %s6593 = scalar_lea.vmem [#allocation3], 529
    %v6594 = vld [vmem:[%s6593] ss:$2 sm:$0xff]
    %s6595 = scalar_lea.vmem [#allocation3], 545
    %v6596 = vld [vmem:[%s6595] ss:$2 sm:$0xff]
    %s6597 = scalar_lea.vmem [#allocation3], 561
    %v6598 = vld [vmem:[%s6597] ss:$2 sm:$0xff]
    %v6599 = vmul.f32 %v6528, %v6375
    %v6600 = vmul.f32 %v6530, %v6375
    %v6601 = vmul.f32 %v6532, %v6375
    %v6602 = vmul.f32 %v6534, %v6375
    %v6603 = vmul.f32 %v6536, %v6375
    %v6604 = vmul.f32 %v6538, %v6375
    %v6605 = vmul.f32 %v6540, %v6375
    %v6606 = vmul.f32 %v6542, %v6375
    %v6607 = vmul.f32 %v6544, %v6375
    %v6608 = vmul.f32 %v6546, %v6375
    %v6609 = vmul.f32 %v6548, %v6375
    %v6610 = vmul.f32 %v6550, %v6375
    %v6611 = vmul.f32 %v6552, %v6375
    %v6612 = vmul.f32 %v6554, %v6375
    %v6613 = vmul.f32 %v6556, %v6375
    %v6614 = vmul.f32 %v6558, %v6375
    %v6615 = vmul.f32 %v6560, %v6375
    %v6616 = vmul.f32 %v6562, %v6375
    %v6617 = vadd.f32 %v6599, %v6399
    %v6618 = vadd.f32 %v6600, %v6399
    %v6619 = vadd.f32 %v6601, %v6399
    %v6620 = vadd.f32 %v6602, %v6399
    %v6621 = vadd.f32 %v6603, %v6399
    %v6622 = vadd.f32 %v6604, %v6399
    %v6623 = vadd.f32 %v6605, %v6399
    %v6624 = vadd.f32 %v6606, %v6399
    %v6625 = vadd.f32 %v6607, %v6399
    %v6626 = vadd.f32 %v6608, %v6399
    %v6627 = vadd.f32 %v6609, %v6399
    %v6628 = vadd.f32 %v6610, %v6399
    %v6629 = vadd.f32 %v6611, %v6399
    %v6630 = vadd.f32 %v6612, %v6399
    %v6631 = vadd.f32 %v6613, %v6399
    %v6632 = vadd.f32 %v6614, %v6399
    %v6633 = vadd.f32 %v6615, %v6399
    %v6634 = vadd.f32 %v6616, %v6399
    %v6635 = vmax.f32 %v6617, 0.0
    %v6636 = vmax.f32 %v6618, 0.0
    %v6637 = vmax.f32 %v6619, 0.0
    %v6638 = vmax.f32 %v6620, 0.0
    %v6639 = vmax.f32 %v6621, 0.0
    %v6640 = vmax.f32 %v6622, 0.0
    %v6641 = vmax.f32 %v6623, 0.0
    %v6642 = vmax.f32 %v6624, 0.0
    %v6643 = vmax.f32 %v6625, 0.0
    %v6644 = vmax.f32 %v6626, 0.0
    %v6645 = vmax.f32 %v6627, 0.0
    %v6646 = vmax.f32 %v6628, 0.0
    %v6647 = vmax.f32 %v6629, 0.0
    %v6648 = vmax.f32 %v6630, 0.0
    %v6649 = vmax.f32 %v6631, 0.0
    %v6650 = vmax.f32 %v6632, 0.0
    %v6651 = vmax.f32 %v6633, 0.0
    %v6652 = vmax.f32 %v6634, 0.0
    %v6653 = vmul.f32 %v6564, %v6375
    %v6654 = vmul.f32 %v6566, %v6375
    %v6655 = vmul.f32 %v6568, %v6375
    %v6656 = vmul.f32 %v6570, %v6375
    %v6657 = vmul.f32 %v6572, %v6375
    %v6658 = vmul.f32 %v6574, %v6375
    %v6659 = vmul.f32 %v6576, %v6375
    %v6660 = vmul.f32 %v6578, %v6375
    %v6661 = vmul.f32 %v6580, %v6375
    %v6662 = vmul.f32 %v6582, %v6375
    %v6663 = vmul.f32 %v6584, %v6375
    %v6664 = vmul.f32 %v6586, %v6375
    %v6665 = vmul.f32 %v6588, %v6375
    %v6666 = vmul.f32 %v6590, %v6375
    %v6667 = vmul.f32 %v6592, %v6375
    %v6668 = vmul.f32 %v6594, %v6375
    %v6669 = vmul.f32 %v6596, %v6375
    %v6670 = vmul.f32 %v6598, %v6375
    %v6671 = vadd.f32 %v6653, %v6399
    %v6672 = vadd.f32 %v6654, %v6399
    %v6673 = vadd.f32 %v6655, %v6399
    %v6674 = vadd.f32 %v6656, %v6399
    %v6675 = vadd.f32 %v6657, %v6399
    %v6676 = vadd.f32 %v6658, %v6399
    %v6677 = vadd.f32 %v6659, %v6399
    %v6678 = vadd.f32 %v6660, %v6399
    %v6679 = vadd.f32 %v6661, %v6399
    %v6680 = vadd.f32 %v6662, %v6399
    %v6681 = vadd.f32 %v6663, %v6399
    %v6682 = vadd.f32 %v6664, %v6399
    %v6683 = vadd.f32 %v6665, %v6399
    %v6684 = vadd.f32 %v6666, %v6399
    %v6685 = vadd.f32 %v6667, %v6399
    %v6686 = vadd.f32 %v6668, %v6399
    %v6687 = vadd.f32 %v6669, %v6399
    %v6688 = vadd.f32 %v6670, %v6399
    %v6689 = vmax.f32 %v6671, 0.0
    %v6690 = vmax.f32 %v6672, 0.0
    %v6691 = vmax.f32 %v6673, 0.0
    %v6692 = vmax.f32 %v6674, 0.0
    %v6693 = vmax.f32 %v6675, 0.0
    %v6694 = vmax.f32 %v6676, 0.0
    %v6695 = vmax.f32 %v6677, 0.0
    %v6696 = vmax.f32 %v6678, 0.0
    %v6697 = vmax.f32 %v6679, 0.0
    %v6698 = vmax.f32 %v6680, 0.0
    %v6699 = vmax.f32 %v6681, 0.0
    %v6700 = vmax.f32 %v6682, 0.0
    %v6701 = vmax.f32 %v6683, 0.0
    %v6702 = vmax.f32 %v6684, 0.0
    %v6703 = vmax.f32 %v6685, 0.0
    %v6704 = vmax.f32 %v6686, 0.0
    %v6705 = vmax.f32 %v6687, 0.0
    %v6706 = vmax.f32 %v6688, 0.0
    %v6707 = vmax.f32 %v6635, %v6689
    %v6708 = vmax.f32 %v6636, %v6690
    %v6709 = vmax.f32 %v6637, %v6691
    %v6710 = vmax.f32 %v6638, %v6692
    %v6711 = vmax.f32 %v6639, %v6693
    %v6712 = vmax.f32 %v6640, %v6694
    %v6713 = vmax.f32 %v6641, %v6695
    %v6714 = vmax.f32 %v6642, %v6696
    %v6715 = vmax.f32 %v6643, %v6697
    %v6716 = vmax.f32 %v6644, %v6698
    %v6717 = vmax.f32 %v6645, %v6699
    %v6718 = vmax.f32 %v6646, %v6700
    %v6719 = vmax.f32 %v6647, %v6701
    %v6720 = vmax.f32 %v6648, %v6702
    %v6721 = vmax.f32 %v6649, %v6703
    %v6722 = vmax.f32 %v6650, %v6704
    %v6723 = vmax.f32 %v6651, %v6705
    %v6724 = vmax.f32 %v6652, %v6706
    %6725 = vst.msk [vmem:[#allocation4 + $0x90] sm:$0xff] %vm28, %v6707
    %6726 = vst.msk [vmem:[#allocation4 + $0x98] sm:$0xff] %vm28, %v6708
    %6727 = vst.msk [vmem:[#allocation4 + $0xa0] sm:$0xff] %vm28, %v6709
    %6728 = vst.msk [vmem:[#allocation4 + $0xa8] sm:$0xff] %vm28, %v6710
    %6729 = vst.msk [vmem:[#allocation4 + $0xb0] sm:$0xff] %vm28, %v6711
    %6730 = vst.msk [vmem:[#allocation4 + $0xb8] sm:$0xff] %vm28, %v6712
    %6731 = vst.msk [vmem:[#allocation4 + $0xc0] sm:$0xff] %vm28, %v6713
    %6732 = vst.msk [vmem:[#allocation4 + $0xc8] sm:$0xff] %vm28, %v6714
    %6733 = vst.msk [vmem:[#allocation4 + $0xd0] sm:$0xff] %vm28, %v6715
    %6734 = vst.msk [vmem:[#allocation4 + $0xd8] sm:$0xff] %vm28, %v6716
    %6735 = vst.msk [vmem:[#allocation4 + $0xe0] sm:$0xff] %vm28, %v6717
    %6736 = vst.msk [vmem:[#allocation4 + $0xe8] sm:$0xff] %vm28, %v6718
    %6737 = vst.msk [vmem:[#allocation4 + $0xf0] sm:$0xff] %vm28, %v6719
    %6738 = vst.msk [vmem:[#allocation4 + $0xf8] sm:$0xff] %vm28, %v6720
    %6739 = vst.msk [vmem:[#allocation4 + $0x100] sm:$0xff] %vm28, %v6721
    %6740 = vst.msk [vmem:[#allocation4 + $0x108] sm:$0xff] %vm28, %v6722
    %6741 = vst.msk [vmem:[#allocation4 + $0x110] sm:$0xff] %vm28, %v6723
    %6742 = vst.msk [vmem:[#allocation4 + $0x118] sm:$0xff] %vm28, %v6724
    %v6743 = vld [vmem:[#allocation4] sm:$0xff]
    %v6744 = vld [vmem:[#allocation4 + $0x9] sm:$0xff]
    %v6745 = vmax.f32 %v6743, %v6744
    %6746 = vst.msk [vmem:[#allocation5 + $0xb] sm:$0xff] %vm28, %v6745
    %v6747 = vld [vmem:[#allocation4 + $0x12] sm:$0xff]
    %v6748 = vld [vmem:[#allocation4 + $0x1b] sm:$0xff]
    %v6749 = vmax.f32 %v6747, %v6748
    %6750 = vst.msk [vmem:[#allocation5 + $0x15] sm:$0xff] %vm28, %v6749
    %v6751 = vld [vmem:[#allocation4 + $0x24] sm:$0xff]
    %v6752 = vld [vmem:[#allocation4 + $0x2d] sm:$0xff]
    %v6753 = vmax.f32 %v6751, %v6752
    %6754 = vst.msk [vmem:[#allocation5 + $0x1f] sm:$0xff] %vm28, %v6753
    %v6755 = vld [vmem:[#allocation4 + $0x36] sm:$0xff]
    %v6756 = vld [vmem:[#allocation4 + $0x3f] sm:$0xff]
    %v6757 = vmax.f32 %v6755, %v6756
    %6758 = vst.msk [vmem:[#allocation5 + $0x29] sm:$0xff] %vm28, %v6757
    %v6759 = vld [vmem:[#allocation4 + $0x48] sm:$0xff]
    %v6760 = vld [vmem:[#allocation4 + $0x51] sm:$0xff]
    %v6761 = vmax.f32 %v6759, %v6760
    %6762 = vst.msk [vmem:[#allocation5 + $0x33] sm:$0xff] %vm28, %v6761
    %v6763 = vld [vmem:[#allocation4 + $0x5a] sm:$0xff]
    %v6764 = vld [vmem:[#allocation4 + $0x63] sm:$0xff]
    %v6765 = vmax.f32 %v6763, %v6764
    %6766 = vst.msk [vmem:[#allocation5 + $0x3d] sm:$0xff] %vm28, %v6765
    %v6767 = vld [vmem:[#allocation4 + $0x6c] sm:$0xff]
    %v6768 = vld [vmem:[#allocation4 + $0x75] sm:$0xff]
    %v6769 = vmax.f32 %v6767, %v6768
    %6770 = vst.msk [vmem:[#allocation5 + $0x47] sm:$0xff] %vm28, %v6769
    %v6771 = vld [vmem:[#allocation4 + $0x7e] sm:$0xff]
    %v6772 = vld [vmem:[#allocation4 + $0x87] sm:$0xff]
    %v6773 = vmax.f32 %v6771, %v6772
    %6774 = vst.msk [vmem:[#allocation5 + $0x51] sm:$0xff] %vm28, %v6773
    %v6775 = vld [vmem:[#allocation4 + $0x90] sm:$0xff]
    %v6776 = vld [vmem:[#allocation4 + $0x99] sm:$0xff]
    %v6777 = vmax.f32 %v6775, %v6776
    %6778 = vst.msk [vmem:[#allocation5 + $0x6f] sm:$0xff] %vm28, %v6777
    %v6779 = vld [vmem:[#allocation4 + $0xa2] sm:$0xff]
    %v6780 = vld [vmem:[#allocation4 + $0xab] sm:$0xff]
    %v6781 = vmax.f32 %v6779, %v6780
    %6782 = vst.msk [vmem:[#allocation5 + $0x79] sm:$0xff] %vm28, %v6781
    %v6783 = vld [vmem:[#allocation4 + $0xb4] sm:$0xff]
    %v6784 = vld [vmem:[#allocation4 + $0xbd] sm:$0xff]
    %v6785 = vmax.f32 %v6783, %v6784
    %6786 = vst.msk [vmem:[#allocation5 + $0x83] sm:$0xff] %vm28, %v6785
    %v6787 = vld [vmem:[#allocation4 + $0xc6] sm:$0xff]
    %v6788 = vld [vmem:[#allocation4 + $0xcf] sm:$0xff]
    %v6789 = vmax.f32 %v6787, %v6788
    %6790 = vst.msk [vmem:[#allocation5 + $0x8d] sm:$0xff] %vm28, %v6789
    %v6791 = vld [vmem:[#allocation4 + $0xd8] sm:$0xff]
    %v6792 = vld [vmem:[#allocation4 + $0xe1] sm:$0xff]
    %v6793 = vmax.f32 %v6791, %v6792
    %6794 = vst.msk [vmem:[#allocation5 + $0x97] sm:$0xff] %vm28, %v6793
    %v6795 = vld [vmem:[#allocation4 + $0xea] sm:$0xff]
    %v6796 = vld [vmem:[#allocation4 + $0xf3] sm:$0xff]
    %v6797 = vmax.f32 %v6795, %v6796
    %6798 = vst.msk [vmem:[#allocation5 + $0xa1] sm:$0xff] %vm28, %v6797
    %v6799 = vld [vmem:[#allocation4 + $0xfc] sm:$0xff]
    %v6800 = vld [vmem:[#allocation4 + $0x105] sm:$0xff]
    %v6801 = vmax.f32 %v6799, %v6800
    %6802 = vst.msk [vmem:[#allocation5 + $0xab] sm:$0xff] %vm28, %v6801
    %v6803 = vld [vmem:[#allocation4 + $0x10e] sm:$0xff]
    %v6804 = vld [vmem:[#allocation4 + $0x117] sm:$0xff]
    %v6805 = vmax.f32 %v6803, %v6804
    %6806 = vst.msk [vmem:[#allocation5 + $0xb5] sm:$0xff] %vm28, %v6805
    %v6807 = vld [vmem:[#allocation5] sm:$0xff]
    %v6808 = vld [vmem:[#allocation5 + $0x8] sm:$0xff]
    %v6809 = vld [vmem:[#allocation5 + $0x10] sm:$0xff]
    %v6810 = vld [vmem:[#allocation5 + $0x18] sm:$0xff]
    %v6811 = vld [vmem:[#allocation5 + $0x20] sm:$0xff]
    %v6812 = vld [vmem:[#allocation5 + $0x28] sm:$0xff]
    %v6813 = vld [vmem:[#allocation5 + $0x30] sm:$0xff]
    %v6814 = vld [vmem:[#allocation5 + $0x38] sm:$0xff]
    %v6815 = vld [vmem:[#allocation5 + $0x40] sm:$0xff]
    %v6816 = vld [vmem:[#allocation5 + $0x48] sm:$0xff]
    %6817 = vst.msk [vmem:[#allocation6] sm:$0xff] %vm28, %v6807
    %6818 = vst.msk [vmem:[#allocation6 + $0x28] sm:$0xff] %vm28, %v6808
    %6819 = vst.msk [vmem:[#allocation6 + $0x50] sm:$0xff] %vm28, %v6809
    %6820 = vst.msk [vmem:[#allocation6 + $0x78] sm:$0xff] %vm28, %v6810
    %6821 = vst.msk [vmem:[#allocation6 + $0xa0] sm:$0xff] %vm28, %v6811
    %6822 = vst.msk [vmem:[#allocation6 + $0xc8] sm:$0xff] %vm28, %v6812
    %6823 = vst.msk [vmem:[#allocation6 + $0xf0] sm:$0xff] %vm28, %v6813
    %6824 = vst.msk [vmem:[#allocation6 + $0x118] sm:$0xff] %vm28, %v6814
    %6825 = vst.msk [vmem:[#allocation6 + $0x140] sm:$0xff] %vm28, %v6815
    %6826 = vst.msk [vmem:[#allocation6 + $0x168] sm:$0xff] %vm28, %v6816
    %v6827 = vld [vmem:[#allocation5 + $0x1] sm:$0xff]
    %v6828 = vld [vmem:[#allocation5 + $0x9] sm:$0xff]
    %v6829 = vld [vmem:[#allocation5 + $0x11] sm:$0xff]
    %v6830 = vld [vmem:[#allocation5 + $0x19] sm:$0xff]
    %v6831 = vld [vmem:[#allocation5 + $0x21] sm:$0xff]
    %v6832 = vld [vmem:[#allocation5 + $0x29] sm:$0xff]
    %v6833 = vld [vmem:[#allocation5 + $0x31] sm:$0xff]
    %v6834 = vld [vmem:[#allocation5 + $0x39] sm:$0xff]
    %v6835 = vld [vmem:[#allocation5 + $0x41] sm:$0xff]
    %v6836 = vld [vmem:[#allocation5 + $0x49] sm:$0xff]
    %6847 = vrot.lane.b32.xlu0 %v6827, 64
    %v6848 = vpop.permute.xlu0 %6847
    %6849 = vrot.lane.b32.xlu0 %v6828, 64
    %v6850 = vpop.permute.xlu0 %6849
    %6851 = vrot.lane.b32.xlu0 %v6829, 64
    %v6852 = vpop.permute.xlu0 %6851
    %6853 = vrot.lane.b32.xlu0 %v6830, 64
    %v6854 = vpop.permute.xlu0 %6853
    %6855 = vrot.lane.b32.xlu0 %v6831, 64
    %v6856 = vpop.permute.xlu0 %6855
    %6857 = vrot.lane.b32.xlu0 %v6832, 64
    %v6858 = vpop.permute.xlu0 %6857
    %6859 = vrot.lane.b32.xlu0 %v6833, 64
    %v6860 = vpop.permute.xlu0 %6859
    %6861 = vrot.lane.b32.xlu0 %v6834, 64
    %v6862 = vpop.permute.xlu0 %6861
    %6863 = vrot.lane.b32.xlu0 %v6835, 64
    %v6864 = vpop.permute.xlu0 %6863
    %6865 = vrot.lane.b32.xlu0 %v6836, 64
    %v6866 = vpop.permute.xlu0 %6865
    %vm6877 = vcmask 1048064
    %6878 = vst.msk [vmem:[#allocation6] sm:$0xff] %vm6877, %v6848
    %6879 = vst.msk [vmem:[#allocation6 + $0x28] sm:$0xff] %vm6877, %v6850
    %6880 = vst.msk [vmem:[#allocation6 + $0x50] sm:$0xff] %vm6877, %v6852
    %6881 = vst.msk [vmem:[#allocation6 + $0x78] sm:$0xff] %vm6877, %v6854
    %6882 = vst.msk [vmem:[#allocation6 + $0xa0] sm:$0xff] %vm6877, %v6856
    %6883 = vst.msk [vmem:[#allocation6 + $0xc8] sm:$0xff] %vm6877, %v6858
    %6884 = vst.msk [vmem:[#allocation6 + $0xf0] sm:$0xff] %vm6877, %v6860
    %6885 = vst.msk [vmem:[#allocation6 + $0x118] sm:$0xff] %vm6877, %v6862
    %6886 = vst.msk [vmem:[#allocation6 + $0x140] sm:$0xff] %vm6877, %v6864
    %6887 = vst.msk [vmem:[#allocation6 + $0x168] sm:$0xff] %vm6877, %v6866
    %v6888 = vld [vmem:[#allocation5 + $0x2] sm:$0xff]
    %v6889 = vld [vmem:[#allocation5 + $0xa] sm:$0xff]
    %v6890 = vld [vmem:[#allocation5 + $0x12] sm:$0xff]
    %v6891 = vld [vmem:[#allocation5 + $0x1a] sm:$0xff]
    %v6892 = vld [vmem:[#allocation5 + $0x22] sm:$0xff]
    %v6893 = vld [vmem:[#allocation5 + $0x2a] sm:$0xff]
    %v6894 = vld [vmem:[#allocation5 + $0x32] sm:$0xff]
    %v6895 = vld [vmem:[#allocation5 + $0x3a] sm:$0xff]
    %v6896 = vld [vmem:[#allocation5 + $0x42] sm:$0xff]
    %v6897 = vld [vmem:[#allocation5 + $0x4a] sm:$0xff]
    %6898 = vst.msk [vmem:[#allocation6 + $0x8] sm:$0xff] %vm28, %v6888
    %6899 = vst.msk [vmem:[#allocation6 + $0x30] sm:$0xff] %vm28, %v6889
    %6900 = vst.msk [vmem:[#allocation6 + $0x58] sm:$0xff] %vm28, %v6890
    %6901 = vst.msk [vmem:[#allocation6 + $0x80] sm:$0xff] %vm28, %v6891
    %6902 = vst.msk [vmem:[#allocation6 + $0xa8] sm:$0xff] %vm28, %v6892
    %6903 = vst.msk [vmem:[#allocation6 + $0xd0] sm:$0xff] %vm28, %v6893
    %6904 = vst.msk [vmem:[#allocation6 + $0xf8] sm:$0xff] %vm28, %v6894
    %6905 = vst.msk [vmem:[#allocation6 + $0x120] sm:$0xff] %vm28, %v6895
    %6906 = vst.msk [vmem:[#allocation6 + $0x148] sm:$0xff] %vm28, %v6896
    %6907 = vst.msk [vmem:[#allocation6 + $0x170] sm:$0xff] %vm28, %v6897
    %v6908 = vld [vmem:[#allocation5 + $0xa] sm:$0xff]
    %v6909 = vld [vmem:[#allocation5 + $0x12] sm:$0xff]
    %v6910 = vld [vmem:[#allocation5 + $0x1a] sm:$0xff]
    %v6911 = vld [vmem:[#allocation5 + $0x22] sm:$0xff]
    %v6912 = vld [vmem:[#allocation5 + $0x2a] sm:$0xff]
    %v6913 = vld [vmem:[#allocation5 + $0x32] sm:$0xff]
    %v6914 = vld [vmem:[#allocation5 + $0x3a] sm:$0xff]
    %v6915 = vld [vmem:[#allocation5 + $0x42] sm:$0xff]
    %v6916 = vld [vmem:[#allocation5 + $0x4a] sm:$0xff]
    %v6917 = vld [vmem:[#allocation5 + $0x52] sm:$0xff]
    %6928 = vrot.lane.b32.xlu0 %v6908, 64
    %v6929 = vpop.permute.xlu0 %6928
    %6930 = vrot.lane.b32.xlu0 %v6909, 64
    %v6931 = vpop.permute.xlu0 %6930
    %6932 = vrot.lane.b32.xlu0 %v6910, 64
    %v6933 = vpop.permute.xlu0 %6932
    %6934 = vrot.lane.b32.xlu0 %v6911, 64
    %v6935 = vpop.permute.xlu0 %6934
    %6936 = vrot.lane.b32.xlu0 %v6912, 64
    %v6937 = vpop.permute.xlu0 %6936
    %6938 = vrot.lane.b32.xlu0 %v6913, 64
    %v6939 = vpop.permute.xlu0 %6938
    %6940 = vrot.lane.b32.xlu0 %v6914, 64
    %v6941 = vpop.permute.xlu0 %6940
    %6942 = vrot.lane.b32.xlu0 %v6915, 64
    %v6943 = vpop.permute.xlu0 %6942
    %6944 = vrot.lane.b32.xlu0 %v6916, 64
    %v6945 = vpop.permute.xlu0 %6944
    %6946 = vrot.lane.b32.xlu0 %v6917, 64
    %v6947 = vpop.permute.xlu0 %6946
    %6958 = vst.msk [vmem:[#allocation6 + $0x8] sm:$0xff] %vm6877, %v6929
    %6959 = vst.msk [vmem:[#allocation6 + $0x30] sm:$0xff] %vm6877, %v6931
    %6960 = vst.msk [vmem:[#allocation6 + $0x58] sm:$0xff] %vm6877, %v6933
    %6961 = vst.msk [vmem:[#allocation6 + $0x80] sm:$0xff] %vm6877, %v6935
    %6962 = vst.msk [vmem:[#allocation6 + $0xa8] sm:$0xff] %vm6877, %v6937
    %6963 = vst.msk [vmem:[#allocation6 + $0xd0] sm:$0xff] %vm6877, %v6939
    %6964 = vst.msk [vmem:[#allocation6 + $0xf8] sm:$0xff] %vm6877, %v6941
    %6965 = vst.msk [vmem:[#allocation6 + $0x120] sm:$0xff] %vm6877, %v6943
    %6966 = vst.msk [vmem:[#allocation6 + $0x148] sm:$0xff] %vm6877, %v6945
    %6967 = vst.msk [vmem:[#allocation6 + $0x170] sm:$0xff] %vm6877, %v6947
    %v6968 = vld [vmem:[#allocation5 + $0xb] sm:$0xff]
    %v6969 = vld [vmem:[#allocation5 + $0x13] sm:$0xff]
    %v6970 = vld [vmem:[#allocation5 + $0x1b] sm:$0xff]
    %v6971 = vld [vmem:[#allocation5 + $0x23] sm:$0xff]
    %v6972 = vld [vmem:[#allocation5 + $0x2b] sm:$0xff]
    %v6973 = vld [vmem:[#allocation5 + $0x33] sm:$0xff]
    %v6974 = vld [vmem:[#allocation5 + $0x3b] sm:$0xff]
    %v6975 = vld [vmem:[#allocation5 + $0x43] sm:$0xff]
    %v6976 = vld [vmem:[#allocation5 + $0x4b] sm:$0xff]
    %v6977 = vld [vmem:[#allocation5 + $0x53] sm:$0xff]
    %6978 = vst.msk [vmem:[#allocation6 + $0x10] sm:$0xff] %vm28, %v6968
    %6979 = vst.msk [vmem:[#allocation6 + $0x38] sm:$0xff] %vm28, %v6969
    %6980 = vst.msk [vmem:[#allocation6 + $0x60] sm:$0xff] %vm28, %v6970
    %6981 = vst.msk [vmem:[#allocation6 + $0x88] sm:$0xff] %vm28, %v6971
    %6982 = vst.msk [vmem:[#allocation6 + $0xb0] sm:$0xff] %vm28, %v6972
    %6983 = vst.msk [vmem:[#allocation6 + $0xd8] sm:$0xff] %vm28, %v6973
    %6984 = vst.msk [vmem:[#allocation6 + $0x100] sm:$0xff] %vm28, %v6974
    %6985 = vst.msk [vmem:[#allocation6 + $0x128] sm:$0xff] %vm28, %v6975
    %6986 = vst.msk [vmem:[#allocation6 + $0x150] sm:$0xff] %vm28, %v6976
    %6987 = vst.msk [vmem:[#allocation6 + $0x178] sm:$0xff] %vm28, %v6977
    %v6988 = vld [vmem:[#allocation5 + $0xc] sm:$0xff]
    %v6989 = vld [vmem:[#allocation5 + $0x14] sm:$0xff]
    %v6990 = vld [vmem:[#allocation5 + $0x1c] sm:$0xff]
    %v6991 = vld [vmem:[#allocation5 + $0x24] sm:$0xff]
    %v6992 = vld [vmem:[#allocation5 + $0x2c] sm:$0xff]
    %v6993 = vld [vmem:[#allocation5 + $0x34] sm:$0xff]
    %v6994 = vld [vmem:[#allocation5 + $0x3c] sm:$0xff]
    %v6995 = vld [vmem:[#allocation5 + $0x44] sm:$0xff]
    %v6996 = vld [vmem:[#allocation5 + $0x4c] sm:$0xff]
    %v6997 = vld [vmem:[#allocation5 + $0x54] sm:$0xff]
    %7008 = vrot.lane.b32.xlu0 %v6988, 64
    %v7009 = vpop.permute.xlu0 %7008
    %7010 = vrot.lane.b32.xlu0 %v6989, 64
    %v7011 = vpop.permute.xlu0 %7010
    %7012 = vrot.lane.b32.xlu0 %v6990, 64
    %v7013 = vpop.permute.xlu0 %7012
    %7014 = vrot.lane.b32.xlu0 %v6991, 64
    %v7015 = vpop.permute.xlu0 %7014
    %7016 = vrot.lane.b32.xlu0 %v6992, 64
    %v7017 = vpop.permute.xlu0 %7016
    %7018 = vrot.lane.b32.xlu0 %v6993, 64
    %v7019 = vpop.permute.xlu0 %7018
    %7020 = vrot.lane.b32.xlu0 %v6994, 64
    %v7021 = vpop.permute.xlu0 %7020
    %7022 = vrot.lane.b32.xlu0 %v6995, 64
    %v7023 = vpop.permute.xlu0 %7022
    %7024 = vrot.lane.b32.xlu0 %v6996, 64
    %v7025 = vpop.permute.xlu0 %7024
    %7026 = vrot.lane.b32.xlu0 %v6997, 64
    %v7027 = vpop.permute.xlu0 %7026
    %7038 = vst.msk [vmem:[#allocation6 + $0x10] sm:$0xff] %vm6877, %v7009
    %7039 = vst.msk [vmem:[#allocation6 + $0x38] sm:$0xff] %vm6877, %v7011
    %7040 = vst.msk [vmem:[#allocation6 + $0x60] sm:$0xff] %vm6877, %v7013
    %7041 = vst.msk [vmem:[#allocation6 + $0x88] sm:$0xff] %vm6877, %v7015
    %7042 = vst.msk [vmem:[#allocation6 + $0xb0] sm:$0xff] %vm6877, %v7017
    %7043 = vst.msk [vmem:[#allocation6 + $0xd8] sm:$0xff] %vm6877, %v7019
    %7044 = vst.msk [vmem:[#allocation6 + $0x100] sm:$0xff] %vm6877, %v7021
    %7045 = vst.msk [vmem:[#allocation6 + $0x128] sm:$0xff] %vm6877, %v7023
    %7046 = vst.msk [vmem:[#allocation6 + $0x150] sm:$0xff] %vm6877, %v7025
    %7047 = vst.msk [vmem:[#allocation6 + $0x178] sm:$0xff] %vm6877, %v7027
    %v7048 = vld [vmem:[#allocation5 + $0x14] sm:$0xff]
    %v7049 = vld [vmem:[#allocation5 + $0x1c] sm:$0xff]
    %v7050 = vld [vmem:[#allocation5 + $0x24] sm:$0xff]
    %v7051 = vld [vmem:[#allocation5 + $0x2c] sm:$0xff]
    %v7052 = vld [vmem:[#allocation5 + $0x34] sm:$0xff]
    %v7053 = vld [vmem:[#allocation5 + $0x3c] sm:$0xff]
    %v7054 = vld [vmem:[#allocation5 + $0x44] sm:$0xff]
    %v7055 = vld [vmem:[#allocation5 + $0x4c] sm:$0xff]
    %v7056 = vld [vmem:[#allocation5 + $0x54] sm:$0xff]
    %v7057 = vld [vmem:[#allocation5 + $0x5c] sm:$0xff]
    %7058 = vst.msk [vmem:[#allocation6 + $0x18] sm:$0xff] %vm28, %v7048
    %7059 = vst.msk [vmem:[#allocation6 + $0x40] sm:$0xff] %vm28, %v7049
    %7060 = vst.msk [vmem:[#allocation6 + $0x68] sm:$0xff] %vm28, %v7050
    %7061 = vst.msk [vmem:[#allocation6 + $0x90] sm:$0xff] %vm28, %v7051
    %7062 = vst.msk [vmem:[#allocation6 + $0xb8] sm:$0xff] %vm28, %v7052
    %7063 = vst.msk [vmem:[#allocation6 + $0xe0] sm:$0xff] %vm28, %v7053
    %7064 = vst.msk [vmem:[#allocation6 + $0x108] sm:$0xff] %vm28, %v7054
    %7065 = vst.msk [vmem:[#allocation6 + $0x130] sm:$0xff] %vm28, %v7055
    %7066 = vst.msk [vmem:[#allocation6 + $0x158] sm:$0xff] %vm28, %v7056
    %7067 = vst.msk [vmem:[#allocation6 + $0x180] sm:$0xff] %vm28, %v7057
    %v7068 = vld [vmem:[#allocation5 + $0x15] sm:$0xff]
    %v7069 = vld [vmem:[#allocation5 + $0x1d] sm:$0xff]
    %v7070 = vld [vmem:[#allocation5 + $0x25] sm:$0xff]
    %v7071 = vld [vmem:[#allocation5 + $0x2d] sm:$0xff]
    %v7072 = vld [vmem:[#allocation5 + $0x35] sm:$0xff]
    %v7073 = vld [vmem:[#allocation5 + $0x3d] sm:$0xff]
    %v7074 = vld [vmem:[#allocation5 + $0x45] sm:$0xff]
    %v7075 = vld [vmem:[#allocation5 + $0x4d] sm:$0xff]
    %v7076 = vld [vmem:[#allocation5 + $0x55] sm:$0xff]
    %v7077 = vld [vmem:[#allocation5 + $0x5d] sm:$0xff]
    %7088 = vrot.lane.b32.xlu0 %v7068, 64
    %v7089 = vpop.permute.xlu0 %7088
    %7090 = vrot.lane.b32.xlu0 %v7069, 64
    %v7091 = vpop.permute.xlu0 %7090
    %7092 = vrot.lane.b32.xlu0 %v7070, 64
    %v7093 = vpop.permute.xlu0 %7092
    %7094 = vrot.lane.b32.xlu0 %v7071, 64
    %v7095 = vpop.permute.xlu0 %7094
    %7096 = vrot.lane.b32.xlu0 %v7072, 64
    %v7097 = vpop.permute.xlu0 %7096
    %7098 = vrot.lane.b32.xlu0 %v7073, 64
    %v7099 = vpop.permute.xlu0 %7098
    %7100 = vrot.lane.b32.xlu0 %v7074, 64
    %v7101 = vpop.permute.xlu0 %7100
    %7102 = vrot.lane.b32.xlu0 %v7075, 64
    %v7103 = vpop.permute.xlu0 %7102
    %7104 = vrot.lane.b32.xlu0 %v7076, 64
    %v7105 = vpop.permute.xlu0 %7104
    %7106 = vrot.lane.b32.xlu0 %v7077, 64
    %v7107 = vpop.permute.xlu0 %7106
    %7118 = vst.msk [vmem:[#allocation6 + $0x18] sm:$0xff] %vm6877, %v7089
    %7119 = vst.msk [vmem:[#allocation6 + $0x40] sm:$0xff] %vm6877, %v7091
    %7120 = vst.msk [vmem:[#allocation6 + $0x68] sm:$0xff] %vm6877, %v7093
    %7121 = vst.msk [vmem:[#allocation6 + $0x90] sm:$0xff] %vm6877, %v7095
    %7122 = vst.msk [vmem:[#allocation6 + $0xb8] sm:$0xff] %vm6877, %v7097
    %7123 = vst.msk [vmem:[#allocation6 + $0xe0] sm:$0xff] %vm6877, %v7099
    %7124 = vst.msk [vmem:[#allocation6 + $0x108] sm:$0xff] %vm6877, %v7101
    %7125 = vst.msk [vmem:[#allocation6 + $0x130] sm:$0xff] %vm6877, %v7103
    %7126 = vst.msk [vmem:[#allocation6 + $0x158] sm:$0xff] %vm6877, %v7105
    %7127 = vst.msk [vmem:[#allocation6 + $0x180] sm:$0xff] %vm6877, %v7107
    %v7128 = vld [vmem:[#allocation5 + $0x16] sm:$0xff]
    %v7129 = vld [vmem:[#allocation5 + $0x1e] sm:$0xff]
    %v7130 = vld [vmem:[#allocation5 + $0x26] sm:$0xff]
    %v7131 = vld [vmem:[#allocation5 + $0x2e] sm:$0xff]
    %v7132 = vld [vmem:[#allocation5 + $0x36] sm:$0xff]
    %v7133 = vld [vmem:[#allocation5 + $0x3e] sm:$0xff]
    %v7134 = vld [vmem:[#allocation5 + $0x46] sm:$0xff]
    %v7135 = vld [vmem:[#allocation5 + $0x4e] sm:$0xff]
    %v7136 = vld [vmem:[#allocation5 + $0x56] sm:$0xff]
    %v7137 = vld [vmem:[#allocation5 + $0x5e] sm:$0xff]
    %7138 = vst.msk [vmem:[#allocation6 + $0x20] sm:$0xff] %vm28, %v7128
    %7139 = vst.msk [vmem:[#allocation6 + $0x48] sm:$0xff] %vm28, %v7129
    %7140 = vst.msk [vmem:[#allocation6 + $0x70] sm:$0xff] %vm28, %v7130
    %7141 = vst.msk [vmem:[#allocation6 + $0x98] sm:$0xff] %vm28, %v7131
    %7142 = vst.msk [vmem:[#allocation6 + $0xc0] sm:$0xff] %vm28, %v7132
    %7143 = vst.msk [vmem:[#allocation6 + $0xe8] sm:$0xff] %vm28, %v7133
    %7144 = vst.msk [vmem:[#allocation6 + $0x110] sm:$0xff] %vm28, %v7134
    %7145 = vst.msk [vmem:[#allocation6 + $0x138] sm:$0xff] %vm28, %v7135
    %7146 = vst.msk [vmem:[#allocation6 + $0x160] sm:$0xff] %vm28, %v7136
    %7147 = vst.msk [vmem:[#allocation6 + $0x188] sm:$0xff] %vm28, %v7137
    %v7148 = vld [vmem:[#allocation5 + $0x64] sm:$0xff]
    %v7149 = vld [vmem:[#allocation5 + $0x6c] sm:$0xff]
    %v7150 = vld [vmem:[#allocation5 + $0x74] sm:$0xff]
    %v7151 = vld [vmem:[#allocation5 + $0x7c] sm:$0xff]
    %v7152 = vld [vmem:[#allocation5 + $0x84] sm:$0xff]
    %v7153 = vld [vmem:[#allocation5 + $0x8c] sm:$0xff]
    %v7154 = vld [vmem:[#allocation5 + $0x94] sm:$0xff]
    %v7155 = vld [vmem:[#allocation5 + $0x9c] sm:$0xff]
    %v7156 = vld [vmem:[#allocation5 + $0xa4] sm:$0xff]
    %v7157 = vld [vmem:[#allocation5 + $0xac] sm:$0xff]
    %7158 = vst.msk [vmem:[#allocation6 + $0x190] sm:$0xff] %vm28, %v7148
    %7159 = vst.msk [vmem:[#allocation6 + $0x1b8] sm:$0xff] %vm28, %v7149
    %7160 = vst.msk [vmem:[#allocation6 + $0x1e0] sm:$0xff] %vm28, %v7150
    %7161 = vst.msk [vmem:[#allocation6 + $0x208] sm:$0xff] %vm28, %v7151
    %7162 = vst.msk [vmem:[#allocation6 + $0x230] sm:$0xff] %vm28, %v7152
    %7163 = vst.msk [vmem:[#allocation6 + $0x258] sm:$0xff] %vm28, %v7153
    %7164 = vst.msk [vmem:[#allocation6 + $0x280] sm:$0xff] %vm28, %v7154
    %7165 = vst.msk [vmem:[#allocation6 + $0x2a8] sm:$0xff] %vm28, %v7155
    %7166 = vst.msk [vmem:[#allocation6 + $0x2d0] sm:$0xff] %vm28, %v7156
    %7167 = vst.msk [vmem:[#allocation6 + $0x2f8] sm:$0xff] %vm28, %v7157
    %v7168 = vld [vmem:[#allocation5 + $0x65] sm:$0xff]
    %v7169 = vld [vmem:[#allocation5 + $0x6d] sm:$0xff]
    %v7170 = vld [vmem:[#allocation5 + $0x75] sm:$0xff]
    %v7171 = vld [vmem:[#allocation5 + $0x7d] sm:$0xff]
    %v7172 = vld [vmem:[#allocation5 + $0x85] sm:$0xff]
    %v7173 = vld [vmem:[#allocation5 + $0x8d] sm:$0xff]
    %v7174 = vld [vmem:[#allocation5 + $0x95] sm:$0xff]
    %v7175 = vld [vmem:[#allocation5 + $0x9d] sm:$0xff]
    %v7176 = vld [vmem:[#allocation5 + $0xa5] sm:$0xff]
    %v7177 = vld [vmem:[#allocation5 + $0xad] sm:$0xff]
    %7188 = vrot.lane.b32.xlu0 %v7168, 64
    %v7189 = vpop.permute.xlu0 %7188
    %7190 = vrot.lane.b32.xlu0 %v7169, 64
    %v7191 = vpop.permute.xlu0 %7190
    %7192 = vrot.lane.b32.xlu0 %v7170, 64
    %v7193 = vpop.permute.xlu0 %7192
    %7194 = vrot.lane.b32.xlu0 %v7171, 64
    %v7195 = vpop.permute.xlu0 %7194
    %7196 = vrot.lane.b32.xlu0 %v7172, 64
    %v7197 = vpop.permute.xlu0 %7196
    %7198 = vrot.lane.b32.xlu0 %v7173, 64
    %v7199 = vpop.permute.xlu0 %7198
    %7200 = vrot.lane.b32.xlu0 %v7174, 64
    %v7201 = vpop.permute.xlu0 %7200
    %7202 = vrot.lane.b32.xlu0 %v7175, 64
    %v7203 = vpop.permute.xlu0 %7202
    %7204 = vrot.lane.b32.xlu0 %v7176, 64
    %v7205 = vpop.permute.xlu0 %7204
    %7206 = vrot.lane.b32.xlu0 %v7177, 64
    %v7207 = vpop.permute.xlu0 %7206
    %7218 = vst.msk [vmem:[#allocation6 + $0x190] sm:$0xff] %vm6877, %v7189
    %7219 = vst.msk [vmem:[#allocation6 + $0x1b8] sm:$0xff] %vm6877, %v7191
    %7220 = vst.msk [vmem:[#allocation6 + $0x1e0] sm:$0xff] %vm6877, %v7193
    %7221 = vst.msk [vmem:[#allocation6 + $0x208] sm:$0xff] %vm6877, %v7195
    %7222 = vst.msk [vmem:[#allocation6 + $0x230] sm:$0xff] %vm6877, %v7197
    %7223 = vst.msk [vmem:[#allocation6 + $0x258] sm:$0xff] %vm6877, %v7199
    %7224 = vst.msk [vmem:[#allocation6 + $0x280] sm:$0xff] %vm6877, %v7201
    %7225 = vst.msk [vmem:[#allocation6 + $0x2a8] sm:$0xff] %vm6877, %v7203
    %7226 = vst.msk [vmem:[#allocation6 + $0x2d0] sm:$0xff] %vm6877, %v7205
    %7227 = vst.msk [vmem:[#allocation6 + $0x2f8] sm:$0xff] %vm6877, %v7207
    %v7228 = vld [vmem:[#allocation5 + $0x66] sm:$0xff]
    %v7229 = vld [vmem:[#allocation5 + $0x6e] sm:$0xff]
    %v7230 = vld [vmem:[#allocation5 + $0x76] sm:$0xff]
    %v7231 = vld [vmem:[#allocation5 + $0x7e] sm:$0xff]
    %v7232 = vld [vmem:[#allocation5 + $0x86] sm:$0xff]
    %v7233 = vld [vmem:[#allocation5 + $0x8e] sm:$0xff]
    %v7234 = vld [vmem:[#allocation5 + $0x96] sm:$0xff]
    %v7235 = vld [vmem:[#allocation5 + $0x9e] sm:$0xff]
    %v7236 = vld [vmem:[#allocation5 + $0xa6] sm:$0xff]
    %v7237 = vld [vmem:[#allocation5 + $0xae] sm:$0xff]
    %7238 = vst.msk [vmem:[#allocation6 + $0x198] sm:$0xff] %vm28, %v7228
    %7239 = vst.msk [vmem:[#allocation6 + $0x1c0] sm:$0xff] %vm28, %v7229
    %7240 = vst.msk [vmem:[#allocation6 + $0x1e8] sm:$0xff] %vm28, %v7230
    %7241 = vst.msk [vmem:[#allocation6 + $0x210] sm:$0xff] %vm28, %v7231
    %7242 = vst.msk [vmem:[#allocation6 + $0x238] sm:$0xff] %vm28, %v7232
    %7243 = vst.msk [vmem:[#allocation6 + $0x260] sm:$0xff] %vm28, %v7233
    %7244 = vst.msk [vmem:[#allocation6 + $0x288] sm:$0xff] %vm28, %v7234
    %7245 = vst.msk [vmem:[#allocation6 + $0x2b0] sm:$0xff] %vm28, %v7235
    %7246 = vst.msk [vmem:[#allocation6 + $0x2d8] sm:$0xff] %vm28, %v7236
    %7247 = vst.msk [vmem:[#allocation6 + $0x300] sm:$0xff] %vm28, %v7237
    %v7248 = vld [vmem:[#allocation5 + $0x6e] sm:$0xff]
    %v7249 = vld [vmem:[#allocation5 + $0x76] sm:$0xff]
    %v7250 = vld [vmem:[#allocation5 + $0x7e] sm:$0xff]
    %v7251 = vld [vmem:[#allocation5 + $0x86] sm:$0xff]
    %v7252 = vld [vmem:[#allocation5 + $0x8e] sm:$0xff]
    %v7253 = vld [vmem:[#allocation5 + $0x96] sm:$0xff]
    %v7254 = vld [vmem:[#allocation5 + $0x9e] sm:$0xff]
    %v7255 = vld [vmem:[#allocation5 + $0xa6] sm:$0xff]
    %v7256 = vld [vmem:[#allocation5 + $0xae] sm:$0xff]
    %v7257 = vld [vmem:[#allocation5 + $0xb6] sm:$0xff]
    %7268 = vrot.lane.b32.xlu0 %v7248, 64
    %v7269 = vpop.permute.xlu0 %7268
    %7270 = vrot.lane.b32.xlu0 %v7249, 64
    %v7271 = vpop.permute.xlu0 %7270
    %7272 = vrot.lane.b32.xlu0 %v7250, 64
    %v7273 = vpop.permute.xlu0 %7272
    %7274 = vrot.lane.b32.xlu0 %v7251, 64
    %v7275 = vpop.permute.xlu0 %7274
    %7276 = vrot.lane.b32.xlu0 %v7252, 64
    %v7277 = vpop.permute.xlu0 %7276
    %7278 = vrot.lane.b32.xlu0 %v7253, 64
    %v7279 = vpop.permute.xlu0 %7278
    %7280 = vrot.lane.b32.xlu0 %v7254, 64
    %v7281 = vpop.permute.xlu0 %7280
    %7282 = vrot.lane.b32.xlu0 %v7255, 64
    %v7283 = vpop.permute.xlu0 %7282
    %7284 = vrot.lane.b32.xlu0 %v7256, 64
    %v7285 = vpop.permute.xlu0 %7284
    %7286 = vrot.lane.b32.xlu0 %v7257, 64
    %v7287 = vpop.permute.xlu0 %7286
    %7298 = vst.msk [vmem:[#allocation6 + $0x198] sm:$0xff] %vm6877, %v7269
    %7299 = vst.msk [vmem:[#allocation6 + $0x1c0] sm:$0xff] %vm6877, %v7271
    %7300 = vst.msk [vmem:[#allocation6 + $0x1e8] sm:$0xff] %vm6877, %v7273
    %7301 = vst.msk [vmem:[#allocation6 + $0x210] sm:$0xff] %vm6877, %v7275
    %7302 = vst.msk [vmem:[#allocation6 + $0x238] sm:$0xff] %vm6877, %v7277
    %7303 = vst.msk [vmem:[#allocation6 + $0x260] sm:$0xff] %vm6877, %v7279
    %7304 = vst.msk [vmem:[#allocation6 + $0x288] sm:$0xff] %vm6877, %v7281
    %7305 = vst.msk [vmem:[#allocation6 + $0x2b0] sm:$0xff] %vm6877, %v7283
    %7306 = vst.msk [vmem:[#allocation6 + $0x2d8] sm:$0xff] %vm6877, %v7285
    %7307 = vst.msk [vmem:[#allocation6 + $0x300] sm:$0xff] %vm6877, %v7287
    %v7308 = vld [vmem:[#allocation5 + $0x6f] sm:$0xff]
    %v7309 = vld [vmem:[#allocation5 + $0x77] sm:$0xff]
    %v7310 = vld [vmem:[#allocation5 + $0x7f] sm:$0xff]
    %v7311 = vld [vmem:[#allocation5 + $0x87] sm:$0xff]
    %v7312 = vld [vmem:[#allocation5 + $0x8f] sm:$0xff]
    %v7313 = vld [vmem:[#allocation5 + $0x97] sm:$0xff]
    %v7314 = vld [vmem:[#allocation5 + $0x9f] sm:$0xff]
    %v7315 = vld [vmem:[#allocation5 + $0xa7] sm:$0xff]
    %v7316 = vld [vmem:[#allocation5 + $0xaf] sm:$0xff]
    %v7317 = vld [vmem:[#allocation5 + $0xb7] sm:$0xff]
    %7318 = vst.msk [vmem:[#allocation6 + $0x1a0] sm:$0xff] %vm28, %v7308
    %7319 = vst.msk [vmem:[#allocation6 + $0x1c8] sm:$0xff] %vm28, %v7309
    %7320 = vst.msk [vmem:[#allocation6 + $0x1f0] sm:$0xff] %vm28, %v7310
    %7321 = vst.msk [vmem:[#allocation6 + $0x218] sm:$0xff] %vm28, %v7311
    %7322 = vst.msk [vmem:[#allocation6 + $0x240] sm:$0xff] %vm28, %v7312
    %7323 = vst.msk [vmem:[#allocation6 + $0x268] sm:$0xff] %vm28, %v7313
    %7324 = vst.msk [vmem:[#allocation6 + $0x290] sm:$0xff] %vm28, %v7314
    %7325 = vst.msk [vmem:[#allocation6 + $0x2b8] sm:$0xff] %vm28, %v7315
    %7326 = vst.msk [vmem:[#allocation6 + $0x2e0] sm:$0xff] %vm28, %v7316
    %7327 = vst.msk [vmem:[#allocation6 + $0x308] sm:$0xff] %vm28, %v7317
    %v7328 = vld [vmem:[#allocation5 + $0x70] sm:$0xff]
    %v7329 = vld [vmem:[#allocation5 + $0x78] sm:$0xff]
    %v7330 = vld [vmem:[#allocation5 + $0x80] sm:$0xff]
    %v7331 = vld [vmem:[#allocation5 + $0x88] sm:$0xff]
    %v7332 = vld [vmem:[#allocation5 + $0x90] sm:$0xff]
    %v7333 = vld [vmem:[#allocation5 + $0x98] sm:$0xff]
    %v7334 = vld [vmem:[#allocation5 + $0xa0] sm:$0xff]
    %v7335 = vld [vmem:[#allocation5 + $0xa8] sm:$0xff]
    %v7336 = vld [vmem:[#allocation5 + $0xb0] sm:$0xff]
    %v7337 = vld [vmem:[#allocation5 + $0xb8] sm:$0xff]
    %7348 = vrot.lane.b32.xlu0 %v7328, 64
    %v7349 = vpop.permute.xlu0 %7348
    %7350 = vrot.lane.b32.xlu0 %v7329, 64
    %v7351 = vpop.permute.xlu0 %7350
    %7352 = vrot.lane.b32.xlu0 %v7330, 64
    %v7353 = vpop.permute.xlu0 %7352
    %7354 = vrot.lane.b32.xlu0 %v7331, 64
    %v7355 = vpop.permute.xlu0 %7354
    %7356 = vrot.lane.b32.xlu0 %v7332, 64
    %v7357 = vpop.permute.xlu0 %7356
    %7358 = vrot.lane.b32.xlu0 %v7333, 64
    %v7359 = vpop.permute.xlu0 %7358
    %7360 = vrot.lane.b32.xlu0 %v7334, 64
    %v7361 = vpop.permute.xlu0 %7360
    %7362 = vrot.lane.b32.xlu0 %v7335, 64
    %v7363 = vpop.permute.xlu0 %7362
    %7364 = vrot.lane.b32.xlu0 %v7336, 64
    %v7365 = vpop.permute.xlu0 %7364
    %7366 = vrot.lane.b32.xlu0 %v7337, 64
    %v7367 = vpop.permute.xlu0 %7366
    %7378 = vst.msk [vmem:[#allocation6 + $0x1a0] sm:$0xff] %vm6877, %v7349
    %7379 = vst.msk [vmem:[#allocation6 + $0x1c8] sm:$0xff] %vm6877, %v7351
    %7380 = vst.msk [vmem:[#allocation6 + $0x1f0] sm:$0xff] %vm6877, %v7353
    %7381 = vst.msk [vmem:[#allocation6 + $0x218] sm:$0xff] %vm6877, %v7355
    %7382 = vst.msk [vmem:[#allocation6 + $0x240] sm:$0xff] %vm6877, %v7357
    %7383 = vst.msk [vmem:[#allocation6 + $0x268] sm:$0xff] %vm6877, %v7359
    %7384 = vst.msk [vmem:[#allocation6 + $0x290] sm:$0xff] %vm6877, %v7361
    %7385 = vst.msk [vmem:[#allocation6 + $0x2b8] sm:$0xff] %vm6877, %v7363
    %7386 = vst.msk [vmem:[#allocation6 + $0x2e0] sm:$0xff] %vm6877, %v7365
    %7387 = vst.msk [vmem:[#allocation6 + $0x308] sm:$0xff] %vm6877, %v7367
    %v7388 = vld [vmem:[#allocation5 + $0x78] sm:$0xff]
    %v7389 = vld [vmem:[#allocation5 + $0x80] sm:$0xff]
    %v7390 = vld [vmem:[#allocation5 + $0x88] sm:$0xff]
    %v7391 = vld [vmem:[#allocation5 + $0x90] sm:$0xff]
    %v7392 = vld [vmem:[#allocation5 + $0x98] sm:$0xff]
    %v7393 = vld [vmem:[#allocation5 + $0xa0] sm:$0xff]
    %v7394 = vld [vmem:[#allocation5 + $0xa8] sm:$0xff]
    %v7395 = vld [vmem:[#allocation5 + $0xb0] sm:$0xff]
    %v7396 = vld [vmem:[#allocation5 + $0xb8] sm:$0xff]
    %v7397 = vld [vmem:[#allocation5 + $0xc0] sm:$0xff]
    %7398 = vst.msk [vmem:[#allocation6 + $0x1a8] sm:$0xff] %vm28, %v7388
    %7399 = vst.msk [vmem:[#allocation6 + $0x1d0] sm:$0xff] %vm28, %v7389
    %7400 = vst.msk [vmem:[#allocation6 + $0x1f8] sm:$0xff] %vm28, %v7390
    %7401 = vst.msk [vmem:[#allocation6 + $0x220] sm:$0xff] %vm28, %v7391
    %7402 = vst.msk [vmem:[#allocation6 + $0x248] sm:$0xff] %vm28, %v7392
    %7403 = vst.msk [vmem:[#allocation6 + $0x270] sm:$0xff] %vm28, %v7393
    %7404 = vst.msk [vmem:[#allocation6 + $0x298] sm:$0xff] %vm28, %v7394
    %7405 = vst.msk [vmem:[#allocation6 + $0x2c0] sm:$0xff] %vm28, %v7395
    %7406 = vst.msk [vmem:[#allocation6 + $0x2e8] sm:$0xff] %vm28, %v7396
    %7407 = vst.msk [vmem:[#allocation6 + $0x310] sm:$0xff] %vm28, %v7397
    %v7408 = vld [vmem:[#allocation5 + $0x79] sm:$0xff]
    %v7409 = vld [vmem:[#allocation5 + $0x81] sm:$0xff]
    %v7410 = vld [vmem:[#allocation5 + $0x89] sm:$0xff]
    %v7411 = vld [vmem:[#allocation5 + $0x91] sm:$0xff]
    %v7412 = vld [vmem:[#allocation5 + $0x99] sm:$0xff]
    %v7413 = vld [vmem:[#allocation5 + $0xa1] sm:$0xff]
    %v7414 = vld [vmem:[#allocation5 + $0xa9] sm:$0xff]
    %v7415 = vld [vmem:[#allocation5 + $0xb1] sm:$0xff]
    %v7416 = vld [vmem:[#allocation5 + $0xb9] sm:$0xff]
    %v7417 = vld [vmem:[#allocation5 + $0xc1] sm:$0xff]
    %7428 = vrot.lane.b32.xlu0 %v7408, 64
    %v7429 = vpop.permute.xlu0 %7428
    %7430 = vrot.lane.b32.xlu0 %v7409, 64
    %v7431 = vpop.permute.xlu0 %7430
    %7432 = vrot.lane.b32.xlu0 %v7410, 64
    %v7433 = vpop.permute.xlu0 %7432
    %7434 = vrot.lane.b32.xlu0 %v7411, 64
    %v7435 = vpop.permute.xlu0 %7434
    %7436 = vrot.lane.b32.xlu0 %v7412, 64
    %v7437 = vpop.permute.xlu0 %7436
    %7438 = vrot.lane.b32.xlu0 %v7413, 64
    %v7439 = vpop.permute.xlu0 %7438
    %7440 = vrot.lane.b32.xlu0 %v7414, 64
    %v7441 = vpop.permute.xlu0 %7440
    %7442 = vrot.lane.b32.xlu0 %v7415, 64
    %v7443 = vpop.permute.xlu0 %7442
    %7444 = vrot.lane.b32.xlu0 %v7416, 64
    %v7445 = vpop.permute.xlu0 %7444
    %7446 = vrot.lane.b32.xlu0 %v7417, 64
    %v7447 = vpop.permute.xlu0 %7446
    %7458 = vst.msk [vmem:[#allocation6 + $0x1a8] sm:$0xff] %vm6877, %v7429
    %7459 = vst.msk [vmem:[#allocation6 + $0x1d0] sm:$0xff] %vm6877, %v7431
    %7460 = vst.msk [vmem:[#allocation6 + $0x1f8] sm:$0xff] %vm6877, %v7433
    %7461 = vst.msk [vmem:[#allocation6 + $0x220] sm:$0xff] %vm6877, %v7435
    %7462 = vst.msk [vmem:[#allocation6 + $0x248] sm:$0xff] %vm6877, %v7437
    %7463 = vst.msk [vmem:[#allocation6 + $0x270] sm:$0xff] %vm6877, %v7439
    %7464 = vst.msk [vmem:[#allocation6 + $0x298] sm:$0xff] %vm6877, %v7441
    %7465 = vst.msk [vmem:[#allocation6 + $0x2c0] sm:$0xff] %vm6877, %v7443
    %7466 = vst.msk [vmem:[#allocation6 + $0x2e8] sm:$0xff] %vm6877, %v7445
    %7467 = vst.msk [vmem:[#allocation6 + $0x310] sm:$0xff] %vm6877, %v7447
    %v7468 = vld [vmem:[#allocation5 + $0x7a] sm:$0xff]
    %v7469 = vld [vmem:[#allocation5 + $0x82] sm:$0xff]
    %v7470 = vld [vmem:[#allocation5 + $0x8a] sm:$0xff]
    %v7471 = vld [vmem:[#allocation5 + $0x92] sm:$0xff]
    %v7472 = vld [vmem:[#allocation5 + $0x9a] sm:$0xff]
    %v7473 = vld [vmem:[#allocation5 + $0xa2] sm:$0xff]
    %v7474 = vld [vmem:[#allocation5 + $0xaa] sm:$0xff]
    %v7475 = vld [vmem:[#allocation5 + $0xb2] sm:$0xff]
    %v7476 = vld [vmem:[#allocation5 + $0xba] sm:$0xff]
    %v7477 = vld [vmem:[#allocation5 + $0xc2] sm:$0xff]
    %7478 = vst.msk [vmem:[#allocation6 + $0x1b0] sm:$0xff] %vm28, %v7468
    %7479 = vst.msk [vmem:[#allocation6 + $0x1d8] sm:$0xff] %vm28, %v7469
    %7480 = vst.msk [vmem:[#allocation6 + $0x200] sm:$0xff] %vm28, %v7470
    %7481 = vst.msk [vmem:[#allocation6 + $0x228] sm:$0xff] %vm28, %v7471
    %7482 = vst.msk [vmem:[#allocation6 + $0x250] sm:$0xff] %vm28, %v7472
    %7483 = vst.msk [vmem:[#allocation6 + $0x278] sm:$0xff] %vm28, %v7473
    %7484 = vst.msk [vmem:[#allocation6 + $0x2a0] sm:$0xff] %vm28, %v7474
    %7485 = vst.msk [vmem:[#allocation6 + $0x2c8] sm:$0xff] %vm28, %v7475
    %7486 = vst.msk [vmem:[#allocation6 + $0x2f0] sm:$0xff] %vm28, %v7476
    %7487 = vst.msk [vmem:[#allocation6 + $0x318] sm:$0xff] %vm28, %v7477
    %v7488 = vld [vmem:[%s4] sm:$0xf]
    %v7489 = vld [vmem:[%s4 + $0x4] sm:$0xf]
    %v7490 = vld [vmem:[%s4 + $0x8] sm:$0xf]
    %v7491 = vld [vmem:[%s4 + $0xc] sm:$0xf]
    %v7492 = vld [vmem:[%s4 + $0x10] sm:$0xf]
    %v7493 = vld [vmem:[%s4 + $0x14] sm:$0xf]
    %v7494 = vld [vmem:[%s4 + $0x18] sm:$0xf]
    %v7495 = vld [vmem:[%s4 + $0x1c] sm:$0xf]
    %v7496 = vld [vmem:[%s4 + $0x20] sm:$0xf]
    %v7497 = vld [vmem:[%s4 + $0x24] sm:$0xf]
    %v7498 = vld [vmem:[%s4 + $0x28] sm:$0xf]
    %v7499 = vld [vmem:[%s4 + $0x2c] sm:$0xf]
    %v7500 = vld [vmem:[%s4 + $0x30] sm:$0xf]
    %v7501 = vld [vmem:[%s4 + $0x34] sm:$0xf]
    %v7502 = vld [vmem:[%s4 + $0x38] sm:$0xf]
    %v7503 = vld [vmem:[%s4 + $0x3c] sm:$0xf]
    %v7504 = vld [vmem:[%s4 + $0x40] sm:$0xf]
    %v7505 = vld [vmem:[%s4 + $0x44] sm:$0xf]
    %v7506 = vld [vmem:[%s4 + $0x48] sm:$0xf]
    %v7507 = vld [vmem:[%s4 + $0x4c] sm:$0xf]
    %v7508 = vld [vmem:[%s4 + $0x50] sm:$0xf]
    %v7509 = vld [vmem:[%s4 + $0x54] sm:$0xf]
    %v7510 = vld [vmem:[%s4 + $0x58] sm:$0xf]
    %v7511 = vld [vmem:[%s4 + $0x5c] sm:$0xf]
    %v7512 = vld [vmem:[%s4 + $0x60] sm:$0xf]
    %v7513 = vld [vmem:[%s4 + $0x64] sm:$0xf]
    %v7514 = vld [vmem:[%s4 + $0x68] sm:$0xf]
    %v7515 = vld [vmem:[%s4 + $0x6c] sm:$0xf]
    %v7516 = vld [vmem:[%s4 + $0x70] sm:$0xf]
    %v7517 = vld [vmem:[%s4 + $0x74] sm:$0xf]
    %v7518 = vld [vmem:[%s4 + $0x78] sm:$0xf]
    %v7519 = vld [vmem:[%s4 + $0x7c] sm:$0xf]
    %v7520 = vld [vmem:[%s4 + $0x80] sm:$0xf]
    %v7521 = vld [vmem:[%s4 + $0x84] sm:$0xf]
    %v7522 = vld [vmem:[%s4 + $0x88] sm:$0xf]
    %v7523 = vld [vmem:[%s4 + $0x8c] sm:$0xf]
    %v7524 = vld [vmem:[%s4 + $0x90] sm:$0xf]
    %v7525 = vld [vmem:[%s4 + $0x94] sm:$0xf]
    %v7526 = vld [vmem:[%s4 + $0x98] sm:$0xf]
    %v7527 = vld [vmem:[%s4 + $0x9c] sm:$0xf]
    %v7528 = vld [vmem:[%s4 + $0xa0] sm:$0xf]
    %v7529 = vld [vmem:[%s4 + $0xa4] sm:$0xf]
    %v7530 = vld [vmem:[%s4 + $0xa8] sm:$0xf]
    %v7531 = vld [vmem:[%s4 + $0xac] sm:$0xf]
    %v7532 = vld [vmem:[%s4 + $0xb0] sm:$0xf]
    %v7533 = vld [vmem:[%s4 + $0xb4] sm:$0xf]
    %v7534 = vld [vmem:[%s4 + $0xb8] sm:$0xf]
    %v7535 = vld [vmem:[%s4 + $0xbc] sm:$0xf]
    %v7536 = vld [vmem:[%s4 + $0xc0] sm:$0xf]
    %v7537 = vld [vmem:[%s4 + $0xc4] sm:$0xf]
    %v7538 = vld [vmem:[%s4 + $0xc8] sm:$0xf]
    %v7539 = vld [vmem:[%s4 + $0xcc] sm:$0xf]
    %v7540 = vld [vmem:[%s4 + $0xd0] sm:$0xf]
    %v7541 = vld [vmem:[%s4 + $0xd4] sm:$0xf]
    %v7542 = vld [vmem:[%s4 + $0xd8] sm:$0xf]
    %v7543 = vld [vmem:[%s4 + $0xdc] sm:$0xf]
    %v7544 = vld [vmem:[%s4 + $0xe0] sm:$0xf]
    %v7545 = vld [vmem:[%s4 + $0xe4] sm:$0xf]
    %v7546 = vld [vmem:[%s4 + $0xe8] sm:$0xf]
    %v7547 = vld [vmem:[%s4 + $0xec] sm:$0xf]
    %v7548 = vld [vmem:[%s4 + $0xf0] sm:$0xf]
    %v7549 = vld [vmem:[%s4 + $0xf4] sm:$0xf]
    %v7550 = vld [vmem:[%s4 + $0xf8] sm:$0xf]
    %v7551 = vld [vmem:[%s4 + $0xfc] sm:$0xf]
    %v7552 = vld [vmem:[%s4 + $0x100] sm:$0xf]
    %v7553 = vld [vmem:[%s4 + $0x104] sm:$0xf]
    %v7554 = vld [vmem:[%s4 + $0x108] sm:$0xf]
    %v7555 = vld [vmem:[%s4 + $0x10c] sm:$0xf]
    %v7556 = vld [vmem:[%s4 + $0x110] sm:$0xf]
    %v7557 = vld [vmem:[%s4 + $0x114] sm:$0xf]
    %v7558 = vld [vmem:[%s4 + $0x118] sm:$0xf]
    %v7559 = vld [vmem:[%s4 + $0x11c] sm:$0xf]
    %v7560 = vld [vmem:[#allocation6] sm:$0xff]
    %v7561 = vld [vmem:[#allocation6 + $0x8] sm:$0xff]
    %v7562 = vld [vmem:[#allocation6 + $0x10] sm:$0xff]
    %v7563 = vld [vmem:[#allocation6 + $0x18] sm:$0xff]
    %v7564 = vld [vmem:[#allocation6 + $0x20] sm:$0xff]
    %v7565 = vld [vmem:[#allocation6 + $0x28] sm:$0xff]
    %v7566 = vld [vmem:[#allocation6 + $0x30] sm:$0xff]
    %v7567 = vld [vmem:[#allocation6 + $0x38] sm:$0xff]
    %v7568 = vld [vmem:[#allocation6 + $0x40] sm:$0xff]
    %v7569 = vld [vmem:[#allocation6 + $0x48] sm:$0xff]
    %v7570 = vld [vmem:[#allocation6 + $0x50] sm:$0xff]
    %v7571 = vld [vmem:[#allocation6 + $0x58] sm:$0xff]
    %v7572 = vld [vmem:[#allocation6 + $0x60] sm:$0xff]
    %v7573 = vld [vmem:[#allocation6 + $0x68] sm:$0xff]
    %v7574 = vld [vmem:[#allocation6 + $0x70] sm:$0xff]
    %v7575 = vld [vmem:[#allocation6 + $0x78] sm:$0xff]
    %v7576 = vld [vmem:[#allocation6 + $0x80] sm:$0xff]
    %v7577 = vld [vmem:[#allocation6 + $0x88] sm:$0xff]
    %v7578 = vld [vmem:[#allocation6 + $0x90] sm:$0xff]
    %v7579 = vld [vmem:[#allocation6 + $0x98] sm:$0xff]
    %v7580 = vpack.c.bf16 %v7565, %v7560
    %v7581 = vpack.c.bf16 %v7566, %v7561
    %v7582 = vpack.c.bf16 %v7567, %v7562
    %v7583 = vpack.c.bf16 %v7568, %v7563
    %v7584 = vpack.c.bf16 %v7569, %v7564
    %v7585 = vpack.c.bf16 %v7575, %v7570
    %v7586 = vpack.c.bf16 %v7576, %v7571
    %v7587 = vpack.c.bf16 %v7577, %v7572
    %v7588 = vpack.c.bf16 %v7578, %v7573
    %v7589 = vpack.c.bf16 %v7579, %v7574
    %v7662 = vunpack.c.l.b16 %v7488
    %v7663 = vunpack.c.l.b16 %v7489
    %v7664 = vunpack.c.l.b16 %v7490
    %v7665 = vunpack.c.l.b16 %v7491
    %v7666 = vunpack.c.l.b16 %v7492
    %v7667 = vunpack.c.l.b16 %v7493
    %v7668 = vunpack.c.l.b16 %v7494
    %v7669 = vunpack.c.l.b16 %v7495
    %v7670 = vunpack.c.l.b16 %v7496
    %v7671 = vunpack.c.l.b16 %v7497
    %v7672 = vunpack.c.l.b16 %v7498
    %v7673 = vunpack.c.l.b16 %v7499
    %v7674 = vunpack.c.l.b16 %v7500
    %v7675 = vunpack.c.l.b16 %v7501
    %v7676 = vunpack.c.l.b16 %v7502
    %v7677 = vunpack.c.l.b16 %v7503
    %v7678 = vunpack.c.l.b16 %v7504
    %v7679 = vunpack.c.l.b16 %v7505
    %v7680 = vunpack.c.l.b16 %v7506
    %v7681 = vunpack.c.l.b16 %v7507
    %v7682 = vunpack.c.l.b16 %v7508
    %v7683 = vunpack.c.l.b16 %v7509
    %v7684 = vunpack.c.l.b16 %v7510
    %v7685 = vunpack.c.l.b16 %v7511
    %v7686 = vunpack.c.l.b16 %v7512
    %v7687 = vunpack.c.l.b16 %v7513
    %v7688 = vunpack.c.l.b16 %v7514
    %v7689 = vunpack.c.l.b16 %v7515
    %v7690 = vunpack.c.l.b16 %v7516
    %v7691 = vunpack.c.l.b16 %v7517
    %v7692 = vunpack.c.l.b16 %v7518
    %v7693 = vunpack.c.l.b16 %v7519
    %v7694 = vunpack.c.l.b16 %v7520
    %v7695 = vunpack.c.l.b16 %v7521
    %v7696 = vunpack.c.l.b16 %v7522
    %v7697 = vunpack.c.l.b16 %v7523
    %v7698 = vunpack.c.l.b16 %v7524
    %v7699 = vunpack.c.l.b16 %v7525
    %v7700 = vunpack.c.l.b16 %v7526
    %v7701 = vunpack.c.l.b16 %v7527
    %v7702 = vunpack.c.l.b16 %v7528
    %v7703 = vunpack.c.l.b16 %v7529
    %v7704 = vunpack.c.l.b16 %v7530
    %v7705 = vunpack.c.l.b16 %v7531
    %v7706 = vunpack.c.l.b16 %v7532
    %v7707 = vunpack.c.l.b16 %v7533
    %v7708 = vunpack.c.l.b16 %v7534
    %v7709 = vunpack.c.l.b16 %v7535
    %v7710 = vunpack.c.l.b16 %v7536
    %v7711 = vunpack.c.l.b16 %v7537
    %v7712 = vunpack.c.l.b16 %v7538
    %v7713 = vunpack.c.l.b16 %v7539
    %v7714 = vunpack.c.l.b16 %v7540
    %v7715 = vunpack.c.l.b16 %v7541
    %v7716 = vunpack.c.l.b16 %v7542
    %v7717 = vunpack.c.l.b16 %v7543
    %v7718 = vunpack.c.l.b16 %v7544
    %v7719 = vunpack.c.l.b16 %v7545
    %v7720 = vunpack.c.l.b16 %v7546
    %v7721 = vunpack.c.l.b16 %v7547
    %v7722 = vunpack.c.l.b16 %v7548
    %v7723 = vunpack.c.l.b16 %v7549
    %v7724 = vunpack.c.l.b16 %v7550
    %v7725 = vunpack.c.l.b16 %v7551
    %v7726 = vunpack.c.l.b16 %v7552
    %v7727 = vunpack.c.l.b16 %v7553
    %v7728 = vunpack.c.l.b16 %v7554
    %v7729 = vunpack.c.l.b16 %v7555
    %v7730 = vunpack.c.l.b16 %v7556
    %v7731 = vunpack.c.l.b16 %v7557
    %v7732 = vunpack.c.l.b16 %v7558
    %v7733 = vunpack.c.l.b16 %v7559
    %v7734 = vpack.c.b16 %v7663, %v7662
    %v7735 = vpack.c.b16 %v7665, %v7664
    %v7736 = vpack.c.b16 %v7667, %v7666
    %v7737 = vpack.c.b16 %v7669, %v7668
    %v7738 = vpack.c.b16 %v7671, %v7670
    %v7739 = vpack.c.b16 %v7673, %v7672
    %v7740 = vpack.c.b16 %v7675, %v7674
    %v7741 = vpack.c.b16 %v7677, %v7676
    %v7742 = vpack.c.b16 %v7679, %v7678
    %v7743 = vpack.c.b16 %v7681, %v7680
    %v7744 = vpack.c.b16 %v7683, %v7682
    %v7745 = vpack.c.b16 %v7685, %v7684
    %v7746 = vpack.c.b16 %v7687, %v7686
    %v7747 = vpack.c.b16 %v7689, %v7688
    %v7748 = vpack.c.b16 %v7691, %v7690
    %v7749 = vpack.c.b16 %v7693, %v7692
    %v7750 = vpack.c.b16 %v7695, %v7694
    %v7751 = vpack.c.b16 %v7697, %v7696
    %v7752 = vpack.c.b16 %v7699, %v7698
    %v7753 = vpack.c.b16 %v7701, %v7700
    %v7754 = vpack.c.b16 %v7703, %v7702
    %v7755 = vpack.c.b16 %v7705, %v7704
    %v7756 = vpack.c.b16 %v7707, %v7706
    %v7757 = vpack.c.b16 %v7709, %v7708
    %v7758 = vpack.c.b16 %v7711, %v7710
    %v7759 = vpack.c.b16 %v7713, %v7712
    %v7760 = vpack.c.b16 %v7715, %v7714
    %v7761 = vpack.c.b16 %v7717, %v7716
    %v7762 = vpack.c.b16 %v7719, %v7718
    %v7763 = vpack.c.b16 %v7721, %v7720
    %v7764 = vpack.c.b16 %v7723, %v7722
    %v7765 = vpack.c.b16 %v7725, %v7724
    %v7766 = vpack.c.b16 %v7727, %v7726
    %v7767 = vpack.c.b16 %v7729, %v7728
    %v7768 = vpack.c.b16 %v7731, %v7730
    %v7769 = vpack.c.b16 %v7733, %v7732
    %v7807 = vsel %vm28, %v7584, 0
    %v7810 = vsel %vm28, %v7589, 0
    %7812 = vmatprep.subr.bf16.mxu0 0
    %7813 = vmatpush1.bf16.msra.mxu0 %v7741
    %7814 = vmatprep.subr.bf16.mxu0 0
    %7815 = vmatpush1.bf16.msra.mxu0 %v7740
    %7816 = vmatprep.subr.bf16.mxu0 0
    %7817 = vmatpush1.bf16.msra.mxu0 %v7739
    %7818 = vmatprep.subr.bf16.mxu0 0
    %7819 = vmatpush1.bf16.msra.mxu0 %v7738
    %7820 = vmatprep.subr.bf16.mxu0 0
    %7821 = vmatpush1.bf16.msra.mxu0 %v7737
    %7822 = vmatprep.subr.bf16.mxu0 0
    %7823 = vmatpush1.bf16.msra.mxu0 %v7736
    %7824 = vmatprep.subr.bf16.mxu0 0
    %7825 = vmatpush1.bf16.msra.mxu0 %v7735
    %7826 = vmatprep.subr.bf16.mxu0 0
    %7827 = vmatpush1.bf16.msra.mxu0 %v7734
    %7828 = vmatprep.subr.bf16.mxu0 0
    %7829 = vmatpush2.bf16.msra.mxu0 %v7749
    %7830 = vmatprep.subr.bf16.mxu0 0
    %7831 = vmatpush2.bf16.msra.mxu0 %v7748
    %7832 = vmatprep.subr.bf16.mxu0 0
    %7833 = vmatpush2.bf16.msra.mxu0 %v7747
    %7834 = vmatprep.subr.bf16.mxu0 0
    %7835 = vmatpush2.bf16.msra.mxu0 %v7746
    %7836 = vmatprep.subr.bf16.mxu0 0
    %7837 = vmatpush2.bf16.msra.mxu0 %v7745
    %7838 = vmatprep.subr.bf16.mxu0 0
    %7839 = vmatpush2.bf16.msra.mxu0 %v7744
    %7840 = vmatprep.subr.bf16.mxu0 0
    %7841 = vmatpush2.bf16.msra.mxu0 %v7743
    %7842 = vmatprep.subr.bf16.mxu0 0
    %7843 = vmatpush2.bf16.msra.mxu0 %v7742
    %7844 = vmatprep.mubr.bf16.mxu0 %v7581
    %7845 = vmatmul.mubr.bf16.gmra.mxu0 %v7580
    %v7846 = vpop.f32.mrf.mxu0
    %v7847 = vadd.f32 0.0, %v7846
    %v7848 = vpop.f32.mrf.mxu0
    %v7849 = vpop.f32.mrf.mxu0
    %v7850 = vadd.f32 0.0, %v7849
    %v7851 = vpop.f32.mrf.mxu0
    %7852 = vmatprep.mubr.bf16.mxu0 %v7586
    %7853 = vmatmul.mubr.bf16.gmra.mxu0 %v7585
    %v7854 = vpop.f32.mrf.mxu0
    %v7855 = vadd.f32 0.0, %v7854
    %v7856 = vpop.f32.mrf.mxu0
    %v7857 = vpop.f32.mrf.mxu0
    %v7858 = vadd.f32 0.0, %v7857
    %v7859 = vpop.f32.mrf.mxu0
    %7860 = vdwg.mxu0
    %7861 = vmatprep.subr.bf16.mxu0 0
    %7862 = vmatpush1.bf16.msra.mxu0 %v7757
    %7863 = vmatprep.subr.bf16.mxu0 0
    %7864 = vmatpush1.bf16.msra.mxu0 %v7756
    %7865 = vmatprep.subr.bf16.mxu0 0
    %7866 = vmatpush1.bf16.msra.mxu0 %v7755
    %7867 = vmatprep.subr.bf16.mxu0 0
    %7868 = vmatpush1.bf16.msra.mxu0 %v7754
    %7869 = vmatprep.subr.bf16.mxu0 0
    %7870 = vmatpush1.bf16.msra.mxu0 %v7753
    %7871 = vmatprep.subr.bf16.mxu0 0
    %7872 = vmatpush1.bf16.msra.mxu0 %v7752
    %7873 = vmatprep.subr.bf16.mxu0 0
    %7874 = vmatpush1.bf16.msra.mxu0 %v7751
    %7875 = vmatprep.subr.bf16.mxu0 0
    %7876 = vmatpush1.bf16.msra.mxu0 %v7750
    %7877 = vmatprep.subr.bf16.mxu0 0
    %7878 = vmatpush2.bf16.msra.mxu0 %v7765
    %7879 = vmatprep.subr.bf16.mxu0 0
    %7880 = vmatpush2.bf16.msra.mxu0 %v7764
    %7881 = vmatprep.subr.bf16.mxu0 0
    %7882 = vmatpush2.bf16.msra.mxu0 %v7763
    %7883 = vmatprep.subr.bf16.mxu0 0
    %7884 = vmatpush2.bf16.msra.mxu0 %v7762
    %7885 = vmatprep.subr.bf16.mxu0 0
    %7886 = vmatpush2.bf16.msra.mxu0 %v7761
    %7887 = vmatprep.subr.bf16.mxu0 0
    %7888 = vmatpush2.bf16.msra.mxu0 %v7760
    %7889 = vmatprep.subr.bf16.mxu0 0
    %7890 = vmatpush2.bf16.msra.mxu0 %v7759
    %7891 = vmatprep.subr.bf16.mxu0 0
    %7892 = vmatpush2.bf16.msra.mxu0 %v7758
    %7893 = vmatprep.mubr.bf16.mxu0 %v7583
    %7894 = vmatmul.mubr.bf16.gmra.mxu0 %v7582
    %v7895 = vpop.f32.mrf.mxu0
    %v7896 = vadd.f32 %v7847, %v7895
    %v7897 = vpop.f32.mrf.mxu0
    %v7898 = vpop.f32.mrf.mxu0
    %v7899 = vadd.f32 %v7850, %v7898
    %v7900 = vpop.f32.mrf.mxu0
    %7901 = vmatprep.mubr.bf16.mxu0 %v7588
    %7902 = vmatmul.mubr.bf16.gmra.mxu0 %v7587
    %v7903 = vpop.f32.mrf.mxu0
    %v7904 = vadd.f32 %v7855, %v7903
    %v7905 = vpop.f32.mrf.mxu0
    %v7906 = vpop.f32.mrf.mxu0
    %v7907 = vadd.f32 %v7858, %v7906
    %v7908 = vpop.f32.mrf.mxu0
    %7909 = vdwg.mxu0
    %7910 = vmatprep.subr.bf16.mxu0 0
    %7911 = vmatpush1.bf16.msra.mxu0 0
    %7912 = vmatprep.subr.bf16.mxu0 0
    %7913 = vmatpush1.bf16.msra.mxu0 0
    %7914 = vmatprep.subr.bf16.mxu0 0
    %7915 = vmatpush1.bf16.msra.mxu0 0
    %7916 = vmatprep.subr.bf16.mxu0 0
    %7917 = vmatpush1.bf16.msra.mxu0 0
    %7918 = vmatprep.subr.bf16.mxu0 0
    %7919 = vmatpush1.bf16.msra.mxu0 %v7769
    %7920 = vmatprep.subr.bf16.mxu0 0
    %7921 = vmatpush1.bf16.msra.mxu0 %v7768
    %7922 = vmatprep.subr.bf16.mxu0 0
    %7923 = vmatpush1.bf16.msra.mxu0 %v7767
    %7924 = vmatprep.subr.bf16.mxu0 0
    %7925 = vmatpush1.bf16.msra.mxu0 %v7766
    %7926 = vmatprep.subr.bf16.mxu0 0
    %7927 = vmatpush2.bf16.msra.mxu0 0
    %7928 = vmatprep.subr.bf16.mxu0 0
    %7929 = vmatpush2.bf16.msra.mxu0 0
    %7930 = vmatprep.subr.bf16.mxu0 0
    %7931 = vmatpush2.bf16.msra.mxu0 0
    %7932 = vmatprep.subr.bf16.mxu0 0
    %7933 = vmatpush2.bf16.msra.mxu0 0
    %7934 = vmatprep.subr.bf16.mxu0 0
    %7935 = vmatpush2.bf16.msra.mxu0 0
    %7936 = vmatprep.subr.bf16.mxu0 0
    %7937 = vmatpush2.bf16.msra.mxu0 0
    %7938 = vmatprep.subr.bf16.mxu0 0
    %7939 = vmatpush2.bf16.msra.mxu0 0
    %7940 = vmatprep.subr.bf16.mxu0 0
    %7941 = vmatpush2.bf16.msra.mxu0 0
    %7942 = vmatprep.mubr.bf16.mxu0 0
    %7943 = vmatmul.mubr.bf16.gmra.mxu0 %v7807
    %v7944 = vpop.f32.mrf.mxu0
    %v7945 = vadd.f32 %v7896, %v7944
    %v7946 = vpop.f32.mrf.mxu0
    %v7947 = vpop.f32.mrf.mxu0
    %v7948 = vadd.f32 %v7899, %v7947
    %v7949 = vpop.f32.mrf.mxu0
    %7950 = vmatprep.mubr.bf16.mxu0 0
    %7951 = vmatmul.mubr.bf16.gmra.mxu0 %v7810
    %v7952 = vpop.f32.mrf.mxu0
    %v7953 = vadd.f32 %v7904, %v7952
    %v7954 = vpop.f32.mrf.mxu0
    %v7955 = vpop.f32.mrf.mxu0
    %v7956 = vadd.f32 %v7907, %v7955
    %v7957 = vpop.f32.mrf.mxu0
    %7958 = vdwg.mxu0
    %vm7959 = vcmask 130048
    %7960 = vst.msk [vmem:[#allocation7] sm:$0xff] %vm7959, %v7945
    %7961 = vst.msk [vmem:[#allocation7 + $0x8] sm:$0xff] %vm7959, %v7948
    %7962 = vst.msk [vmem:[#allocation7 + $0x10] sm:$0xff] %vm7959, %v7953
    %7963 = vst.msk [vmem:[#allocation7 + $0x18] sm:$0xff] %vm7959, %v7956
    %vm7964 = vcmp.lt.s32.totalorder %v3931, 0
    %v7965 = vsub.s32 0, %v3931
    %v7966 = vsel %vm7964, %v7965, %v3931
    %v7967 = vmul.u32.u64.compose %v7966, 3435973837
    %v7968 = vextract.low.u32 %v7967
    %v7969 = vextract.high.u32 %v7967
    %v7970 = vshrl.u32 %v7969, 3
    %v7971 = vmul.u32 %v7970, 10
    %v7972 = vsub.s32 %v7966, %v7971
    %v7973 = vsub.s32 0, %v7972
    %v7974 = vsel %vm7964, %v7973, %v7972
    %vm7975 = vcmp.lt.s32.totalorder %v3932, 0
    %v7976 = vsub.s32 0, %v3932
    %v7977 = vsel %vm7975, %v7976, %v3932
    %v7978 = vmul.u32.u64.compose %v7977, 3435973837
    %v7979 = vextract.low.u32 %v7978
    %v7980 = vextract.high.u32 %v7978
    %v7981 = vshrl.u32 %v7980, 3
    %v7982 = vmul.u32 %v7981, 10
    %v7983 = vsub.s32 %v7977, %v7982
    %v7984 = vsub.s32 0, %v7983
    %v7985 = vsel %vm7975, %v7984, %v7983
    %vm7986 = vcmp.lt.s32.totalorder %v3933, 0
    %v7987 = vsub.s32 0, %v3933
    %v7988 = vsel %vm7986, %v7987, %v3933
    %v7989 = vmul.u32.u64.compose %v7988, 3435973837
    %v7990 = vextract.low.u32 %v7989
    %v7991 = vextract.high.u32 %v7989
    %v7992 = vshrl.u32 %v7991, 3
    %v7993 = vmul.u32 %v7992, 10
    %v7994 = vsub.s32 %v7988, %v7993
    %v7995 = vsub.s32 0, %v7994
    %v7996 = vsel %vm7986, %v7995, %v7994
    %vm7997 = vcmp.lt.s32.totalorder %v3934, 0
    %v7998 = vsub.s32 0, %v3934
    %v7999 = vsel %vm7997, %v7998, %v3934
    %v8000 = vmul.u32.u64.compose %v7999, 3435973837
    %v8001 = vextract.low.u32 %v8000
    %v8002 = vextract.high.u32 %v8000
    %v8003 = vshrl.u32 %v8002, 3
    %v8004 = vmul.u32 %v8003, 10
    %v8005 = vsub.s32 %v7999, %v8004
    %v8006 = vsub.s32 0, %v8005
    %v8007 = vsel %vm7997, %v8006, %v8005
    %vm8008 = vcmp.ne.s32.totalorder %v7974, 0
    %vm8009 = vcmp.ne.s32.totalorder %v7985, 0
    %vm8010 = vcmp.ne.s32.totalorder %v7996, 0
    %vm8011 = vcmp.ne.s32.totalorder %v8007, 0
    %vm8012 = vcmp.lt.s32.totalorder %v7974, 0
    %vm8013 = vcmp.lt.s32.totalorder %v7985, 0
    %vm8014 = vcmp.lt.s32.totalorder %v7996, 0
    %vm8015 = vcmp.lt.s32.totalorder %v8007, 0
    %vm8016 = vmand %vm8012, %vm8008
    %vm8017 = vmand %vm8013, %vm8009
    %vm8018 = vmand %vm8014, %vm8010
    %vm8019 = vmand %vm8015, %vm8011
    %v8020 = vadd.s32 %v7974, 10
    %v8021 = vadd.s32 %v7985, 10
    %v8022 = vadd.s32 %v7996, 10
    %v8023 = vadd.s32 %v8007, 10
    %v8024 = vsel %vm8016, %v8020, %v7974
    %v8025 = vsel %vm8017, %v8021, %v7985
    %v8026 = vsel %vm8018, %v8022, %v7996
    %v8027 = vsel %vm8019, %v8023, %v8007
    %vm8028 = vcmp.lt.s32.totalorder %v8024, 8
    %vm8029 = vcmp.lt.s32.totalorder %v8025, 8
    %vm8030 = vcmp.lt.s32.totalorder %v8026, 8
    %vm8031 = vcmp.lt.s32.totalorder %v8027, 8
    %v8032 = vsel %vm8028, 1, 0
    %v8033 = vsel %vm8029, 1, 0
    %v8034 = vsel %vm8030, 1, 0
    %v8035 = vsel %vm8031, 1, 0
    %vm8036 = vcmp.eq.s32.totalorder %v8032, 1
    %vm8037 = vcmp.eq.s32.totalorder %v8033, 1
    %vm8038 = vcmp.eq.s32.totalorder %v8034, 1
    %vm8039 = vcmp.eq.s32.totalorder %v8035, 1
    %v8040 = vsel %vm8036, %v7945, 0.0
    %v8041 = vsel %vm8037, %v7948, 0.0
    %v8042 = vsel %vm8038, %v7953, 0.0
    %v8043 = vsel %vm8039, %v7956, 0.0
    %v8044 = vsel %vm7959, %v8040, 0.0
    %v8045 = vsel %vm7959, %v8041, 0.0
    %v8046 = vadd.f32 %v8044, %v8045
    %v8047 = vsel %vm7959, %v8042, 0.0
    %v8048 = vadd.f32 %v8046, %v8047
    %v8049 = vsel %vm7959, %v8043, 0.0
    %v8050 = vadd.f32 %v8048, %v8049
    %v8051 = vrot.slane %v8050, 4
    %v8052 = vadd.f32 %v8050, %v8051
    %v8053 = vrot.slane %v8052, 2
    %v8054 = vadd.f32 %v8052, %v8053
    %v8055 = vrot.slane %v8054, 1
    %v8056 = vadd.f32 %v8054, %v8055
    %v8057 = vadd.f32 %v8056, 0.0
    %v8058 = vmul.f32 %v8040, %v7945
    %v8059 = vmul.f32 %v8041, %v7948
    %v8060 = vmul.f32 %v8042, %v7953
    %v8061 = vmul.f32 %v8043, %v7956
    %v8062 = vsel %vm7959, %v8058, 0.0
    %v8063 = vsel %vm7959, %v8059, 0.0
    %v8064 = vadd.f32 %v8062, %v8063
    %v8065 = vsel %vm7959, %v8060, 0.0
    %v8066 = vadd.f32 %v8064, %v8065
    %v8067 = vsel %vm7959, %v8061, 0.0
    %v8068 = vadd.f32 %v8066, %v8067
    %v8069 = vrot.slane %v8068, 4
    %v8070 = vadd.f32 %v8068, %v8069
    %v8071 = vrot.slane %v8070, 2
    %v8072 = vadd.f32 %v8070, %v8071
    %v8073 = vrot.slane %v8072, 1
    %v8074 = vadd.f32 %v8072, %v8073
    %v8075 = vadd.f32 %v8074, 0.0
    %v8076 = vld [vmem:[#allocation6 + $0xa0] sm:$0xff]
    %v8077 = vld [vmem:[#allocation6 + $0xa8] sm:$0xff]
    %v8078 = vld [vmem:[#allocation6 + $0xb0] sm:$0xff]
    %v8079 = vld [vmem:[#allocation6 + $0xb8] sm:$0xff]
    %v8080 = vld [vmem:[#allocation6 + $0xc0] sm:$0xff]
    %v8081 = vld [vmem:[#allocation6 + $0xc8] sm:$0xff]
    %v8082 = vld [vmem:[#allocation6 + $0xd0] sm:$0xff]
    %v8083 = vld [vmem:[#allocation6 + $0xd8] sm:$0xff]
    %v8084 = vld [vmem:[#allocation6 + $0xe0] sm:$0xff]
    %v8085 = vld [vmem:[#allocation6 + $0xe8] sm:$0xff]
    %v8086 = vld [vmem:[#allocation6 + $0xf0] sm:$0xff]
    %v8087 = vld [vmem:[#allocation6 + $0xf8] sm:$0xff]
    %v8088 = vld [vmem:[#allocation6 + $0x100] sm:$0xff]
    %v8089 = vld [vmem:[#allocation6 + $0x108] sm:$0xff]
    %v8090 = vld [vmem:[#allocation6 + $0x110] sm:$0xff]
    %v8091 = vld [vmem:[#allocation6 + $0x118] sm:$0xff]
    %v8092 = vld [vmem:[#allocation6 + $0x120] sm:$0xff]
    %v8093 = vld [vmem:[#allocation6 + $0x128] sm:$0xff]
    %v8094 = vld [vmem:[#allocation6 + $0x130] sm:$0xff]
    %v8095 = vld [vmem:[#allocation6 + $0x138] sm:$0xff]
    %v8096 = vpack.c.bf16 %v8081, %v8076
    %v8097 = vpack.c.bf16 %v8082, %v8077
    %v8098 = vpack.c.bf16 %v8083, %v8078
    %v8099 = vpack.c.bf16 %v8084, %v8079
    %v8100 = vpack.c.bf16 %v8085, %v8080
    %v8101 = vpack.c.bf16 %v8091, %v8086
    %v8102 = vpack.c.bf16 %v8092, %v8087
    %v8103 = vpack.c.bf16 %v8093, %v8088
    %v8104 = vpack.c.bf16 %v8094, %v8089
    %v8105 = vpack.c.bf16 %v8095, %v8090
    %v8107 = vsel %vm28, %v8100, 0
    %v8110 = vsel %vm28, %v8105, 0
    %8112 = vmatprep.subr.bf16.mxu0 0
    %8113 = vmatpush1.bf16.msra.mxu0 %v7741
    %8114 = vmatprep.subr.bf16.mxu0 0
    %8115 = vmatpush1.bf16.msra.mxu0 %v7740
    %8116 = vmatprep.subr.bf16.mxu0 0
    %8117 = vmatpush1.bf16.msra.mxu0 %v7739
    %8118 = vmatprep.subr.bf16.mxu0 0
    %8119 = vmatpush1.bf16.msra.mxu0 %v7738
    %8120 = vmatprep.subr.bf16.mxu0 0
    %8121 = vmatpush1.bf16.msra.mxu0 %v7737
    %8122 = vmatprep.subr.bf16.mxu0 0
    %8123 = vmatpush1.bf16.msra.mxu0 %v7736
    %8124 = vmatprep.subr.bf16.mxu0 0
    %8125 = vmatpush1.bf16.msra.mxu0 %v7735
    %8126 = vmatprep.subr.bf16.mxu0 0
    %8127 = vmatpush1.bf16.msra.mxu0 %v7734
    %8128 = vmatprep.subr.bf16.mxu0 0
    %8129 = vmatpush2.bf16.msra.mxu0 %v7749
    %8130 = vmatprep.subr.bf16.mxu0 0
    %8131 = vmatpush2.bf16.msra.mxu0 %v7748
    %8132 = vmatprep.subr.bf16.mxu0 0
    %8133 = vmatpush2.bf16.msra.mxu0 %v7747
    %8134 = vmatprep.subr.bf16.mxu0 0
    %8135 = vmatpush2.bf16.msra.mxu0 %v7746
    %8136 = vmatprep.subr.bf16.mxu0 0
    %8137 = vmatpush2.bf16.msra.mxu0 %v7745
    %8138 = vmatprep.subr.bf16.mxu0 0
    %8139 = vmatpush2.bf16.msra.mxu0 %v7744
    %8140 = vmatprep.subr.bf16.mxu0 0
    %8141 = vmatpush2.bf16.msra.mxu0 %v7743
    %8142 = vmatprep.subr.bf16.mxu0 0
    %8143 = vmatpush2.bf16.msra.mxu0 %v7742
    %8144 = vmatprep.mubr.bf16.mxu0 %v8097
    %8145 = vmatmul.mubr.bf16.gmra.mxu0 %v8096
    %v8146 = vpop.f32.mrf.mxu0
    %v8147 = vadd.f32 0.0, %v8146
    %v8148 = vpop.f32.mrf.mxu0
    %v8149 = vpop.f32.mrf.mxu0
    %v8150 = vadd.f32 0.0, %v8149
    %v8151 = vpop.f32.mrf.mxu0
    %8152 = vmatprep.mubr.bf16.mxu0 %v8102
    %8153 = vmatmul.mubr.bf16.gmra.mxu0 %v8101
    %v8154 = vpop.f32.mrf.mxu0
    %v8155 = vadd.f32 0.0, %v8154
    %v8156 = vpop.f32.mrf.mxu0
    %v8157 = vpop.f32.mrf.mxu0
    %v8158 = vadd.f32 0.0, %v8157
    %v8159 = vpop.f32.mrf.mxu0
    %8160 = vdwg.mxu0
    %8161 = vmatprep.subr.bf16.mxu0 0
    %8162 = vmatpush1.bf16.msra.mxu0 %v7757
    %8163 = vmatprep.subr.bf16.mxu0 0
    %8164 = vmatpush1.bf16.msra.mxu0 %v7756
    %8165 = vmatprep.subr.bf16.mxu0 0
    %8166 = vmatpush1.bf16.msra.mxu0 %v7755
    %8167 = vmatprep.subr.bf16.mxu0 0
    %8168 = vmatpush1.bf16.msra.mxu0 %v7754
    %8169 = vmatprep.subr.bf16.mxu0 0
    %8170 = vmatpush1.bf16.msra.mxu0 %v7753
    %8171 = vmatprep.subr.bf16.mxu0 0
    %8172 = vmatpush1.bf16.msra.mxu0 %v7752
    %8173 = vmatprep.subr.bf16.mxu0 0
    %8174 = vmatpush1.bf16.msra.mxu0 %v7751
    %8175 = vmatprep.subr.bf16.mxu0 0
    %8176 = vmatpush1.bf16.msra.mxu0 %v7750
    %8177 = vmatprep.subr.bf16.mxu0 0
    %8178 = vmatpush2.bf16.msra.mxu0 %v7765
    %8179 = vmatprep.subr.bf16.mxu0 0
    %8180 = vmatpush2.bf16.msra.mxu0 %v7764
    %8181 = vmatprep.subr.bf16.mxu0 0
    %8182 = vmatpush2.bf16.msra.mxu0 %v7763
    %8183 = vmatprep.subr.bf16.mxu0 0
    %8184 = vmatpush2.bf16.msra.mxu0 %v7762
    %8185 = vmatprep.subr.bf16.mxu0 0
    %8186 = vmatpush2.bf16.msra.mxu0 %v7761
    %8187 = vmatprep.subr.bf16.mxu0 0
    %8188 = vmatpush2.bf16.msra.mxu0 %v7760
    %8189 = vmatprep.subr.bf16.mxu0 0
    %8190 = vmatpush2.bf16.msra.mxu0 %v7759
    %8191 = vmatprep.subr.bf16.mxu0 0
    %8192 = vmatpush2.bf16.msra.mxu0 %v7758
    %8193 = vmatprep.mubr.bf16.mxu0 %v8099
    %8194 = vmatmul.mubr.bf16.gmra.mxu0 %v8098
    %v8195 = vpop.f32.mrf.mxu0
    %v8196 = vadd.f32 %v8147, %v8195
    %v8197 = vpop.f32.mrf.mxu0
    %v8198 = vpop.f32.mrf.mxu0
    %v8199 = vadd.f32 %v8150, %v8198
    %v8200 = vpop.f32.mrf.mxu0
    %8201 = vmatprep.mubr.bf16.mxu0 %v8104
    %8202 = vmatmul.mubr.bf16.gmra.mxu0 %v8103
    %v8203 = vpop.f32.mrf.mxu0
    %v8204 = vadd.f32 %v8155, %v8203
    %v8205 = vpop.f32.mrf.mxu0
    %v8206 = vpop.f32.mrf.mxu0
    %v8207 = vadd.f32 %v8158, %v8206
    %v8208 = vpop.f32.mrf.mxu0
    %8209 = vdwg.mxu0
    %8210 = vmatprep.subr.bf16.mxu0 0
    %8211 = vmatpush1.bf16.msra.mxu0 0
    %8212 = vmatprep.subr.bf16.mxu0 0
    %8213 = vmatpush1.bf16.msra.mxu0 0
    %8214 = vmatprep.subr.bf16.mxu0 0
    %8215 = vmatpush1.bf16.msra.mxu0 0
    %8216 = vmatprep.subr.bf16.mxu0 0
    %8217 = vmatpush1.bf16.msra.mxu0 0
    %8218 = vmatprep.subr.bf16.mxu0 0
    %8219 = vmatpush1.bf16.msra.mxu0 %v7769
    %8220 = vmatprep.subr.bf16.mxu0 0
    %8221 = vmatpush1.bf16.msra.mxu0 %v7768
    %8222 = vmatprep.subr.bf16.mxu0 0
    %8223 = vmatpush1.bf16.msra.mxu0 %v7767
    %8224 = vmatprep.subr.bf16.mxu0 0
    %8225 = vmatpush1.bf16.msra.mxu0 %v7766
    %8226 = vmatprep.subr.bf16.mxu0 0
    %8227 = vmatpush2.bf16.msra.mxu0 0
    %8228 = vmatprep.subr.bf16.mxu0 0
    %8229 = vmatpush2.bf16.msra.mxu0 0
    %8230 = vmatprep.subr.bf16.mxu0 0
    %8231 = vmatpush2.bf16.msra.mxu0 0
    %8232 = vmatprep.subr.bf16.mxu0 0
    %8233 = vmatpush2.bf16.msra.mxu0 0
    %8234 = vmatprep.subr.bf16.mxu0 0
    %8235 = vmatpush2.bf16.msra.mxu0 0
    %8236 = vmatprep.subr.bf16.mxu0 0
    %8237 = vmatpush2.bf16.msra.mxu0 0
    %8238 = vmatprep.subr.bf16.mxu0 0
    %8239 = vmatpush2.bf16.msra.mxu0 0
    %8240 = vmatprep.subr.bf16.mxu0 0
    %8241 = vmatpush2.bf16.msra.mxu0 0
    %8242 = vmatprep.mubr.bf16.mxu0 0
    %8243 = vmatmul.mubr.bf16.gmra.mxu0 %v8107
    %v8244 = vpop.f32.mrf.mxu0
    %v8245 = vadd.f32 %v8196, %v8244
    %v8246 = vpop.f32.mrf.mxu0
    %v8247 = vpop.f32.mrf.mxu0
    %v8248 = vadd.f32 %v8199, %v8247
    %v8249 = vpop.f32.mrf.mxu0
    %8250 = vmatprep.mubr.bf16.mxu0 0
    %8251 = vmatmul.mubr.bf16.gmra.mxu0 %v8110
    %v8252 = vpop.f32.mrf.mxu0
    %v8253 = vadd.f32 %v8204, %v8252
    %v8254 = vpop.f32.mrf.mxu0
    %v8255 = vpop.f32.mrf.mxu0
    %v8256 = vadd.f32 %v8207, %v8255
    %v8257 = vpop.f32.mrf.mxu0
    %8258 = vdwg.mxu0
    %8259 = vst.msk [vmem:[#allocation7 + $0x20] sm:$0xff] %vm7959, %v8245
    %8260 = vst.msk [vmem:[#allocation7 + $0x28] sm:$0xff] %vm7959, %v8248
    %8261 = vst.msk [vmem:[#allocation7 + $0x30] sm:$0xff] %vm7959, %v8253
    %8262 = vst.msk [vmem:[#allocation7 + $0x38] sm:$0xff] %vm7959, %v8256
    %v8263 = vadd.s32 %v3932, 32
    %v8264 = vadd.s32 %v3933, 32
    %v8265 = vadd.s32 %v3934, 32
    %vm8266 = vcmp.lt.s32.totalorder %v3935, 0
    %v8267 = vsub.s32 0, %v3935
    %v8268 = vsel %vm8266, %v8267, %v3935
    %v8269 = vmul.u32.u64.compose %v8268, 3435973837
    %v8270 = vextract.low.u32 %v8269
    %v8271 = vextract.high.u32 %v8269
    %v8272 = vshrl.u32 %v8271, 3
    %v8273 = vmul.u32 %v8272, 10
    %v8274 = vsub.s32 %v8268, %v8273
    %v8275 = vsub.s32 0, %v8274
    %v8276 = vsel %vm8266, %v8275, %v8274
    %vm8277 = vcmp.lt.s32.totalorder %v8263, 0
    %v8278 = vsub.s32 0, %v8263
    %v8279 = vsel %vm8277, %v8278, %v8263
    %v8280 = vmul.u32.u64.compose %v8279, 3435973837
    %v8281 = vextract.low.u32 %v8280
    %v8282 = vextract.high.u32 %v8280
    %v8283 = vshrl.u32 %v8282, 3
    %v8284 = vmul.u32 %v8283, 10
    %v8285 = vsub.s32 %v8279, %v8284
    %v8286 = vsub.s32 0, %v8285
    %v8287 = vsel %vm8277, %v8286, %v8285
    %vm8288 = vcmp.lt.s32.totalorder %v8264, 0
    %v8289 = vsub.s32 0, %v8264
    %v8290 = vsel %vm8288, %v8289, %v8264
    %v8291 = vmul.u32.u64.compose %v8290, 3435973837
    %v8292 = vextract.low.u32 %v8291
    %v8293 = vextract.high.u32 %v8291
    %v8294 = vshrl.u32 %v8293, 3
    %v8295 = vmul.u32 %v8294, 10
    %v8296 = vsub.s32 %v8290, %v8295
    %v8297 = vsub.s32 0, %v8296
    %v8298 = vsel %vm8288, %v8297, %v8296
    %vm8299 = vcmp.lt.s32.totalorder %v8265, 0
    %v8300 = vsub.s32 0, %v8265
    %v8301 = vsel %vm8299, %v8300, %v8265
    %v8302 = vmul.u32.u64.compose %v8301, 3435973837
    %v8303 = vextract.low.u32 %v8302
    %v8304 = vextract.high.u32 %v8302
    %v8305 = vshrl.u32 %v8304, 3
    %v8306 = vmul.u32 %v8305, 10
    %v8307 = vsub.s32 %v8301, %v8306
    %v8308 = vsub.s32 0, %v8307
    %v8309 = vsel %vm8299, %v8308, %v8307
    %vm8310 = vcmp.ne.s32.totalorder %v8276, 0
    %vm8311 = vcmp.ne.s32.totalorder %v8287, 0
    %vm8312 = vcmp.ne.s32.totalorder %v8298, 0
    %vm8313 = vcmp.ne.s32.totalorder %v8309, 0
    %vm8314 = vcmp.lt.s32.totalorder %v8276, 0
    %vm8315 = vcmp.lt.s32.totalorder %v8287, 0
    %vm8316 = vcmp.lt.s32.totalorder %v8298, 0
    %vm8317 = vcmp.lt.s32.totalorder %v8309, 0
    %vm8318 = vmand %vm8314, %vm8310
    %vm8319 = vmand %vm8315, %vm8311
    %vm8320 = vmand %vm8316, %vm8312
    %vm8321 = vmand %vm8317, %vm8313
    %v8322 = vadd.s32 %v8276, 10
    %v8323 = vadd.s32 %v8287, 10
    %v8324 = vadd.s32 %v8298, 10
    %v8325 = vadd.s32 %v8309, 10
    %v8326 = vsel %vm8318, %v8322, %v8276
    %v8327 = vsel %vm8319, %v8323, %v8287
    %v8328 = vsel %vm8320, %v8324, %v8298
    %v8329 = vsel %vm8321, %v8325, %v8309
    %vm8330 = vcmp.lt.s32.totalorder %v8326, 8
    %vm8331 = vcmp.lt.s32.totalorder %v8327, 8
    %vm8332 = vcmp.lt.s32.totalorder %v8328, 8
    %vm8333 = vcmp.lt.s32.totalorder %v8329, 8
    %v8334 = vsel %vm8330, 1, 0
    %v8335 = vsel %vm8331, 1, 0
    %v8336 = vsel %vm8332, 1, 0
    %v8337 = vsel %vm8333, 1, 0
    %vm8338 = vcmp.eq.s32.totalorder %v8334, 1
    %vm8339 = vcmp.eq.s32.totalorder %v8335, 1
    %vm8340 = vcmp.eq.s32.totalorder %v8336, 1
    %vm8341 = vcmp.eq.s32.totalorder %v8337, 1
    %v8342 = vsel %vm8338, %v8245, 0.0
    %v8343 = vsel %vm8339, %v8248, 0.0
    %v8344 = vsel %vm8340, %v8253, 0.0
    %v8345 = vsel %vm8341, %v8256, 0.0
    %v8346 = vsel %vm7959, %v8342, 0.0
    %v8347 = vsel %vm7959, %v8343, 0.0
    %v8348 = vadd.f32 %v8346, %v8347
    %v8349 = vsel %vm7959, %v8344, 0.0
    %v8350 = vadd.f32 %v8348, %v8349
    %v8351 = vsel %vm7959, %v8345, 0.0
    %v8352 = vadd.f32 %v8350, %v8351
    %v8353 = vrot.slane %v8352, 4
    %v8354 = vadd.f32 %v8352, %v8353
    %v8355 = vrot.slane %v8354, 2
    %v8356 = vadd.f32 %v8354, %v8355
    %v8357 = vrot.slane %v8356, 1
    %v8358 = vadd.f32 %v8356, %v8357
    %v8359 = vadd.f32 %v8057, %v8358
    %v8360 = vmul.f32 %v8342, %v8245
    %v8361 = vmul.f32 %v8343, %v8248
    %v8362 = vmul.f32 %v8344, %v8253
    %v8363 = vmul.f32 %v8345, %v8256
    %v8364 = vsel %vm7959, %v8360, 0.0
    %v8365 = vsel %vm7959, %v8361, 0.0
    %v8366 = vadd.f32 %v8364, %v8365
    %v8367 = vsel %vm7959, %v8362, 0.0
    %v8368 = vadd.f32 %v8366, %v8367
    %v8369 = vsel %vm7959, %v8363, 0.0
    %v8370 = vadd.f32 %v8368, %v8369
    %v8371 = vrot.slane %v8370, 4
    %v8372 = vadd.f32 %v8370, %v8371
    %v8373 = vrot.slane %v8372, 2
    %v8374 = vadd.f32 %v8372, %v8373
    %v8375 = vrot.slane %v8374, 1
    %v8376 = vadd.f32 %v8374, %v8375
    %v8377 = vadd.f32 %v8075, %v8376
    %v8378 = vld [vmem:[#allocation6 + $0x140] sm:$0xff]
    %v8379 = vld [vmem:[#allocation6 + $0x148] sm:$0xff]
    %v8380 = vld [vmem:[#allocation6 + $0x150] sm:$0xff]
    %v8381 = vld [vmem:[#allocation6 + $0x158] sm:$0xff]
    %v8382 = vld [vmem:[#allocation6 + $0x160] sm:$0xff]
    %v8383 = vld [vmem:[#allocation6 + $0x168] sm:$0xff]
    %v8384 = vld [vmem:[#allocation6 + $0x170] sm:$0xff]
    %v8385 = vld [vmem:[#allocation6 + $0x178] sm:$0xff]
    %v8386 = vld [vmem:[#allocation6 + $0x180] sm:$0xff]
    %v8387 = vld [vmem:[#allocation6 + $0x188] sm:$0xff]
    %v8388 = vld [vmem:[#allocation6 + $0x190] sm:$0xff]
    %v8389 = vld [vmem:[#allocation6 + $0x198] sm:$0xff]
    %v8390 = vld [vmem:[#allocation6 + $0x1a0] sm:$0xff]
    %v8391 = vld [vmem:[#allocation6 + $0x1a8] sm:$0xff]
    %v8392 = vld [vmem:[#allocation6 + $0x1b0] sm:$0xff]
    %v8393 = vld [vmem:[#allocation6 + $0x1b8] sm:$0xff]
    %v8394 = vld [vmem:[#allocation6 + $0x1c0] sm:$0xff]
    %v8395 = vld [vmem:[#allocation6 + $0x1c8] sm:$0xff]
    %v8396 = vld [vmem:[#allocation6 + $0x1d0] sm:$0xff]
    %v8397 = vld [vmem:[#allocation6 + $0x1d8] sm:$0xff]
    %v8398 = vpack.c.bf16 %v8383, %v8378
    %v8399 = vpack.c.bf16 %v8384, %v8379
    %v8400 = vpack.c.bf16 %v8385, %v8380
    %v8401 = vpack.c.bf16 %v8386, %v8381
    %v8402 = vpack.c.bf16 %v8387, %v8382
    %v8403 = vpack.c.bf16 %v8393, %v8388
    %v8404 = vpack.c.bf16 %v8394, %v8389
    %v8405 = vpack.c.bf16 %v8395, %v8390
    %v8406 = vpack.c.bf16 %v8396, %v8391
    %v8407 = vpack.c.bf16 %v8397, %v8392
    %v8409 = vsel %vm28, %v8402, 0
    %v8412 = vsel %vm28, %v8407, 0
    %8414 = vmatprep.subr.bf16.mxu0 0
    %8415 = vmatpush1.bf16.msra.mxu0 %v7741
    %8416 = vmatprep.subr.bf16.mxu0 0
    %8417 = vmatpush1.bf16.msra.mxu0 %v7740
    %8418 = vmatprep.subr.bf16.mxu0 0
    %8419 = vmatpush1.bf16.msra.mxu0 %v7739
    %8420 = vmatprep.subr.bf16.mxu0 0
    %8421 = vmatpush1.bf16.msra.mxu0 %v7738
    %8422 = vmatprep.subr.bf16.mxu0 0
    %8423 = vmatpush1.bf16.msra.mxu0 %v7737
    %8424 = vmatprep.subr.bf16.mxu0 0
    %8425 = vmatpush1.bf16.msra.mxu0 %v7736
    %8426 = vmatprep.subr.bf16.mxu0 0
    %8427 = vmatpush1.bf16.msra.mxu0 %v7735
    %8428 = vmatprep.subr.bf16.mxu0 0
    %8429 = vmatpush1.bf16.msra.mxu0 %v7734
    %8430 = vmatprep.subr.bf16.mxu0 0
    %8431 = vmatpush2.bf16.msra.mxu0 %v7749
    %8432 = vmatprep.subr.bf16.mxu0 0
    %8433 = vmatpush2.bf16.msra.mxu0 %v7748
    %8434 = vmatprep.subr.bf16.mxu0 0
    %8435 = vmatpush2.bf16.msra.mxu0 %v7747
    %8436 = vmatprep.subr.bf16.mxu0 0
    %8437 = vmatpush2.bf16.msra.mxu0 %v7746
    %8438 = vmatprep.subr.bf16.mxu0 0
    %8439 = vmatpush2.bf16.msra.mxu0 %v7745
    %8440 = vmatprep.subr.bf16.mxu0 0
    %8441 = vmatpush2.bf16.msra.mxu0 %v7744
    %8442 = vmatprep.subr.bf16.mxu0 0
    %8443 = vmatpush2.bf16.msra.mxu0 %v7743
    %8444 = vmatprep.subr.bf16.mxu0 0
    %8445 = vmatpush2.bf16.msra.mxu0 %v7742
    %8446 = vmatprep.mubr.bf16.mxu0 %v8399
    %8447 = vmatmul.mubr.bf16.gmra.mxu0 %v8398
    %v8448 = vpop.f32.mrf.mxu0
    %v8449 = vadd.f32 0.0, %v8448
    %v8450 = vpop.f32.mrf.mxu0
    %v8451 = vpop.f32.mrf.mxu0
    %v8452 = vadd.f32 0.0, %v8451
    %v8453 = vpop.f32.mrf.mxu0
    %8454 = vmatprep.mubr.bf16.mxu0 %v8404
    %8455 = vmatmul.mubr.bf16.gmra.mxu0 %v8403
    %v8456 = vpop.f32.mrf.mxu0
    %v8457 = vadd.f32 0.0, %v8456
    %v8458 = vpop.f32.mrf.mxu0
    %v8459 = vpop.f32.mrf.mxu0
    %v8460 = vadd.f32 0.0, %v8459
    %v8461 = vpop.f32.mrf.mxu0
    %8462 = vdwg.mxu0
    %8463 = vmatprep.subr.bf16.mxu0 0
    %8464 = vmatpush1.bf16.msra.mxu0 %v7757
    %8465 = vmatprep.subr.bf16.mxu0 0
    %8466 = vmatpush1.bf16.msra.mxu0 %v7756
    %8467 = vmatprep.subr.bf16.mxu0 0
    %8468 = vmatpush1.bf16.msra.mxu0 %v7755
    %8469 = vmatprep.subr.bf16.mxu0 0
    %8470 = vmatpush1.bf16.msra.mxu0 %v7754
    %8471 = vmatprep.subr.bf16.mxu0 0
    %8472 = vmatpush1.bf16.msra.mxu0 %v7753
    %8473 = vmatprep.subr.bf16.mxu0 0
    %8474 = vmatpush1.bf16.msra.mxu0 %v7752
    %8475 = vmatprep.subr.bf16.mxu0 0
    %8476 = vmatpush1.bf16.msra.mxu0 %v7751
    %8477 = vmatprep.subr.bf16.mxu0 0
    %8478 = vmatpush1.bf16.msra.mxu0 %v7750
    %8479 = vmatprep.subr.bf16.mxu0 0
    %8480 = vmatpush2.bf16.msra.mxu0 %v7765
    %8481 = vmatprep.subr.bf16.mxu0 0
    %8482 = vmatpush2.bf16.msra.mxu0 %v7764
    %8483 = vmatprep.subr.bf16.mxu0 0
    %8484 = vmatpush2.bf16.msra.mxu0 %v7763
    %8485 = vmatprep.subr.bf16.mxu0 0
    %8486 = vmatpush2.bf16.msra.mxu0 %v7762
    %8487 = vmatprep.subr.bf16.mxu0 0
    %8488 = vmatpush2.bf16.msra.mxu0 %v7761
    %8489 = vmatprep.subr.bf16.mxu0 0
    %8490 = vmatpush2.bf16.msra.mxu0 %v7760
    %8491 = vmatprep.subr.bf16.mxu0 0
    %8492 = vmatpush2.bf16.msra.mxu0 %v7759
    %8493 = vmatprep.subr.bf16.mxu0 0
    %8494 = vmatpush2.bf16.msra.mxu0 %v7758
    %8495 = vmatprep.mubr.bf16.mxu0 %v8401
    %8496 = vmatmul.mubr.bf16.gmra.mxu0 %v8400
    %v8497 = vpop.f32.mrf.mxu0
    %v8498 = vadd.f32 %v8449, %v8497
    %v8499 = vpop.f32.mrf.mxu0
    %v8500 = vpop.f32.mrf.mxu0
    %v8501 = vadd.f32 %v8452, %v8500
    %v8502 = vpop.f32.mrf.mxu0
    %8503 = vmatprep.mubr.bf16.mxu0 %v8406
    %8504 = vmatmul.mubr.bf16.gmra.mxu0 %v8405
    %v8505 = vpop.f32.mrf.mxu0
    %v8506 = vadd.f32 %v8457, %v8505
    %v8507 = vpop.f32.mrf.mxu0
    %v8508 = vpop.f32.mrf.mxu0
    %v8509 = vadd.f32 %v8460, %v8508
    %v8510 = vpop.f32.mrf.mxu0
    %8511 = vdwg.mxu0
    %8512 = vmatprep.subr.bf16.mxu0 0
    %8513 = vmatpush1.bf16.msra.mxu0 0
    %8514 = vmatprep.subr.bf16.mxu0 0
    %8515 = vmatpush1.bf16.msra.mxu0 0
    %8516 = vmatprep.subr.bf16.mxu0 0
    %8517 = vmatpush1.bf16.msra.mxu0 0
    %8518 = vmatprep.subr.bf16.mxu0 0
    %8519 = vmatpush1.bf16.msra.mxu0 0
    %8520 = vmatprep.subr.bf16.mxu0 0
    %8521 = vmatpush1.bf16.msra.mxu0 %v7769
    %8522 = vmatprep.subr.bf16.mxu0 0
    %8523 = vmatpush1.bf16.msra.mxu0 %v7768
    %8524 = vmatprep.subr.bf16.mxu0 0
    %8525 = vmatpush1.bf16.msra.mxu0 %v7767
    %8526 = vmatprep.subr.bf16.mxu0 0
    %8527 = vmatpush1.bf16.msra.mxu0 %v7766
    %8528 = vmatprep.subr.bf16.mxu0 0
    %8529 = vmatpush2.bf16.msra.mxu0 0
    %8530 = vmatprep.subr.bf16.mxu0 0
    %8531 = vmatpush2.bf16.msra.mxu0 0
    %8532 = vmatprep.subr.bf16.mxu0 0
    %8533 = vmatpush2.bf16.msra.mxu0 0
    %8534 = vmatprep.subr.bf16.mxu0 0
    %8535 = vmatpush2.bf16.msra.mxu0 0
    %8536 = vmatprep.subr.bf16.mxu0 0
    %8537 = vmatpush2.bf16.msra.mxu0 0
    %8538 = vmatprep.subr.bf16.mxu0 0
    %8539 = vmatpush2.bf16.msra.mxu0 0
    %8540 = vmatprep.subr.bf16.mxu0 0
    %8541 = vmatpush2.bf16.msra.mxu0 0
    %8542 = vmatprep.subr.bf16.mxu0 0
    %8543 = vmatpush2.bf16.msra.mxu0 0
    %8544 = vmatprep.mubr.bf16.mxu0 0
    %8545 = vmatmul.mubr.bf16.gmra.mxu0 %v8409
    %v8546 = vpop.f32.mrf.mxu0
    %v8547 = vadd.f32 %v8498, %v8546
    %v8548 = vpop.f32.mrf.mxu0
    %v8549 = vpop.f32.mrf.mxu0
    %v8550 = vadd.f32 %v8501, %v8549
    %v8551 = vpop.f32.mrf.mxu0
    %8552 = vmatprep.mubr.bf16.mxu0 0
    %8553 = vmatmul.mubr.bf16.gmra.mxu0 %v8412
    %v8554 = vpop.f32.mrf.mxu0
    %v8555 = vadd.f32 %v8506, %v8554
    %v8556 = vpop.f32.mrf.mxu0
    %v8557 = vpop.f32.mrf.mxu0
    %v8558 = vadd.f32 %v8509, %v8557
    %v8559 = vpop.f32.mrf.mxu0
    %8560 = vdwg.mxu0
    %8561 = vst.msk [vmem:[#allocation7 + $0x40] sm:$0xff] %vm7959, %v8547
    %8562 = vst.msk [vmem:[#allocation7 + $0x48] sm:$0xff] %vm7959, %v8550
    %8563 = vst.msk [vmem:[#allocation7 + $0x50] sm:$0xff] %vm7959, %v8555
    %8564 = vst.msk [vmem:[#allocation7 + $0x58] sm:$0xff] %vm7959, %v8558
    %v8565 = vadd.s32 %v3932, 64
    %v8566 = vadd.s32 %v3933, 64
    %v8567 = vadd.s32 %v3934, 64
    %vm8568 = vcmp.lt.s32.totalorder %v3939, 0
    %v8569 = vsub.s32 0, %v3939
    %v8570 = vsel %vm8568, %v8569, %v3939
    %v8571 = vmul.u32.u64.compose %v8570, 3435973837
    %v8572 = vextract.low.u32 %v8571
    %v8573 = vextract.high.u32 %v8571
    %v8574 = vshrl.u32 %v8573, 3
    %v8575 = vmul.u32 %v8574, 10
    %v8576 = vsub.s32 %v8570, %v8575
    %v8577 = vsub.s32 0, %v8576
    %v8578 = vsel %vm8568, %v8577, %v8576
    %vm8579 = vcmp.lt.s32.totalorder %v8565, 0
    %v8580 = vsub.s32 0, %v8565
    %v8581 = vsel %vm8579, %v8580, %v8565
    %v8582 = vmul.u32.u64.compose %v8581, 3435973837
    %v8583 = vextract.low.u32 %v8582
    %v8584 = vextract.high.u32 %v8582
    %v8585 = vshrl.u32 %v8584, 3
    %v8586 = vmul.u32 %v8585, 10
    %v8587 = vsub.s32 %v8581, %v8586
    %v8588 = vsub.s32 0, %v8587
    %v8589 = vsel %vm8579, %v8588, %v8587
    %vm8590 = vcmp.lt.s32.totalorder %v8566, 0
    %v8591 = vsub.s32 0, %v8566
    %v8592 = vsel %vm8590, %v8591, %v8566
    %v8593 = vmul.u32.u64.compose %v8592, 3435973837
    %v8594 = vextract.low.u32 %v8593
    %v8595 = vextract.high.u32 %v8593
    %v8596 = vshrl.u32 %v8595, 3
    %v8597 = vmul.u32 %v8596, 10
    %v8598 = vsub.s32 %v8592, %v8597
    %v8599 = vsub.s32 0, %v8598
    %v8600 = vsel %vm8590, %v8599, %v8598
    %vm8601 = vcmp.lt.s32.totalorder %v8567, 0
    %v8602 = vsub.s32 0, %v8567
    %v8603 = vsel %vm8601, %v8602, %v8567
    %v8604 = vmul.u32.u64.compose %v8603, 3435973837
    %v8605 = vextract.low.u32 %v8604
    %v8606 = vextract.high.u32 %v8604
    %v8607 = vshrl.u32 %v8606, 3
    %v8608 = vmul.u32 %v8607, 10
    %v8609 = vsub.s32 %v8603, %v8608
    %v8610 = vsub.s32 0, %v8609
    %v8611 = vsel %vm8601, %v8610, %v8609
    %vm8612 = vcmp.ne.s32.totalorder %v8578, 0
    %vm8613 = vcmp.ne.s32.totalorder %v8589, 0
    %vm8614 = vcmp.ne.s32.totalorder %v8600, 0
    %vm8615 = vcmp.ne.s32.totalorder %v8611, 0
    %vm8616 = vcmp.lt.s32.totalorder %v8578, 0
    %vm8617 = vcmp.lt.s32.totalorder %v8589, 0
    %vm8618 = vcmp.lt.s32.totalorder %v8600, 0
    %vm8619 = vcmp.lt.s32.totalorder %v8611, 0
    %vm8620 = vmand %vm8616, %vm8612
    %vm8621 = vmand %vm8617, %vm8613
    %vm8622 = vmand %vm8618, %vm8614
    %vm8623 = vmand %vm8619, %vm8615
    %v8624 = vadd.s32 %v8578, 10
    %v8625 = vadd.s32 %v8589, 10
    %v8626 = vadd.s32 %v8600, 10
    %v8627 = vadd.s32 %v8611, 10
    %v8628 = vsel %vm8620, %v8624, %v8578
    %v8629 = vsel %vm8621, %v8625, %v8589
    %v8630 = vsel %vm8622, %v8626, %v8600
    %v8631 = vsel %vm8623, %v8627, %v8611
    %vm8632 = vcmp.lt.s32.totalorder %v8628, 8
    %vm8633 = vcmp.lt.s32.totalorder %v8629, 8
    %vm8634 = vcmp.lt.s32.totalorder %v8630, 8
    %vm8635 = vcmp.lt.s32.totalorder %v8631, 8
    %v8636 = vsel %vm8632, 1, 0
    %v8637 = vsel %vm8633, 1, 0
    %v8638 = vsel %vm8634, 1, 0
    %v8639 = vsel %vm8635, 1, 0
    %vm8640 = vcmp.eq.s32.totalorder %v8636, 1
    %vm8641 = vcmp.eq.s32.totalorder %v8637, 1
    %vm8642 = vcmp.eq.s32.totalorder %v8638, 1
    %vm8643 = vcmp.eq.s32.totalorder %v8639, 1
    %v8644 = vsel %vm8640, %v8547, 0.0
    %v8645 = vsel %vm8641, %v8550, 0.0
    %v8646 = vsel %vm8642, %v8555, 0.0
    %v8647 = vsel %vm8643, %v8558, 0.0
    %v8648 = vsel %vm7959, %v8644, 0.0
    %v8649 = vsel %vm7959, %v8645, 0.0
    %v8650 = vadd.f32 %v8648, %v8649
    %v8651 = vsel %vm7959, %v8646, 0.0
    %v8652 = vadd.f32 %v8650, %v8651
    %v8653 = vsel %vm7959, %v8647, 0.0
    %v8654 = vadd.f32 %v8652, %v8653
    %v8655 = vrot.slane %v8654, 4
    %v8656 = vadd.f32 %v8654, %v8655
    %v8657 = vrot.slane %v8656, 2
    %v8658 = vadd.f32 %v8656, %v8657
    %v8659 = vrot.slane %v8658, 1
    %v8660 = vadd.f32 %v8658, %v8659
    %v8661 = vadd.f32 %v8359, %v8660
    %v8662 = vmul.f32 %v8644, %v8547
    %v8663 = vmul.f32 %v8645, %v8550
    %v8664 = vmul.f32 %v8646, %v8555
    %v8665 = vmul.f32 %v8647, %v8558
    %v8666 = vsel %vm7959, %v8662, 0.0
    %v8667 = vsel %vm7959, %v8663, 0.0
    %v8668 = vadd.f32 %v8666, %v8667
    %v8669 = vsel %vm7959, %v8664, 0.0
    %v8670 = vadd.f32 %v8668, %v8669
    %v8671 = vsel %vm7959, %v8665, 0.0
    %v8672 = vadd.f32 %v8670, %v8671
    %v8673 = vrot.slane %v8672, 4
    %v8674 = vadd.f32 %v8672, %v8673
    %v8675 = vrot.slane %v8674, 2
    %v8676 = vadd.f32 %v8674, %v8675
    %v8677 = vrot.slane %v8676, 1
    %v8678 = vadd.f32 %v8676, %v8677
    %v8679 = vadd.f32 %v8377, %v8678
    %v8680 = vld [vmem:[#allocation6 + $0x1e0] sm:$0xff]
    %v8681 = vld [vmem:[#allocation6 + $0x1e8] sm:$0xff]
    %v8682 = vld [vmem:[#allocation6 + $0x1f0] sm:$0xff]
    %v8683 = vld [vmem:[#allocation6 + $0x1f8] sm:$0xff]
    %v8684 = vld [vmem:[#allocation6 + $0x200] sm:$0xff]
    %v8685 = vld [vmem:[#allocation6 + $0x208] sm:$0xff]
    %v8686 = vld [vmem:[#allocation6 + $0x210] sm:$0xff]
    %v8687 = vld [vmem:[#allocation6 + $0x218] sm:$0xff]
    %v8688 = vld [vmem:[#allocation6 + $0x220] sm:$0xff]
    %v8689 = vld [vmem:[#allocation6 + $0x228] sm:$0xff]
    %v8690 = vld [vmem:[#allocation6 + $0x230] sm:$0xff]
    %v8691 = vld [vmem:[#allocation6 + $0x238] sm:$0xff]
    %v8692 = vld [vmem:[#allocation6 + $0x240] sm:$0xff]
    %v8693 = vld [vmem:[#allocation6 + $0x248] sm:$0xff]
    %v8694 = vld [vmem:[#allocation6 + $0x250] sm:$0xff]
    %v8695 = vld [vmem:[#allocation6 + $0x258] sm:$0xff]
    %v8696 = vld [vmem:[#allocation6 + $0x260] sm:$0xff]
    %v8697 = vld [vmem:[#allocation6 + $0x268] sm:$0xff]
    %v8698 = vld [vmem:[#allocation6 + $0x270] sm:$0xff]
    %v8699 = vld [vmem:[#allocation6 + $0x278] sm:$0xff]
    %v8700 = vpack.c.bf16 %v8685, %v8680
    %v8701 = vpack.c.bf16 %v8686, %v8681
    %v8702 = vpack.c.bf16 %v8687, %v8682
    %v8703 = vpack.c.bf16 %v8688, %v8683
    %v8704 = vpack.c.bf16 %v8689, %v8684
    %v8705 = vpack.c.bf16 %v8695, %v8690
    %v8706 = vpack.c.bf16 %v8696, %v8691
    %v8707 = vpack.c.bf16 %v8697, %v8692
    %v8708 = vpack.c.bf16 %v8698, %v8693
    %v8709 = vpack.c.bf16 %v8699, %v8694
    %v8711 = vsel %vm28, %v8704, 0
    %v8714 = vsel %vm28, %v8709, 0
    %8716 = vmatprep.subr.bf16.mxu0 0
    %8717 = vmatpush1.bf16.msra.mxu0 %v7741
    %8718 = vmatprep.subr.bf16.mxu0 0
    %8719 = vmatpush1.bf16.msra.mxu0 %v7740
    %8720 = vmatprep.subr.bf16.mxu0 0
    %8721 = vmatpush1.bf16.msra.mxu0 %v7739
    %8722 = vmatprep.subr.bf16.mxu0 0
    %8723 = vmatpush1.bf16.msra.mxu0 %v7738
    %8724 = vmatprep.subr.bf16.mxu0 0
    %8725 = vmatpush1.bf16.msra.mxu0 %v7737
    %8726 = vmatprep.subr.bf16.mxu0 0
    %8727 = vmatpush1.bf16.msra.mxu0 %v7736
    %8728 = vmatprep.subr.bf16.mxu0 0
    %8729 = vmatpush1.bf16.msra.mxu0 %v7735
    %8730 = vmatprep.subr.bf16.mxu0 0
    %8731 = vmatpush1.bf16.msra.mxu0 %v7734
    %8732 = vmatprep.subr.bf16.mxu0 0
    %8733 = vmatpush2.bf16.msra.mxu0 %v7749
    %8734 = vmatprep.subr.bf16.mxu0 0
    %8735 = vmatpush2.bf16.msra.mxu0 %v7748
    %8736 = vmatprep.subr.bf16.mxu0 0
    %8737 = vmatpush2.bf16.msra.mxu0 %v7747
    %8738 = vmatprep.subr.bf16.mxu0 0
    %8739 = vmatpush2.bf16.msra.mxu0 %v7746
    %8740 = vmatprep.subr.bf16.mxu0 0
    %8741 = vmatpush2.bf16.msra.mxu0 %v7745
    %8742 = vmatprep.subr.bf16.mxu0 0
    %8743 = vmatpush2.bf16.msra.mxu0 %v7744
    %8744 = vmatprep.subr.bf16.mxu0 0
    %8745 = vmatpush2.bf16.msra.mxu0 %v7743
    %8746 = vmatprep.subr.bf16.mxu0 0
    %8747 = vmatpush2.bf16.msra.mxu0 %v7742
    %8748 = vmatprep.mubr.bf16.mxu0 %v8701
    %8749 = vmatmul.mubr.bf16.gmra.mxu0 %v8700
    %v8750 = vpop.f32.mrf.mxu0
    %v8751 = vadd.f32 0.0, %v8750
    %v8752 = vpop.f32.mrf.mxu0
    %v8753 = vpop.f32.mrf.mxu0
    %v8754 = vadd.f32 0.0, %v8753
    %v8755 = vpop.f32.mrf.mxu0
    %8756 = vmatprep.mubr.bf16.mxu0 %v8706
    %8757 = vmatmul.mubr.bf16.gmra.mxu0 %v8705
    %v8758 = vpop.f32.mrf.mxu0
    %v8759 = vadd.f32 0.0, %v8758
    %v8760 = vpop.f32.mrf.mxu0
    %v8761 = vpop.f32.mrf.mxu0
    %v8762 = vadd.f32 0.0, %v8761
    %v8763 = vpop.f32.mrf.mxu0
    %8764 = vdwg.mxu0
    %8765 = vmatprep.subr.bf16.mxu0 0
    %8766 = vmatpush1.bf16.msra.mxu0 %v7757
    %8767 = vmatprep.subr.bf16.mxu0 0
    %8768 = vmatpush1.bf16.msra.mxu0 %v7756
    %8769 = vmatprep.subr.bf16.mxu0 0
    %8770 = vmatpush1.bf16.msra.mxu0 %v7755
    %8771 = vmatprep.subr.bf16.mxu0 0
    %8772 = vmatpush1.bf16.msra.mxu0 %v7754
    %8773 = vmatprep.subr.bf16.mxu0 0
    %8774 = vmatpush1.bf16.msra.mxu0 %v7753
    %8775 = vmatprep.subr.bf16.mxu0 0
    %8776 = vmatpush1.bf16.msra.mxu0 %v7752
    %8777 = vmatprep.subr.bf16.mxu0 0
    %8778 = vmatpush1.bf16.msra.mxu0 %v7751
    %8779 = vmatprep.subr.bf16.mxu0 0
    %8780 = vmatpush1.bf16.msra.mxu0 %v7750
    %8781 = vmatprep.subr.bf16.mxu0 0
    %8782 = vmatpush2.bf16.msra.mxu0 %v7765
    %8783 = vmatprep.subr.bf16.mxu0 0
    %8784 = vmatpush2.bf16.msra.mxu0 %v7764
    %8785 = vmatprep.subr.bf16.mxu0 0
    %8786 = vmatpush2.bf16.msra.mxu0 %v7763
    %8787 = vmatprep.subr.bf16.mxu0 0
    %8788 = vmatpush2.bf16.msra.mxu0 %v7762
    %8789 = vmatprep.subr.bf16.mxu0 0
    %8790 = vmatpush2.bf16.msra.mxu0 %v7761
    %8791 = vmatprep.subr.bf16.mxu0 0
    %8792 = vmatpush2.bf16.msra.mxu0 %v7760
    %8793 = vmatprep.subr.bf16.mxu0 0
    %8794 = vmatpush2.bf16.msra.mxu0 %v7759
    %8795 = vmatprep.subr.bf16.mxu0 0
    %8796 = vmatpush2.bf16.msra.mxu0 %v7758
    %8797 = vmatprep.mubr.bf16.mxu0 %v8703
    %8798 = vmatmul.mubr.bf16.gmra.mxu0 %v8702
    %v8799 = vpop.f32.mrf.mxu0
    %v8800 = vadd.f32 %v8751, %v8799
    %v8801 = vpop.f32.mrf.mxu0
    %v8802 = vpop.f32.mrf.mxu0
    %v8803 = vadd.f32 %v8754, %v8802
    %v8804 = vpop.f32.mrf.mxu0
    %8805 = vmatprep.mubr.bf16.mxu0 %v8708
    %8806 = vmatmul.mubr.bf16.gmra.mxu0 %v8707
    %v8807 = vpop.f32.mrf.mxu0
    %v8808 = vadd.f32 %v8759, %v8807
    %v8809 = vpop.f32.mrf.mxu0
    %v8810 = vpop.f32.mrf.mxu0
    %v8811 = vadd.f32 %v8762, %v8810
    %v8812 = vpop.f32.mrf.mxu0
    %8813 = vdwg.mxu0
    %8814 = vmatprep.subr.bf16.mxu0 0
    %8815 = vmatpush1.bf16.msra.mxu0 0
    %8816 = vmatprep.subr.bf16.mxu0 0
    %8817 = vmatpush1.bf16.msra.mxu0 0
    %8818 = vmatprep.subr.bf16.mxu0 0
    %8819 = vmatpush1.bf16.msra.mxu0 0
    %8820 = vmatprep.subr.bf16.mxu0 0
    %8821 = vmatpush1.bf16.msra.mxu0 0
    %8822 = vmatprep.subr.bf16.mxu0 0
    %8823 = vmatpush1.bf16.msra.mxu0 %v7769
    %8824 = vmatprep.subr.bf16.mxu0 0
    %8825 = vmatpush1.bf16.msra.mxu0 %v7768
    %8826 = vmatprep.subr.bf16.mxu0 0
    %8827 = vmatpush1.bf16.msra.mxu0 %v7767
    %8828 = vmatprep.subr.bf16.mxu0 0
    %8829 = vmatpush1.bf16.msra.mxu0 %v7766
    %8830 = vmatprep.subr.bf16.mxu0 0
    %8831 = vmatpush2.bf16.msra.mxu0 0
    %8832 = vmatprep.subr.bf16.mxu0 0
    %8833 = vmatpush2.bf16.msra.mxu0 0
    %8834 = vmatprep.subr.bf16.mxu0 0
    %8835 = vmatpush2.bf16.msra.mxu0 0
    %8836 = vmatprep.subr.bf16.mxu0 0
    %8837 = vmatpush2.bf16.msra.mxu0 0
    %8838 = vmatprep.subr.bf16.mxu0 0
    %8839 = vmatpush2.bf16.msra.mxu0 0
    %8840 = vmatprep.subr.bf16.mxu0 0
    %8841 = vmatpush2.bf16.msra.mxu0 0
    %8842 = vmatprep.subr.bf16.mxu0 0
    %8843 = vmatpush2.bf16.msra.mxu0 0
    %8844 = vmatprep.subr.bf16.mxu0 0
    %8845 = vmatpush2.bf16.msra.mxu0 0
    %8846 = vmatprep.mubr.bf16.mxu0 0
    %8847 = vmatmul.mubr.bf16.gmra.mxu0 %v8711
    %v8848 = vpop.f32.mrf.mxu0
    %v8849 = vadd.f32 %v8800, %v8848
    %v8850 = vpop.f32.mrf.mxu0
    %v8851 = vpop.f32.mrf.mxu0
    %v8852 = vadd.f32 %v8803, %v8851
    %v8853 = vpop.f32.mrf.mxu0
    %8854 = vmatprep.mubr.bf16.mxu0 0
    %8855 = vmatmul.mubr.bf16.gmra.mxu0 %v8714
    %v8856 = vpop.f32.mrf.mxu0
    %v8857 = vadd.f32 %v8808, %v8856
    %v8858 = vpop.f32.mrf.mxu0
    %v8859 = vpop.f32.mrf.mxu0
    %v8860 = vadd.f32 %v8811, %v8859
    %v8861 = vpop.f32.mrf.mxu0
    %8862 = vdwg.mxu0
    %8863 = vst.msk [vmem:[#allocation7 + $0x60] sm:$0xff] %vm7959, %v8849
    %8864 = vst.msk [vmem:[#allocation7 + $0x68] sm:$0xff] %vm7959, %v8852
    %8865 = vst.msk [vmem:[#allocation7 + $0x70] sm:$0xff] %vm7959, %v8857
    %8866 = vst.msk [vmem:[#allocation7 + $0x78] sm:$0xff] %vm7959, %v8860
    %v8867 = vadd.s32 %v3932, 96
    %v8868 = vadd.s32 %v3933, 96
    %v8869 = vadd.s32 %v3934, 96
    %vm8870 = vcmp.lt.s32.totalorder %v3943, 0
    %v8871 = vsub.s32 0, %v3943
    %v8872 = vsel %vm8870, %v8871, %v3943
    %v8873 = vmul.u32.u64.compose %v8872, 3435973837
    %v8874 = vextract.low.u32 %v8873
    %v8875 = vextract.high.u32 %v8873
    %v8876 = vshrl.u32 %v8875, 3
    %v8877 = vmul.u32 %v8876, 10
    %v8878 = vsub.s32 %v8872, %v8877
    %v8879 = vsub.s32 0, %v8878
    %v8880 = vsel %vm8870, %v8879, %v8878
    %vm8881 = vcmp.lt.s32.totalorder %v8867, 0
    %v8882 = vsub.s32 0, %v8867
    %v8883 = vsel %vm8881, %v8882, %v8867
    %v8884 = vmul.u32.u64.compose %v8883, 3435973837
    %v8885 = vextract.low.u32 %v8884
    %v8886 = vextract.high.u32 %v8884
    %v8887 = vshrl.u32 %v8886, 3
    %v8888 = vmul.u32 %v8887, 10
    %v8889 = vsub.s32 %v8883, %v8888
    %v8890 = vsub.s32 0, %v8889
    %v8891 = vsel %vm8881, %v8890, %v8889
    %vm8892 = vcmp.lt.s32.totalorder %v8868, 0
    %v8893 = vsub.s32 0, %v8868
    %v8894 = vsel %vm8892, %v8893, %v8868
    %v8895 = vmul.u32.u64.compose %v8894, 3435973837
    %v8896 = vextract.low.u32 %v8895
    %v8897 = vextract.high.u32 %v8895
    %v8898 = vshrl.u32 %v8897, 3
    %v8899 = vmul.u32 %v8898, 10
    %v8900 = vsub.s32 %v8894, %v8899
    %v8901 = vsub.s32 0, %v8900
    %v8902 = vsel %vm8892, %v8901, %v8900
    %vm8903 = vcmp.lt.s32.totalorder %v8869, 0
    %v8904 = vsub.s32 0, %v8869
    %v8905 = vsel %vm8903, %v8904, %v8869
    %v8906 = vmul.u32.u64.compose %v8905, 3435973837
    %v8907 = vextract.low.u32 %v8906
    %v8908 = vextract.high.u32 %v8906
    %v8909 = vshrl.u32 %v8908, 3
    %v8910 = vmul.u32 %v8909, 10
    %v8911 = vsub.s32 %v8905, %v8910
    %v8912 = vsub.s32 0, %v8911
    %v8913 = vsel %vm8903, %v8912, %v8911
    %vm8914 = vcmp.ne.s32.totalorder %v8880, 0
    %vm8915 = vcmp.ne.s32.totalorder %v8891, 0
    %vm8916 = vcmp.ne.s32.totalorder %v8902, 0
    %vm8917 = vcmp.ne.s32.totalorder %v8913, 0
    %vm8918 = vcmp.lt.s32.totalorder %v8880, 0
    %vm8919 = vcmp.lt.s32.totalorder %v8891, 0
    %vm8920 = vcmp.lt.s32.totalorder %v8902, 0
    %vm8921 = vcmp.lt.s32.totalorder %v8913, 0
    %vm8922 = vmand %vm8918, %vm8914
    %vm8923 = vmand %vm8919, %vm8915
    %vm8924 = vmand %vm8920, %vm8916
    %vm8925 = vmand %vm8921, %vm8917
    %v8926 = vadd.s32 %v8880, 10
    %v8927 = vadd.s32 %v8891, 10
    %v8928 = vadd.s32 %v8902, 10
    %v8929 = vadd.s32 %v8913, 10
    %v8930 = vsel %vm8922, %v8926, %v8880
    %v8931 = vsel %vm8923, %v8927, %v8891
    %v8932 = vsel %vm8924, %v8928, %v8902
    %v8933 = vsel %vm8925, %v8929, %v8913
    %vm8934 = vcmp.lt.s32.totalorder %v8930, 8
    %vm8935 = vcmp.lt.s32.totalorder %v8931, 8
    %vm8936 = vcmp.lt.s32.totalorder %v8932, 8
    %vm8937 = vcmp.lt.s32.totalorder %v8933, 8
    %v8938 = vsel %vm8934, 1, 0
    %v8939 = vsel %vm8935, 1, 0
    %v8940 = vsel %vm8936, 1, 0
    %v8941 = vsel %vm8937, 1, 0
    %vm8942 = vcmp.eq.s32.totalorder %v8938, 1
    %vm8943 = vcmp.eq.s32.totalorder %v8939, 1
    %vm8944 = vcmp.eq.s32.totalorder %v8940, 1
    %vm8945 = vcmp.eq.s32.totalorder %v8941, 1
    %v8946 = vsel %vm8942, %v8849, 0.0
    %v8947 = vsel %vm8943, %v8852, 0.0
    %v8948 = vsel %vm8944, %v8857, 0.0
    %v8949 = vsel %vm8945, %v8860, 0.0
    %v8950 = vsel %vm7959, %v8946, 0.0
    %v8951 = vsel %vm7959, %v8947, 0.0
    %v8952 = vadd.f32 %v8950, %v8951
    %v8953 = vsel %vm7959, %v8948, 0.0
    %v8954 = vadd.f32 %v8952, %v8953
    %v8955 = vsel %vm7959, %v8949, 0.0
    %v8956 = vadd.f32 %v8954, %v8955
    %v8957 = vrot.slane %v8956, 4
    %v8958 = vadd.f32 %v8956, %v8957
    %v8959 = vrot.slane %v8958, 2
    %v8960 = vadd.f32 %v8958, %v8959
    %v8961 = vrot.slane %v8960, 1
    %v8962 = vadd.f32 %v8960, %v8961
    %v8963 = vadd.f32 %v8661, %v8962
    %v8964 = vmul.f32 %v8946, %v8849
    %v8965 = vmul.f32 %v8947, %v8852
    %v8966 = vmul.f32 %v8948, %v8857
    %v8967 = vmul.f32 %v8949, %v8860
    %v8968 = vsel %vm7959, %v8964, 0.0
    %v8969 = vsel %vm7959, %v8965, 0.0
    %v8970 = vadd.f32 %v8968, %v8969
    %v8971 = vsel %vm7959, %v8966, 0.0
    %v8972 = vadd.f32 %v8970, %v8971
    %v8973 = vsel %vm7959, %v8967, 0.0
    %v8974 = vadd.f32 %v8972, %v8973
    %v8975 = vrot.slane %v8974, 4
    %v8976 = vadd.f32 %v8974, %v8975
    %v8977 = vrot.slane %v8976, 2
    %v8978 = vadd.f32 %v8976, %v8977
    %v8979 = vrot.slane %v8978, 1
    %v8980 = vadd.f32 %v8978, %v8979
    %v8981 = vadd.f32 %v8679, %v8980
    %v8982 = vld [vmem:[#allocation6 + $0x280] sm:$0xff]
    %v8983 = vld [vmem:[#allocation6 + $0x288] sm:$0xff]
    %v8984 = vld [vmem:[#allocation6 + $0x290] sm:$0xff]
    %v8985 = vld [vmem:[#allocation6 + $0x298] sm:$0xff]
    %v8986 = vld [vmem:[#allocation6 + $0x2a0] sm:$0xff]
    %v8987 = vld [vmem:[#allocation6 + $0x2a8] sm:$0xff]
    %v8988 = vld [vmem:[#allocation6 + $0x2b0] sm:$0xff]
    %v8989 = vld [vmem:[#allocation6 + $0x2b8] sm:$0xff]
    %v8990 = vld [vmem:[#allocation6 + $0x2c0] sm:$0xff]
    %v8991 = vld [vmem:[#allocation6 + $0x2c8] sm:$0xff]
    %v8992 = vld [vmem:[#allocation6 + $0x2d0] sm:$0xff]
    %v8993 = vld [vmem:[#allocation6 + $0x2d8] sm:$0xff]
    %v8994 = vld [vmem:[#allocation6 + $0x2e0] sm:$0xff]
    %v8995 = vld [vmem:[#allocation6 + $0x2e8] sm:$0xff]
    %v8996 = vld [vmem:[#allocation6 + $0x2f0] sm:$0xff]
    %v8997 = vld [vmem:[#allocation6 + $0x2f8] sm:$0xff]
    %v8998 = vld [vmem:[#allocation6 + $0x300] sm:$0xff]
    %v8999 = vld [vmem:[#allocation6 + $0x308] sm:$0xff]
    %v9000 = vld [vmem:[#allocation6 + $0x310] sm:$0xff]
    %v9001 = vld [vmem:[#allocation6 + $0x318] sm:$0xff]
    %v9002 = vpack.c.bf16 %v8987, %v8982
    %v9003 = vpack.c.bf16 %v8988, %v8983
    %v9004 = vpack.c.bf16 %v8989, %v8984
    %v9005 = vpack.c.bf16 %v8990, %v8985
    %v9006 = vpack.c.bf16 %v8991, %v8986
    %v9007 = vpack.c.bf16 %v8997, %v8992
    %v9008 = vpack.c.bf16 %v8998, %v8993
    %v9009 = vpack.c.bf16 %v8999, %v8994
    %v9010 = vpack.c.bf16 %v9000, %v8995
    %v9011 = vpack.c.bf16 %v9001, %v8996
    %v9013 = vsel %vm28, %v9006, 0
    %v9016 = vsel %vm28, %v9011, 0
    %9018 = vmatprep.subr.bf16.mxu0 0
    %9019 = vmatpush1.bf16.msra.mxu0 %v7741
    %9020 = vmatprep.subr.bf16.mxu0 0
    %9021 = vmatpush1.bf16.msra.mxu0 %v7740
    %9022 = vmatprep.subr.bf16.mxu0 0
    %9023 = vmatpush1.bf16.msra.mxu0 %v7739
    %9024 = vmatprep.subr.bf16.mxu0 0
    %9025 = vmatpush1.bf16.msra.mxu0 %v7738
    %9026 = vmatprep.subr.bf16.mxu0 0
    %9027 = vmatpush1.bf16.msra.mxu0 %v7737
    %9028 = vmatprep.subr.bf16.mxu0 0
    %9029 = vmatpush1.bf16.msra.mxu0 %v7736
    %9030 = vmatprep.subr.bf16.mxu0 0
    %9031 = vmatpush1.bf16.msra.mxu0 %v7735
    %9032 = vmatprep.subr.bf16.mxu0 0
    %9033 = vmatpush1.bf16.msra.mxu0 %v7734
    %9034 = vmatprep.subr.bf16.mxu0 0
    %9035 = vmatpush2.bf16.msra.mxu0 %v7749
    %9036 = vmatprep.subr.bf16.mxu0 0
    %9037 = vmatpush2.bf16.msra.mxu0 %v7748
    %9038 = vmatprep.subr.bf16.mxu0 0
    %9039 = vmatpush2.bf16.msra.mxu0 %v7747
    %9040 = vmatprep.subr.bf16.mxu0 0
    %9041 = vmatpush2.bf16.msra.mxu0 %v7746
    %9042 = vmatprep.subr.bf16.mxu0 0
    %9043 = vmatpush2.bf16.msra.mxu0 %v7745
    %9044 = vmatprep.subr.bf16.mxu0 0
    %9045 = vmatpush2.bf16.msra.mxu0 %v7744
    %9046 = vmatprep.subr.bf16.mxu0 0
    %9047 = vmatpush2.bf16.msra.mxu0 %v7743
    %9048 = vmatprep.subr.bf16.mxu0 0
    %9049 = vmatpush2.bf16.msra.mxu0 %v7742
    %9050 = vmatprep.mubr.bf16.mxu0 %v9003
    %9051 = vmatmul.mubr.bf16.gmra.mxu0 %v9002
    %v9052 = vpop.f32.mrf.mxu0
    %v9053 = vadd.f32 0.0, %v9052
    %v9054 = vpop.f32.mrf.mxu0
    %v9055 = vpop.f32.mrf.mxu0
    %v9056 = vadd.f32 0.0, %v9055
    %v9057 = vpop.f32.mrf.mxu0
    %9058 = vmatprep.mubr.bf16.mxu0 %v9008
    %9059 = vmatmul.mubr.bf16.gmra.mxu0 %v9007
    %v9060 = vpop.f32.mrf.mxu0
    %v9061 = vadd.f32 0.0, %v9060
    %v9062 = vpop.f32.mrf.mxu0
    %v9063 = vpop.f32.mrf.mxu0
    %v9064 = vadd.f32 0.0, %v9063
    %v9065 = vpop.f32.mrf.mxu0
    %9066 = vdwg.mxu0
    %9067 = vmatprep.subr.bf16.mxu0 0
    %9068 = vmatpush1.bf16.msra.mxu0 %v7757
    %9069 = vmatprep.subr.bf16.mxu0 0
    %9070 = vmatpush1.bf16.msra.mxu0 %v7756
    %9071 = vmatprep.subr.bf16.mxu0 0
    %9072 = vmatpush1.bf16.msra.mxu0 %v7755
    %9073 = vmatprep.subr.bf16.mxu0 0
    %9074 = vmatpush1.bf16.msra.mxu0 %v7754
    %9075 = vmatprep.subr.bf16.mxu0 0
    %9076 = vmatpush1.bf16.msra.mxu0 %v7753
    %9077 = vmatprep.subr.bf16.mxu0 0
    %9078 = vmatpush1.bf16.msra.mxu0 %v7752
    %9079 = vmatprep.subr.bf16.mxu0 0
    %9080 = vmatpush1.bf16.msra.mxu0 %v7751
    %9081 = vmatprep.subr.bf16.mxu0 0
    %9082 = vmatpush1.bf16.msra.mxu0 %v7750
    %9083 = vmatprep.subr.bf16.mxu0 0
    %9084 = vmatpush2.bf16.msra.mxu0 %v7765
    %9085 = vmatprep.subr.bf16.mxu0 0
    %9086 = vmatpush2.bf16.msra.mxu0 %v7764
    %9087 = vmatprep.subr.bf16.mxu0 0
    %9088 = vmatpush2.bf16.msra.mxu0 %v7763
    %9089 = vmatprep.subr.bf16.mxu0 0
    %9090 = vmatpush2.bf16.msra.mxu0 %v7762
    %9091 = vmatprep.subr.bf16.mxu0 0
    %9092 = vmatpush2.bf16.msra.mxu0 %v7761
    %9093 = vmatprep.subr.bf16.mxu0 0
    %9094 = vmatpush2.bf16.msra.mxu0 %v7760
    %9095 = vmatprep.subr.bf16.mxu0 0
    %9096 = vmatpush2.bf16.msra.mxu0 %v7759
    %9097 = vmatprep.subr.bf16.mxu0 0
    %9098 = vmatpush2.bf16.msra.mxu0 %v7758
    %9099 = vmatprep.mubr.bf16.mxu0 %v9005
    %9100 = vmatmul.mubr.bf16.gmra.mxu0 %v9004
    %v9101 = vpop.f32.mrf.mxu0
    %v9102 = vadd.f32 %v9053, %v9101
    %v9103 = vpop.f32.mrf.mxu0
    %v9104 = vpop.f32.mrf.mxu0
    %v9105 = vadd.f32 %v9056, %v9104
    %v9106 = vpop.f32.mrf.mxu0
    %9107 = vmatprep.mubr.bf16.mxu0 %v9010
    %9108 = vmatmul.mubr.bf16.gmra.mxu0 %v9009
    %v9109 = vpop.f32.mrf.mxu0
    %v9110 = vadd.f32 %v9061, %v9109
    %v9111 = vpop.f32.mrf.mxu0
    %v9112 = vpop.f32.mrf.mxu0
    %v9113 = vadd.f32 %v9064, %v9112
    %v9114 = vpop.f32.mrf.mxu0
    %9115 = vdwg.mxu0
    %9116 = vmatprep.subr.bf16.mxu0 0
    %9117 = vmatpush1.bf16.msra.mxu0 0
    %9118 = vmatprep.subr.bf16.mxu0 0
    %9119 = vmatpush1.bf16.msra.mxu0 0
    %9120 = vmatprep.subr.bf16.mxu0 0
    %9121 = vmatpush1.bf16.msra.mxu0 0
    %9122 = vmatprep.subr.bf16.mxu0 0
    %9123 = vmatpush1.bf16.msra.mxu0 0
    %9124 = vmatprep.subr.bf16.mxu0 0
    %9125 = vmatpush1.bf16.msra.mxu0 %v7769
    %9126 = vmatprep.subr.bf16.mxu0 0
    %9127 = vmatpush1.bf16.msra.mxu0 %v7768
    %9128 = vmatprep.subr.bf16.mxu0 0
    %9129 = vmatpush1.bf16.msra.mxu0 %v7767
    %9130 = vmatprep.subr.bf16.mxu0 0
    %9131 = vmatpush1.bf16.msra.mxu0 %v7766
    %9132 = vmatprep.subr.bf16.mxu0 0
    %9133 = vmatpush2.bf16.msra.mxu0 0
    %9134 = vmatprep.subr.bf16.mxu0 0
    %9135 = vmatpush2.bf16.msra.mxu0 0
    %9136 = vmatprep.subr.bf16.mxu0 0
    %9137 = vmatpush2.bf16.msra.mxu0 0
    %9138 = vmatprep.subr.bf16.mxu0 0
    %9139 = vmatpush2.bf16.msra.mxu0 0
    %9140 = vmatprep.subr.bf16.mxu0 0
    %9141 = vmatpush2.bf16.msra.mxu0 0
    %9142 = vmatprep.subr.bf16.mxu0 0
    %9143 = vmatpush2.bf16.msra.mxu0 0
    %9144 = vmatprep.subr.bf16.mxu0 0
    %9145 = vmatpush2.bf16.msra.mxu0 0
    %9146 = vmatprep.subr.bf16.mxu0 0
    %9147 = vmatpush2.bf16.msra.mxu0 0
    %9148 = vmatprep.mubr.bf16.mxu0 0
    %9149 = vmatmul.mubr.bf16.gmra.mxu0 %v9013
    %v9150 = vpop.f32.mrf.mxu0
    %v9151 = vadd.f32 %v9102, %v9150
    %v9152 = vpop.f32.mrf.mxu0
    %v9153 = vpop.f32.mrf.mxu0
    %v9154 = vadd.f32 %v9105, %v9153
    %v9155 = vpop.f32.mrf.mxu0
    %9156 = vmatprep.mubr.bf16.mxu0 0
    %9157 = vmatmul.mubr.bf16.gmra.mxu0 %v9016
    %v9158 = vpop.f32.mrf.mxu0
    %v9159 = vadd.f32 %v9110, %v9158
    %v9160 = vpop.f32.mrf.mxu0
    %v9161 = vpop.f32.mrf.mxu0
    %v9162 = vadd.f32 %v9113, %v9161
    %v9163 = vpop.f32.mrf.mxu0
    %9164 = vdwg.mxu0
    %9165 = vst.msk [vmem:[#allocation7 + $0x80] sm:$0xff] %vm7959, %v9151
    %9166 = vst.msk [vmem:[#allocation7 + $0x88] sm:$0xff] %vm7959, %v9154
    %9167 = vst.msk [vmem:[#allocation7 + $0x90] sm:$0xff] %vm7959, %v9159
    %9168 = vst.msk [vmem:[#allocation7 + $0x98] sm:$0xff] %vm7959, %v9162
    %v9169 = vadd.s32 %v3932, 128
    %v9170 = vadd.s32 %v3933, 128
    %v9171 = vadd.s32 %v3934, 128
    %vm9172 = vcmp.lt.s32.totalorder %v3947, 0
    %v9173 = vsub.s32 0, %v3947
    %v9174 = vsel %vm9172, %v9173, %v3947
    %v9175 = vmul.u32.u64.compose %v9174, 3435973837
    %v9176 = vextract.low.u32 %v9175
    %v9177 = vextract.high.u32 %v9175
    %v9178 = vshrl.u32 %v9177, 3
    %v9179 = vmul.u32 %v9178, 10
    %v9180 = vsub.s32 %v9174, %v9179
    %v9181 = vsub.s32 0, %v9180
    %v9182 = vsel %vm9172, %v9181, %v9180
    %vm9183 = vcmp.lt.s32.totalorder %v9169, 0
    %v9184 = vsub.s32 0, %v9169
    %v9185 = vsel %vm9183, %v9184, %v9169
    %v9186 = vmul.u32.u64.compose %v9185, 3435973837
    %v9187 = vextract.low.u32 %v9186
    %v9188 = vextract.high.u32 %v9186
    %v9189 = vshrl.u32 %v9188, 3
    %v9190 = vmul.u32 %v9189, 10
    %v9191 = vsub.s32 %v9185, %v9190
    %v9192 = vsub.s32 0, %v9191
    %v9193 = vsel %vm9183, %v9192, %v9191
    %vm9194 = vcmp.lt.s32.totalorder %v9170, 0
    %v9195 = vsub.s32 0, %v9170
    %v9196 = vsel %vm9194, %v9195, %v9170
    %v9197 = vmul.u32.u64.compose %v9196, 3435973837
    %v9198 = vextract.low.u32 %v9197
    %v9199 = vextract.high.u32 %v9197
    %v9200 = vshrl.u32 %v9199, 3
    %v9201 = vmul.u32 %v9200, 10
    %v9202 = vsub.s32 %v9196, %v9201
    %v9203 = vsub.s32 0, %v9202
    %v9204 = vsel %vm9194, %v9203, %v9202
    %vm9205 = vcmp.lt.s32.totalorder %v9171, 0
    %v9206 = vsub.s32 0, %v9171
    %v9207 = vsel %vm9205, %v9206, %v9171
    %v9208 = vmul.u32.u64.compose %v9207, 3435973837
    %v9209 = vextract.low.u32 %v9208
    %v9210 = vextract.high.u32 %v9208
    %v9211 = vshrl.u32 %v9210, 3
    %v9212 = vmul.u32 %v9211, 10
    %v9213 = vsub.s32 %v9207, %v9212
    %v9214 = vsub.s32 0, %v9213
    %v9215 = vsel %vm9205, %v9214, %v9213
    %vm9216 = vcmp.ne.s32.totalorder %v9182, 0
    %vm9217 = vcmp.ne.s32.totalorder %v9193, 0
    %vm9218 = vcmp.ne.s32.totalorder %v9204, 0
    %vm9219 = vcmp.ne.s32.totalorder %v9215, 0
    %vm9220 = vcmp.lt.s32.totalorder %v9182, 0
    %vm9221 = vcmp.lt.s32.totalorder %v9193, 0
    %vm9222 = vcmp.lt.s32.totalorder %v9204, 0
    %vm9223 = vcmp.lt.s32.totalorder %v9215, 0
    %vm9224 = vmand %vm9220, %vm9216
    %vm9225 = vmand %vm9221, %vm9217
    %vm9226 = vmand %vm9222, %vm9218
    %vm9227 = vmand %vm9223, %vm9219
    %v9228 = vadd.s32 %v9182, 10
    %v9229 = vadd.s32 %v9193, 10
    %v9230 = vadd.s32 %v9204, 10
    %v9231 = vadd.s32 %v9215, 10
    %v9232 = vsel %vm9224, %v9228, %v9182
    %v9233 = vsel %vm9225, %v9229, %v9193
    %v9234 = vsel %vm9226, %v9230, %v9204
    %v9235 = vsel %vm9227, %v9231, %v9215
    %vm9236 = vcmp.lt.s32.totalorder %v9232, 8
    %vm9237 = vcmp.lt.s32.totalorder %v9233, 8
    %vm9238 = vcmp.lt.s32.totalorder %v9234, 8
    %vm9239 = vcmp.lt.s32.totalorder %v9235, 8
    %v9240 = vsel %vm9236, 1, 0
    %v9241 = vsel %vm9237, 1, 0
    %v9242 = vsel %vm9238, 1, 0
    %v9243 = vsel %vm9239, 1, 0
    %vm9244 = vcmp.eq.s32.totalorder %v9240, 1
    %vm9245 = vcmp.eq.s32.totalorder %v9241, 1
    %vm9246 = vcmp.eq.s32.totalorder %v9242, 1
    %vm9247 = vcmp.eq.s32.totalorder %v9243, 1
    %v9248 = vsel %vm9244, %v9151, 0.0
    %v9249 = vsel %vm9245, %v9154, 0.0
    %v9250 = vsel %vm9246, %v9159, 0.0
    %v9251 = vsel %vm9247, %v9162, 0.0
    %v9252 = vsel %vm7959, %v9248, 0.0
    %v9253 = vsel %vm7959, %v9249, 0.0
    %v9254 = vadd.f32 %v9252, %v9253
    %v9255 = vsel %vm7959, %v9250, 0.0
    %v9256 = vadd.f32 %v9254, %v9255
    %v9257 = vsel %vm7959, %v9251, 0.0
    %v9258 = vadd.f32 %v9256, %v9257
    %v9259 = vrot.slane %v9258, 4
    %v9260 = vadd.f32 %v9258, %v9259
    %v9261 = vrot.slane %v9260, 2
    %v9262 = vadd.f32 %v9260, %v9261
    %v9263 = vrot.slane %v9262, 1
    %v9264 = vadd.f32 %v9262, %v9263
    %v9265 = vadd.f32 %v8963, %v9264
    %v9266 = vmul.f32 %v9248, %v9151
    %v9267 = vmul.f32 %v9249, %v9154
    %v9268 = vmul.f32 %v9250, %v9159
    %v9269 = vmul.f32 %v9251, %v9162
    %v9270 = vsel %vm7959, %v9266, 0.0
    %v9271 = vsel %vm7959, %v9267, 0.0
    %v9272 = vadd.f32 %v9270, %v9271
    %v9273 = vsel %vm7959, %v9268, 0.0
    %v9274 = vadd.f32 %v9272, %v9273
    %v9275 = vsel %vm7959, %v9269, 0.0
    %v9276 = vadd.f32 %v9274, %v9275
    %v9277 = vrot.slane %v9276, 4
    %v9278 = vadd.f32 %v9276, %v9277
    %v9279 = vrot.slane %v9278, 2
    %v9280 = vadd.f32 %v9278, %v9279
    %v9281 = vrot.slane %v9280, 1
    %v9282 = vadd.f32 %v9280, %v9281
    %v9283 = vadd.f32 %v8981, %v9282
    %v9284 = vmul.f32 %v9265, 0.0078125
    %v9285 = vmul.f32 %v9283, 0.0078125
    %v9286 = vmul.f32 %v9284, %v9284
    %v9287 = vsub.f32 %v9285, %v9286
    %v9288 = vld [vmem:[%s5] sm:$0x1]
    %v9289 = vadd.f32 %v9287, 1e-05
    %v9290 = vrsqrt.pop %v9289
    %v9291 = vmul.f32 %v9288, %v9290
    %v9292 = vld [vmem:[%s6] sm:$0x1]
    %v9293 = vmul.f32 %v9284, %v9291
    %v9294 = vsub.f32 %v9292, %v9293
    %v9295 = vld [vmem:[#allocation7] ss:$2 sm:$0xff]
    %s9296 = scalar_lea.vmem [#allocation7], 16
    %v9297 = vld [vmem:[%s9296] ss:$2 sm:$0xff]
    %s9298 = scalar_lea.vmem [#allocation7], 32
    %v9299 = vld [vmem:[%s9298] ss:$2 sm:$0xff]
    %s9300 = scalar_lea.vmem [#allocation7], 48
    %v9301 = vld [vmem:[%s9300] ss:$2 sm:$0xff]
    %s9302 = scalar_lea.vmem [#allocation7], 64
    %v9303 = vld [vmem:[%s9302] ss:$2 sm:$0xff]
    %s9304 = scalar_lea.vmem [#allocation7], 1
    %v9305 = vld [vmem:[%s9304] ss:$2 sm:$0xff]
    %s9306 = scalar_lea.vmem [#allocation7], 17
    %v9307 = vld [vmem:[%s9306] ss:$2 sm:$0xff]
    %s9308 = scalar_lea.vmem [#allocation7], 33
    %v9309 = vld [vmem:[%s9308] ss:$2 sm:$0xff]
    %s9310 = scalar_lea.vmem [#allocation7], 49
    %v9311 = vld [vmem:[%s9310] ss:$2 sm:$0xff]
    %s9312 = scalar_lea.vmem [#allocation7], 65
    %v9313 = vld [vmem:[%s9312] ss:$2 sm:$0xff]
    %v9315 = vlaneseq
    %v9316 = vshrl.u32 %v9315, 7
    %v9317 = vsub.s32 0, %v9316
    %v9318 = vrot.slane %v9291, %v9317
    %v9320 = vmul.f32 %v9295, %v9318
    %v9321 = vmul.f32 %v9297, %v9318
    %v9322 = vmul.f32 %v9299, %v9318
    %v9323 = vmul.f32 %v9301, %v9318
    %v9324 = vmul.f32 %v9303, %v9318
    %v9326 = vlaneseq
    %v9327 = vshrl.u32 %v9326, 7
    %v9328 = vsub.s32 0, %v9327
    %v9329 = vrot.slane %v9294, %v9328
    %v9331 = vadd.f32 %v9320, %v9329
    %v9332 = vadd.f32 %v9321, %v9329
    %v9333 = vadd.f32 %v9322, %v9329
    %v9334 = vadd.f32 %v9323, %v9329
    %v9335 = vadd.f32 %v9324, %v9329
    %v9336 = vmax.f32 %v9331, 0.0
    %v9337 = vmax.f32 %v9332, 0.0
    %v9338 = vmax.f32 %v9333, 0.0
    %v9339 = vmax.f32 %v9334, 0.0
    %v9340 = vmax.f32 %v9335, 0.0
    %v9341 = vmul.f32 %v9305, %v9318
    %v9342 = vmul.f32 %v9307, %v9318
    %v9343 = vmul.f32 %v9309, %v9318
    %v9344 = vmul.f32 %v9311, %v9318
    %v9345 = vmul.f32 %v9313, %v9318
    %v9346 = vadd.f32 %v9341, %v9329
    %v9347 = vadd.f32 %v9342, %v9329
    %v9348 = vadd.f32 %v9343, %v9329
    %v9349 = vadd.f32 %v9344, %v9329
    %v9350 = vadd.f32 %v9345, %v9329
    %v9351 = vmax.f32 %v9346, 0.0
    %v9352 = vmax.f32 %v9347, 0.0
    %v9353 = vmax.f32 %v9348, 0.0
    %v9354 = vmax.f32 %v9349, 0.0
    %v9355 = vmax.f32 %v9350, 0.0
    %v9356 = vmax.f32 %v9336, %v9351
    %v9357 = vmax.f32 %v9337, %v9352
    %v9358 = vmax.f32 %v9338, %v9353
    %v9359 = vmax.f32 %v9339, %v9354
    %v9360 = vmax.f32 %v9340, %v9355
    %9361 = vst.msk [vmem:[#allocation8] sm:$0xff] %vm7959, %v9356
    %9362 = vst.msk [vmem:[#allocation8 + $0x8] sm:$0xff] %vm7959, %v9357
    %9363 = vst.msk [vmem:[#allocation8 + $0x10] sm:$0xff] %vm7959, %v9358
    %9364 = vst.msk [vmem:[#allocation8 + $0x18] sm:$0xff] %vm7959, %v9359
    %9365 = vst.msk [vmem:[#allocation8 + $0x20] sm:$0xff] %vm7959, %v9360
    %s9366 = scalar_lea.vmem [#allocation7], 80
    %v9367 = vld [vmem:[%s9366] ss:$2 sm:$0xff]
    %s9368 = scalar_lea.vmem [#allocation7], 96
    %v9369 = vld [vmem:[%s9368] ss:$2 sm:$0xff]
    %s9370 = scalar_lea.vmem [#allocation7], 112
    %v9371 = vld [vmem:[%s9370] ss:$2 sm:$0xff]
    %s9372 = scalar_lea.vmem [#allocation7], 128
    %v9373 = vld [vmem:[%s9372] ss:$2 sm:$0xff]
    %s9374 = scalar_lea.vmem [#allocation7], 144
    %v9375 = vld [vmem:[%s9374] ss:$2 sm:$0xff]
    %s9376 = scalar_lea.vmem [#allocation7], 81
    %v9377 = vld [vmem:[%s9376] ss:$2 sm:$0xff]
    %s9378 = scalar_lea.vmem [#allocation7], 97
    %v9379 = vld [vmem:[%s9378] ss:$2 sm:$0xff]
    %s9380 = scalar_lea.vmem [#allocation7], 113
    %v9381 = vld [vmem:[%s9380] ss:$2 sm:$0xff]
    %s9382 = scalar_lea.vmem [#allocation7], 129
    %v9383 = vld [vmem:[%s9382] ss:$2 sm:$0xff]
    %s9384 = scalar_lea.vmem [#allocation7], 145
    %v9385 = vld [vmem:[%s9384] ss:$2 sm:$0xff]
    %v9386 = vmul.f32 %v9367, %v9318
    %v9387 = vmul.f32 %v9369, %v9318
    %v9388 = vmul.f32 %v9371, %v9318
    %v9389 = vmul.f32 %v9373, %v9318
    %v9390 = vmul.f32 %v9375, %v9318
    %v9391 = vadd.f32 %v9386, %v9329
    %v9392 = vadd.f32 %v9387, %v9329
    %v9393 = vadd.f32 %v9388, %v9329
    %v9394 = vadd.f32 %v9389, %v9329
    %v9395 = vadd.f32 %v9390, %v9329
    %v9396 = vmax.f32 %v9391, 0.0
    %v9397 = vmax.f32 %v9392, 0.0
    %v9398 = vmax.f32 %v9393, 0.0
    %v9399 = vmax.f32 %v9394, 0.0
    %v9400 = vmax.f32 %v9395, 0.0
    %v9401 = vmul.f32 %v9377, %v9318
    %v9402 = vmul.f32 %v9379, %v9318
    %v9403 = vmul.f32 %v9381, %v9318
    %v9404 = vmul.f32 %v9383, %v9318
    %v9405 = vmul.f32 %v9385, %v9318
    %v9406 = vadd.f32 %v9401, %v9329
    %v9407 = vadd.f32 %v9402, %v9329
    %v9408 = vadd.f32 %v9403, %v9329
    %v9409 = vadd.f32 %v9404, %v9329
    %v9410 = vadd.f32 %v9405, %v9329
    %v9411 = vmax.f32 %v9406, 0.0
    %v9412 = vmax.f32 %v9407, 0.0
    %v9413 = vmax.f32 %v9408, 0.0
    %v9414 = vmax.f32 %v9409, 0.0
    %v9415 = vmax.f32 %v9410, 0.0
    %v9416 = vmax.f32 %v9396, %v9411
    %v9417 = vmax.f32 %v9397, %v9412
    %v9418 = vmax.f32 %v9398, %v9413
    %v9419 = vmax.f32 %v9399, %v9414
    %v9420 = vmax.f32 %v9400, %v9415
    %9421 = vst.msk [vmem:[#allocation8 + $0x28] sm:$0xff] %vm7959, %v9416
    %9422 = vst.msk [vmem:[#allocation8 + $0x30] sm:$0xff] %vm7959, %v9417
    %9423 = vst.msk [vmem:[#allocation8 + $0x38] sm:$0xff] %vm7959, %v9418
    %9424 = vst.msk [vmem:[#allocation8 + $0x40] sm:$0xff] %vm7959, %v9419
    %9425 = vst.msk [vmem:[#allocation8 + $0x48] sm:$0xff] %vm7959, %v9420
    %v9426 = vld [vmem:[#allocation8] sm:$0x1f]
    %v9427 = vld [vmem:[#allocation8 + $0x5] sm:$0x1f]
    %v9428 = vmax.f32 %v9426, %v9427
    %vm9429 = vcmask 125952
    %9430 = vst.msk [vmem:[#allocation9] sm:$0xf] %vm9429, %v9428
    %v9431 = vld [vmem:[#allocation8 + $0xa] sm:$0x1f]
    %v9432 = vld [vmem:[#allocation8 + $0xf] sm:$0x1f]
    %v9433 = vmax.f32 %v9431, %v9432
    %9434 = vst.msk [vmem:[#allocation9 + $0x4] sm:$0xf] %vm9429, %v9433
    %v9435 = vld [vmem:[#allocation8 + $0x14] sm:$0x1f]
    %v9436 = vld [vmem:[#allocation8 + $0x19] sm:$0x1f]
    %v9437 = vmax.f32 %v9435, %v9436
    %9438 = vst.msk [vmem:[#allocation9 + $0x8] sm:$0xf] %vm9429, %v9437
    %v9439 = vld [vmem:[#allocation8 + $0x1e] sm:$0x1f]
    %v9440 = vld [vmem:[#allocation8 + $0x23] sm:$0x1f]
    %v9441 = vmax.f32 %v9439, %v9440
    %9442 = vst.msk [vmem:[#allocation9 + $0xc] sm:$0xf] %vm9429, %v9441
    %v9443 = vld [vmem:[#allocation8 + $0x28] sm:$0x1f]
    %v9444 = vld [vmem:[#allocation8 + $0x2d] sm:$0x1f]
    %v9445 = vmax.f32 %v9443, %v9444
    %9446 = vst.msk [vmem:[#allocation9 + $0x10] sm:$0xf] %vm9429, %v9445
    %v9447 = vld [vmem:[#allocation8 + $0x32] sm:$0x1f]
    %v9448 = vld [vmem:[#allocation8 + $0x37] sm:$0x1f]
    %v9449 = vmax.f32 %v9447, %v9448
    %9450 = vst.msk [vmem:[#allocation9 + $0x14] sm:$0xf] %vm9429, %v9449
    %v9451 = vld [vmem:[#allocation8 + $0x3c] sm:$0x1f]
    %v9452 = vld [vmem:[#allocation8 + $0x41] sm:$0x1f]
    %v9453 = vmax.f32 %v9451, %v9452
    %9454 = vst.msk [vmem:[#allocation9 + $0x18] sm:$0xf] %vm9429, %v9453
    %v9455 = vld [vmem:[#allocation8 + $0x46] sm:$0x1f]
    %v9456 = vld [vmem:[#allocation8 + $0x4b] sm:$0x1f]
    %v9457 = vmax.f32 %v9455, %v9456
    %9458 = vst.msk [vmem:[#allocation9 + $0x1c] sm:$0xf] %vm9429, %v9457
    // Predicated region
    $region30: #{encode_module_forward.1} parent=1 // pred_check
      _
    $region31: #{encode_module_forward.1} parent=1 // pred_check_branch
      %9460 = sbr.rel (0) target = $region33
    $region32: #{encode_module_forward.1} parent=1 // pred_region
      %s9462 = ssub.s32 512, 512
      %9463 = vsyncadd [#allocation10], %s9462
      %s9464 = sshll.u32 [#allocation9], 4
      %s9465 = int_to_ptr.vmem [resolvable:$true] %s9464
      %9470 = dma.vmem_to_hbm [thread:$0]  %s9465, 512, %s7, [#allocation10], 128, 128, 8
    $region33: #{encode_module_forward.1} parent=1 // pred_fallthru
      _
    // Predicated region
    $region34: #{encode_module_forward.1} parent=1 // pred_check
      _
    $region35: #{encode_module_forward.1} parent=1 // pred_check_branch
      %9472 = sbr.rel (0) target = $region37
    $region36: #{encode_module_forward.1} parent=1 // pred_region
      %9473 = dma.done [#allocation10], 512
    $region37: #{encode_module_forward.1} parent=1 // pred_fallthru
      _
    %9474 = vsyncpa [#allocation10], 1

</llo_original>
